<compile_context>
chip_gen: v7x
topology: tpu7x:2x2x1
jax: 0.10.0
libtpu: 0.0.40
codegen_flags: <defaults>
</compile_context>

<pallas_src>
import functools

import jax
import jax.numpy as jnp
from jax import lax
from jax.experimental import pallas as pl
from jax.experimental.pallas import tpu as pltpu


# --------------------------------------------------------------------- kernel
def _upsample_conv_kernel(x_ref, w_ref, b_ref, o_ref, *, K, Wp, M):
    # x_ref: (1, M_in, Cin)  bf16 — flattened reflect-padded (+upsampled) image,
    #                         row-major with width Wp, plus one trailing zero row.
    # w_ref: (K*K, Cin, TCo) bf16 — tap t = dy*K + dx
    # b_ref: (1, TCo)        f32
    # o_ref: (1, M, TCo)     f32 — dense stride-1 conv rows, width Wp (garbage
    #                         columns w >= Wc are discarded by the wrapper).
    acc = jnp.dot(
        x_ref[0, pl.ds(0, M), :], w_ref[0], preferred_element_type=jnp.float32
    ) + b_ref[...]                                   # bias folded into acc init
    for t in range(1, K * K):
        off = (t // K) * Wp + (t % K)                # static shift per tap
        acc = acc + jnp.dot(
            x_ref[0, pl.ds(off, M), :], w_ref[t],
            preferred_element_type=jnp.float32,
        )
    o_ref[0] = acc.astype(o_ref.dtype)


# -------------------------------------------------------------------- wrapper
@functools.partial(jax.jit, static_argnames=("kernel_size", "stride", "upsample"))
def upsample_conv_layer(x_nchw, weight, bias, *, kernel_size, stride, upsample=None):
    """Forward of UpsampleConvLayer.

    x_nchw : (N, Cin, H, W) f32
    weight : (Cout, Cin, K, K) f32   (PyTorch Conv2d layout)
    bias   : (Cout,) f32
    returns (N, Cout, Hout, Wout) f32
    """
    N, Cin, H, W = x_nchw.shape
    Cout = weight.shape[0]
    K = kernel_size
    P = K // 2
    s_up = upsample if upsample else 1

    x = jnp.transpose(x_nchw, (0, 2, 3, 1))          # NCHW -> NHWC

    Hu, Wu = H * s_up, W * s_up                      # after nearest upsample
    Hp, Wp = Hu + 2 * P, Wu + 2 * P                  # after reflect padding

    # Fused nearest-upsample + reflect-pad as a single gather.
    def src_idx(padded_len, up_len):
        i = jnp.arange(padded_len) - P
        refl = (up_len - 1) - jnp.abs((up_len - 1) - jnp.abs(i))   # reflect (no edge repeat)
        return refl // s_up                                        # nearest upsample
    ridx = src_idx(Hp, Hu)
    cidx = src_idx(Wp, Wu)
    xpad = x[:, ridx][:, :, cidx]                    # (N, Hp, Wp, Cin)

    Hc = Hp - K + 1                                  # dense (stride-1) output rows
    Wc = Wp - K + 1
    M = Hc * Wp                                      # flattened matmul M (valid + wrap cols)

    # Flatten spatial, append one zero row so the largest tap slice stays in bounds,
    # and cast activations to bf16 for the MXU.
    x2d = xpad.reshape(N, Hp * Wp, Cin)
    x2d = jnp.concatenate([x2d, jnp.zeros((N, Wp, Cin), x2d.dtype)], axis=1)
    x2d = x2d.astype(jnp.bfloat16)
    M_in = x2d.shape[1]

    # Weights: (Cout, Cin, K, K) -> (K*K, Cin, Cout), bf16. Bias stays f32.
    wt = jnp.transpose(weight, (2, 3, 1, 0)).reshape(K * K, Cin, Cout)
    wt = wt.astype(jnp.bfloat16)
    bt = bias.reshape(1, Cout).astype(jnp.float32)

    # Output-channel tiling (lane axis): full Cout if it fits a lane tile, else 128.
    TCo = Cout if Cout <= 128 else 128
    assert Cout % TCo == 0, "Cout must be <=128 or a multiple of 128"
    grid = (N, Cout // TCo)

    kernel = functools.partial(_upsample_conv_kernel, K=K, Wp=Wp, M=M)
    out2d = pl.pallas_call(
        kernel,
        out_shape=jax.ShapeDtypeStruct((N, M, Cout), jnp.float32),
        grid=grid,
        in_specs=[
            pl.BlockSpec((1, M_in, Cin), lambda n, c: (n, 0, 0)),
            pl.BlockSpec((K * K, Cin, TCo), lambda n, c: (0, 0, c)),
            pl.BlockSpec((1, TCo), lambda n, c: (0, c)),
        ],
        out_specs=pl.BlockSpec((1, M, TCo), lambda n, c: (n, 0, c)),
        compiler_params=pltpu.CompilerParams(
            dimension_semantics=("parallel", "parallel"),
            vmem_limit_bytes=48 * 1024 * 1024,       # <= v7x 64 MiB physical VMEM
        ),
    )(x2d, wt, bt)

    out = out2d.reshape(N, Hc, Wp, Cout)[:, :, :Wc, :]     # drop wrap-around columns
    if stride > 1:
        out = out[:, ::stride, ::stride, :]
    return jnp.transpose(out, (0, 3, 1, 2))          # NHWC -> NCHW


# ------------------------------------------------------------------ reference
def reference(x_nchw, weight, bias, *, kernel_size, stride, upsample=None):
    """Pure-JAX (XLA) reference mirroring the PyTorch module."""
    x = x_nchw
    if upsample:
        x = jnp.repeat(jnp.repeat(x, upsample, axis=2), upsample, axis=3)
    P = kernel_size // 2
    if P > 0:
        x = jnp.pad(x, ((0, 0), (0, 0), (P, P), (P, P)), mode="reflect")
    out = lax.conv_general_dilated(
        x, weight, window_strides=(stride, stride), padding="VALID",
        dimension_numbers=("NCHW", "OIHW", "NCHW"),
        precision=lax.Precision.HIGHEST,
    )
    return out + bias.reshape(1, -1, 1, 1)


# ----------------------------------------------------------------------- main
if __name__ == "__main__":
    key = jax.random.PRNGKey(0)
    kx, kw, kb = jax.random.split(key, 3)

    N, Cin, H, W = 2, 8, 16, 16
    Cout, K = 128, 3

    x = jax.random.normal(kx, (N, Cin, H, W), jnp.float32)
    w = jax.random.normal(kw, (Cout, Cin, K, K), jnp.float32) * (Cin * K * K) ** -0.5
    b = jax.random.normal(kb, (Cout,), jnp.float32) * 0.05

    configs = [
        dict(kernel_size=K, stride=1, upsample=2),      # canonical UpsampleConvLayer use
        dict(kernel_size=K, stride=2, upsample=None),   # no upsample, strided conv
    ]
    for cfg in configs:
        out = upsample_conv_layer(x, w, b, **cfg)
        out = jax.block_until_ready(out)
        ref = jax.block_until_ready(reference(x, w, b, **cfg))
        assert out.shape == ref.shape, (cfg, out.shape, ref.shape)
        assert out.dtype == jnp.float32
        err = float(jnp.max(jnp.abs(out - ref)))
        assert err < 5e-2, (cfg, err)                   # bf16-matmul tolerance

    print("KERNEL_OK")
</pallas_src>

<mosaic_0001>
module attributes {stable_mosaic.version = 11 : i64} {
  func.func @_upsample_conv_kernel(%arg0: i32, %arg1: i32, %arg2: memref<1x1190x8xbf16, #tpu.memory_space<vmem>>, %arg3: memref<9x8x128xbf16, #tpu.memory_space<vmem>>, %arg4: memref<1x128xf32, #tpu.memory_space<vmem>>, %arg5: memref<1x1088x128xf32, #tpu.memory_space<vmem>>) attributes {dimension_semantics = [#tpu.dimension_semantics<parallel>, #tpu.dimension_semantics<parallel>], iteration_bounds = array<i64: 2, 1>, scalar_prefetch = 0 : i64, scratch_operands = 0 : i64, tpu.core_type = #tpu.core_type<tc>, window_params = [{transform_indices = @transform_0, window_bounds = array<i64: 1, 1190, 8>}, {transform_indices = @transform_1, window_bounds = array<i64: 9, 8, 128>}, {transform_indices = @transform_2, window_bounds = array<i64: 1, 128>}, {transform_indices = @transform_3, window_bounds = array<i64: 1, 1088, 128>}]} {
    %c0 = arith.constant 0 : index
    %c0_0 = arith.constant 0 : index
    %c0_1 = arith.constant 0 : index
    %0 = vector.load %arg2[%c0, %c0_0, %c0_1] : memref<1x1190x8xbf16, #tpu.memory_space<vmem>>, vector<1x1088x8xbf16>
    %1 = vector.shape_cast %0 : vector<1x1088x8xbf16> to vector<1088x8xbf16>
    %c0_2 = arith.constant 0 : index
    %c0_3 = arith.constant 0 : index
    %c0_4 = arith.constant 0 : index
    %2 = vector.load %arg3[%c0_2, %c0_3, %c0_4] : memref<9x8x128xbf16, #tpu.memory_space<vmem>>, vector<1x8x128xbf16>
    %3 = vector.shape_cast %2 : vector<1x8x128xbf16> to vector<8x128xbf16>
    %cst = arith.constant dense<0.000000e+00> : vector<1088x128xf32>
    %4 = tpu.matmul %1, %3, %cst {dimension_numbers = #tpu.dot_dimension_numbers<[1], [0], [0], [1], [0, 0, 1, 1], [], []>} : vector<1088x8xbf16>, vector<8x128xbf16>, vector<1088x128xf32> -> vector<1088x128xf32>
    %c0_5 = arith.constant 0 : index
    %c0_6 = arith.constant 0 : index
    %5 = vector.load %arg4[%c0_5, %c0_6] : memref<1x128xf32, #tpu.memory_space<vmem>>, vector<1x128xf32>
    %6 = vector.broadcast %5 : vector<1x128xf32> to vector<1088x128xf32>
    %7 = arith.addf %4, %6 : vector<1088x128xf32>
    %c0_7 = arith.constant 0 : index
    %c1 = arith.constant 1 : index
    %c0_8 = arith.constant 0 : index
    %8 = vector.load %arg2[%c0_7, %c1, %c0_8] : memref<1x1190x8xbf16, #tpu.memory_space<vmem>>, vector<1x1088x8xbf16>
    %9 = vector.shape_cast %8 : vector<1x1088x8xbf16> to vector<1088x8xbf16>
    %c1_9 = arith.constant 1 : index
    %c0_10 = arith.constant 0 : index
    %c0_11 = arith.constant 0 : index
    %10 = vector.load %arg3[%c1_9, %c0_10, %c0_11] : memref<9x8x128xbf16, #tpu.memory_space<vmem>>, vector<1x8x128xbf16>
    %11 = vector.shape_cast %10 : vector<1x8x128xbf16> to vector<8x128xbf16>
    %cst_12 = arith.constant dense<0.000000e+00> : vector<1088x128xf32>
    %12 = tpu.matmul %9, %11, %cst_12 {dimension_numbers = #tpu.dot_dimension_numbers<[1], [0], [0], [1], [0, 0, 1, 1], [], []>} : vector<1088x8xbf16>, vector<8x128xbf16>, vector<1088x128xf32> -> vector<1088x128xf32>
    %13 = arith.addf %7, %12 : vector<1088x128xf32>
    %c0_13 = arith.constant 0 : index
    %c2 = arith.constant 2 : index
    %c0_14 = arith.constant 0 : index
    %14 = vector.load %arg2[%c0_13, %c2, %c0_14] : memref<1x1190x8xbf16, #tpu.memory_space<vmem>>, vector<1x1088x8xbf16>
    %15 = vector.shape_cast %14 : vector<1x1088x8xbf16> to vector<1088x8xbf16>
    %c2_15 = arith.constant 2 : index
    %c0_16 = arith.constant 0 : index
    %c0_17 = arith.constant 0 : index
    %16 = vector.load %arg3[%c2_15, %c0_16, %c0_17] : memref<9x8x128xbf16, #tpu.memory_space<vmem>>, vector<1x8x128xbf16>
    %17 = vector.shape_cast %16 : vector<1x8x128xbf16> to vector<8x128xbf16>
    %cst_18 = arith.constant dense<0.000000e+00> : vector<1088x128xf32>
    %18 = tpu.matmul %15, %17, %cst_18 {dimension_numbers = #tpu.dot_dimension_numbers<[1], [0], [0], [1], [0, 0, 1, 1], [], []>} : vector<1088x8xbf16>, vector<8x128xbf16>, vector<1088x128xf32> -> vector<1088x128xf32>
    %19 = arith.addf %13, %18 : vector<1088x128xf32>
    %c0_19 = arith.constant 0 : index
    %c34 = arith.constant 34 : index
    %c0_20 = arith.constant 0 : index
    %20 = vector.load %arg2[%c0_19, %c34, %c0_20] : memref<1x1190x8xbf16, #tpu.memory_space<vmem>>, vector<1x1088x8xbf16>
    %21 = vector.shape_cast %20 : vector<1x1088x8xbf16> to vector<1088x8xbf16>
    %c3 = arith.constant 3 : index
    %c0_21 = arith.constant 0 : index
    %c0_22 = arith.constant 0 : index
    %22 = vector.load %arg3[%c3, %c0_21, %c0_22] : memref<9x8x128xbf16, #tpu.memory_space<vmem>>, vector<1x8x128xbf16>
    %23 = vector.shape_cast %22 : vector<1x8x128xbf16> to vector<8x128xbf16>
    %cst_23 = arith.constant dense<0.000000e+00> : vector<1088x128xf32>
    %24 = tpu.matmul %21, %23, %cst_23 {dimension_numbers = #tpu.dot_dimension_numbers<[1], [0], [0], [1], [0, 0, 1, 1], [], []>} : vector<1088x8xbf16>, vector<8x128xbf16>, vector<1088x128xf32> -> vector<1088x128xf32>
    %25 = arith.addf %19, %24 : vector<1088x128xf32>
    %c0_24 = arith.constant 0 : index
    %c35 = arith.constant 35 : index
    %c0_25 = arith.constant 0 : index
    %26 = vector.load %arg2[%c0_24, %c35, %c0_25] : memref<1x1190x8xbf16, #tpu.memory_space<vmem>>, vector<1x1088x8xbf16>
    %27 = vector.shape_cast %26 : vector<1x1088x8xbf16> to vector<1088x8xbf16>
    %c4 = arith.constant 4 : index
    %c0_26 = arith.constant 0 : index
    %c0_27 = arith.constant 0 : index
    %28 = vector.load %arg3[%c4, %c0_26, %c0_27] : memref<9x8x128xbf16, #tpu.memory_space<vmem>>, vector<1x8x128xbf16>
    %29 = vector.shape_cast %28 : vector<1x8x128xbf16> to vector<8x128xbf16>
    %cst_28 = arith.constant dense<0.000000e+00> : vector<1088x128xf32>
    %30 = tpu.matmul %27, %29, %cst_28 {dimension_numbers = #tpu.dot_dimension_numbers<[1], [0], [0], [1], [0, 0, 1, 1], [], []>} : vector<1088x8xbf16>, vector<8x128xbf16>, vector<1088x128xf32> -> vector<1088x128xf32>
    %31 = arith.addf %25, %30 : vector<1088x128xf32>
    %c0_29 = arith.constant 0 : index
    %c36 = arith.constant 36 : index
    %c0_30 = arith.constant 0 : index
    %32 = vector.load %arg2[%c0_29, %c36, %c0_30] : memref<1x1190x8xbf16, #tpu.memory_space<vmem>>, vector<1x1088x8xbf16>
    %33 = vector.shape_cast %32 : vector<1x1088x8xbf16> to vector<1088x8xbf16>
    %c5 = arith.constant 5 : index
    %c0_31 = arith.constant 0 : index
    %c0_32 = arith.constant 0 : index
    %34 = vector.load %arg3[%c5, %c0_31, %c0_32] : memref<9x8x128xbf16, #tpu.memory_space<vmem>>, vector<1x8x128xbf16>
    %35 = vector.shape_cast %34 : vector<1x8x128xbf16> to vector<8x128xbf16>
    %cst_33 = arith.constant dense<0.000000e+00> : vector<1088x128xf32>
    %36 = tpu.matmul %33, %35, %cst_33 {dimension_numbers = #tpu.dot_dimension_numbers<[1], [0], [0], [1], [0, 0, 1, 1], [], []>} : vector<1088x8xbf16>, vector<8x128xbf16>, vector<1088x128xf32> -> vector<1088x128xf32>
    %37 = arith.addf %31, %36 : vector<1088x128xf32>
    %c0_34 = arith.constant 0 : index
    %c68 = arith.constant 68 : index
    %c0_35 = arith.constant 0 : index
    %38 = vector.load %arg2[%c0_34, %c68, %c0_35] : memref<1x1190x8xbf16, #tpu.memory_space<vmem>>, vector<1x1088x8xbf16>
    %39 = vector.shape_cast %38 : vector<1x1088x8xbf16> to vector<1088x8xbf16>
    %c6 = arith.constant 6 : index
    %c0_36 = arith.constant 0 : index
    %c0_37 = arith.constant 0 : index
    %40 = vector.load %arg3[%c6, %c0_36, %c0_37] : memref<9x8x128xbf16, #tpu.memory_space<vmem>>, vector<1x8x128xbf16>
    %41 = vector.shape_cast %40 : vector<1x8x128xbf16> to vector<8x128xbf16>
    %cst_38 = arith.constant dense<0.000000e+00> : vector<1088x128xf32>
    %42 = tpu.matmul %39, %41, %cst_38 {dimension_numbers = #tpu.dot_dimension_numbers<[1], [0], [0], [1], [0, 0, 1, 1], [], []>} : vector<1088x8xbf16>, vector<8x128xbf16>, vector<1088x128xf32> -> vector<1088x128xf32>
    %43 = arith.addf %37, %42 : vector<1088x128xf32>
    %c0_39 = arith.constant 0 : index
    %c69 = arith.constant 69 : index
    %c0_40 = arith.constant 0 : index
    %44 = vector.load %arg2[%c0_39, %c69, %c0_40] : memref<1x1190x8xbf16, #tpu.memory_space<vmem>>, vector<1x1088x8xbf16>
    %45 = vector.shape_cast %44 : vector<1x1088x8xbf16> to vector<1088x8xbf16>
    %c7 = arith.constant 7 : index
    %c0_41 = arith.constant 0 : index
    %c0_42 = arith.constant 0 : index
    %46 = vector.load %arg3[%c7, %c0_41, %c0_42] : memref<9x8x128xbf16, #tpu.memory_space<vmem>>, vector<1x8x128xbf16>
    %47 = vector.shape_cast %46 : vector<1x8x128xbf16> to vector<8x128xbf16>
    %cst_43 = arith.constant dense<0.000000e+00> : vector<1088x128xf32>
    %48 = tpu.matmul %45, %47, %cst_43 {dimension_numbers = #tpu.dot_dimension_numbers<[1], [0], [0], [1], [0, 0, 1, 1], [], []>} : vector<1088x8xbf16>, vector<8x128xbf16>, vector<1088x128xf32> -> vector<1088x128xf32>
    %49 = arith.addf %43, %48 : vector<1088x128xf32>
    %c0_44 = arith.constant 0 : index
    %c70 = arith.constant 70 : index
    %c0_45 = arith.constant 0 : index
    %50 = vector.load %arg2[%c0_44, %c70, %c0_45] : memref<1x1190x8xbf16, #tpu.memory_space<vmem>>, vector<1x1088x8xbf16>
    %51 = vector.shape_cast %50 : vector<1x1088x8xbf16> to vector<1088x8xbf16>
    %c8 = arith.constant 8 : index
    %c0_46 = arith.constant 0 : index
    %c0_47 = arith.constant 0 : index
    %52 = vector.load %arg3[%c8, %c0_46, %c0_47] : memref<9x8x128xbf16, #tpu.memory_space<vmem>>, vector<1x8x128xbf16>
    %53 = vector.shape_cast %52 : vector<1x8x128xbf16> to vector<8x128xbf16>
    %cst_48 = arith.constant dense<0.000000e+00> : vector<1088x128xf32>
    %54 = tpu.matmul %51, %53, %cst_48 {dimension_numbers = #tpu.dot_dimension_numbers<[1], [0], [0], [1], [0, 0, 1, 1], [], []>} : vector<1088x8xbf16>, vector<8x128xbf16>, vector<1088x128xf32> -> vector<1088x128xf32>
    %55 = arith.addf %49, %54 : vector<1088x128xf32>
    %c0_49 = arith.constant 0 : index
    %c0_50 = arith.constant 0 : index
    %c0_51 = arith.constant 0 : index
    %56 = vector.load %arg5[%c0_49, %c0_50, %c0_51] : memref<1x1088x128xf32, #tpu.memory_space<vmem>>, vector<1x1088x128xf32>
    %57 = vector.shape_cast %56 : vector<1x1088x128xf32> to vector<1088x128xf32>
    %58 = vector.shape_cast %55 : vector<1088x128xf32> to vector<1x1088x128xf32>
    tpu.vector_store %arg5[%c0_49, %c0_50, %c0_51], %58 {strides = array<i32>} : memref<1x1088x128xf32, #tpu.memory_space<vmem>>, vector<1x1088x128xf32>,
    return
  }
  func.func @transform_0(%arg0: i32, %arg1: i32) -> (i32, i32, i32) {
    %c0_i32 = arith.constant 0 : i32
    %c0_i32_0 = arith.constant 0 : i32
    %c0_i32_1 = arith.constant 0 : i32
    return %arg0, %c0_i32, %c0_i32_0 : i32, i32, i32
  }
  func.func @transform_1(%arg0: i32, %arg1: i32) -> (i32, i32, i32) {
    %c0_i32 = arith.constant 0 : i32
    %c0_i32_0 = arith.constant 0 : i32
    %c0_i32_1 = arith.constant 0 : i32
    return %c0_i32, %c0_i32_0, %arg1 : i32, i32, i32
  }
  func.func @transform_2(%arg0: i32, %arg1: i32) -> (i32, i32) {
    %c0_i32 = arith.constant 0 : i32
    %c0_i32_0 = arith.constant 0 : i32
    return %c0_i32, %arg1 : i32, i32
  }
  func.func @transform_3(%arg0: i32, %arg1: i32) -> (i32, i32, i32) {
    %c0_i32 = arith.constant 0 : i32
    %c0_i32_0 = arith.constant 0 : i32
    return %arg0, %c0_i32, %arg1 : i32, i32, i32
  }
}

</mosaic_0001>

<llo_original>
// kernel: upsample_conv_layer.1
$region0: #{upsample_conv_layer.1}
  #allocation0 [shape = 'u32[]', space=smem, size = 0x4, offset = 0x4, fixed_abs, tag = 'smem constant byte address 0x4 - core index']
  #allocation1 [shape = 'u32[144,128]{1,0:T(1,128)}', space=vmem, size = 0x12000, scoped, tag = 'internal scratch']
  %s0 = inlined_call_operand.vmem [shape: bf16[2,1190,8], index: 0, kind: input, shape index: {}]
  %s1 = inlined_call_operand.vmem [shape: bf16[9,8,128], index: 1, kind: input, shape index: {}]
  %s2 = inlined_call_operand.vmem [shape: f32[1,128], index: 2, kind: input, shape index: {}]
  %s3 = inlined_call_operand.vmem [shape: f32[2,1088,128], index: 3, kind: output, shape index: {}]
  %s4 = sld [smem:[#allocation0]]
  $region45: #{upsample_conv_layer.1} parent=0
    _
  %s6 = ssub.s32 1, %s4
  %s7 = scalar_select 0, %s6, %s4
  loop: start=0, step=1, limit=4
  $region2: #{upsample_conv_layer.1} parent=0 // loop_pre_header
    _
  $region3: #{upsample_conv_layer.1} parent=0 // loop_header
    %s9 = sphi 0, %s13
    %p10 = scmp.ge.s32.totalorder %s9, 4
    %s16 = sphi 0, %s28
    %s17 = sphi 0, %s24
    %s18 = sphi 0, %s16
    %s19 = sphi 0, %s17
    %s20 = sphi 0, %s18
    %s21 = sphi 0, %s19
    %s31 = sphi 0, %s33
    %s34 = sphi 0, %s31
    %s35 = sphi 0, %s34
    %s51 = sphi 0, %s35
    %s57 = sphi 0, %s59
    %s60 = sphi 0, %s57
    %s61 = sphi 0, %s60
    %s77 = sphi 0, %s61
    %s83 = sphi 0, %s85
    %s86 = sphi 0, %s83
    %s87 = sphi 0, %s86
    %s103 = sphi 0, %s87
    %s111 = sphi 0, %s113
    %s114 = sphi 0, %s111
    %s115 = sphi 0, %s114
    %s131 = sphi 0, %s115
  $region4: #{upsample_conv_layer.1} parent=0 // loop_header_branch
    %12 = sbr.rel (%p10) target = $region8
  $region5: #{upsample_conv_layer.1} parent=0 // loop_body
    %s14 = ssub.s32 %s9, 1
    %s15 = ssub.s32 %s9, 2
    %s22 = sadd.s32 1, %s17
    %p23 = scmp.ge.s32.totalorder %s22, 1
    %s24 = scalar_select %p23, 0, %s22
    %s25 = sadd.s32 1, %s16
    %s26 = scalar_select %p23, %s25, %s16
    %p27 = scmp.ge.s32.totalorder %s26, 2
    %s28 = scalar_select %p27, 0, %s26
    %s29 = ssub.s32 %s16, %s28
    %p30 = scmp.eq.s32.totalorder %s29, 0
    %s32 = sadd.s32 %s31, 1
    %s33 = scalar_select %p30, %s31, %s32
    %p36 = pneg %p30
    %p37 = scmp.eq.s32.totalorder %s9, 1
    %p38 = por %p36, %p37
    %p39 = scmp.ne.s32.totalorder %s31, %s34
    %p40 = scmp.eq.s32.totalorder %s9, 0
    %p41 = por %p39, %p40
    %p42 = scmp.ne.s32.totalorder %s31, %s34
    %p43 = scmp.eq.s32.totalorder %s14, 1
    %p44 = por %p42, %p43
    %p45 = scmp.ne.s32.totalorder %s34, %s35
    %p46 = scmp.eq.s32.totalorder %s14, 0
    %p47 = por %p45, %p46
    %p48 = scmp.ne.s32.totalorder %s34, %s35
    %p49 = scmp.eq.s32.totalorder %s15, 1
    %p50 = por %p48, %p49
    %p52 = scmp.ne.s32.totalorder %s35, %s51
    %p53 = scmp.eq.s32.totalorder %s15, 0
    %p54 = por %p52, %p53
    %s55 = ssub.s32 %s17, %s24
    %p56 = scmp.eq.s32.totalorder %s55, 0
    %s58 = sadd.s32 %s57, 1
    %s59 = scalar_select %p56, %s57, %s58
    %p62 = pneg %p56
    %p63 = scmp.eq.s32.totalorder %s9, 1
    %p64 = por %p62, %p63
    %p65 = scmp.ne.s32.totalorder %s57, %s60
    %p66 = scmp.eq.s32.totalorder %s9, 0
    %p67 = por %p65, %p66
    %p68 = scmp.ne.s32.totalorder %s57, %s60
    %p69 = scmp.eq.s32.totalorder %s14, 1
    %p70 = por %p68, %p69
    %p71 = scmp.ne.s32.totalorder %s60, %s61
    %p72 = scmp.eq.s32.totalorder %s14, 0
    %p73 = por %p71, %p72
    %p74 = scmp.ne.s32.totalorder %s60, %s61
    %p75 = scmp.eq.s32.totalorder %s15, 1
    %p76 = por %p74, %p75
    %p78 = scmp.ne.s32.totalorder %s61, %s77
    %p79 = scmp.eq.s32.totalorder %s15, 0
    %p80 = por %p78, %p79
    %s81 = ssub.s32 %s17, %s24
    %p82 = scmp.eq.s32.totalorder %s81, 0
    %s84 = sadd.s32 %s83, 1
    %s85 = scalar_select %p82, %s83, %s84
    %p88 = pneg %p82
    %p89 = scmp.eq.s32.totalorder %s9, 1
    %p90 = por %p88, %p89
    %p91 = scmp.ne.s32.totalorder %s83, %s86
    %p92 = scmp.eq.s32.totalorder %s9, 0
    %p93 = por %p91, %p92
    %p94 = scmp.ne.s32.totalorder %s83, %s86
    %p95 = scmp.eq.s32.totalorder %s14, 1
    %p96 = por %p94, %p95
    %p97 = scmp.ne.s32.totalorder %s86, %s87
    %p98 = scmp.eq.s32.totalorder %s14, 0
    %p99 = por %p97, %p98
    %p100 = scmp.ne.s32.totalorder %s86, %s87
    %p101 = scmp.eq.s32.totalorder %s15, 1
    %p102 = por %p100, %p101
    %p104 = scmp.ne.s32.totalorder %s87, %s103
    %p105 = scmp.eq.s32.totalorder %s15, 0
    %p106 = por %p104, %p105
    %s107 = ssub.s32 %s16, %s28
    %s108 = ssub.s32 %s17, %s24
    %s109 = sor.u32 %s107, %s108
    %p110 = scmp.eq.s32.totalorder %s109, 0
    %s112 = sadd.s32 %s111, 1
    %s113 = scalar_select %p110, %s111, %s112
    %p116 = pneg %p110
    %p117 = scmp.eq.s32.totalorder %s9, 1
    %p118 = por %p116, %p117
    %p119 = scmp.ne.s32.totalorder %s111, %s114
    %p120 = scmp.eq.s32.totalorder %s9, 0
    %p121 = por %p119, %p120
    %p122 = scmp.ne.s32.totalorder %s111, %s114
    %p123 = scmp.eq.s32.totalorder %s14, 1
    %p124 = por %p122, %p123
    %p125 = scmp.ne.s32.totalorder %s114, %s115
    %p126 = scmp.eq.s32.totalorder %s14, 0
    %p127 = por %p125, %p126
    %p128 = scmp.ne.s32.totalorder %s114, %s115
    %p129 = scmp.eq.s32.totalorder %s15, 1
    %p130 = por %p128, %p129
    %p132 = scmp.ne.s32.totalorder %s115, %s131
    %p133 = scmp.eq.s32.totalorder %s15, 0
    %p134 = por %p132, %p133
    %p135 = scmp.le.s32.totalorder 1, %s9
    %p136 = scmp.lt.s32.totalorder %s9, 3
    %p137 = pnand %p135, %p136
    %p138 = pneg %p137
    // Predicated region
    $region9: #{upsample_conv_layer.1} parent=5 // pred_check
      _
    $region10: #{upsample_conv_layer.1} parent=5 // pred_check_branch
      %140 = sbr.rel (%p137) target = $region12
    $region11: #{upsample_conv_layer.1} parent=5 // pred_region
      %s141 = ssub.s32 %s9, 1
      // Predicated region
      $region13: #{upsample_conv_layer.1} parent=11 // pred_check
        %p142 = pneg %p73
      $region14: #{upsample_conv_layer.1} parent=11 // pred_check_branch
        %144 = sbr.rel (%p142) target = $region16
      $region15: #{upsample_conv_layer.1} parent=11 // pred_region
        %p145 = scmp.lt.s32.totalorder %s19, 0
        %s146 = scalar_select %p145, %s19, 0
        %s147 = smul.addr %s146, 4
        %s148 = scalar_lea.vmem %s1, %s147
      $region16: #{upsample_conv_layer.1} parent=11 // pred_fallthru
        _
      // Predicated region
      $region17: #{upsample_conv_layer.1} parent=11 // pred_check
        %p149 = pneg %p99
      $region18: #{upsample_conv_layer.1} parent=11 // pred_check_branch
        %151 = sbr.rel (%p149) target = $region20
      $region19: #{upsample_conv_layer.1} parent=11 // pred_region
        %p152 = scmp.lt.s32.totalorder %s19, 0
        %s153 = scalar_select %p152, %s19, 0
        %s154 = scalar_lea.vmem %s2, %s153
      $region20: #{upsample_conv_layer.1} parent=11 // pred_fallthru
        _
    $region12: #{upsample_conv_layer.1} parent=5 // pred_fallthru
      _
    %p155 = scmp.lt.s32.totalorder %s9, 2
    // Predicated region
    $region21: #{upsample_conv_layer.1} parent=5 // pred_check
      %p156 = pneg %p155
    $region22: #{upsample_conv_layer.1} parent=5 // pred_check_branch
      %158 = sbr.rel (%p156) target = $region24
    $region23: #{upsample_conv_layer.1} parent=5 // pred_region
      // Predicated region
      $region25: #{upsample_conv_layer.1} parent=23 // pred_check
        %p159 = pneg %p41
      $region26: #{upsample_conv_layer.1} parent=23 // pred_check_branch
        %161 = sbr.rel (%p159) target = $region28
      $region27: #{upsample_conv_layer.1} parent=23 // pred_region
        %p162 = scmp.lt.s32.totalorder %s16, 1
        %s163 = scalar_select %p162, %s16, 1
        %s164 = smul.addr %s163, 149
        %s165 = smul.addr %s164, 4
        %s166 = scalar_lea.vmem %s0, %s165
      $region28: #{upsample_conv_layer.1} parent=23 // pred_fallthru
        _
    $region24: #{upsample_conv_layer.1} parent=5 // pred_fallthru
      _
    %p167 = scmp.le.s32.totalorder 1, %s9
    %p168 = scmp.lt.s32.totalorder %s9, 3
    %p169 = pnand %p167, %p168
    %p170 = pneg %p169
    // Predicated region
    $region29: #{upsample_conv_layer.1} parent=5 // pred_check
      _
    $region30: #{upsample_conv_layer.1} parent=5 // pred_check_branch
      %172 = sbr.rel (%p169) target = $region32
    $region31: #{upsample_conv_layer.1} parent=5 // pred_region
      %s173 = ssub.s32 %s9, 1
      %p174 = scmp.lt.s32.totalorder %s18, 1
      %s175 = scalar_select %p174, %s18, 1
      %s176 = smul.addr %s175, 149
      %s177 = smul.addr %s176, 4
      %s178 = scalar_lea.vmem %s0, %s177
      %p179 = pneg %p47
      %p180 = pneg %p44
      %p181 = scmp.lt.s32.totalorder %s19, 0
      %s182 = scalar_select %p181, %s19, 0
      %s183 = smul.addr %s182, 4
      %s184 = scalar_lea.vmem %s1, %s183
      %p185 = pneg %p73
      %p186 = pneg %p70
      %p187 = scmp.lt.s32.totalorder %s19, 0
      %s188 = scalar_select %p187, %s19, 0
      %s189 = scalar_lea.vmem %s2, %s188
      %p190 = pneg %p99
      %p191 = pneg %p96
      %p192 = pneg %p127
      %p193 = pneg %p124
      %p194 = scmp.lt.s32.totalorder %s18, 1
      %s195 = scalar_select %p194, %s18, 1
      %p196 = scmp.lt.s32.totalorder %s19, 0
      %s197 = scalar_select %p196, %s19, 0
      %s198 = smul.addr %s195, 136
      %s199 = sadd.s32 %s197, %s198
      %s200 = smul.addr %s199, 8
      %s201 = scalar_lea.vmem %s3, %s200
      %p202 = scmp.lt.s32.totalorder %s18, 1
      %s203 = scalar_select %p202, %s18, 1
      %s204 = smul.addr %s203, 149
      %s205 = smul.addr %s204, 4
      %s206 = scalar_lea.vmem %s0, %s205
      %p207 = scmp.lt.s32.totalorder %s19, 0
      %s208 = scalar_select %p207, %s19, 0
      %s209 = smul.addr %s208, 4
      %s210 = scalar_lea.vmem %s1, %s209
      %p211 = scmp.lt.s32.totalorder %s19, 0
      %s212 = scalar_select %p211, %s19, 0
      %s213 = scalar_lea.vmem %s2, %s212
      %p214 = scmp.lt.s32.totalorder %s18, 1
      %s215 = scalar_select %p214, %s18, 1
      %p216 = scmp.lt.s32.totalorder %s19, 0
      %s217 = scalar_select %p216, %s19, 0
      %s218 = smul.addr %s215, 136
      %s219 = sadd.s32 %s217, %s218
      %s220 = smul.addr %s219, 8
      %s221 = scalar_lea.vmem %s3, %s220
      %v223 = vld [vmem:[%s206] sm:$0xf]
      %v224 = vld [vmem:[%s206 + $0x4] sm:$0xf]
      %v225 = vld [vmem:[%s206 + $0x8] sm:$0xf]
      %v226 = vld [vmem:[%s206 + $0xc] sm:$0xf]
      %v227 = vld [vmem:[%s206 + $0x10] sm:$0xf]
      %v228 = vld [vmem:[%s206 + $0x14] sm:$0xf]
      %v229 = vld [vmem:[%s206 + $0x18] sm:$0xf]
      %v230 = vld [vmem:[%s206 + $0x1c] sm:$0xf]
      %v231 = vld [vmem:[%s206 + $0x20] sm:$0xf]
      %v232 = vld [vmem:[%s206 + $0x24] sm:$0xf]
      %v233 = vld [vmem:[%s206 + $0x28] sm:$0xf]
      %v234 = vld [vmem:[%s206 + $0x2c] sm:$0xf]
      %v235 = vld [vmem:[%s206 + $0x30] sm:$0xf]
      %v236 = vld [vmem:[%s206 + $0x34] sm:$0xf]
      %v237 = vld [vmem:[%s206 + $0x38] sm:$0xf]
      %v238 = vld [vmem:[%s206 + $0x3c] sm:$0xf]
      %v239 = vld [vmem:[%s206 + $0x40] sm:$0xf]
      %v240 = vld [vmem:[%s206 + $0x44] sm:$0xf]
      %v241 = vld [vmem:[%s206 + $0x48] sm:$0xf]
      %v242 = vld [vmem:[%s206 + $0x4c] sm:$0xf]
      %v243 = vld [vmem:[%s206 + $0x50] sm:$0xf]
      %v244 = vld [vmem:[%s206 + $0x54] sm:$0xf]
      %v245 = vld [vmem:[%s206 + $0x58] sm:$0xf]
      %v246 = vld [vmem:[%s206 + $0x5c] sm:$0xf]
      %v247 = vld [vmem:[%s206 + $0x60] sm:$0xf]
      %v248 = vld [vmem:[%s206 + $0x64] sm:$0xf]
      %v249 = vld [vmem:[%s206 + $0x68] sm:$0xf]
      %v250 = vld [vmem:[%s206 + $0x6c] sm:$0xf]
      %v251 = vld [vmem:[%s206 + $0x70] sm:$0xf]
      %v252 = vld [vmem:[%s206 + $0x74] sm:$0xf]
      %v253 = vld [vmem:[%s206 + $0x78] sm:$0xf]
      %v254 = vld [vmem:[%s206 + $0x7c] sm:$0xf]
      %v255 = vld [vmem:[%s206 + $0x80] sm:$0xf]
      %v256 = vld [vmem:[%s206 + $0x84] sm:$0xf]
      %v257 = vld [vmem:[%s206 + $0x88] sm:$0xf]
      %v258 = vld [vmem:[%s206 + $0x8c] sm:$0xf]
      %v259 = vld [vmem:[%s206 + $0x90] sm:$0xf]
      %v260 = vld [vmem:[%s206 + $0x94] sm:$0xf]
      %v261 = vld [vmem:[%s206 + $0x98] sm:$0xf]
      %v262 = vld [vmem:[%s206 + $0x9c] sm:$0xf]
      %v263 = vld [vmem:[%s206 + $0xa0] sm:$0xf]
      %v264 = vld [vmem:[%s206 + $0xa4] sm:$0xf]
      %v265 = vld [vmem:[%s206 + $0xa8] sm:$0xf]
      %v266 = vld [vmem:[%s206 + $0xac] sm:$0xf]
      %v267 = vld [vmem:[%s206 + $0xb0] sm:$0xf]
      %v268 = vld [vmem:[%s206 + $0xb4] sm:$0xf]
      %v269 = vld [vmem:[%s206 + $0xb8] sm:$0xf]
      %v270 = vld [vmem:[%s206 + $0xbc] sm:$0xf]
      %v271 = vld [vmem:[%s206 + $0xc0] sm:$0xf]
      %v272 = vld [vmem:[%s206 + $0xc4] sm:$0xf]
      %v273 = vld [vmem:[%s206 + $0xc8] sm:$0xf]
      %v274 = vld [vmem:[%s206 + $0xcc] sm:$0xf]
      %v275 = vld [vmem:[%s206 + $0xd0] sm:$0xf]
      %v276 = vld [vmem:[%s206 + $0xd4] sm:$0xf]
      %v277 = vld [vmem:[%s206 + $0xd8] sm:$0xf]
      %v278 = vld [vmem:[%s206 + $0xdc] sm:$0xf]
      %v279 = vld [vmem:[%s206 + $0xe0] sm:$0xf]
      %v280 = vld [vmem:[%s206 + $0xe4] sm:$0xf]
      %v281 = vld [vmem:[%s206 + $0xe8] sm:$0xf]
      %v282 = vld [vmem:[%s206 + $0xec] sm:$0xf]
      %v283 = vld [vmem:[%s206 + $0xf0] sm:$0xf]
      %v284 = vld [vmem:[%s206 + $0xf4] sm:$0xf]
      %v285 = vld [vmem:[%s206 + $0xf8] sm:$0xf]
      %v286 = vld [vmem:[%s206 + $0xfc] sm:$0xf]
      %v287 = vld [vmem:[%s206 + $0x100] sm:$0xf]
      %v288 = vld [vmem:[%s206 + $0x104] sm:$0xf]
      %v289 = vld [vmem:[%s206 + $0x108] sm:$0xf]
      %v290 = vld [vmem:[%s206 + $0x10c] sm:$0xf]
      %v291 = vld [vmem:[%s206 + $0x110] sm:$0xf]
      %v292 = vld [vmem:[%s206 + $0x114] sm:$0xf]
      %v293 = vld [vmem:[%s206 + $0x118] sm:$0xf]
      %v294 = vld [vmem:[%s206 + $0x11c] sm:$0xf]
      %v295 = vld [vmem:[%s206 + $0x120] sm:$0xf]
      %v296 = vld [vmem:[%s206 + $0x124] sm:$0xf]
      %v297 = vld [vmem:[%s206 + $0x128] sm:$0xf]
      %v298 = vld [vmem:[%s206 + $0x12c] sm:$0xf]
      %v299 = vld [vmem:[%s206 + $0x130] sm:$0xf]
      %v300 = vld [vmem:[%s206 + $0x134] sm:$0xf]
      %v301 = vld [vmem:[%s206 + $0x138] sm:$0xf]
      %v302 = vld [vmem:[%s206 + $0x13c] sm:$0xf]
      %v303 = vld [vmem:[%s206 + $0x140] sm:$0xf]
      %v304 = vld [vmem:[%s206 + $0x144] sm:$0xf]
      %v305 = vld [vmem:[%s206 + $0x148] sm:$0xf]
      %v306 = vld [vmem:[%s206 + $0x14c] sm:$0xf]
      %v307 = vld [vmem:[%s206 + $0x150] sm:$0xf]
      %v308 = vld [vmem:[%s206 + $0x154] sm:$0xf]
      %v309 = vld [vmem:[%s206 + $0x158] sm:$0xf]
      %v310 = vld [vmem:[%s206 + $0x15c] sm:$0xf]
      %v311 = vld [vmem:[%s206 + $0x160] sm:$0xf]
      %v312 = vld [vmem:[%s206 + $0x164] sm:$0xf]
      %v313 = vld [vmem:[%s206 + $0x168] sm:$0xf]
      %v314 = vld [vmem:[%s206 + $0x16c] sm:$0xf]
      %v315 = vld [vmem:[%s206 + $0x170] sm:$0xf]
      %v316 = vld [vmem:[%s206 + $0x174] sm:$0xf]
      %v317 = vld [vmem:[%s206 + $0x178] sm:$0xf]
      %v318 = vld [vmem:[%s206 + $0x17c] sm:$0xf]
      %v319 = vld [vmem:[%s206 + $0x180] sm:$0xf]
      %v320 = vld [vmem:[%s206 + $0x184] sm:$0xf]
      %v321 = vld [vmem:[%s206 + $0x188] sm:$0xf]
      %v322 = vld [vmem:[%s206 + $0x18c] sm:$0xf]
      %v323 = vld [vmem:[%s206 + $0x190] sm:$0xf]
      %v324 = vld [vmem:[%s206 + $0x194] sm:$0xf]
      %v325 = vld [vmem:[%s206 + $0x198] sm:$0xf]
      %v326 = vld [vmem:[%s206 + $0x19c] sm:$0xf]
      %v327 = vld [vmem:[%s206 + $0x1a0] sm:$0xf]
      %v328 = vld [vmem:[%s206 + $0x1a4] sm:$0xf]
      %v329 = vld [vmem:[%s206 + $0x1a8] sm:$0xf]
      %v330 = vld [vmem:[%s206 + $0x1ac] sm:$0xf]
      %v331 = vld [vmem:[%s206 + $0x1b0] sm:$0xf]
      %v332 = vld [vmem:[%s206 + $0x1b4] sm:$0xf]
      %v333 = vld [vmem:[%s206 + $0x1b8] sm:$0xf]
      %v334 = vld [vmem:[%s206 + $0x1bc] sm:$0xf]
      %v335 = vld [vmem:[%s206 + $0x1c0] sm:$0xf]
      %v336 = vld [vmem:[%s206 + $0x1c4] sm:$0xf]
      %v337 = vld [vmem:[%s206 + $0x1c8] sm:$0xf]
      %v338 = vld [vmem:[%s206 + $0x1cc] sm:$0xf]
      %v339 = vld [vmem:[%s206 + $0x1d0] sm:$0xf]
      %v340 = vld [vmem:[%s206 + $0x1d4] sm:$0xf]
      %v341 = vld [vmem:[%s206 + $0x1d8] sm:$0xf]
      %v342 = vld [vmem:[%s206 + $0x1dc] sm:$0xf]
      %v343 = vld [vmem:[%s206 + $0x1e0] sm:$0xf]
      %v344 = vld [vmem:[%s206 + $0x1e4] sm:$0xf]
      %v345 = vld [vmem:[%s206 + $0x1e8] sm:$0xf]
      %v346 = vld [vmem:[%s206 + $0x1ec] sm:$0xf]
      %v347 = vld [vmem:[%s206 + $0x1f0] sm:$0xf]
      %v348 = vld [vmem:[%s206 + $0x1f4] sm:$0xf]
      %v349 = vld [vmem:[%s206 + $0x1f8] sm:$0xf]
      %v350 = vld [vmem:[%s206 + $0x1fc] sm:$0xf]
      %v351 = vld [vmem:[%s206 + $0x200] sm:$0xf]
      %v352 = vld [vmem:[%s206 + $0x204] sm:$0xf]
      %v353 = vld [vmem:[%s206 + $0x208] sm:$0xf]
      %v354 = vld [vmem:[%s206 + $0x20c] sm:$0xf]
      %v355 = vld [vmem:[%s206 + $0x210] sm:$0xf]
      %v356 = vld [vmem:[%s206 + $0x214] sm:$0xf]
      %v357 = vld [vmem:[%s206 + $0x218] sm:$0xf]
      %v358 = vld [vmem:[%s206 + $0x21c] sm:$0xf]
      %v359 = vld [vmem:[%s210] sm:$0xf]
      %v360 = vld [vmem:[%s213] sm:$0x1]
      %v362 = vlaneseq
      %v363 = vshrl.u32 %v362, 7
      %v364 = vsub.s32 0, %v363
      %v365 = vrot.slane %v360, %v364
      %v503 = vunpack.c.l.b16 %v223
      %v504 = vunpack.c.l.b16 %v224
      %v505 = vunpack.c.l.b16 %v225
      %v506 = vunpack.c.l.b16 %v226
      %v507 = vunpack.c.l.b16 %v227
      %v508 = vunpack.c.l.b16 %v228
      %v509 = vunpack.c.l.b16 %v229
      %v510 = vunpack.c.l.b16 %v230
      %v511 = vunpack.c.l.b16 %v231
      %v512 = vunpack.c.l.b16 %v232
      %v513 = vunpack.c.l.b16 %v233
      %v514 = vunpack.c.l.b16 %v234
      %v515 = vunpack.c.l.b16 %v235
      %v516 = vunpack.c.l.b16 %v236
      %v517 = vunpack.c.l.b16 %v237
      %v518 = vunpack.c.l.b16 %v238
      %v519 = vunpack.c.l.b16 %v239
      %v520 = vunpack.c.l.b16 %v240
      %v521 = vunpack.c.l.b16 %v241
      %v522 = vunpack.c.l.b16 %v242
      %v523 = vunpack.c.l.b16 %v243
      %v524 = vunpack.c.l.b16 %v244
      %v525 = vunpack.c.l.b16 %v245
      %v526 = vunpack.c.l.b16 %v246
      %v527 = vunpack.c.l.b16 %v247
      %v528 = vunpack.c.l.b16 %v248
      %v529 = vunpack.c.l.b16 %v249
      %v530 = vunpack.c.l.b16 %v250
      %v531 = vunpack.c.l.b16 %v251
      %v532 = vunpack.c.l.b16 %v252
      %v533 = vunpack.c.l.b16 %v253
      %v534 = vunpack.c.l.b16 %v254
      %v535 = vunpack.c.l.b16 %v255
      %v536 = vunpack.c.l.b16 %v256
      %v537 = vunpack.c.l.b16 %v257
      %v538 = vunpack.c.l.b16 %v258
      %v539 = vunpack.c.l.b16 %v259
      %v540 = vunpack.c.l.b16 %v260
      %v541 = vunpack.c.l.b16 %v261
      %v542 = vunpack.c.l.b16 %v262
      %v543 = vunpack.c.l.b16 %v263
      %v544 = vunpack.c.l.b16 %v264
      %v545 = vunpack.c.l.b16 %v265
      %v546 = vunpack.c.l.b16 %v266
      %v547 = vunpack.c.l.b16 %v267
      %v548 = vunpack.c.l.b16 %v268
      %v549 = vunpack.c.l.b16 %v269
      %v550 = vunpack.c.l.b16 %v270
      %v551 = vunpack.c.l.b16 %v271
      %v552 = vunpack.c.l.b16 %v272
      %v553 = vunpack.c.l.b16 %v273
      %v554 = vunpack.c.l.b16 %v274
      %v555 = vunpack.c.l.b16 %v275
      %v556 = vunpack.c.l.b16 %v276
      %v557 = vunpack.c.l.b16 %v277
      %v558 = vunpack.c.l.b16 %v278
      %v559 = vunpack.c.l.b16 %v279
      %v560 = vunpack.c.l.b16 %v280
      %v561 = vunpack.c.l.b16 %v281
      %v562 = vunpack.c.l.b16 %v282
      %v563 = vunpack.c.l.b16 %v283
      %v564 = vunpack.c.l.b16 %v284
      %v565 = vunpack.c.l.b16 %v285
      %v566 = vunpack.c.l.b16 %v286
      %v567 = vunpack.c.l.b16 %v287
      %v568 = vunpack.c.l.b16 %v288
      %v569 = vunpack.c.l.b16 %v289
      %v570 = vunpack.c.l.b16 %v290
      %v571 = vunpack.c.l.b16 %v291
      %v572 = vunpack.c.l.b16 %v292
      %v573 = vunpack.c.l.b16 %v293
      %v574 = vunpack.c.l.b16 %v294
      %v575 = vunpack.c.l.b16 %v295
      %v576 = vunpack.c.l.b16 %v296
      %v577 = vunpack.c.l.b16 %v297
      %v578 = vunpack.c.l.b16 %v298
      %v579 = vunpack.c.l.b16 %v299
      %v580 = vunpack.c.l.b16 %v300
      %v581 = vunpack.c.l.b16 %v301
      %v582 = vunpack.c.l.b16 %v302
      %v583 = vunpack.c.l.b16 %v303
      %v584 = vunpack.c.l.b16 %v304
      %v585 = vunpack.c.l.b16 %v305
      %v586 = vunpack.c.l.b16 %v306
      %v587 = vunpack.c.l.b16 %v307
      %v588 = vunpack.c.l.b16 %v308
      %v589 = vunpack.c.l.b16 %v309
      %v590 = vunpack.c.l.b16 %v310
      %v591 = vunpack.c.l.b16 %v311
      %v592 = vunpack.c.l.b16 %v312
      %v593 = vunpack.c.l.b16 %v313
      %v594 = vunpack.c.l.b16 %v314
      %v595 = vunpack.c.l.b16 %v315
      %v596 = vunpack.c.l.b16 %v316
      %v597 = vunpack.c.l.b16 %v317
      %v598 = vunpack.c.l.b16 %v318
      %v599 = vunpack.c.l.b16 %v319
      %v600 = vunpack.c.l.b16 %v320
      %v601 = vunpack.c.l.b16 %v321
      %v602 = vunpack.c.l.b16 %v322
      %v603 = vunpack.c.l.b16 %v323
      %v604 = vunpack.c.l.b16 %v324
      %v605 = vunpack.c.l.b16 %v325
      %v606 = vunpack.c.l.b16 %v326
      %v607 = vunpack.c.l.b16 %v327
      %v608 = vunpack.c.l.b16 %v328
      %v609 = vunpack.c.l.b16 %v329
      %v610 = vunpack.c.l.b16 %v330
      %v611 = vunpack.c.l.b16 %v331
      %v612 = vunpack.c.l.b16 %v332
      %v613 = vunpack.c.l.b16 %v333
      %v614 = vunpack.c.l.b16 %v334
      %v615 = vunpack.c.l.b16 %v335
      %v616 = vunpack.c.l.b16 %v336
      %v617 = vunpack.c.l.b16 %v337
      %v618 = vunpack.c.l.b16 %v338
      %v619 = vunpack.c.l.b16 %v339
      %v620 = vunpack.c.l.b16 %v340
      %v621 = vunpack.c.l.b16 %v341
      %v622 = vunpack.c.l.b16 %v342
      %v623 = vunpack.c.l.b16 %v343
      %v624 = vunpack.c.l.b16 %v344
      %v625 = vunpack.c.l.b16 %v345
      %v626 = vunpack.c.l.b16 %v346
      %v627 = vunpack.c.l.b16 %v347
      %v628 = vunpack.c.l.b16 %v348
      %v629 = vunpack.c.l.b16 %v349
      %v630 = vunpack.c.l.b16 %v350
      %v631 = vunpack.c.l.b16 %v351
      %v632 = vunpack.c.l.b16 %v352
      %v633 = vunpack.c.l.b16 %v353
      %v634 = vunpack.c.l.b16 %v354
      %v635 = vunpack.c.l.b16 %v355
      %v636 = vunpack.c.l.b16 %v356
      %v637 = vunpack.c.l.b16 %v357
      %v638 = vunpack.c.l.b16 %v358
      %v639 = vpack.c.b16 %v504, %v503
      %v640 = vpack.c.b16 %v506, %v505
      %v641 = vpack.c.b16 %v508, %v507
      %v642 = vpack.c.b16 %v510, %v509
      %v643 = vpack.c.b16 %v512, %v511
      %v644 = vpack.c.b16 %v514, %v513
      %v645 = vpack.c.b16 %v516, %v515
      %v646 = vpack.c.b16 %v518, %v517
      %v647 = vpack.c.b16 %v520, %v519
      %v648 = vpack.c.b16 %v522, %v521
      %v649 = vpack.c.b16 %v524, %v523
      %v650 = vpack.c.b16 %v526, %v525
      %v651 = vpack.c.b16 %v528, %v527
      %v652 = vpack.c.b16 %v530, %v529
      %v653 = vpack.c.b16 %v532, %v531
      %v654 = vpack.c.b16 %v534, %v533
      %v655 = vpack.c.b16 %v536, %v535
      %v656 = vpack.c.b16 %v538, %v537
      %v657 = vpack.c.b16 %v540, %v539
      %v658 = vpack.c.b16 %v542, %v541
      %v659 = vpack.c.b16 %v544, %v543
      %v660 = vpack.c.b16 %v546, %v545
      %v661 = vpack.c.b16 %v548, %v547
      %v662 = vpack.c.b16 %v550, %v549
      %v663 = vpack.c.b16 %v552, %v551
      %v664 = vpack.c.b16 %v554, %v553
      %v665 = vpack.c.b16 %v556, %v555
      %v666 = vpack.c.b16 %v558, %v557
      %v667 = vpack.c.b16 %v560, %v559
      %v668 = vpack.c.b16 %v562, %v561
      %v669 = vpack.c.b16 %v564, %v563
      %v670 = vpack.c.b16 %v566, %v565
      %v671 = vpack.c.b16 %v568, %v567
      %v672 = vpack.c.b16 %v570, %v569
      %v673 = vpack.c.b16 %v572, %v571
      %v674 = vpack.c.b16 %v574, %v573
      %v675 = vpack.c.b16 %v576, %v575
      %v676 = vpack.c.b16 %v578, %v577
      %v677 = vpack.c.b16 %v580, %v579
      %v678 = vpack.c.b16 %v582, %v581
      %v679 = vpack.c.b16 %v584, %v583
      %v680 = vpack.c.b16 %v586, %v585
      %v681 = vpack.c.b16 %v588, %v587
      %v682 = vpack.c.b16 %v590, %v589
      %v683 = vpack.c.b16 %v592, %v591
      %v684 = vpack.c.b16 %v594, %v593
      %v685 = vpack.c.b16 %v596, %v595
      %v686 = vpack.c.b16 %v598, %v597
      %v687 = vpack.c.b16 %v600, %v599
      %v688 = vpack.c.b16 %v602, %v601
      %v689 = vpack.c.b16 %v604, %v603
      %v690 = vpack.c.b16 %v606, %v605
      %v691 = vpack.c.b16 %v608, %v607
      %v692 = vpack.c.b16 %v610, %v609
      %v693 = vpack.c.b16 %v612, %v611
      %v694 = vpack.c.b16 %v614, %v613
      %v695 = vpack.c.b16 %v616, %v615
      %v696 = vpack.c.b16 %v618, %v617
      %v697 = vpack.c.b16 %v620, %v619
      %v698 = vpack.c.b16 %v622, %v621
      %v699 = vpack.c.b16 %v624, %v623
      %v700 = vpack.c.b16 %v626, %v625
      %v701 = vpack.c.b16 %v628, %v627
      %v702 = vpack.c.b16 %v630, %v629
      %v703 = vpack.c.b16 %v632, %v631
      %v704 = vpack.c.b16 %v634, %v633
      %v705 = vpack.c.b16 %v636, %v635
      %v706 = vpack.c.b16 %v638, %v637
      %vm707 = vcmask 64512
      %v709 = vsel %vm707, %v639, 0
      %v712 = vsel %vm707, %v640, 0
      %v715 = vsel %vm707, %v641, 0
      %v718 = vsel %vm707, %v642, 0
      %v721 = vsel %vm707, %v643, 0
      %v724 = vsel %vm707, %v644, 0
      %v727 = vsel %vm707, %v645, 0
      %v730 = vsel %vm707, %v646, 0
      %v733 = vsel %vm707, %v647, 0
      %v736 = vsel %vm707, %v648, 0
      %v739 = vsel %vm707, %v649, 0
      %v742 = vsel %vm707, %v650, 0
      %v745 = vsel %vm707, %v651, 0
      %v748 = vsel %vm707, %v652, 0
      %v751 = vsel %vm707, %v653, 0
      %v754 = vsel %vm707, %v654, 0
      %v757 = vsel %vm707, %v655, 0
      %v760 = vsel %vm707, %v656, 0
      %v763 = vsel %vm707, %v657, 0
      %v766 = vsel %vm707, %v658, 0
      %v769 = vsel %vm707, %v659, 0
      %v772 = vsel %vm707, %v660, 0
      %v775 = vsel %vm707, %v661, 0
      %v778 = vsel %vm707, %v662, 0
      %v781 = vsel %vm707, %v663, 0
      %v784 = vsel %vm707, %v664, 0
      %v787 = vsel %vm707, %v665, 0
      %v790 = vsel %vm707, %v666, 0
      %v793 = vsel %vm707, %v667, 0
      %v796 = vsel %vm707, %v668, 0
      %v799 = vsel %vm707, %v669, 0
      %v802 = vsel %vm707, %v670, 0
      %v805 = vsel %vm707, %v671, 0
      %v808 = vsel %vm707, %v672, 0
      %v811 = vsel %vm707, %v673, 0
      %v814 = vsel %vm707, %v674, 0
      %v817 = vsel %vm707, %v675, 0
      %v820 = vsel %vm707, %v676, 0
      %v823 = vsel %vm707, %v677, 0
      %v826 = vsel %vm707, %v678, 0
      %v829 = vsel %vm707, %v679, 0
      %v832 = vsel %vm707, %v680, 0
      %v835 = vsel %vm707, %v681, 0
      %v838 = vsel %vm707, %v682, 0
      %v841 = vsel %vm707, %v683, 0
      %v844 = vsel %vm707, %v684, 0
      %v847 = vsel %vm707, %v685, 0
      %v850 = vsel %vm707, %v686, 0
      %v853 = vsel %vm707, %v687, 0
      %v856 = vsel %vm707, %v688, 0
      %v859 = vsel %vm707, %v689, 0
      %v862 = vsel %vm707, %v690, 0
      %v865 = vsel %vm707, %v691, 0
      %v868 = vsel %vm707, %v692, 0
      %v871 = vsel %vm707, %v693, 0
      %v874 = vsel %vm707, %v694, 0
      %v877 = vsel %vm707, %v695, 0
      %v880 = vsel %vm707, %v696, 0
      %v883 = vsel %vm707, %v697, 0
      %v886 = vsel %vm707, %v698, 0
      %v889 = vsel %vm707, %v699, 0
      %v892 = vsel %vm707, %v700, 0
      %v895 = vsel %vm707, %v701, 0
      %v898 = vsel %vm707, %v702, 0
      %v901 = vsel %vm707, %v703, 0
      %v904 = vsel %vm707, %v704, 0
      %v907 = vsel %vm707, %v705, 0
      %v910 = vsel %vm707, %v706, 0
      %vm912 = vcmask 1043456
      %v914 = vsel %vm912, %v359, 0
      %916 = vmatprep.subr.bf16.mxu0 0
      %917 = vmatpush1.bf16.msra.mxu0 %v914
      %918 = vmatprep.subr.bf16.mxu0 0
      %919 = vmatpush1.bf16.msra.mxu0 0
      %920 = vmatprep.subr.bf16.mxu0 0
      %921 = vmatpush1.bf16.msra.mxu0 0
      %922 = vmatprep.subr.bf16.mxu0 0
      %923 = vmatpush1.bf16.msra.mxu0 0
      %924 = vmatprep.subr.bf16.mxu0 0
      %925 = vmatpush1.bf16.msra.mxu0 0
      %926 = vmatprep.subr.bf16.mxu0 0
      %927 = vmatpush1.bf16.msra.mxu0 0
      %928 = vmatprep.subr.bf16.mxu0 0
      %929 = vmatpush1.bf16.msra.mxu0 0
      %930 = vmatprep.subr.bf16.mxu0 0
      %931 = vmatpush1.bf16.msra.mxu0 0
      %932 = vmatprep.subr.bf16.mxu0 0
      %933 = vmatpush1.bf16.msra.mxu0 0
      %934 = vmatprep.subr.bf16.mxu0 0
      %935 = vmatpush1.bf16.msra.mxu0 0
      %936 = vmatprep.subr.bf16.mxu0 0
      %937 = vmatpush1.bf16.msra.mxu0 0
      %938 = vmatprep.subr.bf16.mxu0 0
      %939 = vmatpush1.bf16.msra.mxu0 0
      %940 = vmatprep.subr.bf16.mxu0 0
      %941 = vmatpush1.bf16.msra.mxu0 0
      %942 = vmatprep.subr.bf16.mxu0 0
      %943 = vmatpush1.bf16.msra.mxu0 0
      %944 = vmatprep.subr.bf16.mxu0 0
      %945 = vmatpush1.bf16.msra.mxu0 0
      %946 = vmatprep.subr.bf16.mxu0 0
      %947 = vmatpush1.bf16.msra.mxu0 0
      %948 = vmatprep.mubr.bf16.mxu0 0
      %949 = vmatmul.mubr.bf16.gmra.mrb[0].mxu0 %v709
      %v950 = vpop.f32.mrb[0].mxu0
      %v951 = vadd.f32 %v365, %v950
      %v952 = vpop.f32.mrb[0].mxu0
      %v953 = vpop.f32.mrb[0].mxu0
      %v954 = vadd.f32 %v365, %v953
      %v955 = vpop.f32.mrb[0].mxu0
      %956 = vmatprep.mubr.bf16.mxu0 0
      %957 = vmatmul.mubr.bf16.gmra.mrb[0].mxu0 %v712
      %v958 = vpop.f32.mrb[0].mxu0
      %v959 = vadd.f32 %v365, %v958
      %v960 = vpop.f32.mrb[0].mxu0
      %v961 = vpop.f32.mrb[0].mxu0
      %v962 = vadd.f32 %v365, %v961
      %v963 = vpop.f32.mrb[0].mxu0
      %964 = vmatprep.mubr.bf16.mxu0 0
      %965 = vmatmul.mubr.bf16.gmra.mrb[0].mxu0 %v715
      %v966 = vpop.f32.mrb[0].mxu0
      %v967 = vadd.f32 %v365, %v966
      %v968 = vpop.f32.mrb[0].mxu0
      %v969 = vpop.f32.mrb[0].mxu0
      %v970 = vadd.f32 %v365, %v969
      %v971 = vpop.f32.mrb[0].mxu0
      %972 = vmatprep.mubr.bf16.mxu0 0
      %973 = vmatmul.mubr.bf16.gmra.mrb[0].mxu0 %v718
      %v974 = vpop.f32.mrb[0].mxu0
      %v975 = vadd.f32 %v365, %v974
      %v976 = vpop.f32.mrb[0].mxu0
      %v977 = vpop.f32.mrb[0].mxu0
      %v978 = vadd.f32 %v365, %v977
      %v979 = vpop.f32.mrb[0].mxu0
      %980 = vmatprep.mubr.bf16.mxu0 0
      %981 = vmatmul.mubr.bf16.gmra.mrb[0].mxu0 %v721
      %v982 = vpop.f32.mrb[0].mxu0
      %v983 = vadd.f32 %v365, %v982
      %v984 = vpop.f32.mrb[0].mxu0
      %v985 = vpop.f32.mrb[0].mxu0
      %v986 = vadd.f32 %v365, %v985
      %v987 = vpop.f32.mrb[0].mxu0
      %988 = vmatprep.mubr.bf16.mxu0 0
      %989 = vmatmul.mubr.bf16.gmra.mrb[0].mxu0 %v724
      %v990 = vpop.f32.mrb[0].mxu0
      %v991 = vadd.f32 %v365, %v990
      %v992 = vpop.f32.mrb[0].mxu0
      %v993 = vpop.f32.mrb[0].mxu0
      %v994 = vadd.f32 %v365, %v993
      %v995 = vpop.f32.mrb[0].mxu0
      %996 = vmatprep.mubr.bf16.mxu0 0
      %997 = vmatmul.mubr.bf16.gmra.mrb[0].mxu0 %v727
      %v998 = vpop.f32.mrb[0].mxu0
      %v999 = vadd.f32 %v365, %v998
      %v1000 = vpop.f32.mrb[0].mxu0
      %v1001 = vpop.f32.mrb[0].mxu0
      %v1002 = vadd.f32 %v365, %v1001
      %v1003 = vpop.f32.mrb[0].mxu0
      %1004 = vmatprep.mubr.bf16.mxu0 0
      %1005 = vmatmul.mubr.bf16.gmra.mrb[0].mxu0 %v730
      %v1006 = vpop.f32.mrb[0].mxu0
      %v1007 = vadd.f32 %v365, %v1006
      %v1008 = vpop.f32.mrb[0].mxu0
      %v1009 = vpop.f32.mrb[0].mxu0
      %v1010 = vadd.f32 %v365, %v1009
      %v1011 = vpop.f32.mrb[0].mxu0
      %1012 = vmatprep.mubr.bf16.mxu0 0
      %1013 = vmatmul.mubr.bf16.gmra.mrb[0].mxu0 %v733
      %v1014 = vpop.f32.mrb[0].mxu0
      %v1015 = vadd.f32 %v365, %v1014
      %v1016 = vpop.f32.mrb[0].mxu0
      %v1017 = vpop.f32.mrb[0].mxu0
      %v1018 = vadd.f32 %v365, %v1017
      %v1019 = vpop.f32.mrb[0].mxu0
      %1020 = vmatprep.mubr.bf16.mxu0 0
      %1021 = vmatmul.mubr.bf16.gmra.mrb[0].mxu0 %v736
      %v1022 = vpop.f32.mrb[0].mxu0
      %v1023 = vadd.f32 %v365, %v1022
      %v1024 = vpop.f32.mrb[0].mxu0
      %v1025 = vpop.f32.mrb[0].mxu0
      %v1026 = vadd.f32 %v365, %v1025
      %v1027 = vpop.f32.mrb[0].mxu0
      %1028 = vmatprep.mubr.bf16.mxu0 0
      %1029 = vmatmul.mubr.bf16.gmra.mrb[0].mxu0 %v739
      %v1030 = vpop.f32.mrb[0].mxu0
      %v1031 = vadd.f32 %v365, %v1030
      %v1032 = vpop.f32.mrb[0].mxu0
      %v1033 = vpop.f32.mrb[0].mxu0
      %v1034 = vadd.f32 %v365, %v1033
      %v1035 = vpop.f32.mrb[0].mxu0
      %1036 = vmatprep.mubr.bf16.mxu0 0
      %1037 = vmatmul.mubr.bf16.gmra.mrb[0].mxu0 %v742
      %v1038 = vpop.f32.mrb[0].mxu0
      %v1039 = vadd.f32 %v365, %v1038
      %v1040 = vpop.f32.mrb[0].mxu0
      %v1041 = vpop.f32.mrb[0].mxu0
      %v1042 = vadd.f32 %v365, %v1041
      %v1043 = vpop.f32.mrb[0].mxu0
      %1044 = vmatprep.mubr.bf16.mxu0 0
      %1045 = vmatmul.mubr.bf16.gmra.mrb[0].mxu0 %v745
      %v1046 = vpop.f32.mrb[0].mxu0
      %v1047 = vadd.f32 %v365, %v1046
      %v1048 = vpop.f32.mrb[0].mxu0
      %v1049 = vpop.f32.mrb[0].mxu0
      %v1050 = vadd.f32 %v365, %v1049
      %v1051 = vpop.f32.mrb[0].mxu0
      %1052 = vmatprep.mubr.bf16.mxu0 0
      %1053 = vmatmul.mubr.bf16.gmra.mrb[0].mxu0 %v748
      %v1054 = vpop.f32.mrb[0].mxu0
      %v1055 = vadd.f32 %v365, %v1054
      %v1056 = vpop.f32.mrb[0].mxu0
      %v1057 = vpop.f32.mrb[0].mxu0
      %v1058 = vadd.f32 %v365, %v1057
      %v1059 = vpop.f32.mrb[0].mxu0
      %1060 = vmatprep.mubr.bf16.mxu0 0
      %1061 = vmatmul.mubr.bf16.gmra.mrb[0].mxu0 %v751
      %v1062 = vpop.f32.mrb[0].mxu0
      %v1063 = vadd.f32 %v365, %v1062
      %v1064 = vpop.f32.mrb[0].mxu0
      %v1065 = vpop.f32.mrb[0].mxu0
      %v1066 = vadd.f32 %v365, %v1065
      %v1067 = vpop.f32.mrb[0].mxu0
      %1068 = vmatprep.mubr.bf16.mxu0 0
      %1069 = vmatmul.mubr.bf16.gmra.mrb[0].mxu0 %v754
      %v1070 = vpop.f32.mrb[0].mxu0
      %v1071 = vadd.f32 %v365, %v1070
      %v1072 = vpop.f32.mrb[0].mxu0
      %v1073 = vpop.f32.mrb[0].mxu0
      %v1074 = vadd.f32 %v365, %v1073
      %v1075 = vpop.f32.mrb[0].mxu0
      %1076 = vmatprep.mubr.bf16.mxu0 0
      %1077 = vmatmul.mubr.bf16.gmra.mrb[0].mxu0 %v757
      %v1078 = vpop.f32.mrb[0].mxu0
      %v1079 = vadd.f32 %v365, %v1078
      %v1080 = vpop.f32.mrb[0].mxu0
      %v1081 = vpop.f32.mrb[0].mxu0
      %v1082 = vadd.f32 %v365, %v1081
      %v1083 = vpop.f32.mrb[0].mxu0
      %1084 = vmatprep.mubr.bf16.mxu0 0
      %1085 = vmatmul.mubr.bf16.gmra.mrb[0].mxu0 %v760
      %v1086 = vpop.f32.mrb[0].mxu0
      %v1087 = vadd.f32 %v365, %v1086
      %v1088 = vpop.f32.mrb[0].mxu0
      %v1089 = vpop.f32.mrb[0].mxu0
      %v1090 = vadd.f32 %v365, %v1089
      %v1091 = vpop.f32.mrb[0].mxu0
      %1092 = vmatprep.mubr.bf16.mxu0 0
      %1093 = vmatmul.mubr.bf16.gmra.mrb[0].mxu0 %v763
      %v1094 = vpop.f32.mrb[0].mxu0
      %v1095 = vadd.f32 %v365, %v1094
      %v1096 = vpop.f32.mrb[0].mxu0
      %v1097 = vpop.f32.mrb[0].mxu0
      %v1098 = vadd.f32 %v365, %v1097
      %v1099 = vpop.f32.mrb[0].mxu0
      %1100 = vmatprep.mubr.bf16.mxu0 0
      %1101 = vmatmul.mubr.bf16.gmra.mrb[0].mxu0 %v766
      %v1102 = vpop.f32.mrb[0].mxu0
      %v1103 = vadd.f32 %v365, %v1102
      %v1104 = vpop.f32.mrb[0].mxu0
      %v1105 = vpop.f32.mrb[0].mxu0
      %v1106 = vadd.f32 %v365, %v1105
      %v1107 = vpop.f32.mrb[0].mxu0
      %1108 = vmatprep.mubr.bf16.mxu0 0
      %1109 = vmatmul.mubr.bf16.gmra.mrb[0].mxu0 %v769
      %v1110 = vpop.f32.mrb[0].mxu0
      %v1111 = vadd.f32 %v365, %v1110
      %v1112 = vpop.f32.mrb[0].mxu0
      %v1113 = vpop.f32.mrb[0].mxu0
      %v1114 = vadd.f32 %v365, %v1113
      %v1115 = vpop.f32.mrb[0].mxu0
      %1116 = vmatprep.mubr.bf16.mxu0 0
      %1117 = vmatmul.mubr.bf16.gmra.mrb[0].mxu0 %v772
      %v1118 = vpop.f32.mrb[0].mxu0
      %v1119 = vadd.f32 %v365, %v1118
      %v1120 = vpop.f32.mrb[0].mxu0
      %v1121 = vpop.f32.mrb[0].mxu0
      %v1122 = vadd.f32 %v365, %v1121
      %v1123 = vpop.f32.mrb[0].mxu0
      %1124 = vmatprep.mubr.bf16.mxu0 0
      %1125 = vmatmul.mubr.bf16.gmra.mrb[0].mxu0 %v775
      %v1126 = vpop.f32.mrb[0].mxu0
      %v1127 = vadd.f32 %v365, %v1126
      %v1128 = vpop.f32.mrb[0].mxu0
      %v1129 = vpop.f32.mrb[0].mxu0
      %v1130 = vadd.f32 %v365, %v1129
      %v1131 = vpop.f32.mrb[0].mxu0
      %1132 = vmatprep.mubr.bf16.mxu0 0
      %1133 = vmatmul.mubr.bf16.gmra.mrb[0].mxu0 %v778
      %v1134 = vpop.f32.mrb[0].mxu0
      %v1135 = vadd.f32 %v365, %v1134
      %v1136 = vpop.f32.mrb[0].mxu0
      %v1137 = vpop.f32.mrb[0].mxu0
      %v1138 = vadd.f32 %v365, %v1137
      %v1139 = vpop.f32.mrb[0].mxu0
      %1140 = vmatprep.mubr.bf16.mxu0 0
      %1141 = vmatmul.mubr.bf16.gmra.mrb[0].mxu0 %v781
      %v1142 = vpop.f32.mrb[0].mxu0
      %v1143 = vadd.f32 %v365, %v1142
      %v1144 = vpop.f32.mrb[0].mxu0
      %v1145 = vpop.f32.mrb[0].mxu0
      %v1146 = vadd.f32 %v365, %v1145
      %v1147 = vpop.f32.mrb[0].mxu0
      %1148 = vmatprep.mubr.bf16.mxu0 0
      %1149 = vmatmul.mubr.bf16.gmra.mrb[0].mxu0 %v784
      %v1150 = vpop.f32.mrb[0].mxu0
      %v1151 = vadd.f32 %v365, %v1150
      %v1152 = vpop.f32.mrb[0].mxu0
      %v1153 = vpop.f32.mrb[0].mxu0
      %v1154 = vadd.f32 %v365, %v1153
      %v1155 = vpop.f32.mrb[0].mxu0
      %1156 = vmatprep.mubr.bf16.mxu0 0
      %1157 = vmatmul.mubr.bf16.gmra.mrb[0].mxu0 %v787
      %v1158 = vpop.f32.mrb[0].mxu0
      %v1159 = vadd.f32 %v365, %v1158
      %v1160 = vpop.f32.mrb[0].mxu0
      %v1161 = vpop.f32.mrb[0].mxu0
      %v1162 = vadd.f32 %v365, %v1161
      %v1163 = vpop.f32.mrb[0].mxu0
      %1164 = vmatprep.mubr.bf16.mxu0 0
      %1165 = vmatmul.mubr.bf16.gmra.mrb[0].mxu0 %v790
      %v1166 = vpop.f32.mrb[0].mxu0
      %v1167 = vadd.f32 %v365, %v1166
      %v1168 = vpop.f32.mrb[0].mxu0
      %v1169 = vpop.f32.mrb[0].mxu0
      %v1170 = vadd.f32 %v365, %v1169
      %v1171 = vpop.f32.mrb[0].mxu0
      %1172 = vmatprep.mubr.bf16.mxu0 0
      %1173 = vmatmul.mubr.bf16.gmra.mrb[0].mxu0 %v793
      %v1174 = vpop.f32.mrb[0].mxu0
      %v1175 = vadd.f32 %v365, %v1174
      %v1176 = vpop.f32.mrb[0].mxu0
      %v1177 = vpop.f32.mrb[0].mxu0
      %v1178 = vadd.f32 %v365, %v1177
      %v1179 = vpop.f32.mrb[0].mxu0
      %1180 = vmatprep.mubr.bf16.mxu0 0
      %1181 = vmatmul.mubr.bf16.gmra.mrb[0].mxu0 %v796
      %v1182 = vpop.f32.mrb[0].mxu0
      %v1183 = vadd.f32 %v365, %v1182
      %v1184 = vpop.f32.mrb[0].mxu0
      %v1185 = vpop.f32.mrb[0].mxu0
      %v1186 = vadd.f32 %v365, %v1185
      %v1187 = vpop.f32.mrb[0].mxu0
      %1188 = vmatprep.mubr.bf16.mxu0 0
      %1189 = vmatmul.mubr.bf16.gmra.mrb[0].mxu0 %v799
      %v1190 = vpop.f32.mrb[0].mxu0
      %v1191 = vadd.f32 %v365, %v1190
      %v1192 = vpop.f32.mrb[0].mxu0
      %v1193 = vpop.f32.mrb[0].mxu0
      %v1194 = vadd.f32 %v365, %v1193
      %v1195 = vpop.f32.mrb[0].mxu0
      %1196 = vmatprep.mubr.bf16.mxu0 0
      %1197 = vmatmul.mubr.bf16.gmra.mrb[0].mxu0 %v802
      %v1198 = vpop.f32.mrb[0].mxu0
      %v1199 = vadd.f32 %v365, %v1198
      %v1200 = vpop.f32.mrb[0].mxu0
      %v1201 = vpop.f32.mrb[0].mxu0
      %v1202 = vadd.f32 %v365, %v1201
      %v1203 = vpop.f32.mrb[0].mxu0
      %1204 = vmatprep.mubr.bf16.mxu0 0
      %1205 = vmatmul.mubr.bf16.gmra.mrb[0].mxu0 %v805
      %v1206 = vpop.f32.mrb[0].mxu0
      %v1207 = vadd.f32 %v365, %v1206
      %v1208 = vpop.f32.mrb[0].mxu0
      %v1209 = vpop.f32.mrb[0].mxu0
      %v1210 = vadd.f32 %v365, %v1209
      %v1211 = vpop.f32.mrb[0].mxu0
      %1212 = vmatprep.mubr.bf16.mxu0 0
      %1213 = vmatmul.mubr.bf16.gmra.mrb[0].mxu0 %v808
      %v1214 = vpop.f32.mrb[0].mxu0
      %v1215 = vadd.f32 %v365, %v1214
      %v1216 = vpop.f32.mrb[0].mxu0
      %v1217 = vpop.f32.mrb[0].mxu0
      %v1218 = vadd.f32 %v365, %v1217
      %v1219 = vpop.f32.mrb[0].mxu0
      %1220 = vmatprep.mubr.bf16.mxu0 0
      %1221 = vmatmul.mubr.bf16.gmra.mrb[0].mxu0 %v811
      %v1222 = vpop.f32.mrb[0].mxu0
      %v1223 = vadd.f32 %v365, %v1222
      %v1224 = vpop.f32.mrb[0].mxu0
      %v1225 = vpop.f32.mrb[0].mxu0
      %v1226 = vadd.f32 %v365, %v1225
      %v1227 = vpop.f32.mrb[0].mxu0
      %1228 = vmatprep.mubr.bf16.mxu0 0
      %1229 = vmatmul.mubr.bf16.gmra.mrb[0].mxu0 %v814
      %v1230 = vpop.f32.mrb[0].mxu0
      %v1231 = vadd.f32 %v365, %v1230
      %v1232 = vpop.f32.mrb[0].mxu0
      %v1233 = vpop.f32.mrb[0].mxu0
      %v1234 = vadd.f32 %v365, %v1233
      %v1235 = vpop.f32.mrb[0].mxu0
      %1236 = vmatprep.mubr.bf16.mxu0 0
      %1237 = vmatmul.mubr.bf16.gmra.mrb[0].mxu0 %v817
      %v1238 = vpop.f32.mrb[0].mxu0
      %v1239 = vadd.f32 %v365, %v1238
      %v1240 = vpop.f32.mrb[0].mxu0
      %v1241 = vpop.f32.mrb[0].mxu0
      %v1242 = vadd.f32 %v365, %v1241
      %v1243 = vpop.f32.mrb[0].mxu0
      %1244 = vmatprep.mubr.bf16.mxu0 0
      %1245 = vmatmul.mubr.bf16.gmra.mrb[0].mxu0 %v820
      %v1246 = vpop.f32.mrb[0].mxu0
      %v1247 = vadd.f32 %v365, %v1246
      %v1248 = vpop.f32.mrb[0].mxu0
      %v1249 = vpop.f32.mrb[0].mxu0
      %v1250 = vadd.f32 %v365, %v1249
      %v1251 = vpop.f32.mrb[0].mxu0
      %1252 = vmatprep.mubr.bf16.mxu0 0
      %1253 = vmatmul.mubr.bf16.gmra.mrb[0].mxu0 %v823
      %v1254 = vpop.f32.mrb[0].mxu0
      %v1255 = vadd.f32 %v365, %v1254
      %v1256 = vpop.f32.mrb[0].mxu0
      %v1257 = vpop.f32.mrb[0].mxu0
      %v1258 = vadd.f32 %v365, %v1257
      %v1259 = vpop.f32.mrb[0].mxu0
      %1260 = vmatprep.mubr.bf16.mxu0 0
      %1261 = vmatmul.mubr.bf16.gmra.mrb[0].mxu0 %v826
      %v1262 = vpop.f32.mrb[0].mxu0
      %v1263 = vadd.f32 %v365, %v1262
      %v1264 = vpop.f32.mrb[0].mxu0
      %v1265 = vpop.f32.mrb[0].mxu0
      %v1266 = vadd.f32 %v365, %v1265
      %v1267 = vpop.f32.mrb[0].mxu0
      %1268 = vmatprep.mubr.bf16.mxu0 0
      %1269 = vmatmul.mubr.bf16.gmra.mrb[0].mxu0 %v829
      %v1270 = vpop.f32.mrb[0].mxu0
      %v1271 = vadd.f32 %v365, %v1270
      %v1272 = vpop.f32.mrb[0].mxu0
      %v1273 = vpop.f32.mrb[0].mxu0
      %v1274 = vadd.f32 %v365, %v1273
      %v1275 = vpop.f32.mrb[0].mxu0
      %1276 = vmatprep.mubr.bf16.mxu0 0
      %1277 = vmatmul.mubr.bf16.gmra.mrb[0].mxu0 %v832
      %v1278 = vpop.f32.mrb[0].mxu0
      %v1279 = vadd.f32 %v365, %v1278
      %v1280 = vpop.f32.mrb[0].mxu0
      %v1281 = vpop.f32.mrb[0].mxu0
      %v1282 = vadd.f32 %v365, %v1281
      %v1283 = vpop.f32.mrb[0].mxu0
      %1284 = vmatprep.mubr.bf16.mxu0 0
      %1285 = vmatmul.mubr.bf16.gmra.mrb[0].mxu0 %v835
      %v1286 = vpop.f32.mrb[0].mxu0
      %v1287 = vadd.f32 %v365, %v1286
      %v1288 = vpop.f32.mrb[0].mxu0
      %v1289 = vpop.f32.mrb[0].mxu0
      %v1290 = vadd.f32 %v365, %v1289
      %v1291 = vpop.f32.mrb[0].mxu0
      %1292 = vmatprep.mubr.bf16.mxu0 0
      %1293 = vmatmul.mubr.bf16.gmra.mrb[0].mxu0 %v838
      %v1294 = vpop.f32.mrb[0].mxu0
      %v1295 = vadd.f32 %v365, %v1294
      %v1296 = vpop.f32.mrb[0].mxu0
      %v1297 = vpop.f32.mrb[0].mxu0
      %v1298 = vadd.f32 %v365, %v1297
      %v1299 = vpop.f32.mrb[0].mxu0
      %1300 = vmatprep.mubr.bf16.mxu0 0
      %1301 = vmatmul.mubr.bf16.gmra.mrb[0].mxu0 %v841
      %v1302 = vpop.f32.mrb[0].mxu0
      %v1303 = vadd.f32 %v365, %v1302
      %v1304 = vpop.f32.mrb[0].mxu0
      %v1305 = vpop.f32.mrb[0].mxu0
      %v1306 = vadd.f32 %v365, %v1305
      %v1307 = vpop.f32.mrb[0].mxu0
      %1308 = vmatprep.mubr.bf16.mxu0 0
      %1309 = vmatmul.mubr.bf16.gmra.mrb[0].mxu0 %v844
      %v1310 = vpop.f32.mrb[0].mxu0
      %v1311 = vadd.f32 %v365, %v1310
      %v1312 = vpop.f32.mrb[0].mxu0
      %v1313 = vpop.f32.mrb[0].mxu0
      %v1314 = vadd.f32 %v365, %v1313
      %v1315 = vpop.f32.mrb[0].mxu0
      %1316 = vmatprep.mubr.bf16.mxu0 0
      %1317 = vmatmul.mubr.bf16.gmra.mrb[0].mxu0 %v847
      %v1318 = vpop.f32.mrb[0].mxu0
      %v1319 = vadd.f32 %v365, %v1318
      %v1320 = vpop.f32.mrb[0].mxu0
      %v1321 = vpop.f32.mrb[0].mxu0
      %v1322 = vadd.f32 %v365, %v1321
      %v1323 = vpop.f32.mrb[0].mxu0
      %1324 = vmatprep.mubr.bf16.mxu0 0
      %1325 = vmatmul.mubr.bf16.gmra.mrb[0].mxu0 %v850
      %v1326 = vpop.f32.mrb[0].mxu0
      %v1327 = vadd.f32 %v365, %v1326
      %v1328 = vpop.f32.mrb[0].mxu0
      %v1329 = vpop.f32.mrb[0].mxu0
      %v1330 = vadd.f32 %v365, %v1329
      %v1331 = vpop.f32.mrb[0].mxu0
      %1332 = vmatprep.mubr.bf16.mxu0 0
      %1333 = vmatmul.mubr.bf16.gmra.mrb[0].mxu0 %v853
      %v1334 = vpop.f32.mrb[0].mxu0
      %v1335 = vadd.f32 %v365, %v1334
      %v1336 = vpop.f32.mrb[0].mxu0
      %v1337 = vpop.f32.mrb[0].mxu0
      %v1338 = vadd.f32 %v365, %v1337
      %v1339 = vpop.f32.mrb[0].mxu0
      %1340 = vmatprep.mubr.bf16.mxu0 0
      %1341 = vmatmul.mubr.bf16.gmra.mrb[0].mxu0 %v856
      %v1342 = vpop.f32.mrb[0].mxu0
      %v1343 = vadd.f32 %v365, %v1342
      %v1344 = vpop.f32.mrb[0].mxu0
      %v1345 = vpop.f32.mrb[0].mxu0
      %v1346 = vadd.f32 %v365, %v1345
      %v1347 = vpop.f32.mrb[0].mxu0
      %1348 = vmatprep.mubr.bf16.mxu0 0
      %1349 = vmatmul.mubr.bf16.gmra.mrb[0].mxu0 %v859
      %v1350 = vpop.f32.mrb[0].mxu0
      %v1351 = vadd.f32 %v365, %v1350
      %v1352 = vpop.f32.mrb[0].mxu0
      %v1353 = vpop.f32.mrb[0].mxu0
      %v1354 = vadd.f32 %v365, %v1353
      %v1355 = vpop.f32.mrb[0].mxu0
      %1356 = vmatprep.mubr.bf16.mxu0 0
      %1357 = vmatmul.mubr.bf16.gmra.mrb[0].mxu0 %v862
      %v1358 = vpop.f32.mrb[0].mxu0
      %v1359 = vadd.f32 %v365, %v1358
      %v1360 = vpop.f32.mrb[0].mxu0
      %v1361 = vpop.f32.mrb[0].mxu0
      %v1362 = vadd.f32 %v365, %v1361
      %v1363 = vpop.f32.mrb[0].mxu0
      %1364 = vmatprep.mubr.bf16.mxu0 0
      %1365 = vmatmul.mubr.bf16.gmra.mrb[0].mxu0 %v865
      %v1366 = vpop.f32.mrb[0].mxu0
      %v1367 = vadd.f32 %v365, %v1366
      %v1368 = vpop.f32.mrb[0].mxu0
      %v1369 = vpop.f32.mrb[0].mxu0
      %v1370 = vadd.f32 %v365, %v1369
      %v1371 = vpop.f32.mrb[0].mxu0
      %1372 = vmatprep.mubr.bf16.mxu0 0
      %1373 = vmatmul.mubr.bf16.gmra.mrb[0].mxu0 %v868
      %v1374 = vpop.f32.mrb[0].mxu0
      %v1375 = vadd.f32 %v365, %v1374
      %v1376 = vpop.f32.mrb[0].mxu0
      %v1377 = vpop.f32.mrb[0].mxu0
      %v1378 = vadd.f32 %v365, %v1377
      %v1379 = vpop.f32.mrb[0].mxu0
      %1380 = vmatprep.mubr.bf16.mxu0 0
      %1381 = vmatmul.mubr.bf16.gmra.mrb[0].mxu0 %v871
      %v1382 = vpop.f32.mrb[0].mxu0
      %v1383 = vadd.f32 %v365, %v1382
      %v1384 = vpop.f32.mrb[0].mxu0
      %v1385 = vpop.f32.mrb[0].mxu0
      %v1386 = vadd.f32 %v365, %v1385
      %v1387 = vpop.f32.mrb[0].mxu0
      %1388 = vmatprep.mubr.bf16.mxu0 0
      %1389 = vmatmul.mubr.bf16.gmra.mrb[0].mxu0 %v874
      %v1390 = vpop.f32.mrb[0].mxu0
      %v1391 = vadd.f32 %v365, %v1390
      %v1392 = vpop.f32.mrb[0].mxu0
      %v1393 = vpop.f32.mrb[0].mxu0
      %v1394 = vadd.f32 %v365, %v1393
      %v1395 = vpop.f32.mrb[0].mxu0
      %1396 = vmatprep.mubr.bf16.mxu0 0
      %1397 = vmatmul.mubr.bf16.gmra.mrb[0].mxu0 %v877
      %v1398 = vpop.f32.mrb[0].mxu0
      %v1399 = vadd.f32 %v365, %v1398
      %v1400 = vpop.f32.mrb[0].mxu0
      %v1401 = vpop.f32.mrb[0].mxu0
      %v1402 = vadd.f32 %v365, %v1401
      %v1403 = vpop.f32.mrb[0].mxu0
      %1404 = vmatprep.mubr.bf16.mxu0 0
      %1405 = vmatmul.mubr.bf16.gmra.mrb[0].mxu0 %v880
      %v1406 = vpop.f32.mrb[0].mxu0
      %v1407 = vadd.f32 %v365, %v1406
      %v1408 = vpop.f32.mrb[0].mxu0
      %v1409 = vpop.f32.mrb[0].mxu0
      %v1410 = vadd.f32 %v365, %v1409
      %v1411 = vpop.f32.mrb[0].mxu0
      %1412 = vmatprep.mubr.bf16.mxu0 0
      %1413 = vmatmul.mubr.bf16.gmra.mrb[0].mxu0 %v883
      %v1414 = vpop.f32.mrb[0].mxu0
      %v1415 = vadd.f32 %v365, %v1414
      %v1416 = vpop.f32.mrb[0].mxu0
      %v1417 = vpop.f32.mrb[0].mxu0
      %v1418 = vadd.f32 %v365, %v1417
      %v1419 = vpop.f32.mrb[0].mxu0
      %1420 = vmatprep.mubr.bf16.mxu0 0
      %1421 = vmatmul.mubr.bf16.gmra.mrb[0].mxu0 %v886
      %v1422 = vpop.f32.mrb[0].mxu0
      %v1423 = vadd.f32 %v365, %v1422
      %v1424 = vpop.f32.mrb[0].mxu0
      %v1425 = vpop.f32.mrb[0].mxu0
      %v1426 = vadd.f32 %v365, %v1425
      %v1427 = vpop.f32.mrb[0].mxu0
      %1428 = vmatprep.mubr.bf16.mxu0 0
      %1429 = vmatmul.mubr.bf16.gmra.mrb[0].mxu0 %v889
      %v1430 = vpop.f32.mrb[0].mxu0
      %v1431 = vadd.f32 %v365, %v1430
      %v1432 = vpop.f32.mrb[0].mxu0
      %v1433 = vpop.f32.mrb[0].mxu0
      %v1434 = vadd.f32 %v365, %v1433
      %v1435 = vpop.f32.mrb[0].mxu0
      %1436 = vmatprep.mubr.bf16.mxu0 0
      %1437 = vmatmul.mubr.bf16.gmra.mrb[0].mxu0 %v892
      %v1438 = vpop.f32.mrb[0].mxu0
      %v1439 = vadd.f32 %v365, %v1438
      %v1440 = vpop.f32.mrb[0].mxu0
      %v1441 = vpop.f32.mrb[0].mxu0
      %v1442 = vadd.f32 %v365, %v1441
      %v1443 = vpop.f32.mrb[0].mxu0
      %1444 = vmatprep.mubr.bf16.mxu0 0
      %1445 = vmatmul.mubr.bf16.gmra.mrb[0].mxu0 %v895
      %v1446 = vpop.f32.mrb[0].mxu0
      %v1447 = vadd.f32 %v365, %v1446
      %v1448 = vpop.f32.mrb[0].mxu0
      %v1449 = vpop.f32.mrb[0].mxu0
      %v1450 = vadd.f32 %v365, %v1449
      %v1451 = vpop.f32.mrb[0].mxu0
      %1452 = vmatprep.mubr.bf16.mxu0 0
      %1453 = vmatmul.mubr.bf16.gmra.mrb[0].mxu0 %v898
      %v1454 = vpop.f32.mrb[0].mxu0
      %v1455 = vadd.f32 %v365, %v1454
      %v1456 = vpop.f32.mrb[0].mxu0
      %v1457 = vpop.f32.mrb[0].mxu0
      %v1458 = vadd.f32 %v365, %v1457
      %v1459 = vpop.f32.mrb[0].mxu0
      %1460 = vmatprep.mubr.bf16.mxu0 0
      %1461 = vmatmul.mubr.bf16.gmra.mrb[0].mxu0 %v901
      %v1462 = vpop.f32.mrb[0].mxu0
      %v1463 = vadd.f32 %v365, %v1462
      %v1464 = vpop.f32.mrb[0].mxu0
      %v1465 = vpop.f32.mrb[0].mxu0
      %v1466 = vadd.f32 %v365, %v1465
      %v1467 = vpop.f32.mrb[0].mxu0
      %1468 = vmatprep.mubr.bf16.mxu0 0
      %1469 = vmatmul.mubr.bf16.gmra.mrb[0].mxu0 %v904
      %v1470 = vpop.f32.mrb[0].mxu0
      %v1471 = vadd.f32 %v365, %v1470
      %v1472 = vpop.f32.mrb[0].mxu0
      %v1473 = vpop.f32.mrb[0].mxu0
      %v1474 = vadd.f32 %v365, %v1473
      %v1475 = vpop.f32.mrb[0].mxu0
      %1476 = vmatprep.mubr.bf16.mxu0 0
      %1477 = vmatmul.mubr.bf16.gmra.mrb[0].mxu0 %v907
      %v1478 = vpop.f32.mrb[0].mxu0
      %v1479 = vadd.f32 %v365, %v1478
      %v1480 = vpop.f32.mrb[0].mxu0
      %v1481 = vpop.f32.mrb[0].mxu0
      %v1482 = vadd.f32 %v365, %v1481
      %v1483 = vpop.f32.mrb[0].mxu0
      %1484 = vmatprep.mubr.bf16.mxu0 0
      %1485 = vmatmul.mubr.bf16.gmra.mrb[0].mxu0 %v910
      %v1486 = vpop.f32.mrb[0].mxu0
      %v1487 = vadd.f32 %v365, %v1486
      %v1488 = vpop.f32.mrb[0].mxu0
      %v1489 = vpop.f32.mrb[0].mxu0
      %v1490 = vadd.f32 %v365, %v1489
      %v1491 = vpop.f32.mrb[0].mxu0
      %1492 = vdwg.mxu0
      %v1493 = vld [vmem:[%s206] sm:$0xf]
      %v1494 = vld [vmem:[%s206 + $0x4] sm:$0xf]
      %v1495 = vld [vmem:[%s206 + $0x8] sm:$0xf]
      %v1496 = vld [vmem:[%s206 + $0xc] sm:$0xf]
      %v1497 = vld [vmem:[%s206 + $0x10] sm:$0xf]
      %v1498 = vld [vmem:[%s206 + $0x14] sm:$0xf]
      %v1499 = vld [vmem:[%s206 + $0x18] sm:$0xf]
      %v1500 = vld [vmem:[%s206 + $0x1c] sm:$0xf]
      %v1501 = vld [vmem:[%s206 + $0x20] sm:$0xf]
      %v1502 = vld [vmem:[%s206 + $0x24] sm:$0xf]
      %v1503 = vld [vmem:[%s206 + $0x28] sm:$0xf]
      %v1504 = vld [vmem:[%s206 + $0x2c] sm:$0xf]
      %v1505 = vld [vmem:[%s206 + $0x30] sm:$0xf]
      %v1506 = vld [vmem:[%s206 + $0x34] sm:$0xf]
      %v1507 = vld [vmem:[%s206 + $0x38] sm:$0xf]
      %v1508 = vld [vmem:[%s206 + $0x3c] sm:$0xf]
      %v1509 = vld [vmem:[%s206 + $0x40] sm:$0xf]
      %v1510 = vld [vmem:[%s206 + $0x44] sm:$0xf]
      %v1511 = vld [vmem:[%s206 + $0x48] sm:$0xf]
      %v1512 = vld [vmem:[%s206 + $0x4c] sm:$0xf]
      %v1513 = vld [vmem:[%s206 + $0x50] sm:$0xf]
      %v1514 = vld [vmem:[%s206 + $0x54] sm:$0xf]
      %v1515 = vld [vmem:[%s206 + $0x58] sm:$0xf]
      %v1516 = vld [vmem:[%s206 + $0x5c] sm:$0xf]
      %v1517 = vld [vmem:[%s206 + $0x60] sm:$0xf]
      %v1518 = vld [vmem:[%s206 + $0x64] sm:$0xf]
      %v1519 = vld [vmem:[%s206 + $0x68] sm:$0xf]
      %v1520 = vld [vmem:[%s206 + $0x6c] sm:$0xf]
      %v1521 = vld [vmem:[%s206 + $0x70] sm:$0xf]
      %v1522 = vld [vmem:[%s206 + $0x74] sm:$0xf]
      %v1523 = vld [vmem:[%s206 + $0x78] sm:$0xf]
      %v1524 = vld [vmem:[%s206 + $0x7c] sm:$0xf]
      %v1525 = vld [vmem:[%s206 + $0x80] sm:$0xf]
      %v1526 = vld [vmem:[%s206 + $0x84] sm:$0xf]
      %v1527 = vld [vmem:[%s206 + $0x88] sm:$0xf]
      %v1528 = vld [vmem:[%s206 + $0x8c] sm:$0xf]
      %v1529 = vld [vmem:[%s206 + $0x90] sm:$0xf]
      %v1530 = vld [vmem:[%s206 + $0x94] sm:$0xf]
      %v1531 = vld [vmem:[%s206 + $0x98] sm:$0xf]
      %v1532 = vld [vmem:[%s206 + $0x9c] sm:$0xf]
      %v1533 = vld [vmem:[%s206 + $0xa0] sm:$0xf]
      %v1534 = vld [vmem:[%s206 + $0xa4] sm:$0xf]
      %v1535 = vld [vmem:[%s206 + $0xa8] sm:$0xf]
      %v1536 = vld [vmem:[%s206 + $0xac] sm:$0xf]
      %v1537 = vld [vmem:[%s206 + $0xb0] sm:$0xf]
      %v1538 = vld [vmem:[%s206 + $0xb4] sm:$0xf]
      %v1539 = vld [vmem:[%s206 + $0xb8] sm:$0xf]
      %v1540 = vld [vmem:[%s206 + $0xbc] sm:$0xf]
      %v1541 = vld [vmem:[%s206 + $0xc0] sm:$0xf]
      %v1542 = vld [vmem:[%s206 + $0xc4] sm:$0xf]
      %v1543 = vld [vmem:[%s206 + $0xc8] sm:$0xf]
      %v1544 = vld [vmem:[%s206 + $0xcc] sm:$0xf]
      %v1545 = vld [vmem:[%s206 + $0xd0] sm:$0xf]
      %v1546 = vld [vmem:[%s206 + $0xd4] sm:$0xf]
      %v1547 = vld [vmem:[%s206 + $0xd8] sm:$0xf]
      %v1548 = vld [vmem:[%s206 + $0xdc] sm:$0xf]
      %v1549 = vld [vmem:[%s206 + $0xe0] sm:$0xf]
      %v1550 = vld [vmem:[%s206 + $0xe4] sm:$0xf]
      %v1551 = vld [vmem:[%s206 + $0xe8] sm:$0xf]
      %v1552 = vld [vmem:[%s206 + $0xec] sm:$0xf]
      %v1553 = vld [vmem:[%s206 + $0xf0] sm:$0xf]
      %v1554 = vld [vmem:[%s206 + $0xf4] sm:$0xf]
      %v1555 = vld [vmem:[%s206 + $0xf8] sm:$0xf]
      %v1556 = vld [vmem:[%s206 + $0xfc] sm:$0xf]
      %v1557 = vld [vmem:[%s206 + $0x100] sm:$0xf]
      %v1558 = vld [vmem:[%s206 + $0x104] sm:$0xf]
      %v1559 = vld [vmem:[%s206 + $0x108] sm:$0xf]
      %v1560 = vld [vmem:[%s206 + $0x10c] sm:$0xf]
      %v1561 = vld [vmem:[%s206 + $0x110] sm:$0xf]
      %v1562 = vld [vmem:[%s206 + $0x114] sm:$0xf]
      %v1563 = vld [vmem:[%s206 + $0x118] sm:$0xf]
      %v1564 = vld [vmem:[%s206 + $0x11c] sm:$0xf]
      %v1565 = vld [vmem:[%s206 + $0x120] sm:$0xf]
      %v1566 = vld [vmem:[%s206 + $0x124] sm:$0xf]
      %v1567 = vld [vmem:[%s206 + $0x128] sm:$0xf]
      %v1568 = vld [vmem:[%s206 + $0x12c] sm:$0xf]
      %v1569 = vld [vmem:[%s206 + $0x130] sm:$0xf]
      %v1570 = vld [vmem:[%s206 + $0x134] sm:$0xf]
      %v1571 = vld [vmem:[%s206 + $0x138] sm:$0xf]
      %v1572 = vld [vmem:[%s206 + $0x13c] sm:$0xf]
      %v1573 = vld [vmem:[%s206 + $0x140] sm:$0xf]
      %v1574 = vld [vmem:[%s206 + $0x144] sm:$0xf]
      %v1575 = vld [vmem:[%s206 + $0x148] sm:$0xf]
      %v1576 = vld [vmem:[%s206 + $0x14c] sm:$0xf]
      %v1577 = vld [vmem:[%s206 + $0x150] sm:$0xf]
      %v1578 = vld [vmem:[%s206 + $0x154] sm:$0xf]
      %v1579 = vld [vmem:[%s206 + $0x158] sm:$0xf]
      %v1580 = vld [vmem:[%s206 + $0x15c] sm:$0xf]
      %v1581 = vld [vmem:[%s206 + $0x160] sm:$0xf]
      %v1582 = vld [vmem:[%s206 + $0x164] sm:$0xf]
      %v1583 = vld [vmem:[%s206 + $0x168] sm:$0xf]
      %v1584 = vld [vmem:[%s206 + $0x16c] sm:$0xf]
      %v1585 = vld [vmem:[%s206 + $0x170] sm:$0xf]
      %v1586 = vld [vmem:[%s206 + $0x174] sm:$0xf]
      %v1587 = vld [vmem:[%s206 + $0x178] sm:$0xf]
      %v1588 = vld [vmem:[%s206 + $0x17c] sm:$0xf]
      %v1589 = vld [vmem:[%s206 + $0x180] sm:$0xf]
      %v1590 = vld [vmem:[%s206 + $0x184] sm:$0xf]
      %v1591 = vld [vmem:[%s206 + $0x188] sm:$0xf]
      %v1592 = vld [vmem:[%s206 + $0x18c] sm:$0xf]
      %v1593 = vld [vmem:[%s206 + $0x190] sm:$0xf]
      %v1594 = vld [vmem:[%s206 + $0x194] sm:$0xf]
      %v1595 = vld [vmem:[%s206 + $0x198] sm:$0xf]
      %v1596 = vld [vmem:[%s206 + $0x19c] sm:$0xf]
      %v1597 = vld [vmem:[%s206 + $0x1a0] sm:$0xf]
      %v1598 = vld [vmem:[%s206 + $0x1a4] sm:$0xf]
      %v1599 = vld [vmem:[%s206 + $0x1a8] sm:$0xf]
      %v1600 = vld [vmem:[%s206 + $0x1ac] sm:$0xf]
      %v1601 = vld [vmem:[%s206 + $0x1b0] sm:$0xf]
      %v1602 = vld [vmem:[%s206 + $0x1b4] sm:$0xf]
      %v1603 = vld [vmem:[%s206 + $0x1b8] sm:$0xf]
      %v1604 = vld [vmem:[%s206 + $0x1bc] sm:$0xf]
      %v1605 = vld [vmem:[%s206 + $0x1c0] sm:$0xf]
      %v1606 = vld [vmem:[%s206 + $0x1c4] sm:$0xf]
      %v1607 = vld [vmem:[%s206 + $0x1c8] sm:$0xf]
      %v1608 = vld [vmem:[%s206 + $0x1cc] sm:$0xf]
      %v1609 = vld [vmem:[%s206 + $0x1d0] sm:$0xf]
      %v1610 = vld [vmem:[%s206 + $0x1d4] sm:$0xf]
      %v1611 = vld [vmem:[%s206 + $0x1d8] sm:$0xf]
      %v1612 = vld [vmem:[%s206 + $0x1dc] sm:$0xf]
      %v1613 = vld [vmem:[%s206 + $0x1e0] sm:$0xf]
      %v1614 = vld [vmem:[%s206 + $0x1e4] sm:$0xf]
      %v1615 = vld [vmem:[%s206 + $0x1e8] sm:$0xf]
      %v1616 = vld [vmem:[%s206 + $0x1ec] sm:$0xf]
      %v1617 = vld [vmem:[%s206 + $0x1f0] sm:$0xf]
      %v1618 = vld [vmem:[%s206 + $0x1f4] sm:$0xf]
      %v1619 = vld [vmem:[%s206 + $0x1f8] sm:$0xf]
      %v1620 = vld [vmem:[%s206 + $0x1fc] sm:$0xf]
      %v1621 = vld [vmem:[%s206 + $0x200] sm:$0xf]
      %v1622 = vld [vmem:[%s206 + $0x204] sm:$0xf]
      %v1623 = vld [vmem:[%s206 + $0x208] sm:$0xf]
      %v1624 = vld [vmem:[%s206 + $0x20c] sm:$0xf]
      %v1625 = vld [vmem:[%s206 + $0x210] sm:$0xf]
      %v1626 = vld [vmem:[%s206 + $0x214] sm:$0xf]
      %v1627 = vld [vmem:[%s206 + $0x218] sm:$0xf]
      %v1628 = vld [vmem:[%s206 + $0x21c] sm:$0xf]
      %v1629 = vld [vmem:[%s206 + $0x220] sm:$0x1]
      %s1630 = scalar_lea.vmem %s210, 4
      %v1631 = vld [vmem:[%s1630] sm:$0xf]
      %v1769 = vunpack.c.l.b16 %v1493
      %v1770 = vunpack.c.l.b16 %v1494
      %v1771 = vunpack.c.l.b16 %v1495
      %v1772 = vunpack.c.l.b16 %v1496
      %v1773 = vunpack.c.l.b16 %v1497
      %v1774 = vunpack.c.l.b16 %v1498
      %v1775 = vunpack.c.l.b16 %v1499
      %v1776 = vunpack.c.l.b16 %v1500
      %v1777 = vunpack.c.l.b16 %v1501
      %v1778 = vunpack.c.l.b16 %v1502
      %v1779 = vunpack.c.l.b16 %v1503
      %v1780 = vunpack.c.l.b16 %v1504
      %v1781 = vunpack.c.l.b16 %v1505
      %v1782 = vunpack.c.l.b16 %v1506
      %v1783 = vunpack.c.l.b16 %v1507
      %v1784 = vunpack.c.l.b16 %v1508
      %v1785 = vunpack.c.l.b16 %v1509
      %v1786 = vunpack.c.l.b16 %v1510
      %v1787 = vunpack.c.l.b16 %v1511
      %v1788 = vunpack.c.l.b16 %v1512
      %v1789 = vunpack.c.l.b16 %v1513
      %v1790 = vunpack.c.l.b16 %v1514
      %v1791 = vunpack.c.l.b16 %v1515
      %v1792 = vunpack.c.l.b16 %v1516
      %v1793 = vunpack.c.l.b16 %v1517
      %v1794 = vunpack.c.l.b16 %v1518
      %v1795 = vunpack.c.l.b16 %v1519
      %v1796 = vunpack.c.l.b16 %v1520
      %v1797 = vunpack.c.l.b16 %v1521
      %v1798 = vunpack.c.l.b16 %v1522
      %v1799 = vunpack.c.l.b16 %v1523
      %v1800 = vunpack.c.l.b16 %v1524
      %v1801 = vunpack.c.l.b16 %v1525
      %v1802 = vunpack.c.l.b16 %v1526
      %v1803 = vunpack.c.l.b16 %v1527
      %v1804 = vunpack.c.l.b16 %v1528
      %v1805 = vunpack.c.l.b16 %v1529
      %v1806 = vunpack.c.l.b16 %v1530
      %v1807 = vunpack.c.l.b16 %v1531
      %v1808 = vunpack.c.l.b16 %v1532
      %v1809 = vunpack.c.l.b16 %v1533
      %v1810 = vunpack.c.l.b16 %v1534
      %v1811 = vunpack.c.l.b16 %v1535
      %v1812 = vunpack.c.l.b16 %v1536
      %v1813 = vunpack.c.l.b16 %v1537
      %v1814 = vunpack.c.l.b16 %v1538
      %v1815 = vunpack.c.l.b16 %v1539
      %v1816 = vunpack.c.l.b16 %v1540
      %v1817 = vunpack.c.l.b16 %v1541
      %v1818 = vunpack.c.l.b16 %v1542
      %v1819 = vunpack.c.l.b16 %v1543
      %v1820 = vunpack.c.l.b16 %v1544
      %v1821 = vunpack.c.l.b16 %v1545
      %v1822 = vunpack.c.l.b16 %v1546
      %v1823 = vunpack.c.l.b16 %v1547
      %v1824 = vunpack.c.l.b16 %v1548
      %v1825 = vunpack.c.l.b16 %v1549
      %v1826 = vunpack.c.l.b16 %v1550
      %v1827 = vunpack.c.l.b16 %v1551
      %v1828 = vunpack.c.l.b16 %v1552
      %v1829 = vunpack.c.l.b16 %v1553
      %v1830 = vunpack.c.l.b16 %v1554
      %v1831 = vunpack.c.l.b16 %v1555
      %v1832 = vunpack.c.l.b16 %v1556
      %v1833 = vunpack.c.l.b16 %v1557
      %v1834 = vunpack.c.l.b16 %v1558
      %v1835 = vunpack.c.l.b16 %v1559
      %v1836 = vunpack.c.l.b16 %v1560
      %v1837 = vunpack.c.l.b16 %v1561
      %v1838 = vunpack.c.l.b16 %v1562
      %v1839 = vunpack.c.l.b16 %v1563
      %v1840 = vunpack.c.l.b16 %v1564
      %v1841 = vunpack.c.l.b16 %v1565
      %v1842 = vunpack.c.l.b16 %v1566
      %v1843 = vunpack.c.l.b16 %v1567
      %v1844 = vunpack.c.l.b16 %v1568
      %v1845 = vunpack.c.l.b16 %v1569
      %v1846 = vunpack.c.l.b16 %v1570
      %v1847 = vunpack.c.l.b16 %v1571
      %v1848 = vunpack.c.l.b16 %v1572
      %v1849 = vunpack.c.l.b16 %v1573
      %v1850 = vunpack.c.l.b16 %v1574
      %v1851 = vunpack.c.l.b16 %v1575
      %v1852 = vunpack.c.l.b16 %v1576
      %v1853 = vunpack.c.l.b16 %v1577
      %v1854 = vunpack.c.l.b16 %v1578
      %v1855 = vunpack.c.l.b16 %v1579
      %v1856 = vunpack.c.l.b16 %v1580
      %v1857 = vunpack.c.l.b16 %v1581
      %v1858 = vunpack.c.l.b16 %v1582
      %v1859 = vunpack.c.l.b16 %v1583
      %v1860 = vunpack.c.l.b16 %v1584
      %v1861 = vunpack.c.l.b16 %v1585
      %v1862 = vunpack.c.l.b16 %v1586
      %v1863 = vunpack.c.l.b16 %v1587
      %v1864 = vunpack.c.l.b16 %v1588
      %v1865 = vunpack.c.l.b16 %v1589
      %v1866 = vunpack.c.l.b16 %v1590
      %v1867 = vunpack.c.l.b16 %v1591
      %v1868 = vunpack.c.l.b16 %v1592
      %v1869 = vunpack.c.l.b16 %v1593
      %v1870 = vunpack.c.l.b16 %v1594
      %v1871 = vunpack.c.l.b16 %v1595
      %v1872 = vunpack.c.l.b16 %v1596
      %v1873 = vunpack.c.l.b16 %v1597
      %v1874 = vunpack.c.l.b16 %v1598
      %v1875 = vunpack.c.l.b16 %v1599
      %v1876 = vunpack.c.l.b16 %v1600
      %v1877 = vunpack.c.l.b16 %v1601
      %v1878 = vunpack.c.l.b16 %v1602
      %v1879 = vunpack.c.l.b16 %v1603
      %v1880 = vunpack.c.l.b16 %v1604
      %v1881 = vunpack.c.l.b16 %v1605
      %v1882 = vunpack.c.l.b16 %v1606
      %v1883 = vunpack.c.l.b16 %v1607
      %v1884 = vunpack.c.l.b16 %v1608
      %v1885 = vunpack.c.l.b16 %v1609
      %v1886 = vunpack.c.l.b16 %v1610
      %v1887 = vunpack.c.l.b16 %v1611
      %v1888 = vunpack.c.l.b16 %v1612
      %v1889 = vunpack.c.l.b16 %v1613
      %v1890 = vunpack.c.l.b16 %v1614
      %v1891 = vunpack.c.l.b16 %v1615
      %v1892 = vunpack.c.l.b16 %v1616
      %v1893 = vunpack.c.l.b16 %v1617
      %v1894 = vunpack.c.l.b16 %v1618
      %v1895 = vunpack.c.l.b16 %v1619
      %v1896 = vunpack.c.l.b16 %v1620
      %v1897 = vunpack.c.l.b16 %v1621
      %v1898 = vunpack.c.l.b16 %v1622
      %v1899 = vunpack.c.l.b16 %v1623
      %v1900 = vunpack.c.l.b16 %v1624
      %v1901 = vunpack.c.l.b16 %v1625
      %v1902 = vunpack.c.l.b16 %v1626
      %v1903 = vunpack.c.l.b16 %v1627
      %v1904 = vunpack.c.l.b16 %v1628
      %v1905 = vunpack.c.l.b16 %v1629
      %v1906 = vpack.c.b16 %v1770, %v1769
      %v1907 = vpack.c.b16 %v1772, %v1771
      %v1908 = vpack.c.b16 %v1774, %v1773
      %v1909 = vpack.c.b16 %v1776, %v1775
      %v1910 = vpack.c.b16 %v1778, %v1777
      %v1911 = vpack.c.b16 %v1780, %v1779
      %v1912 = vpack.c.b16 %v1782, %v1781
      %v1913 = vpack.c.b16 %v1784, %v1783
      %v1914 = vpack.c.b16 %v1786, %v1785
      %v1915 = vpack.c.b16 %v1788, %v1787
      %v1916 = vpack.c.b16 %v1790, %v1789
      %v1917 = vpack.c.b16 %v1792, %v1791
      %v1918 = vpack.c.b16 %v1794, %v1793
      %v1919 = vpack.c.b16 %v1796, %v1795
      %v1920 = vpack.c.b16 %v1798, %v1797
      %v1921 = vpack.c.b16 %v1800, %v1799
      %v1922 = vpack.c.b16 %v1802, %v1801
      %v1923 = vpack.c.b16 %v1804, %v1803
      %v1924 = vpack.c.b16 %v1806, %v1805
      %v1925 = vpack.c.b16 %v1808, %v1807
      %v1926 = vpack.c.b16 %v1810, %v1809
      %v1927 = vpack.c.b16 %v1812, %v1811
      %v1928 = vpack.c.b16 %v1814, %v1813
      %v1929 = vpack.c.b16 %v1816, %v1815
      %v1930 = vpack.c.b16 %v1818, %v1817
      %v1931 = vpack.c.b16 %v1820, %v1819
      %v1932 = vpack.c.b16 %v1822, %v1821
      %v1933 = vpack.c.b16 %v1824, %v1823
      %v1934 = vpack.c.b16 %v1826, %v1825
      %v1935 = vpack.c.b16 %v1828, %v1827
      %v1936 = vpack.c.b16 %v1830, %v1829
      %v1937 = vpack.c.b16 %v1832, %v1831
      %v1938 = vpack.c.b16 %v1834, %v1833
      %v1939 = vpack.c.b16 %v1836, %v1835
      %v1940 = vpack.c.b16 %v1838, %v1837
      %v1941 = vpack.c.b16 %v1840, %v1839
      %v1942 = vpack.c.b16 %v1842, %v1841
      %v1943 = vpack.c.b16 %v1844, %v1843
      %v1944 = vpack.c.b16 %v1846, %v1845
      %v1945 = vpack.c.b16 %v1848, %v1847
      %v1946 = vpack.c.b16 %v1850, %v1849
      %v1947 = vpack.c.b16 %v1852, %v1851
      %v1948 = vpack.c.b16 %v1854, %v1853
      %v1949 = vpack.c.b16 %v1856, %v1855
      %v1950 = vpack.c.b16 %v1858, %v1857
      %v1951 = vpack.c.b16 %v1860, %v1859
      %v1952 = vpack.c.b16 %v1862, %v1861
      %v1953 = vpack.c.b16 %v1864, %v1863
      %v1954 = vpack.c.b16 %v1866, %v1865
      %v1955 = vpack.c.b16 %v1868, %v1867
      %v1956 = vpack.c.b16 %v1870, %v1869
      %v1957 = vpack.c.b16 %v1872, %v1871
      %v1958 = vpack.c.b16 %v1874, %v1873
      %v1959 = vpack.c.b16 %v1876, %v1875
      %v1960 = vpack.c.b16 %v1878, %v1877
      %v1961 = vpack.c.b16 %v1880, %v1879
      %v1962 = vpack.c.b16 %v1882, %v1881
      %v1963 = vpack.c.b16 %v1884, %v1883
      %v1964 = vpack.c.b16 %v1886, %v1885
      %v1965 = vpack.c.b16 %v1888, %v1887
      %v1966 = vpack.c.b16 %v1890, %v1889
      %v1967 = vpack.c.b16 %v1892, %v1891
      %v1968 = vpack.c.b16 %v1894, %v1893
      %v1969 = vpack.c.b16 %v1896, %v1895
      %v1970 = vpack.c.b16 %v1898, %v1897
      %v1971 = vpack.c.b16 %v1900, %v1899
      %v1972 = vpack.c.b16 %v1902, %v1901
      %v1973 = vpack.c.b16 %v1904, %v1903
      %v1974 = vpack.c.b16 %v1905, %v1905
      %vm1975 = vsmask.f32 7424
      %v1977 = vshrl.u32 %v1906, 16
      %v1979 = vshll.u32 %v1906, 16
      %v1981 = vrot.slane %v1979, 1
      %v1982 = vor.u32 %v1977, %v1981
      %v1984 = vshll.u32 %v1907, 16
      %v1986 = vrot.slane %v1984, 1
      %v1987 = vsel %vm1975, %v1982, %v1986
      %v1988 = vshrl.u32 %v1907, 16
      %v1990 = vor.u32 %v1988, %v1986
      %v1992 = vshll.u32 %v1908, 16
      %v1994 = vrot.slane %v1992, 1
      %v1995 = vsel %vm1975, %v1990, %v1994
      %v1996 = vshrl.u32 %v1908, 16
      %v1998 = vor.u32 %v1996, %v1994
      %v2000 = vshll.u32 %v1909, 16
      %v2002 = vrot.slane %v2000, 1
      %v2003 = vsel %vm1975, %v1998, %v2002
      %v2004 = vshrl.u32 %v1909, 16
      %v2006 = vor.u32 %v2004, %v2002
      %v2008 = vshll.u32 %v1910, 16
      %v2010 = vrot.slane %v2008, 1
      %v2011 = vsel %vm1975, %v2006, %v2010
      %v2012 = vshrl.u32 %v1910, 16
      %v2014 = vor.u32 %v2012, %v2010
      %v2016 = vshll.u32 %v1911, 16
      %v2018 = vrot.slane %v2016, 1
      %v2019 = vsel %vm1975, %v2014, %v2018
      %v2020 = vshrl.u32 %v1911, 16
      %v2022 = vor.u32 %v2020, %v2018
      %v2024 = vshll.u32 %v1912, 16
      %v2026 = vrot.slane %v2024, 1
      %v2027 = vsel %vm1975, %v2022, %v2026
      %v2028 = vshrl.u32 %v1912, 16
      %v2030 = vor.u32 %v2028, %v2026
      %v2032 = vshll.u32 %v1913, 16
      %v2034 = vrot.slane %v2032, 1
      %v2035 = vsel %vm1975, %v2030, %v2034
      %v2036 = vshrl.u32 %v1913, 16
      %v2038 = vor.u32 %v2036, %v2034
      %v2040 = vshll.u32 %v1914, 16
      %v2042 = vrot.slane %v2040, 1
      %v2043 = vsel %vm1975, %v2038, %v2042
      %v2044 = vshrl.u32 %v1914, 16
      %v2046 = vor.u32 %v2044, %v2042
      %v2048 = vshll.u32 %v1915, 16
      %v2050 = vrot.slane %v2048, 1
      %v2051 = vsel %vm1975, %v2046, %v2050
      %v2052 = vshrl.u32 %v1915, 16
      %v2054 = vor.u32 %v2052, %v2050
      %v2056 = vshll.u32 %v1916, 16
      %v2058 = vrot.slane %v2056, 1
      %v2059 = vsel %vm1975, %v2054, %v2058
      %v2060 = vshrl.u32 %v1916, 16
      %v2062 = vor.u32 %v2060, %v2058
      %v2064 = vshll.u32 %v1917, 16
      %v2066 = vrot.slane %v2064, 1
      %v2067 = vsel %vm1975, %v2062, %v2066
      %v2068 = vshrl.u32 %v1917, 16
      %v2070 = vor.u32 %v2068, %v2066
      %v2072 = vshll.u32 %v1918, 16
      %v2074 = vrot.slane %v2072, 1
      %v2075 = vsel %vm1975, %v2070, %v2074
      %v2076 = vshrl.u32 %v1918, 16
      %v2078 = vor.u32 %v2076, %v2074
      %v2080 = vshll.u32 %v1919, 16
      %v2082 = vrot.slane %v2080, 1
      %v2083 = vsel %vm1975, %v2078, %v2082
      %v2084 = vshrl.u32 %v1919, 16
      %v2086 = vor.u32 %v2084, %v2082
      %v2088 = vshll.u32 %v1920, 16
      %v2090 = vrot.slane %v2088, 1
      %v2091 = vsel %vm1975, %v2086, %v2090
      %v2092 = vshrl.u32 %v1920, 16
      %v2094 = vor.u32 %v2092, %v2090
      %v2096 = vshll.u32 %v1921, 16
      %v2098 = vrot.slane %v2096, 1
      %v2099 = vsel %vm1975, %v2094, %v2098
      %v2100 = vshrl.u32 %v1921, 16
      %v2102 = vor.u32 %v2100, %v2098
      %v2104 = vshll.u32 %v1922, 16
      %v2106 = vrot.slane %v2104, 1
      %v2107 = vsel %vm1975, %v2102, %v2106
      %v2108 = vshrl.u32 %v1922, 16
      %v2110 = vor.u32 %v2108, %v2106
      %v2112 = vshll.u32 %v1923, 16
      %v2114 = vrot.slane %v2112, 1
      %v2115 = vsel %vm1975, %v2110, %v2114
      %v2116 = vshrl.u32 %v1923, 16
      %v2118 = vor.u32 %v2116, %v2114
      %v2120 = vshll.u32 %v1924, 16
      %v2122 = vrot.slane %v2120, 1
      %v2123 = vsel %vm1975, %v2118, %v2122
      %v2124 = vshrl.u32 %v1924, 16
      %v2126 = vor.u32 %v2124, %v2122
      %v2128 = vshll.u32 %v1925, 16
      %v2130 = vrot.slane %v2128, 1
      %v2131 = vsel %vm1975, %v2126, %v2130
      %v2132 = vshrl.u32 %v1925, 16
      %v2134 = vor.u32 %v2132, %v2130
      %v2136 = vshll.u32 %v1926, 16
      %v2138 = vrot.slane %v2136, 1
      %v2139 = vsel %vm1975, %v2134, %v2138
      %v2140 = vshrl.u32 %v1926, 16
      %v2142 = vor.u32 %v2140, %v2138
      %v2144 = vshll.u32 %v1927, 16
      %v2146 = vrot.slane %v2144, 1
      %v2147 = vsel %vm1975, %v2142, %v2146
      %v2148 = vshrl.u32 %v1927, 16
      %v2150 = vor.u32 %v2148, %v2146
      %v2152 = vshll.u32 %v1928, 16
      %v2154 = vrot.slane %v2152, 1
      %v2155 = vsel %vm1975, %v2150, %v2154
      %v2156 = vshrl.u32 %v1928, 16
      %v2158 = vor.u32 %v2156, %v2154
      %v2160 = vshll.u32 %v1929, 16
      %v2162 = vrot.slane %v2160, 1
      %v2163 = vsel %vm1975, %v2158, %v2162
      %v2164 = vshrl.u32 %v1929, 16
      %v2166 = vor.u32 %v2164, %v2162
      %v2168 = vshll.u32 %v1930, 16
      %v2170 = vrot.slane %v2168, 1
      %v2171 = vsel %vm1975, %v2166, %v2170
      %v2172 = vshrl.u32 %v1930, 16
      %v2174 = vor.u32 %v2172, %v2170
      %v2176 = vshll.u32 %v1931, 16
      %v2178 = vrot.slane %v2176, 1
      %v2179 = vsel %vm1975, %v2174, %v2178
      %v2180 = vshrl.u32 %v1931, 16
      %v2182 = vor.u32 %v2180, %v2178
      %v2184 = vshll.u32 %v1932, 16
      %v2186 = vrot.slane %v2184, 1
      %v2187 = vsel %vm1975, %v2182, %v2186
      %v2188 = vshrl.u32 %v1932, 16
      %v2190 = vor.u32 %v2188, %v2186
      %v2192 = vshll.u32 %v1933, 16
      %v2194 = vrot.slane %v2192, 1
      %v2195 = vsel %vm1975, %v2190, %v2194
      %v2196 = vshrl.u32 %v1933, 16
      %v2198 = vor.u32 %v2196, %v2194
      %v2200 = vshll.u32 %v1934, 16
      %v2202 = vrot.slane %v2200, 1
      %v2203 = vsel %vm1975, %v2198, %v2202
      %v2204 = vshrl.u32 %v1934, 16
      %v2206 = vor.u32 %v2204, %v2202
      %v2208 = vshll.u32 %v1935, 16
      %v2210 = vrot.slane %v2208, 1
      %v2211 = vsel %vm1975, %v2206, %v2210
      %v2212 = vshrl.u32 %v1935, 16
      %v2214 = vor.u32 %v2212, %v2210
      %v2216 = vshll.u32 %v1936, 16
      %v2218 = vrot.slane %v2216, 1
      %v2219 = vsel %vm1975, %v2214, %v2218
      %v2220 = vshrl.u32 %v1936, 16
      %v2222 = vor.u32 %v2220, %v2218
      %v2224 = vshll.u32 %v1937, 16
      %v2226 = vrot.slane %v2224, 1
      %v2227 = vsel %vm1975, %v2222, %v2226
      %v2228 = vshrl.u32 %v1937, 16
      %v2230 = vor.u32 %v2228, %v2226
      %v2232 = vshll.u32 %v1938, 16
      %v2234 = vrot.slane %v2232, 1
      %v2235 = vsel %vm1975, %v2230, %v2234
      %v2236 = vshrl.u32 %v1938, 16
      %v2238 = vor.u32 %v2236, %v2234
      %v2240 = vshll.u32 %v1939, 16
      %v2242 = vrot.slane %v2240, 1
      %v2243 = vsel %vm1975, %v2238, %v2242
      %v2244 = vshrl.u32 %v1939, 16
      %v2246 = vor.u32 %v2244, %v2242
      %v2248 = vshll.u32 %v1940, 16
      %v2250 = vrot.slane %v2248, 1
      %v2251 = vsel %vm1975, %v2246, %v2250
      %v2252 = vshrl.u32 %v1940, 16
      %v2254 = vor.u32 %v2252, %v2250
      %v2256 = vshll.u32 %v1941, 16
      %v2258 = vrot.slane %v2256, 1
      %v2259 = vsel %vm1975, %v2254, %v2258
      %v2260 = vshrl.u32 %v1941, 16
      %v2262 = vor.u32 %v2260, %v2258
      %v2264 = vshll.u32 %v1942, 16
      %v2266 = vrot.slane %v2264, 1
      %v2267 = vsel %vm1975, %v2262, %v2266
      %v2268 = vshrl.u32 %v1942, 16
      %v2270 = vor.u32 %v2268, %v2266
      %v2272 = vshll.u32 %v1943, 16
      %v2274 = vrot.slane %v2272, 1
      %v2275 = vsel %vm1975, %v2270, %v2274
      %v2276 = vshrl.u32 %v1943, 16
      %v2278 = vor.u32 %v2276, %v2274
      %v2280 = vshll.u32 %v1944, 16
      %v2282 = vrot.slane %v2280, 1
      %v2283 = vsel %vm1975, %v2278, %v2282
      %v2284 = vshrl.u32 %v1944, 16
      %v2286 = vor.u32 %v2284, %v2282
      %v2288 = vshll.u32 %v1945, 16
      %v2290 = vrot.slane %v2288, 1
      %v2291 = vsel %vm1975, %v2286, %v2290
      %v2292 = vshrl.u32 %v1945, 16
      %v2294 = vor.u32 %v2292, %v2290
      %v2296 = vshll.u32 %v1946, 16
      %v2298 = vrot.slane %v2296, 1
      %v2299 = vsel %vm1975, %v2294, %v2298
      %v2300 = vshrl.u32 %v1946, 16
      %v2302 = vor.u32 %v2300, %v2298
      %v2304 = vshll.u32 %v1947, 16
      %v2306 = vrot.slane %v2304, 1
      %v2307 = vsel %vm1975, %v2302, %v2306
      %v2308 = vshrl.u32 %v1947, 16
      %v2310 = vor.u32 %v2308, %v2306
      %v2312 = vshll.u32 %v1948, 16
      %v2314 = vrot.slane %v2312, 1
      %v2315 = vsel %vm1975, %v2310, %v2314
      %v2316 = vshrl.u32 %v1948, 16
      %v2318 = vor.u32 %v2316, %v2314
      %v2320 = vshll.u32 %v1949, 16
      %v2322 = vrot.slane %v2320, 1
      %v2323 = vsel %vm1975, %v2318, %v2322
      %v2324 = vshrl.u32 %v1949, 16
      %v2326 = vor.u32 %v2324, %v2322
      %v2328 = vshll.u32 %v1950, 16
      %v2330 = vrot.slane %v2328, 1
      %v2331 = vsel %vm1975, %v2326, %v2330
      %v2332 = vshrl.u32 %v1950, 16
      %v2334 = vor.u32 %v2332, %v2330
      %v2336 = vshll.u32 %v1951, 16
      %v2338 = vrot.slane %v2336, 1
      %v2339 = vsel %vm1975, %v2334, %v2338
      %v2340 = vshrl.u32 %v1951, 16
      %v2342 = vor.u32 %v2340, %v2338
      %v2344 = vshll.u32 %v1952, 16
      %v2346 = vrot.slane %v2344, 1
      %v2347 = vsel %vm1975, %v2342, %v2346
      %v2348 = vshrl.u32 %v1952, 16
      %v2350 = vor.u32 %v2348, %v2346
      %v2352 = vshll.u32 %v1953, 16
      %v2354 = vrot.slane %v2352, 1
      %v2355 = vsel %vm1975, %v2350, %v2354
      %v2356 = vshrl.u32 %v1953, 16
      %v2358 = vor.u32 %v2356, %v2354
      %v2360 = vshll.u32 %v1954, 16
      %v2362 = vrot.slane %v2360, 1
      %v2363 = vsel %vm1975, %v2358, %v2362
      %v2364 = vshrl.u32 %v1954, 16
      %v2366 = vor.u32 %v2364, %v2362
      %v2368 = vshll.u32 %v1955, 16
      %v2370 = vrot.slane %v2368, 1
      %v2371 = vsel %vm1975, %v2366, %v2370
      %v2372 = vshrl.u32 %v1955, 16
      %v2374 = vor.u32 %v2372, %v2370
      %v2376 = vshll.u32 %v1956, 16
      %v2378 = vrot.slane %v2376, 1
      %v2379 = vsel %vm1975, %v2374, %v2378
      %v2380 = vshrl.u32 %v1956, 16
      %v2382 = vor.u32 %v2380, %v2378
      %v2384 = vshll.u32 %v1957, 16
      %v2386 = vrot.slane %v2384, 1
      %v2387 = vsel %vm1975, %v2382, %v2386
      %v2388 = vshrl.u32 %v1957, 16
      %v2390 = vor.u32 %v2388, %v2386
      %v2392 = vshll.u32 %v1958, 16
      %v2394 = vrot.slane %v2392, 1
      %v2395 = vsel %vm1975, %v2390, %v2394
      %v2396 = vshrl.u32 %v1958, 16
      %v2398 = vor.u32 %v2396, %v2394
      %v2400 = vshll.u32 %v1959, 16
      %v2402 = vrot.slane %v2400, 1
      %v2403 = vsel %vm1975, %v2398, %v2402
      %v2404 = vshrl.u32 %v1959, 16
      %v2406 = vor.u32 %v2404, %v2402
      %v2408 = vshll.u32 %v1960, 16
      %v2410 = vrot.slane %v2408, 1
      %v2411 = vsel %vm1975, %v2406, %v2410
      %v2412 = vshrl.u32 %v1960, 16
      %v2414 = vor.u32 %v2412, %v2410
      %v2416 = vshll.u32 %v1961, 16
      %v2418 = vrot.slane %v2416, 1
      %v2419 = vsel %vm1975, %v2414, %v2418
      %v2420 = vshrl.u32 %v1961, 16
      %v2422 = vor.u32 %v2420, %v2418
      %v2424 = vshll.u32 %v1962, 16
      %v2426 = vrot.slane %v2424, 1
      %v2427 = vsel %vm1975, %v2422, %v2426
      %v2428 = vshrl.u32 %v1962, 16
      %v2430 = vor.u32 %v2428, %v2426
      %v2432 = vshll.u32 %v1963, 16
      %v2434 = vrot.slane %v2432, 1
      %v2435 = vsel %vm1975, %v2430, %v2434
      %v2436 = vshrl.u32 %v1963, 16
      %v2438 = vor.u32 %v2436, %v2434
      %v2440 = vshll.u32 %v1964, 16
      %v2442 = vrot.slane %v2440, 1
      %v2443 = vsel %vm1975, %v2438, %v2442
      %v2444 = vshrl.u32 %v1964, 16
      %v2446 = vor.u32 %v2444, %v2442
      %v2448 = vshll.u32 %v1965, 16
      %v2450 = vrot.slane %v2448, 1
      %v2451 = vsel %vm1975, %v2446, %v2450
      %v2452 = vshrl.u32 %v1965, 16
      %v2454 = vor.u32 %v2452, %v2450
      %v2456 = vshll.u32 %v1966, 16
      %v2458 = vrot.slane %v2456, 1
      %v2459 = vsel %vm1975, %v2454, %v2458
      %v2460 = vshrl.u32 %v1966, 16
      %v2462 = vor.u32 %v2460, %v2458
      %v2464 = vshll.u32 %v1967, 16
      %v2466 = vrot.slane %v2464, 1
      %v2467 = vsel %vm1975, %v2462, %v2466
      %v2468 = vshrl.u32 %v1967, 16
      %v2470 = vor.u32 %v2468, %v2466
      %v2472 = vshll.u32 %v1968, 16
      %v2474 = vrot.slane %v2472, 1
      %v2475 = vsel %vm1975, %v2470, %v2474
      %v2476 = vshrl.u32 %v1968, 16
      %v2478 = vor.u32 %v2476, %v2474
      %v2480 = vshll.u32 %v1969, 16
      %v2482 = vrot.slane %v2480, 1
      %v2483 = vsel %vm1975, %v2478, %v2482
      %v2484 = vshrl.u32 %v1969, 16
      %v2486 = vor.u32 %v2484, %v2482
      %v2488 = vshll.u32 %v1970, 16
      %v2490 = vrot.slane %v2488, 1
      %v2491 = vsel %vm1975, %v2486, %v2490
      %v2492 = vshrl.u32 %v1970, 16
      %v2494 = vor.u32 %v2492, %v2490
      %v2496 = vshll.u32 %v1971, 16
      %v2498 = vrot.slane %v2496, 1
      %v2499 = vsel %vm1975, %v2494, %v2498
      %v2500 = vshrl.u32 %v1971, 16
      %v2502 = vor.u32 %v2500, %v2498
      %v2504 = vshll.u32 %v1972, 16
      %v2506 = vrot.slane %v2504, 1
      %v2507 = vsel %vm1975, %v2502, %v2506
      %v2508 = vshrl.u32 %v1972, 16
      %v2510 = vor.u32 %v2508, %v2506
      %v2512 = vshll.u32 %v1973, 16
      %v2514 = vrot.slane %v2512, 1
      %v2515 = vsel %vm1975, %v2510, %v2514
      %v2516 = vshrl.u32 %v1973, 16
      %v2518 = vor.u32 %v2516, %v2514
      %v2520 = vshll.u32 %v1974, 16
      %v2522 = vrot.slane %v2520, 1
      %v2523 = vsel %vm1975, %v2518, %v2522
      %v2525 = vsel %vm707, %v1987, 0
      %v2528 = vsel %vm707, %v1995, 0
      %v2531 = vsel %vm707, %v2003, 0
      %v2534 = vsel %vm707, %v2011, 0
      %v2537 = vsel %vm707, %v2019, 0
      %v2540 = vsel %vm707, %v2027, 0
      %v2543 = vsel %vm707, %v2035, 0
      %v2546 = vsel %vm707, %v2043, 0
      %v2549 = vsel %vm707, %v2051, 0
      %v2552 = vsel %vm707, %v2059, 0
      %v2555 = vsel %vm707, %v2067, 0
      %v2558 = vsel %vm707, %v2075, 0
      %v2561 = vsel %vm707, %v2083, 0
      %v2564 = vsel %vm707, %v2091, 0
      %v2567 = vsel %vm707, %v2099, 0
      %v2570 = vsel %vm707, %v2107, 0
      %v2573 = vsel %vm707, %v2115, 0
      %v2576 = vsel %vm707, %v2123, 0
      %v2579 = vsel %vm707, %v2131, 0
      %v2582 = vsel %vm707, %v2139, 0
      %v2585 = vsel %vm707, %v2147, 0
      %v2588 = vsel %vm707, %v2155, 0
      %v2591 = vsel %vm707, %v2163, 0
      %v2594 = vsel %vm707, %v2171, 0
      %v2597 = vsel %vm707, %v2179, 0
      %v2600 = vsel %vm707, %v2187, 0
      %v2603 = vsel %vm707, %v2195, 0
      %v2606 = vsel %vm707, %v2203, 0
      %v2609 = vsel %vm707, %v2211, 0
      %v2612 = vsel %vm707, %v2219, 0
      %v2615 = vsel %vm707, %v2227, 0
      %v2618 = vsel %vm707, %v2235, 0
      %v2621 = vsel %vm707, %v2243, 0
      %v2624 = vsel %vm707, %v2251, 0
      %v2627 = vsel %vm707, %v2259, 0
      %v2630 = vsel %vm707, %v2267, 0
      %v2633 = vsel %vm707, %v2275, 0
      %v2636 = vsel %vm707, %v2283, 0
      %v2639 = vsel %vm707, %v2291, 0
      %v2642 = vsel %vm707, %v2299, 0
      %v2645 = vsel %vm707, %v2307, 0
      %v2648 = vsel %vm707, %v2315, 0
      %v2651 = vsel %vm707, %v2323, 0
      %v2654 = vsel %vm707, %v2331, 0
      %v2657 = vsel %vm707, %v2339, 0
      %v2660 = vsel %vm707, %v2347, 0
      %v2663 = vsel %vm707, %v2355, 0
      %v2666 = vsel %vm707, %v2363, 0
      %v2669 = vsel %vm707, %v2371, 0
      %v2672 = vsel %vm707, %v2379, 0
      %v2675 = vsel %vm707, %v2387, 0
      %v2678 = vsel %vm707, %v2395, 0
      %v2681 = vsel %vm707, %v2403, 0
      %v2684 = vsel %vm707, %v2411, 0
      %v2687 = vsel %vm707, %v2419, 0
      %v2690 = vsel %vm707, %v2427, 0
      %v2693 = vsel %vm707, %v2435, 0
      %v2696 = vsel %vm707, %v2443, 0
      %v2699 = vsel %vm707, %v2451, 0
      %v2702 = vsel %vm707, %v2459, 0
      %v2705 = vsel %vm707, %v2467, 0
      %v2708 = vsel %vm707, %v2475, 0
      %v2711 = vsel %vm707, %v2483, 0
      %v2714 = vsel %vm707, %v2491, 0
      %v2717 = vsel %vm707, %v2499, 0
      %v2720 = vsel %vm707, %v2507, 0
      %v2723 = vsel %vm707, %v2515, 0
      %v2726 = vsel %vm707, %v2523, 0
      %v2729 = vsel %vm912, %v1631, 0
      %2731 = vmatprep.subr.bf16.mxu0 0
      %2732 = vmatpush1.bf16.msra.mxu0 %v2729
      %2733 = vmatprep.subr.bf16.mxu0 0
      %2734 = vmatpush1.bf16.msra.mxu0 0
      %2735 = vmatprep.subr.bf16.mxu0 0
      %2736 = vmatpush1.bf16.msra.mxu0 0
      %2737 = vmatprep.subr.bf16.mxu0 0
      %2738 = vmatpush1.bf16.msra.mxu0 0
      %2739 = vmatprep.subr.bf16.mxu0 0
      %2740 = vmatpush1.bf16.msra.mxu0 0
      %2741 = vmatprep.subr.bf16.mxu0 0
      %2742 = vmatpush1.bf16.msra.mxu0 0
      %2743 = vmatprep.subr.bf16.mxu0 0
      %2744 = vmatpush1.bf16.msra.mxu0 0
      %2745 = vmatprep.subr.bf16.mxu0 0
      %2746 = vmatpush1.bf16.msra.mxu0 0
      %2747 = vmatprep.subr.bf16.mxu0 0
      %2748 = vmatpush1.bf16.msra.mxu0 0
      %2749 = vmatprep.subr.bf16.mxu0 0
      %2750 = vmatpush1.bf16.msra.mxu0 0
      %2751 = vmatprep.subr.bf16.mxu0 0
      %2752 = vmatpush1.bf16.msra.mxu0 0
      %2753 = vmatprep.subr.bf16.mxu0 0
      %2754 = vmatpush1.bf16.msra.mxu0 0
      %2755 = vmatprep.subr.bf16.mxu0 0
      %2756 = vmatpush1.bf16.msra.mxu0 0
      %2757 = vmatprep.subr.bf16.mxu0 0
      %2758 = vmatpush1.bf16.msra.mxu0 0
      %2759 = vmatprep.subr.bf16.mxu0 0
      %2760 = vmatpush1.bf16.msra.mxu0 0
      %2761 = vmatprep.subr.bf16.mxu0 0
      %2762 = vmatpush1.bf16.msra.mxu0 0
      %2763 = vmatprep.mubr.bf16.mxu0 0
      %2764 = vmatmul.mubr.bf16.gmra.mrb[0].mxu0 %v2525
      %v2765 = vpop.f32.mrb[0].mxu0
      %v2766 = vadd.f32 0.0, %v2765
      %v2767 = vpop.f32.mrb[0].mxu0
      %v2768 = vpop.f32.mrb[0].mxu0
      %v2769 = vadd.f32 0.0, %v2768
      %v2770 = vpop.f32.mrb[0].mxu0
      %2771 = vmatprep.mubr.bf16.mxu0 0
      %2772 = vmatmul.mubr.bf16.gmra.mrb[0].mxu0 %v2528
      %v2773 = vpop.f32.mrb[0].mxu0
      %v2774 = vadd.f32 0.0, %v2773
      %v2775 = vpop.f32.mrb[0].mxu0
      %v2776 = vpop.f32.mrb[0].mxu0
      %v2777 = vadd.f32 0.0, %v2776
      %v2778 = vpop.f32.mrb[0].mxu0
      %2779 = vmatprep.mubr.bf16.mxu0 0
      %2780 = vmatmul.mubr.bf16.gmra.mrb[0].mxu0 %v2531
      %v2781 = vpop.f32.mrb[0].mxu0
      %v2782 = vadd.f32 0.0, %v2781
      %v2783 = vpop.f32.mrb[0].mxu0
      %v2784 = vpop.f32.mrb[0].mxu0
      %v2785 = vadd.f32 0.0, %v2784
      %v2786 = vpop.f32.mrb[0].mxu0
      %2787 = vmatprep.mubr.bf16.mxu0 0
      %2788 = vmatmul.mubr.bf16.gmra.mrb[0].mxu0 %v2534
      %v2789 = vpop.f32.mrb[0].mxu0
      %v2790 = vadd.f32 0.0, %v2789
      %v2791 = vpop.f32.mrb[0].mxu0
      %v2792 = vpop.f32.mrb[0].mxu0
      %v2793 = vadd.f32 0.0, %v2792
      %v2794 = vpop.f32.mrb[0].mxu0
      %2795 = vmatprep.mubr.bf16.mxu0 0
      %2796 = vmatmul.mubr.bf16.gmra.mrb[0].mxu0 %v2537
      %v2797 = vpop.f32.mrb[0].mxu0
      %v2798 = vadd.f32 0.0, %v2797
      %v2799 = vpop.f32.mrb[0].mxu0
      %v2800 = vpop.f32.mrb[0].mxu0
      %v2801 = vadd.f32 0.0, %v2800
      %v2802 = vpop.f32.mrb[0].mxu0
      %2803 = vmatprep.mubr.bf16.mxu0 0
      %2804 = vmatmul.mubr.bf16.gmra.mrb[0].mxu0 %v2540
      %v2805 = vpop.f32.mrb[0].mxu0
      %v2806 = vadd.f32 0.0, %v2805
      %v2807 = vpop.f32.mrb[0].mxu0
      %v2808 = vpop.f32.mrb[0].mxu0
      %v2809 = vadd.f32 0.0, %v2808
      %v2810 = vpop.f32.mrb[0].mxu0
      %2811 = vmatprep.mubr.bf16.mxu0 0
      %2812 = vmatmul.mubr.bf16.gmra.mrb[0].mxu0 %v2543
      %v2813 = vpop.f32.mrb[0].mxu0
      %v2814 = vadd.f32 0.0, %v2813
      %v2815 = vpop.f32.mrb[0].mxu0
      %v2816 = vpop.f32.mrb[0].mxu0
      %v2817 = vadd.f32 0.0, %v2816
      %v2818 = vpop.f32.mrb[0].mxu0
      %2819 = vmatprep.mubr.bf16.mxu0 0
      %2820 = vmatmul.mubr.bf16.gmra.mrb[0].mxu0 %v2546
      %v2821 = vpop.f32.mrb[0].mxu0
      %v2822 = vadd.f32 0.0, %v2821
      %v2823 = vpop.f32.mrb[0].mxu0
      %v2824 = vpop.f32.mrb[0].mxu0
      %v2825 = vadd.f32 0.0, %v2824
      %v2826 = vpop.f32.mrb[0].mxu0
      %2827 = vmatprep.mubr.bf16.mxu0 0
      %2828 = vmatmul.mubr.bf16.gmra.mrb[0].mxu0 %v2549
      %v2829 = vpop.f32.mrb[0].mxu0
      %v2830 = vadd.f32 0.0, %v2829
      %v2831 = vpop.f32.mrb[0].mxu0
      %v2832 = vpop.f32.mrb[0].mxu0
      %v2833 = vadd.f32 0.0, %v2832
      %v2834 = vpop.f32.mrb[0].mxu0
      %2835 = vmatprep.mubr.bf16.mxu0 0
      %2836 = vmatmul.mubr.bf16.gmra.mrb[0].mxu0 %v2552
      %v2837 = vpop.f32.mrb[0].mxu0
      %v2838 = vadd.f32 0.0, %v2837
      %v2839 = vpop.f32.mrb[0].mxu0
      %v2840 = vpop.f32.mrb[0].mxu0
      %v2841 = vadd.f32 0.0, %v2840
      %v2842 = vpop.f32.mrb[0].mxu0
      %2843 = vmatprep.mubr.bf16.mxu0 0
      %2844 = vmatmul.mubr.bf16.gmra.mrb[0].mxu0 %v2555
      %v2845 = vpop.f32.mrb[0].mxu0
      %v2846 = vadd.f32 0.0, %v2845
      %v2847 = vpop.f32.mrb[0].mxu0
      %v2848 = vpop.f32.mrb[0].mxu0
      %v2849 = vadd.f32 0.0, %v2848
      %v2850 = vpop.f32.mrb[0].mxu0
      %2851 = vmatprep.mubr.bf16.mxu0 0
      %2852 = vmatmul.mubr.bf16.gmra.mrb[0].mxu0 %v2558
      %v2853 = vpop.f32.mrb[0].mxu0
      %v2854 = vadd.f32 0.0, %v2853
      %v2855 = vpop.f32.mrb[0].mxu0
      %v2856 = vpop.f32.mrb[0].mxu0
      %v2857 = vadd.f32 0.0, %v2856
      %v2858 = vpop.f32.mrb[0].mxu0
      %2859 = vmatprep.mubr.bf16.mxu0 0
      %2860 = vmatmul.mubr.bf16.gmra.mrb[0].mxu0 %v2561
      %v2861 = vpop.f32.mrb[0].mxu0
      %v2862 = vadd.f32 0.0, %v2861
      %v2863 = vpop.f32.mrb[0].mxu0
      %v2864 = vpop.f32.mrb[0].mxu0
      %v2865 = vadd.f32 0.0, %v2864
      %v2866 = vpop.f32.mrb[0].mxu0
      %2867 = vmatprep.mubr.bf16.mxu0 0
      %2868 = vmatmul.mubr.bf16.gmra.mrb[0].mxu0 %v2564
      %v2869 = vpop.f32.mrb[0].mxu0
      %v2870 = vadd.f32 0.0, %v2869
      %v2871 = vpop.f32.mrb[0].mxu0
      %v2872 = vpop.f32.mrb[0].mxu0
      %v2873 = vadd.f32 0.0, %v2872
      %v2874 = vpop.f32.mrb[0].mxu0
      %2875 = vmatprep.mubr.bf16.mxu0 0
      %2876 = vmatmul.mubr.bf16.gmra.mrb[0].mxu0 %v2567
      %v2877 = vpop.f32.mrb[0].mxu0
      %v2878 = vadd.f32 0.0, %v2877
      %v2879 = vpop.f32.mrb[0].mxu0
      %v2880 = vpop.f32.mrb[0].mxu0
      %v2881 = vadd.f32 0.0, %v2880
      %v2882 = vpop.f32.mrb[0].mxu0
      %2883 = vmatprep.mubr.bf16.mxu0 0
      %2884 = vmatmul.mubr.bf16.gmra.mrb[0].mxu0 %v2570
      %v2885 = vpop.f32.mrb[0].mxu0
      %v2886 = vadd.f32 0.0, %v2885
      %v2887 = vpop.f32.mrb[0].mxu0
      %v2888 = vpop.f32.mrb[0].mxu0
      %v2889 = vadd.f32 0.0, %v2888
      %v2890 = vpop.f32.mrb[0].mxu0
      %2891 = vmatprep.mubr.bf16.mxu0 0
      %2892 = vmatmul.mubr.bf16.gmra.mrb[0].mxu0 %v2573
      %v2893 = vpop.f32.mrb[0].mxu0
      %v2894 = vadd.f32 0.0, %v2893
      %v2895 = vpop.f32.mrb[0].mxu0
      %v2896 = vpop.f32.mrb[0].mxu0
      %v2897 = vadd.f32 0.0, %v2896
      %v2898 = vpop.f32.mrb[0].mxu0
      %2899 = vmatprep.mubr.bf16.mxu0 0
      %2900 = vmatmul.mubr.bf16.gmra.mrb[0].mxu0 %v2576
      %v2901 = vpop.f32.mrb[0].mxu0
      %v2902 = vadd.f32 0.0, %v2901
      %v2903 = vpop.f32.mrb[0].mxu0
      %v2904 = vpop.f32.mrb[0].mxu0
      %v2905 = vadd.f32 0.0, %v2904
      %v2906 = vpop.f32.mrb[0].mxu0
      %2907 = vmatprep.mubr.bf16.mxu0 0
      %2908 = vmatmul.mubr.bf16.gmra.mrb[0].mxu0 %v2579
      %v2909 = vpop.f32.mrb[0].mxu0
      %v2910 = vadd.f32 0.0, %v2909
      %v2911 = vpop.f32.mrb[0].mxu0
      %v2912 = vpop.f32.mrb[0].mxu0
      %v2913 = vadd.f32 0.0, %v2912
      %v2914 = vpop.f32.mrb[0].mxu0
      %2915 = vmatprep.mubr.bf16.mxu0 0
      %2916 = vmatmul.mubr.bf16.gmra.mrb[0].mxu0 %v2582
      %v2917 = vpop.f32.mrb[0].mxu0
      %v2918 = vadd.f32 0.0, %v2917
      %v2919 = vpop.f32.mrb[0].mxu0
      %v2920 = vpop.f32.mrb[0].mxu0
      %v2921 = vadd.f32 0.0, %v2920
      %v2922 = vpop.f32.mrb[0].mxu0
      %2923 = vmatprep.mubr.bf16.mxu0 0
      %2924 = vmatmul.mubr.bf16.gmra.mrb[0].mxu0 %v2585
      %v2925 = vpop.f32.mrb[0].mxu0
      %v2926 = vadd.f32 0.0, %v2925
      %v2927 = vpop.f32.mrb[0].mxu0
      %v2928 = vpop.f32.mrb[0].mxu0
      %v2929 = vadd.f32 0.0, %v2928
      %v2930 = vpop.f32.mrb[0].mxu0
      %2931 = vmatprep.mubr.bf16.mxu0 0
      %2932 = vmatmul.mubr.bf16.gmra.mrb[0].mxu0 %v2588
      %v2933 = vpop.f32.mrb[0].mxu0
      %v2934 = vadd.f32 0.0, %v2933
      %v2935 = vpop.f32.mrb[0].mxu0
      %v2936 = vpop.f32.mrb[0].mxu0
      %v2937 = vadd.f32 0.0, %v2936
      %v2938 = vpop.f32.mrb[0].mxu0
      %2939 = vmatprep.mubr.bf16.mxu0 0
      %2940 = vmatmul.mubr.bf16.gmra.mrb[0].mxu0 %v2591
      %v2941 = vpop.f32.mrb[0].mxu0
      %v2942 = vadd.f32 0.0, %v2941
      %v2943 = vpop.f32.mrb[0].mxu0
      %v2944 = vpop.f32.mrb[0].mxu0
      %v2945 = vadd.f32 0.0, %v2944
      %v2946 = vpop.f32.mrb[0].mxu0
      %2947 = vmatprep.mubr.bf16.mxu0 0
      %2948 = vmatmul.mubr.bf16.gmra.mrb[0].mxu0 %v2594
      %v2949 = vpop.f32.mrb[0].mxu0
      %v2950 = vadd.f32 0.0, %v2949
      %v2951 = vpop.f32.mrb[0].mxu0
      %v2952 = vpop.f32.mrb[0].mxu0
      %v2953 = vadd.f32 0.0, %v2952
      %v2954 = vpop.f32.mrb[0].mxu0
      %2955 = vmatprep.mubr.bf16.mxu0 0
      %2956 = vmatmul.mubr.bf16.gmra.mrb[0].mxu0 %v2597
      %v2957 = vpop.f32.mrb[0].mxu0
      %v2958 = vadd.f32 0.0, %v2957
      %v2959 = vpop.f32.mrb[0].mxu0
      %v2960 = vpop.f32.mrb[0].mxu0
      %v2961 = vadd.f32 0.0, %v2960
      %v2962 = vpop.f32.mrb[0].mxu0
      %2963 = vmatprep.mubr.bf16.mxu0 0
      %2964 = vmatmul.mubr.bf16.gmra.mrb[0].mxu0 %v2600
      %v2965 = vpop.f32.mrb[0].mxu0
      %v2966 = vadd.f32 0.0, %v2965
      %v2967 = vpop.f32.mrb[0].mxu0
      %v2968 = vpop.f32.mrb[0].mxu0
      %v2969 = vadd.f32 0.0, %v2968
      %v2970 = vpop.f32.mrb[0].mxu0
      %2971 = vmatprep.mubr.bf16.mxu0 0
      %2972 = vmatmul.mubr.bf16.gmra.mrb[0].mxu0 %v2603
      %v2973 = vpop.f32.mrb[0].mxu0
      %v2974 = vadd.f32 0.0, %v2973
      %v2975 = vpop.f32.mrb[0].mxu0
      %v2976 = vpop.f32.mrb[0].mxu0
      %v2977 = vadd.f32 0.0, %v2976
      %v2978 = vpop.f32.mrb[0].mxu0
      %2979 = vmatprep.mubr.bf16.mxu0 0
      %2980 = vmatmul.mubr.bf16.gmra.mrb[0].mxu0 %v2606
      %v2981 = vpop.f32.mrb[0].mxu0
      %v2982 = vadd.f32 0.0, %v2981
      %v2983 = vpop.f32.mrb[0].mxu0
      %v2984 = vpop.f32.mrb[0].mxu0
      %v2985 = vadd.f32 0.0, %v2984
      %v2986 = vpop.f32.mrb[0].mxu0
      %2987 = vmatprep.mubr.bf16.mxu0 0
      %2988 = vmatmul.mubr.bf16.gmra.mrb[0].mxu0 %v2609
      %v2989 = vpop.f32.mrb[0].mxu0
      %v2990 = vadd.f32 0.0, %v2989
      %v2991 = vpop.f32.mrb[0].mxu0
      %v2992 = vpop.f32.mrb[0].mxu0
      %v2993 = vadd.f32 0.0, %v2992
      %v2994 = vpop.f32.mrb[0].mxu0
      %2995 = vmatprep.mubr.bf16.mxu0 0
      %2996 = vmatmul.mubr.bf16.gmra.mrb[0].mxu0 %v2612
      %v2997 = vpop.f32.mrb[0].mxu0
      %v2998 = vadd.f32 0.0, %v2997
      %v2999 = vpop.f32.mrb[0].mxu0
      %v3000 = vpop.f32.mrb[0].mxu0
      %v3001 = vadd.f32 0.0, %v3000
      %v3002 = vpop.f32.mrb[0].mxu0
      %3003 = vmatprep.mubr.bf16.mxu0 0
      %3004 = vmatmul.mubr.bf16.gmra.mrb[0].mxu0 %v2615
      %v3005 = vpop.f32.mrb[0].mxu0
      %v3006 = vadd.f32 0.0, %v3005
      %v3007 = vpop.f32.mrb[0].mxu0
      %v3008 = vpop.f32.mrb[0].mxu0
      %v3009 = vadd.f32 0.0, %v3008
      %v3010 = vpop.f32.mrb[0].mxu0
      %3011 = vmatprep.mubr.bf16.mxu0 0
      %3012 = vmatmul.mubr.bf16.gmra.mrb[0].mxu0 %v2618
      %v3013 = vpop.f32.mrb[0].mxu0
      %v3014 = vadd.f32 0.0, %v3013
      %v3015 = vpop.f32.mrb[0].mxu0
      %v3016 = vpop.f32.mrb[0].mxu0
      %v3017 = vadd.f32 0.0, %v3016
      %v3018 = vpop.f32.mrb[0].mxu0
      %3019 = vmatprep.mubr.bf16.mxu0 0
      %3020 = vmatmul.mubr.bf16.gmra.mrb[0].mxu0 %v2621
      %v3021 = vpop.f32.mrb[0].mxu0
      %v3022 = vadd.f32 0.0, %v3021
      %v3023 = vpop.f32.mrb[0].mxu0
      %v3024 = vpop.f32.mrb[0].mxu0
      %v3025 = vadd.f32 0.0, %v3024
      %v3026 = vpop.f32.mrb[0].mxu0
      %3027 = vmatprep.mubr.bf16.mxu0 0
      %3028 = vmatmul.mubr.bf16.gmra.mrb[0].mxu0 %v2624
      %v3029 = vpop.f32.mrb[0].mxu0
      %v3030 = vadd.f32 0.0, %v3029
      %v3031 = vpop.f32.mrb[0].mxu0
      %v3032 = vpop.f32.mrb[0].mxu0
      %v3033 = vadd.f32 0.0, %v3032
      %v3034 = vpop.f32.mrb[0].mxu0
      %3035 = vmatprep.mubr.bf16.mxu0 0
      %3036 = vmatmul.mubr.bf16.gmra.mrb[0].mxu0 %v2627
      %v3037 = vpop.f32.mrb[0].mxu0
      %v3038 = vadd.f32 0.0, %v3037
      %v3039 = vpop.f32.mrb[0].mxu0
      %v3040 = vpop.f32.mrb[0].mxu0
      %v3041 = vadd.f32 0.0, %v3040
      %v3042 = vpop.f32.mrb[0].mxu0
      %3043 = vmatprep.mubr.bf16.mxu0 0
      %3044 = vmatmul.mubr.bf16.gmra.mrb[0].mxu0 %v2630
      %v3045 = vpop.f32.mrb[0].mxu0
      %v3046 = vadd.f32 0.0, %v3045
      %v3047 = vpop.f32.mrb[0].mxu0
      %v3048 = vpop.f32.mrb[0].mxu0
      %v3049 = vadd.f32 0.0, %v3048
      %v3050 = vpop.f32.mrb[0].mxu0
      %3051 = vmatprep.mubr.bf16.mxu0 0
      %3052 = vmatmul.mubr.bf16.gmra.mrb[0].mxu0 %v2633
      %v3053 = vpop.f32.mrb[0].mxu0
      %v3054 = vadd.f32 0.0, %v3053
      %v3055 = vpop.f32.mrb[0].mxu0
      %v3056 = vpop.f32.mrb[0].mxu0
      %v3057 = vadd.f32 0.0, %v3056
      %v3058 = vpop.f32.mrb[0].mxu0
      %3059 = vmatprep.mubr.bf16.mxu0 0
      %3060 = vmatmul.mubr.bf16.gmra.mrb[0].mxu0 %v2636
      %v3061 = vpop.f32.mrb[0].mxu0
      %v3062 = vadd.f32 0.0, %v3061
      %v3063 = vpop.f32.mrb[0].mxu0
      %v3064 = vpop.f32.mrb[0].mxu0
      %v3065 = vadd.f32 0.0, %v3064
      %v3066 = vpop.f32.mrb[0].mxu0
      %3067 = vmatprep.mubr.bf16.mxu0 0
      %3068 = vmatmul.mubr.bf16.gmra.mrb[0].mxu0 %v2639
      %v3069 = vpop.f32.mrb[0].mxu0
      %v3070 = vadd.f32 0.0, %v3069
      %v3071 = vpop.f32.mrb[0].mxu0
      %v3072 = vpop.f32.mrb[0].mxu0
      %v3073 = vadd.f32 0.0, %v3072
      %v3074 = vpop.f32.mrb[0].mxu0
      %3075 = vmatprep.mubr.bf16.mxu0 0
      %3076 = vmatmul.mubr.bf16.gmra.mrb[0].mxu0 %v2642
      %v3077 = vpop.f32.mrb[0].mxu0
      %v3078 = vadd.f32 0.0, %v3077
      %v3079 = vpop.f32.mrb[0].mxu0
      %v3080 = vpop.f32.mrb[0].mxu0
      %v3081 = vadd.f32 0.0, %v3080
      %v3082 = vpop.f32.mrb[0].mxu0
      %3083 = vmatprep.mubr.bf16.mxu0 0
      %3084 = vmatmul.mubr.bf16.gmra.mrb[0].mxu0 %v2645
      %v3085 = vpop.f32.mrb[0].mxu0
      %v3086 = vadd.f32 0.0, %v3085
      %v3087 = vpop.f32.mrb[0].mxu0
      %v3088 = vpop.f32.mrb[0].mxu0
      %v3089 = vadd.f32 0.0, %v3088
      %v3090 = vpop.f32.mrb[0].mxu0
      %3091 = vmatprep.mubr.bf16.mxu0 0
      %3092 = vmatmul.mubr.bf16.gmra.mrb[0].mxu0 %v2648
      %v3093 = vpop.f32.mrb[0].mxu0
      %v3094 = vadd.f32 0.0, %v3093
      %v3095 = vpop.f32.mrb[0].mxu0
      %v3096 = vpop.f32.mrb[0].mxu0
      %v3097 = vadd.f32 0.0, %v3096
      %v3098 = vpop.f32.mrb[0].mxu0
      %3099 = vmatprep.mubr.bf16.mxu0 0
      %3100 = vmatmul.mubr.bf16.gmra.mrb[0].mxu0 %v2651
      %v3101 = vpop.f32.mrb[0].mxu0
      %v3102 = vadd.f32 0.0, %v3101
      %v3103 = vpop.f32.mrb[0].mxu0
      %v3104 = vpop.f32.mrb[0].mxu0
      %v3105 = vadd.f32 0.0, %v3104
      %v3106 = vpop.f32.mrb[0].mxu0
      %3107 = vmatprep.mubr.bf16.mxu0 0
      %3108 = vmatmul.mubr.bf16.gmra.mrb[0].mxu0 %v2654
      %v3109 = vpop.f32.mrb[0].mxu0
      %v3110 = vadd.f32 0.0, %v3109
      %v3111 = vpop.f32.mrb[0].mxu0
      %v3112 = vpop.f32.mrb[0].mxu0
      %v3113 = vadd.f32 0.0, %v3112
      %v3114 = vpop.f32.mrb[0].mxu0
      %3115 = vmatprep.mubr.bf16.mxu0 0
      %3116 = vmatmul.mubr.bf16.gmra.mrb[0].mxu0 %v2657
      %v3117 = vpop.f32.mrb[0].mxu0
      %v3118 = vadd.f32 0.0, %v3117
      %v3119 = vpop.f32.mrb[0].mxu0
      %v3120 = vpop.f32.mrb[0].mxu0
      %v3121 = vadd.f32 0.0, %v3120
      %v3122 = vpop.f32.mrb[0].mxu0
      %3123 = vmatprep.mubr.bf16.mxu0 0
      %3124 = vmatmul.mubr.bf16.gmra.mrb[0].mxu0 %v2660
      %v3125 = vpop.f32.mrb[0].mxu0
      %v3126 = vadd.f32 0.0, %v3125
      %v3127 = vpop.f32.mrb[0].mxu0
      %v3128 = vpop.f32.mrb[0].mxu0
      %v3129 = vadd.f32 0.0, %v3128
      %v3130 = vpop.f32.mrb[0].mxu0
      %3131 = vmatprep.mubr.bf16.mxu0 0
      %3132 = vmatmul.mubr.bf16.gmra.mrb[0].mxu0 %v2663
      %v3133 = vpop.f32.mrb[0].mxu0
      %v3134 = vadd.f32 0.0, %v3133
      %v3135 = vpop.f32.mrb[0].mxu0
      %v3136 = vpop.f32.mrb[0].mxu0
      %v3137 = vadd.f32 0.0, %v3136
      %v3138 = vpop.f32.mrb[0].mxu0
      %3139 = vmatprep.mubr.bf16.mxu0 0
      %3140 = vmatmul.mubr.bf16.gmra.mrb[0].mxu0 %v2666
      %v3141 = vpop.f32.mrb[0].mxu0
      %v3142 = vadd.f32 0.0, %v3141
      %v3143 = vpop.f32.mrb[0].mxu0
      %v3144 = vpop.f32.mrb[0].mxu0
      %v3145 = vadd.f32 0.0, %v3144
      %v3146 = vpop.f32.mrb[0].mxu0
      %3147 = vmatprep.mubr.bf16.mxu0 0
      %3148 = vmatmul.mubr.bf16.gmra.mrb[0].mxu0 %v2669
      %v3149 = vpop.f32.mrb[0].mxu0
      %v3150 = vadd.f32 0.0, %v3149
      %v3151 = vpop.f32.mrb[0].mxu0
      %v3152 = vpop.f32.mrb[0].mxu0
      %v3153 = vadd.f32 0.0, %v3152
      %v3154 = vpop.f32.mrb[0].mxu0
      %3155 = vmatprep.mubr.bf16.mxu0 0
      %3156 = vmatmul.mubr.bf16.gmra.mrb[0].mxu0 %v2672
      %v3157 = vpop.f32.mrb[0].mxu0
      %v3158 = vadd.f32 0.0, %v3157
      %v3159 = vpop.f32.mrb[0].mxu0
      %v3160 = vpop.f32.mrb[0].mxu0
      %v3161 = vadd.f32 0.0, %v3160
      %v3162 = vpop.f32.mrb[0].mxu0
      %3163 = vmatprep.mubr.bf16.mxu0 0
      %3164 = vmatmul.mubr.bf16.gmra.mrb[0].mxu0 %v2675
      %v3165 = vpop.f32.mrb[0].mxu0
      %v3166 = vadd.f32 0.0, %v3165
      %v3167 = vpop.f32.mrb[0].mxu0
      %v3168 = vpop.f32.mrb[0].mxu0
      %v3169 = vadd.f32 0.0, %v3168
      %v3170 = vpop.f32.mrb[0].mxu0
      %3171 = vmatprep.mubr.bf16.mxu0 0
      %3172 = vmatmul.mubr.bf16.gmra.mrb[0].mxu0 %v2678
      %v3173 = vpop.f32.mrb[0].mxu0
      %v3174 = vadd.f32 0.0, %v3173
      %v3175 = vpop.f32.mrb[0].mxu0
      %v3176 = vpop.f32.mrb[0].mxu0
      %v3177 = vadd.f32 0.0, %v3176
      %v3178 = vpop.f32.mrb[0].mxu0
      %3179 = vmatprep.mubr.bf16.mxu0 0
      %3180 = vmatmul.mubr.bf16.gmra.mrb[0].mxu0 %v2681
      %v3181 = vpop.f32.mrb[0].mxu0
      %v3182 = vadd.f32 0.0, %v3181
      %v3183 = vpop.f32.mrb[0].mxu0
      %v3184 = vpop.f32.mrb[0].mxu0
      %v3185 = vadd.f32 0.0, %v3184
      %v3186 = vpop.f32.mrb[0].mxu0
      %3187 = vmatprep.mubr.bf16.mxu0 0
      %3188 = vmatmul.mubr.bf16.gmra.mrb[0].mxu0 %v2684
      %v3189 = vpop.f32.mrb[0].mxu0
      %v3190 = vadd.f32 0.0, %v3189
      %v3191 = vpop.f32.mrb[0].mxu0
      %v3192 = vpop.f32.mrb[0].mxu0
      %v3193 = vadd.f32 0.0, %v3192
      %v3194 = vpop.f32.mrb[0].mxu0
      %3195 = vmatprep.mubr.bf16.mxu0 0
      %3196 = vmatmul.mubr.bf16.gmra.mrb[0].mxu0 %v2687
      %v3197 = vpop.f32.mrb[0].mxu0
      %v3198 = vadd.f32 0.0, %v3197
      %v3199 = vpop.f32.mrb[0].mxu0
      %v3200 = vpop.f32.mrb[0].mxu0
      %v3201 = vadd.f32 0.0, %v3200
      %v3202 = vpop.f32.mrb[0].mxu0
      %3203 = vmatprep.mubr.bf16.mxu0 0
      %3204 = vmatmul.mubr.bf16.gmra.mrb[0].mxu0 %v2690
      %v3205 = vpop.f32.mrb[0].mxu0
      %v3206 = vadd.f32 0.0, %v3205
      %v3207 = vpop.f32.mrb[0].mxu0
      %v3208 = vpop.f32.mrb[0].mxu0
      %v3209 = vadd.f32 0.0, %v3208
      %v3210 = vpop.f32.mrb[0].mxu0
      %3211 = vmatprep.mubr.bf16.mxu0 0
      %3212 = vmatmul.mubr.bf16.gmra.mrb[0].mxu0 %v2693
      %v3213 = vpop.f32.mrb[0].mxu0
      %v3214 = vadd.f32 0.0, %v3213
      %v3215 = vpop.f32.mrb[0].mxu0
      %v3216 = vpop.f32.mrb[0].mxu0
      %v3217 = vadd.f32 0.0, %v3216
      %v3218 = vpop.f32.mrb[0].mxu0
      %3219 = vmatprep.mubr.bf16.mxu0 0
      %3220 = vmatmul.mubr.bf16.gmra.mrb[0].mxu0 %v2696
      %v3221 = vpop.f32.mrb[0].mxu0
      %v3222 = vadd.f32 0.0, %v3221
      %v3223 = vpop.f32.mrb[0].mxu0
      %v3224 = vpop.f32.mrb[0].mxu0
      %v3225 = vadd.f32 0.0, %v3224
      %v3226 = vpop.f32.mrb[0].mxu0
      %3227 = vmatprep.mubr.bf16.mxu0 0
      %3228 = vmatmul.mubr.bf16.gmra.mrb[0].mxu0 %v2699
      %v3229 = vpop.f32.mrb[0].mxu0
      %v3230 = vadd.f32 0.0, %v3229
      %v3231 = vpop.f32.mrb[0].mxu0
      %v3232 = vpop.f32.mrb[0].mxu0
      %v3233 = vadd.f32 0.0, %v3232
      %v3234 = vpop.f32.mrb[0].mxu0
      %3235 = vmatprep.mubr.bf16.mxu0 0
      %3236 = vmatmul.mubr.bf16.gmra.mrb[0].mxu0 %v2702
      %v3237 = vpop.f32.mrb[0].mxu0
      %v3238 = vadd.f32 0.0, %v3237
      %v3239 = vpop.f32.mrb[0].mxu0
      %v3240 = vpop.f32.mrb[0].mxu0
      %v3241 = vadd.f32 0.0, %v3240
      %v3242 = vpop.f32.mrb[0].mxu0
      %3243 = vmatprep.mubr.bf16.mxu0 0
      %3244 = vmatmul.mubr.bf16.gmra.mrb[0].mxu0 %v2705
      %v3245 = vpop.f32.mrb[0].mxu0
      %v3246 = vadd.f32 0.0, %v3245
      %v3247 = vpop.f32.mrb[0].mxu0
      %v3248 = vpop.f32.mrb[0].mxu0
      %v3249 = vadd.f32 0.0, %v3248
      %v3250 = vpop.f32.mrb[0].mxu0
      %3251 = vmatprep.mubr.bf16.mxu0 0
      %3252 = vmatmul.mubr.bf16.gmra.mrb[0].mxu0 %v2708
      %v3253 = vpop.f32.mrb[0].mxu0
      %v3254 = vadd.f32 0.0, %v3253
      %v3255 = vpop.f32.mrb[0].mxu0
      %v3256 = vpop.f32.mrb[0].mxu0
      %v3257 = vadd.f32 0.0, %v3256
      %v3258 = vpop.f32.mrb[0].mxu0
      %3259 = vmatprep.mubr.bf16.mxu0 0
      %3260 = vmatmul.mubr.bf16.gmra.mrb[0].mxu0 %v2711
      %v3261 = vpop.f32.mrb[0].mxu0
      %v3262 = vadd.f32 0.0, %v3261
      %v3263 = vpop.f32.mrb[0].mxu0
      %v3264 = vpop.f32.mrb[0].mxu0
      %v3265 = vadd.f32 0.0, %v3264
      %v3266 = vpop.f32.mrb[0].mxu0
      %3267 = vmatprep.mubr.bf16.mxu0 0
      %3268 = vmatmul.mubr.bf16.gmra.mrb[0].mxu0 %v2714
      %v3269 = vpop.f32.mrb[0].mxu0
      %v3270 = vadd.f32 0.0, %v3269
      %v3271 = vpop.f32.mrb[0].mxu0
      %v3272 = vpop.f32.mrb[0].mxu0
      %v3273 = vadd.f32 0.0, %v3272
      %v3274 = vpop.f32.mrb[0].mxu0
      %3275 = vmatprep.mubr.bf16.mxu0 0
      %3276 = vmatmul.mubr.bf16.gmra.mrb[0].mxu0 %v2717
      %v3277 = vpop.f32.mrb[0].mxu0
      %v3278 = vadd.f32 0.0, %v3277
      %v3279 = vpop.f32.mrb[0].mxu0
      %v3280 = vpop.f32.mrb[0].mxu0
      %v3281 = vadd.f32 0.0, %v3280
      %v3282 = vpop.f32.mrb[0].mxu0
      %3283 = vmatprep.mubr.bf16.mxu0 0
      %3284 = vmatmul.mubr.bf16.gmra.mrb[0].mxu0 %v2720
      %v3285 = vpop.f32.mrb[0].mxu0
      %v3286 = vadd.f32 0.0, %v3285
      %v3287 = vpop.f32.mrb[0].mxu0
      %v3288 = vpop.f32.mrb[0].mxu0
      %v3289 = vadd.f32 0.0, %v3288
      %v3290 = vpop.f32.mrb[0].mxu0
      %3291 = vmatprep.mubr.bf16.mxu0 0
      %3292 = vmatmul.mubr.bf16.gmra.mrb[0].mxu0 %v2723
      %v3293 = vpop.f32.mrb[0].mxu0
      %v3294 = vadd.f32 0.0, %v3293
      %v3295 = vpop.f32.mrb[0].mxu0
      %v3296 = vpop.f32.mrb[0].mxu0
      %v3297 = vadd.f32 0.0, %v3296
      %v3298 = vpop.f32.mrb[0].mxu0
      %3299 = vmatprep.mubr.bf16.mxu0 0
      %3300 = vmatmul.mubr.bf16.gmra.mrb[0].mxu0 %v2726
      %v3301 = vpop.f32.mrb[0].mxu0
      %v3302 = vadd.f32 0.0, %v3301
      %v3303 = vpop.f32.mrb[0].mxu0
      %v3304 = vpop.f32.mrb[0].mxu0
      %v3305 = vadd.f32 0.0, %v3304
      %v3306 = vpop.f32.mrb[0].mxu0
      %3307 = vdwg.mxu0
      %v3308 = vadd.f32 %v951, %v2766
      %v3309 = vadd.f32 %v954, %v2769
      %v3310 = vadd.f32 %v959, %v2774
      %v3311 = vadd.f32 %v962, %v2777
      %v3312 = vadd.f32 %v967, %v2782
      %v3313 = vadd.f32 %v970, %v2785
      %v3314 = vadd.f32 %v975, %v2790
      %v3315 = vadd.f32 %v978, %v2793
      %v3316 = vadd.f32 %v983, %v2798
      %v3317 = vadd.f32 %v986, %v2801
      %v3318 = vadd.f32 %v991, %v2806
      %v3319 = vadd.f32 %v994, %v2809
      %v3320 = vadd.f32 %v999, %v2814
      %v3321 = vadd.f32 %v1002, %v2817
      %v3322 = vadd.f32 %v1007, %v2822
      %v3323 = vadd.f32 %v1010, %v2825
      %v3324 = vadd.f32 %v1015, %v2830
      %v3325 = vadd.f32 %v1018, %v2833
      %v3326 = vadd.f32 %v1023, %v2838
      %v3327 = vadd.f32 %v1026, %v2841
      %v3328 = vadd.f32 %v1031, %v2846
      %v3329 = vadd.f32 %v1034, %v2849
      %v3330 = vadd.f32 %v1039, %v2854
      %v3331 = vadd.f32 %v1042, %v2857
      %v3332 = vadd.f32 %v1047, %v2862
      %v3333 = vadd.f32 %v1050, %v2865
      %v3334 = vadd.f32 %v1055, %v2870
      %v3335 = vadd.f32 %v1058, %v2873
      %v3336 = vadd.f32 %v1063, %v2878
      %v3337 = vadd.f32 %v1066, %v2881
      %v3338 = vadd.f32 %v1071, %v2886
      %v3339 = vadd.f32 %v1074, %v2889
      %v3340 = vadd.f32 %v1079, %v2894
      %v3341 = vadd.f32 %v1082, %v2897
      %v3342 = vadd.f32 %v1087, %v2902
      %v3343 = vadd.f32 %v1090, %v2905
      %v3344 = vadd.f32 %v1095, %v2910
      %v3345 = vadd.f32 %v1098, %v2913
      %v3346 = vadd.f32 %v1103, %v2918
      %v3347 = vadd.f32 %v1106, %v2921
      %v3348 = vadd.f32 %v1111, %v2926
      %v3349 = vadd.f32 %v1114, %v2929
      %v3350 = vadd.f32 %v1119, %v2934
      %v3351 = vadd.f32 %v1122, %v2937
      %v3352 = vadd.f32 %v1127, %v2942
      %v3353 = vadd.f32 %v1130, %v2945
      %v3354 = vadd.f32 %v1135, %v2950
      %v3355 = vadd.f32 %v1138, %v2953
      %v3356 = vadd.f32 %v1143, %v2958
      %v3357 = vadd.f32 %v1146, %v2961
      %v3358 = vadd.f32 %v1151, %v2966
      %v3359 = vadd.f32 %v1154, %v2969
      %v3360 = vadd.f32 %v1159, %v2974
      %v3361 = vadd.f32 %v1162, %v2977
      %v3362 = vadd.f32 %v1167, %v2982
      %v3363 = vadd.f32 %v1170, %v2985
      %v3364 = vadd.f32 %v1175, %v2990
      %v3365 = vadd.f32 %v1178, %v2993
      %v3366 = vadd.f32 %v1183, %v2998
      %v3367 = vadd.f32 %v1186, %v3001
      %v3368 = vadd.f32 %v1191, %v3006
      %v3369 = vadd.f32 %v1194, %v3009
      %v3370 = vadd.f32 %v1199, %v3014
      %v3371 = vadd.f32 %v1202, %v3017
      %v3372 = vadd.f32 %v1207, %v3022
      %v3373 = vadd.f32 %v1210, %v3025
      %v3374 = vadd.f32 %v1215, %v3030
      %v3375 = vadd.f32 %v1218, %v3033
      %v3376 = vadd.f32 %v1223, %v3038
      %v3377 = vadd.f32 %v1226, %v3041
      %v3378 = vadd.f32 %v1231, %v3046
      %v3379 = vadd.f32 %v1234, %v3049
      %v3380 = vadd.f32 %v1239, %v3054
      %v3381 = vadd.f32 %v1242, %v3057
      %v3382 = vadd.f32 %v1247, %v3062
      %v3383 = vadd.f32 %v1250, %v3065
      %v3384 = vadd.f32 %v1255, %v3070
      %v3385 = vadd.f32 %v1258, %v3073
      %v3386 = vadd.f32 %v1263, %v3078
      %v3387 = vadd.f32 %v1266, %v3081
      %v3388 = vadd.f32 %v1271, %v3086
      %v3389 = vadd.f32 %v1274, %v3089
      %v3390 = vadd.f32 %v1279, %v3094
      %v3391 = vadd.f32 %v1282, %v3097
      %v3392 = vadd.f32 %v1287, %v3102
      %v3393 = vadd.f32 %v1290, %v3105
      %v3394 = vadd.f32 %v1295, %v3110
      %v3395 = vadd.f32 %v1298, %v3113
      %v3396 = vadd.f32 %v1303, %v3118
      %v3397 = vadd.f32 %v1306, %v3121
      %v3398 = vadd.f32 %v1311, %v3126
      %v3399 = vadd.f32 %v1314, %v3129
      %v3400 = vadd.f32 %v1319, %v3134
      %v3401 = vadd.f32 %v1322, %v3137
      %v3402 = vadd.f32 %v1327, %v3142
      %v3403 = vadd.f32 %v1330, %v3145
      %v3404 = vadd.f32 %v1335, %v3150
      %v3405 = vadd.f32 %v1338, %v3153
      %v3406 = vadd.f32 %v1343, %v3158
      %v3407 = vadd.f32 %v1346, %v3161
      %v3408 = vadd.f32 %v1351, %v3166
      %v3409 = vadd.f32 %v1354, %v3169
      %v3410 = vadd.f32 %v1359, %v3174
      %v3411 = vadd.f32 %v1362, %v3177
      %v3412 = vadd.f32 %v1367, %v3182
      %v3413 = vadd.f32 %v1370, %v3185
      %v3414 = vadd.f32 %v1375, %v3190
      %v3415 = vadd.f32 %v1378, %v3193
      %v3416 = vadd.f32 %v1383, %v3198
      %v3417 = vadd.f32 %v1386, %v3201
      %v3418 = vadd.f32 %v1391, %v3206
      %v3419 = vadd.f32 %v1394, %v3209
      %v3420 = vadd.f32 %v1399, %v3214
      %v3421 = vadd.f32 %v1402, %v3217
      %v3422 = vadd.f32 %v1407, %v3222
      %v3423 = vadd.f32 %v1410, %v3225
      %v3424 = vadd.f32 %v1415, %v3230
      %v3425 = vadd.f32 %v1418, %v3233
      %v3426 = vadd.f32 %v1423, %v3238
      %v3427 = vadd.f32 %v1426, %v3241
      %v3428 = vadd.f32 %v1431, %v3246
      %v3429 = vadd.f32 %v1434, %v3249
      %v3430 = vadd.f32 %v1439, %v3254
      %v3431 = vadd.f32 %v1442, %v3257
      %v3432 = vadd.f32 %v1447, %v3262
      %v3433 = vadd.f32 %v1450, %v3265
      %v3434 = vadd.f32 %v1455, %v3270
      %v3435 = vadd.f32 %v1458, %v3273
      %v3436 = vadd.f32 %v1463, %v3278
      %v3437 = vadd.f32 %v1466, %v3281
      %v3438 = vadd.f32 %v1471, %v3286
      %v3439 = vadd.f32 %v1474, %v3289
      %v3440 = vadd.f32 %v1479, %v3294
      %v3441 = vadd.f32 %v1482, %v3297
      %v3442 = vadd.f32 %v1487, %v3302
      %v3443 = vadd.f32 %v1490, %v3305
      %v3444 = vld [vmem:[%s206] sm:$0xe]
      %s3445 = scalar_lea.vmem %s210, 8
      %v3446 = vld [vmem:[%s3445] sm:$0xf]
      %v3448 = vunpack.c.l.b16 %v3444
      %v3449 = vpack.c.b16 %v1770, %v3448
      %vm3450 = vcmask 1046528
      %v3451 = vrot.slane %v3449, 1
      %v3452 = vrot.slane %v1907, 1
      %v3453 = vsel %vm3450, %v3451, %v3452
      %v3454 = vrot.slane %v1908, 1
      %v3455 = vsel %vm3450, %v3452, %v3454
      %v3456 = vrot.slane %v1909, 1
      %v3457 = vsel %vm3450, %v3454, %v3456
      %v3458 = vrot.slane %v1910, 1
      %v3459 = vsel %vm3450, %v3456, %v3458
      %v3460 = vrot.slane %v1911, 1
      %v3461 = vsel %vm3450, %v3458, %v3460
      %v3462 = vrot.slane %v1912, 1
      %v3463 = vsel %vm3450, %v3460, %v3462
      %v3464 = vrot.slane %v1913, 1
      %v3465 = vsel %vm3450, %v3462, %v3464
      %v3466 = vrot.slane %v1914, 1
      %v3467 = vsel %vm3450, %v3464, %v3466
      %v3468 = vrot.slane %v1915, 1
      %v3469 = vsel %vm3450, %v3466, %v3468
      %v3470 = vrot.slane %v1916, 1
      %v3471 = vsel %vm3450, %v3468, %v3470
      %v3472 = vrot.slane %v1917, 1
      %v3473 = vsel %vm3450, %v3470, %v3472
      %v3474 = vrot.slane %v1918, 1
      %v3475 = vsel %vm3450, %v3472, %v3474
      %v3476 = vrot.slane %v1919, 1
      %v3477 = vsel %vm3450, %v3474, %v3476
      %v3478 = vrot.slane %v1920, 1
      %v3479 = vsel %vm3450, %v3476, %v3478
      %v3480 = vrot.slane %v1921, 1
      %v3481 = vsel %vm3450, %v3478, %v3480
      %v3482 = vrot.slane %v1922, 1
      %v3483 = vsel %vm3450, %v3480, %v3482
      %v3484 = vrot.slane %v1923, 1
      %v3485 = vsel %vm3450, %v3482, %v3484
      %v3486 = vrot.slane %v1924, 1
      %v3487 = vsel %vm3450, %v3484, %v3486
      %v3488 = vrot.slane %v1925, 1
      %v3489 = vsel %vm3450, %v3486, %v3488
      %v3490 = vrot.slane %v1926, 1
      %v3491 = vsel %vm3450, %v3488, %v3490
      %v3492 = vrot.slane %v1927, 1
      %v3493 = vsel %vm3450, %v3490, %v3492
      %v3494 = vrot.slane %v1928, 1
      %v3495 = vsel %vm3450, %v3492, %v3494
      %v3496 = vrot.slane %v1929, 1
      %v3497 = vsel %vm3450, %v3494, %v3496
      %v3498 = vrot.slane %v1930, 1
      %v3499 = vsel %vm3450, %v3496, %v3498
      %v3500 = vrot.slane %v1931, 1
      %v3501 = vsel %vm3450, %v3498, %v3500
      %v3502 = vrot.slane %v1932, 1
      %v3503 = vsel %vm3450, %v3500, %v3502
      %v3504 = vrot.slane %v1933, 1
      %v3505 = vsel %vm3450, %v3502, %v3504
      %v3506 = vrot.slane %v1934, 1
      %v3507 = vsel %vm3450, %v3504, %v3506
      %v3508 = vrot.slane %v1935, 1
      %v3509 = vsel %vm3450, %v3506, %v3508
      %v3510 = vrot.slane %v1936, 1
      %v3511 = vsel %vm3450, %v3508, %v3510
      %v3512 = vrot.slane %v1937, 1
      %v3513 = vsel %vm3450, %v3510, %v3512
      %v3514 = vrot.slane %v1938, 1
      %v3515 = vsel %vm3450, %v3512, %v3514
      %v3516 = vrot.slane %v1939, 1
      %v3517 = vsel %vm3450, %v3514, %v3516
      %v3518 = vrot.slane %v1940, 1
      %v3519 = vsel %vm3450, %v3516, %v3518
      %v3520 = vrot.slane %v1941, 1
      %v3521 = vsel %vm3450, %v3518, %v3520
      %v3522 = vrot.slane %v1942, 1
      %v3523 = vsel %vm3450, %v3520, %v3522
      %v3524 = vrot.slane %v1943, 1
      %v3525 = vsel %vm3450, %v3522, %v3524
      %v3526 = vrot.slane %v1944, 1
      %v3527 = vsel %vm3450, %v3524, %v3526
      %v3528 = vrot.slane %v1945, 1
      %v3529 = vsel %vm3450, %v3526, %v3528
      %v3530 = vrot.slane %v1946, 1
      %v3531 = vsel %vm3450, %v3528, %v3530
      %v3532 = vrot.slane %v1947, 1
      %v3533 = vsel %vm3450, %v3530, %v3532
      %v3534 = vrot.slane %v1948, 1
      %v3535 = vsel %vm3450, %v3532, %v3534
      %v3536 = vrot.slane %v1949, 1
      %v3537 = vsel %vm3450, %v3534, %v3536
      %v3538 = vrot.slane %v1950, 1
      %v3539 = vsel %vm3450, %v3536, %v3538
      %v3540 = vrot.slane %v1951, 1
      %v3541 = vsel %vm3450, %v3538, %v3540
      %v3542 = vrot.slane %v1952, 1
      %v3543 = vsel %vm3450, %v3540, %v3542
      %v3544 = vrot.slane %v1953, 1
      %v3545 = vsel %vm3450, %v3542, %v3544
      %v3546 = vrot.slane %v1954, 1
      %v3547 = vsel %vm3450, %v3544, %v3546
      %v3548 = vrot.slane %v1955, 1
      %v3549 = vsel %vm3450, %v3546, %v3548
      %v3550 = vrot.slane %v1956, 1
      %v3551 = vsel %vm3450, %v3548, %v3550
      %v3552 = vrot.slane %v1957, 1
      %v3553 = vsel %vm3450, %v3550, %v3552
      %v3554 = vrot.slane %v1958, 1
      %v3555 = vsel %vm3450, %v3552, %v3554
      %v3556 = vrot.slane %v1959, 1
      %v3557 = vsel %vm3450, %v3554, %v3556
      %v3558 = vrot.slane %v1960, 1
      %v3559 = vsel %vm3450, %v3556, %v3558
      %v3560 = vrot.slane %v1961, 1
      %v3561 = vsel %vm3450, %v3558, %v3560
      %v3562 = vrot.slane %v1962, 1
      %v3563 = vsel %vm3450, %v3560, %v3562
      %v3564 = vrot.slane %v1963, 1
      %v3565 = vsel %vm3450, %v3562, %v3564
      %v3566 = vrot.slane %v1964, 1
      %v3567 = vsel %vm3450, %v3564, %v3566
      %v3568 = vrot.slane %v1965, 1
      %v3569 = vsel %vm3450, %v3566, %v3568
      %v3570 = vrot.slane %v1966, 1
      %v3571 = vsel %vm3450, %v3568, %v3570
      %v3572 = vrot.slane %v1967, 1
      %v3573 = vsel %vm3450, %v3570, %v3572
      %v3574 = vrot.slane %v1968, 1
      %v3575 = vsel %vm3450, %v3572, %v3574
      %v3576 = vrot.slane %v1969, 1
      %v3577 = vsel %vm3450, %v3574, %v3576
      %v3578 = vrot.slane %v1970, 1
      %v3579 = vsel %vm3450, %v3576, %v3578
      %v3580 = vrot.slane %v1971, 1
      %v3581 = vsel %vm3450, %v3578, %v3580
      %v3582 = vrot.slane %v1972, 1
      %v3583 = vsel %vm3450, %v3580, %v3582
      %v3584 = vrot.slane %v1973, 1
      %v3585 = vsel %vm3450, %v3582, %v3584
      %v3586 = vrot.slane %v1974, 1
      %v3587 = vsel %vm3450, %v3584, %v3586
      %v3589 = vsel %vm707, %v3453, 0
      %v3592 = vsel %vm707, %v3455, 0
      %v3595 = vsel %vm707, %v3457, 0
      %v3598 = vsel %vm707, %v3459, 0
      %v3601 = vsel %vm707, %v3461, 0
      %v3604 = vsel %vm707, %v3463, 0
      %v3607 = vsel %vm707, %v3465, 0
      %v3610 = vsel %vm707, %v3467, 0
      %v3613 = vsel %vm707, %v3469, 0
      %v3616 = vsel %vm707, %v3471, 0
      %v3619 = vsel %vm707, %v3473, 0
      %v3622 = vsel %vm707, %v3475, 0
      %v3625 = vsel %vm707, %v3477, 0
      %v3628 = vsel %vm707, %v3479, 0
      %v3631 = vsel %vm707, %v3481, 0
      %v3634 = vsel %vm707, %v3483, 0
      %v3637 = vsel %vm707, %v3485, 0
      %v3640 = vsel %vm707, %v3487, 0
      %v3643 = vsel %vm707, %v3489, 0
      %v3646 = vsel %vm707, %v3491, 0
      %v3649 = vsel %vm707, %v3493, 0
      %v3652 = vsel %vm707, %v3495, 0
      %v3655 = vsel %vm707, %v3497, 0
      %v3658 = vsel %vm707, %v3499, 0
      %v3661 = vsel %vm707, %v3501, 0
      %v3664 = vsel %vm707, %v3503, 0
      %v3667 = vsel %vm707, %v3505, 0
      %v3670 = vsel %vm707, %v3507, 0
      %v3673 = vsel %vm707, %v3509, 0
      %v3676 = vsel %vm707, %v3511, 0
      %v3679 = vsel %vm707, %v3513, 0
      %v3682 = vsel %vm707, %v3515, 0
      %v3685 = vsel %vm707, %v3517, 0
      %v3688 = vsel %vm707, %v3519, 0
      %v3691 = vsel %vm707, %v3521, 0
      %v3694 = vsel %vm707, %v3523, 0
      %v3697 = vsel %vm707, %v3525, 0
      %v3700 = vsel %vm707, %v3527, 0
      %v3703 = vsel %vm707, %v3529, 0
      %v3706 = vsel %vm707, %v3531, 0
      %v3709 = vsel %vm707, %v3533, 0
      %v3712 = vsel %vm707, %v3535, 0
      %v3715 = vsel %vm707, %v3537, 0
      %v3718 = vsel %vm707, %v3539, 0
      %v3721 = vsel %vm707, %v3541, 0
      %v3724 = vsel %vm707, %v3543, 0
      %v3727 = vsel %vm707, %v3545, 0
      %v3730 = vsel %vm707, %v3547, 0
      %v3733 = vsel %vm707, %v3549, 0
      %v3736 = vsel %vm707, %v3551, 0
      %v3739 = vsel %vm707, %v3553, 0
      %v3742 = vsel %vm707, %v3555, 0
      %v3745 = vsel %vm707, %v3557, 0
      %v3748 = vsel %vm707, %v3559, 0
      %v3751 = vsel %vm707, %v3561, 0
      %v3754 = vsel %vm707, %v3563, 0
      %v3757 = vsel %vm707, %v3565, 0
      %v3760 = vsel %vm707, %v3567, 0
      %v3763 = vsel %vm707, %v3569, 0
      %v3766 = vsel %vm707, %v3571, 0
      %v3769 = vsel %vm707, %v3573, 0
      %v3772 = vsel %vm707, %v3575, 0
      %v3775 = vsel %vm707, %v3577, 0
      %v3778 = vsel %vm707, %v3579, 0
      %v3781 = vsel %vm707, %v3581, 0
      %v3784 = vsel %vm707, %v3583, 0
      %v3787 = vsel %vm707, %v3585, 0
      %v3790 = vsel %vm707, %v3587, 0
      %v3793 = vsel %vm912, %v3446, 0
      %3795 = vmatprep.subr.bf16.mxu0 0
      %3796 = vmatpush1.bf16.msra.mxu0 %v3793
      %3797 = vmatprep.subr.bf16.mxu0 0
      %3798 = vmatpush1.bf16.msra.mxu0 0
      %3799 = vmatprep.subr.bf16.mxu0 0
      %3800 = vmatpush1.bf16.msra.mxu0 0
      %3801 = vmatprep.subr.bf16.mxu0 0
      %3802 = vmatpush1.bf16.msra.mxu0 0
      %3803 = vmatprep.subr.bf16.mxu0 0
      %3804 = vmatpush1.bf16.msra.mxu0 0
      %3805 = vmatprep.subr.bf16.mxu0 0
      %3806 = vmatpush1.bf16.msra.mxu0 0
      %3807 = vmatprep.subr.bf16.mxu0 0
      %3808 = vmatpush1.bf16.msra.mxu0 0
      %3809 = vmatprep.subr.bf16.mxu0 0
      %3810 = vmatpush1.bf16.msra.mxu0 0
      %3811 = vmatprep.subr.bf16.mxu0 0
      %3812 = vmatpush1.bf16.msra.mxu0 0
      %3813 = vmatprep.subr.bf16.mxu0 0
      %3814 = vmatpush1.bf16.msra.mxu0 0
      %3815 = vmatprep.subr.bf16.mxu0 0
      %3816 = vmatpush1.bf16.msra.mxu0 0
      %3817 = vmatprep.subr.bf16.mxu0 0
      %3818 = vmatpush1.bf16.msra.mxu0 0
      %3819 = vmatprep.subr.bf16.mxu0 0
      %3820 = vmatpush1.bf16.msra.mxu0 0
      %3821 = vmatprep.subr.bf16.mxu0 0
      %3822 = vmatpush1.bf16.msra.mxu0 0
      %3823 = vmatprep.subr.bf16.mxu0 0
      %3824 = vmatpush1.bf16.msra.mxu0 0
      %3825 = vmatprep.subr.bf16.mxu0 0
      %3826 = vmatpush1.bf16.msra.mxu0 0
      %3827 = vmatprep.mubr.bf16.mxu0 0
      %3828 = vmatmul.mubr.bf16.gmra.mrb[0].mxu0 %v3589
      %v3829 = vpop.f32.mrb[0].mxu0
      %v3830 = vadd.f32 0.0, %v3829
      %v3831 = vpop.f32.mrb[0].mxu0
      %v3832 = vpop.f32.mrb[0].mxu0
      %v3833 = vadd.f32 0.0, %v3832
      %v3834 = vpop.f32.mrb[0].mxu0
      %3835 = vmatprep.mubr.bf16.mxu0 0
      %3836 = vmatmul.mubr.bf16.gmra.mrb[0].mxu0 %v3592
      %v3837 = vpop.f32.mrb[0].mxu0
      %v3838 = vadd.f32 0.0, %v3837
      %v3839 = vpop.f32.mrb[0].mxu0
      %v3840 = vpop.f32.mrb[0].mxu0
      %v3841 = vadd.f32 0.0, %v3840
      %v3842 = vpop.f32.mrb[0].mxu0
      %3843 = vmatprep.mubr.bf16.mxu0 0
      %3844 = vmatmul.mubr.bf16.gmra.mrb[0].mxu0 %v3595
      %v3845 = vpop.f32.mrb[0].mxu0
      %v3846 = vadd.f32 0.0, %v3845
      %v3847 = vpop.f32.mrb[0].mxu0
      %v3848 = vpop.f32.mrb[0].mxu0
      %v3849 = vadd.f32 0.0, %v3848
      %v3850 = vpop.f32.mrb[0].mxu0
      %3851 = vmatprep.mubr.bf16.mxu0 0
      %3852 = vmatmul.mubr.bf16.gmra.mrb[0].mxu0 %v3598
      %v3853 = vpop.f32.mrb[0].mxu0
      %v3854 = vadd.f32 0.0, %v3853
      %v3855 = vpop.f32.mrb[0].mxu0
      %v3856 = vpop.f32.mrb[0].mxu0
      %v3857 = vadd.f32 0.0, %v3856
      %v3858 = vpop.f32.mrb[0].mxu0
      %3859 = vmatprep.mubr.bf16.mxu0 0
      %3860 = vmatmul.mubr.bf16.gmra.mrb[0].mxu0 %v3601
      %v3861 = vpop.f32.mrb[0].mxu0
      %v3862 = vadd.f32 0.0, %v3861
      %v3863 = vpop.f32.mrb[0].mxu0
      %v3864 = vpop.f32.mrb[0].mxu0
      %v3865 = vadd.f32 0.0, %v3864
      %v3866 = vpop.f32.mrb[0].mxu0
      %3867 = vmatprep.mubr.bf16.mxu0 0
      %3868 = vmatmul.mubr.bf16.gmra.mrb[0].mxu0 %v3604
      %v3869 = vpop.f32.mrb[0].mxu0
      %v3870 = vadd.f32 0.0, %v3869
      %v3871 = vpop.f32.mrb[0].mxu0
      %v3872 = vpop.f32.mrb[0].mxu0
      %v3873 = vadd.f32 0.0, %v3872
      %v3874 = vpop.f32.mrb[0].mxu0
      %3875 = vmatprep.mubr.bf16.mxu0 0
      %3876 = vmatmul.mubr.bf16.gmra.mrb[0].mxu0 %v3607
      %v3877 = vpop.f32.mrb[0].mxu0
      %v3878 = vadd.f32 0.0, %v3877
      %v3879 = vpop.f32.mrb[0].mxu0
      %v3880 = vpop.f32.mrb[0].mxu0
      %v3881 = vadd.f32 0.0, %v3880
      %v3882 = vpop.f32.mrb[0].mxu0
      %3883 = vmatprep.mubr.bf16.mxu0 0
      %3884 = vmatmul.mubr.bf16.gmra.mrb[0].mxu0 %v3610
      %v3885 = vpop.f32.mrb[0].mxu0
      %v3886 = vadd.f32 0.0, %v3885
      %v3887 = vpop.f32.mrb[0].mxu0
      %v3888 = vpop.f32.mrb[0].mxu0
      %v3889 = vadd.f32 0.0, %v3888
      %v3890 = vpop.f32.mrb[0].mxu0
      %3891 = vmatprep.mubr.bf16.mxu0 0
      %3892 = vmatmul.mubr.bf16.gmra.mrb[0].mxu0 %v3613
      %v3893 = vpop.f32.mrb[0].mxu0
      %v3894 = vadd.f32 0.0, %v3893
      %v3895 = vpop.f32.mrb[0].mxu0
      %v3896 = vpop.f32.mrb[0].mxu0
      %v3897 = vadd.f32 0.0, %v3896
      %v3898 = vpop.f32.mrb[0].mxu0
      %3899 = vmatprep.mubr.bf16.mxu0 0
      %3900 = vmatmul.mubr.bf16.gmra.mrb[0].mxu0 %v3616
      %v3901 = vpop.f32.mrb[0].mxu0
      %v3902 = vadd.f32 0.0, %v3901
      %v3903 = vpop.f32.mrb[0].mxu0
      %v3904 = vpop.f32.mrb[0].mxu0
      %v3905 = vadd.f32 0.0, %v3904
      %v3906 = vpop.f32.mrb[0].mxu0
      %3907 = vmatprep.mubr.bf16.mxu0 0
      %3908 = vmatmul.mubr.bf16.gmra.mrb[0].mxu0 %v3619
      %v3909 = vpop.f32.mrb[0].mxu0
      %v3910 = vadd.f32 0.0, %v3909
      %v3911 = vpop.f32.mrb[0].mxu0
      %v3912 = vpop.f32.mrb[0].mxu0
      %v3913 = vadd.f32 0.0, %v3912
      %v3914 = vpop.f32.mrb[0].mxu0
      %3915 = vmatprep.mubr.bf16.mxu0 0
      %3916 = vmatmul.mubr.bf16.gmra.mrb[0].mxu0 %v3622
      %v3917 = vpop.f32.mrb[0].mxu0
      %v3918 = vadd.f32 0.0, %v3917
      %v3919 = vpop.f32.mrb[0].mxu0
      %v3920 = vpop.f32.mrb[0].mxu0
      %v3921 = vadd.f32 0.0, %v3920
      %v3922 = vpop.f32.mrb[0].mxu0
      %3923 = vmatprep.mubr.bf16.mxu0 0
      %3924 = vmatmul.mubr.bf16.gmra.mrb[0].mxu0 %v3625
      %v3925 = vpop.f32.mrb[0].mxu0
      %v3926 = vadd.f32 0.0, %v3925
      %v3927 = vpop.f32.mrb[0].mxu0
      %v3928 = vpop.f32.mrb[0].mxu0
      %v3929 = vadd.f32 0.0, %v3928
      %v3930 = vpop.f32.mrb[0].mxu0
      %3931 = vmatprep.mubr.bf16.mxu0 0
      %3932 = vmatmul.mubr.bf16.gmra.mrb[0].mxu0 %v3628
      %v3933 = vpop.f32.mrb[0].mxu0
      %v3934 = vadd.f32 0.0, %v3933
      %v3935 = vpop.f32.mrb[0].mxu0
      %v3936 = vpop.f32.mrb[0].mxu0
      %v3937 = vadd.f32 0.0, %v3936
      %v3938 = vpop.f32.mrb[0].mxu0
      %3939 = vmatprep.mubr.bf16.mxu0 0
      %3940 = vmatmul.mubr.bf16.gmra.mrb[0].mxu0 %v3631
      %v3941 = vpop.f32.mrb[0].mxu0
      %v3942 = vadd.f32 0.0, %v3941
      %v3943 = vpop.f32.mrb[0].mxu0
      %v3944 = vpop.f32.mrb[0].mxu0
      %v3945 = vadd.f32 0.0, %v3944
      %v3946 = vpop.f32.mrb[0].mxu0
      %3947 = vmatprep.mubr.bf16.mxu0 0
      %3948 = vmatmul.mubr.bf16.gmra.mrb[0].mxu0 %v3634
      %v3949 = vpop.f32.mrb[0].mxu0
      %v3950 = vadd.f32 0.0, %v3949
      %v3951 = vpop.f32.mrb[0].mxu0
      %v3952 = vpop.f32.mrb[0].mxu0
      %v3953 = vadd.f32 0.0, %v3952
      %v3954 = vpop.f32.mrb[0].mxu0
      %3955 = vmatprep.mubr.bf16.mxu0 0
      %3956 = vmatmul.mubr.bf16.gmra.mrb[0].mxu0 %v3637
      %v3957 = vpop.f32.mrb[0].mxu0
      %v3958 = vadd.f32 0.0, %v3957
      %v3959 = vpop.f32.mrb[0].mxu0
      %v3960 = vpop.f32.mrb[0].mxu0
      %v3961 = vadd.f32 0.0, %v3960
      %v3962 = vpop.f32.mrb[0].mxu0
      %3963 = vmatprep.mubr.bf16.mxu0 0
      %3964 = vmatmul.mubr.bf16.gmra.mrb[0].mxu0 %v3640
      %v3965 = vpop.f32.mrb[0].mxu0
      %v3966 = vadd.f32 0.0, %v3965
      %v3967 = vpop.f32.mrb[0].mxu0
      %v3968 = vpop.f32.mrb[0].mxu0
      %v3969 = vadd.f32 0.0, %v3968
      %v3970 = vpop.f32.mrb[0].mxu0
      %3971 = vmatprep.mubr.bf16.mxu0 0
      %3972 = vmatmul.mubr.bf16.gmra.mrb[0].mxu0 %v3643
      %v3973 = vpop.f32.mrb[0].mxu0
      %v3974 = vadd.f32 0.0, %v3973
      %v3975 = vpop.f32.mrb[0].mxu0
      %v3976 = vpop.f32.mrb[0].mxu0
      %v3977 = vadd.f32 0.0, %v3976
      %v3978 = vpop.f32.mrb[0].mxu0
      %3979 = vmatprep.mubr.bf16.mxu0 0
      %3980 = vmatmul.mubr.bf16.gmra.mrb[0].mxu0 %v3646
      %v3981 = vpop.f32.mrb[0].mxu0
      %v3982 = vadd.f32 0.0, %v3981
      %v3983 = vpop.f32.mrb[0].mxu0
      %v3984 = vpop.f32.mrb[0].mxu0
      %v3985 = vadd.f32 0.0, %v3984
      %v3986 = vpop.f32.mrb[0].mxu0
      %3987 = vmatprep.mubr.bf16.mxu0 0
      %3988 = vmatmul.mubr.bf16.gmra.mrb[0].mxu0 %v3649
      %v3989 = vpop.f32.mrb[0].mxu0
      %v3990 = vadd.f32 0.0, %v3989
      %v3991 = vpop.f32.mrb[0].mxu0
      %v3992 = vpop.f32.mrb[0].mxu0
      %v3993 = vadd.f32 0.0, %v3992
      %v3994 = vpop.f32.mrb[0].mxu0
      %3995 = vmatprep.mubr.bf16.mxu0 0
      %3996 = vmatmul.mubr.bf16.gmra.mrb[0].mxu0 %v3652
      %v3997 = vpop.f32.mrb[0].mxu0
      %v3998 = vadd.f32 0.0, %v3997
      %v3999 = vpop.f32.mrb[0].mxu0
      %v4000 = vpop.f32.mrb[0].mxu0
      %v4001 = vadd.f32 0.0, %v4000
      %v4002 = vpop.f32.mrb[0].mxu0
      %4003 = vmatprep.mubr.bf16.mxu0 0
      %4004 = vmatmul.mubr.bf16.gmra.mrb[0].mxu0 %v3655
      %v4005 = vpop.f32.mrb[0].mxu0
      %v4006 = vadd.f32 0.0, %v4005
      %v4007 = vpop.f32.mrb[0].mxu0
      %v4008 = vpop.f32.mrb[0].mxu0
      %v4009 = vadd.f32 0.0, %v4008
      %v4010 = vpop.f32.mrb[0].mxu0
      %4011 = vmatprep.mubr.bf16.mxu0 0
      %4012 = vmatmul.mubr.bf16.gmra.mrb[0].mxu0 %v3658
      %v4013 = vpop.f32.mrb[0].mxu0
      %v4014 = vadd.f32 0.0, %v4013
      %v4015 = vpop.f32.mrb[0].mxu0
      %v4016 = vpop.f32.mrb[0].mxu0
      %v4017 = vadd.f32 0.0, %v4016
      %v4018 = vpop.f32.mrb[0].mxu0
      %4019 = vmatprep.mubr.bf16.mxu0 0
      %4020 = vmatmul.mubr.bf16.gmra.mrb[0].mxu0 %v3661
      %v4021 = vpop.f32.mrb[0].mxu0
      %v4022 = vadd.f32 0.0, %v4021
      %v4023 = vpop.f32.mrb[0].mxu0
      %v4024 = vpop.f32.mrb[0].mxu0
      %v4025 = vadd.f32 0.0, %v4024
      %v4026 = vpop.f32.mrb[0].mxu0
      %4027 = vmatprep.mubr.bf16.mxu0 0
      %4028 = vmatmul.mubr.bf16.gmra.mrb[0].mxu0 %v3664
      %v4029 = vpop.f32.mrb[0].mxu0
      %v4030 = vadd.f32 0.0, %v4029
      %v4031 = vpop.f32.mrb[0].mxu0
      %v4032 = vpop.f32.mrb[0].mxu0
      %v4033 = vadd.f32 0.0, %v4032
      %v4034 = vpop.f32.mrb[0].mxu0
      %4035 = vmatprep.mubr.bf16.mxu0 0
      %4036 = vmatmul.mubr.bf16.gmra.mrb[0].mxu0 %v3667
      %v4037 = vpop.f32.mrb[0].mxu0
      %v4038 = vadd.f32 0.0, %v4037
      %v4039 = vpop.f32.mrb[0].mxu0
      %v4040 = vpop.f32.mrb[0].mxu0
      %v4041 = vadd.f32 0.0, %v4040
      %v4042 = vpop.f32.mrb[0].mxu0
      %4043 = vmatprep.mubr.bf16.mxu0 0
      %4044 = vmatmul.mubr.bf16.gmra.mrb[0].mxu0 %v3670
      %v4045 = vpop.f32.mrb[0].mxu0
      %v4046 = vadd.f32 0.0, %v4045
      %v4047 = vpop.f32.mrb[0].mxu0
      %v4048 = vpop.f32.mrb[0].mxu0
      %v4049 = vadd.f32 0.0, %v4048
      %v4050 = vpop.f32.mrb[0].mxu0
      %4051 = vmatprep.mubr.bf16.mxu0 0
      %4052 = vmatmul.mubr.bf16.gmra.mrb[0].mxu0 %v3673
      %v4053 = vpop.f32.mrb[0].mxu0
      %v4054 = vadd.f32 0.0, %v4053
      %v4055 = vpop.f32.mrb[0].mxu0
      %v4056 = vpop.f32.mrb[0].mxu0
      %v4057 = vadd.f32 0.0, %v4056
      %v4058 = vpop.f32.mrb[0].mxu0
      %4059 = vmatprep.mubr.bf16.mxu0 0
      %4060 = vmatmul.mubr.bf16.gmra.mrb[0].mxu0 %v3676
      %v4061 = vpop.f32.mrb[0].mxu0
      %v4062 = vadd.f32 0.0, %v4061
      %v4063 = vpop.f32.mrb[0].mxu0
      %v4064 = vpop.f32.mrb[0].mxu0
      %v4065 = vadd.f32 0.0, %v4064
      %v4066 = vpop.f32.mrb[0].mxu0
      %4067 = vmatprep.mubr.bf16.mxu0 0
      %4068 = vmatmul.mubr.bf16.gmra.mrb[0].mxu0 %v3679
      %v4069 = vpop.f32.mrb[0].mxu0
      %v4070 = vadd.f32 0.0, %v4069
      %v4071 = vpop.f32.mrb[0].mxu0
      %v4072 = vpop.f32.mrb[0].mxu0
      %v4073 = vadd.f32 0.0, %v4072
      %v4074 = vpop.f32.mrb[0].mxu0
      %4075 = vmatprep.mubr.bf16.mxu0 0
      %4076 = vmatmul.mubr.bf16.gmra.mrb[0].mxu0 %v3682
      %v4077 = vpop.f32.mrb[0].mxu0
      %v4078 = vadd.f32 0.0, %v4077
      %v4079 = vpop.f32.mrb[0].mxu0
      %v4080 = vpop.f32.mrb[0].mxu0
      %v4081 = vadd.f32 0.0, %v4080
      %v4082 = vpop.f32.mrb[0].mxu0
      %4083 = vmatprep.mubr.bf16.mxu0 0
      %4084 = vmatmul.mubr.bf16.gmra.mrb[0].mxu0 %v3685
      %v4085 = vpop.f32.mrb[0].mxu0
      %v4086 = vadd.f32 0.0, %v4085
      %v4087 = vpop.f32.mrb[0].mxu0
      %v4088 = vpop.f32.mrb[0].mxu0
      %v4089 = vadd.f32 0.0, %v4088
      %v4090 = vpop.f32.mrb[0].mxu0
      %4091 = vmatprep.mubr.bf16.mxu0 0
      %4092 = vmatmul.mubr.bf16.gmra.mrb[0].mxu0 %v3688
      %v4093 = vpop.f32.mrb[0].mxu0
      %v4094 = vadd.f32 0.0, %v4093
      %v4095 = vpop.f32.mrb[0].mxu0
      %v4096 = vpop.f32.mrb[0].mxu0
      %v4097 = vadd.f32 0.0, %v4096
      %v4098 = vpop.f32.mrb[0].mxu0
      %4099 = vmatprep.mubr.bf16.mxu0 0
      %4100 = vmatmul.mubr.bf16.gmra.mrb[0].mxu0 %v3691
      %v4101 = vpop.f32.mrb[0].mxu0
      %v4102 = vadd.f32 0.0, %v4101
      %v4103 = vpop.f32.mrb[0].mxu0
      %v4104 = vpop.f32.mrb[0].mxu0
      %v4105 = vadd.f32 0.0, %v4104
      %v4106 = vpop.f32.mrb[0].mxu0
      %4107 = vmatprep.mubr.bf16.mxu0 0
      %4108 = vmatmul.mubr.bf16.gmra.mrb[0].mxu0 %v3694
      %v4109 = vpop.f32.mrb[0].mxu0
      %v4110 = vadd.f32 0.0, %v4109
      %v4111 = vpop.f32.mrb[0].mxu0
      %v4112 = vpop.f32.mrb[0].mxu0
      %v4113 = vadd.f32 0.0, %v4112
      %v4114 = vpop.f32.mrb[0].mxu0
      %4115 = vmatprep.mubr.bf16.mxu0 0
      %4116 = vmatmul.mubr.bf16.gmra.mrb[0].mxu0 %v3697
      %v4117 = vpop.f32.mrb[0].mxu0
      %v4118 = vadd.f32 0.0, %v4117
      %v4119 = vpop.f32.mrb[0].mxu0
      %v4120 = vpop.f32.mrb[0].mxu0
      %v4121 = vadd.f32 0.0, %v4120
      %v4122 = vpop.f32.mrb[0].mxu0
      %4123 = vmatprep.mubr.bf16.mxu0 0
      %4124 = vmatmul.mubr.bf16.gmra.mrb[0].mxu0 %v3700
      %v4125 = vpop.f32.mrb[0].mxu0
      %v4126 = vadd.f32 0.0, %v4125
      %v4127 = vpop.f32.mrb[0].mxu0
      %v4128 = vpop.f32.mrb[0].mxu0
      %v4129 = vadd.f32 0.0, %v4128
      %v4130 = vpop.f32.mrb[0].mxu0
      %4131 = vmatprep.mubr.bf16.mxu0 0
      %4132 = vmatmul.mubr.bf16.gmra.mrb[0].mxu0 %v3703
      %v4133 = vpop.f32.mrb[0].mxu0
      %v4134 = vadd.f32 0.0, %v4133
      %v4135 = vpop.f32.mrb[0].mxu0
      %v4136 = vpop.f32.mrb[0].mxu0
      %v4137 = vadd.f32 0.0, %v4136
      %v4138 = vpop.f32.mrb[0].mxu0
      %4139 = vmatprep.mubr.bf16.mxu0 0
      %4140 = vmatmul.mubr.bf16.gmra.mrb[0].mxu0 %v3706
      %v4141 = vpop.f32.mrb[0].mxu0
      %v4142 = vadd.f32 0.0, %v4141
      %v4143 = vpop.f32.mrb[0].mxu0
      %v4144 = vpop.f32.mrb[0].mxu0
      %v4145 = vadd.f32 0.0, %v4144
      %v4146 = vpop.f32.mrb[0].mxu0
      %4147 = vmatprep.mubr.bf16.mxu0 0
      %4148 = vmatmul.mubr.bf16.gmra.mrb[0].mxu0 %v3709
      %v4149 = vpop.f32.mrb[0].mxu0
      %v4150 = vadd.f32 0.0, %v4149
      %v4151 = vpop.f32.mrb[0].mxu0
      %v4152 = vpop.f32.mrb[0].mxu0
      %v4153 = vadd.f32 0.0, %v4152
      %v4154 = vpop.f32.mrb[0].mxu0
      %4155 = vmatprep.mubr.bf16.mxu0 0
      %4156 = vmatmul.mubr.bf16.gmra.mrb[0].mxu0 %v3712
      %v4157 = vpop.f32.mrb[0].mxu0
      %v4158 = vadd.f32 0.0, %v4157
      %v4159 = vpop.f32.mrb[0].mxu0
      %v4160 = vpop.f32.mrb[0].mxu0
      %v4161 = vadd.f32 0.0, %v4160
      %v4162 = vpop.f32.mrb[0].mxu0
      %4163 = vmatprep.mubr.bf16.mxu0 0
      %4164 = vmatmul.mubr.bf16.gmra.mrb[0].mxu0 %v3715
      %v4165 = vpop.f32.mrb[0].mxu0
      %v4166 = vadd.f32 0.0, %v4165
      %v4167 = vpop.f32.mrb[0].mxu0
      %v4168 = vpop.f32.mrb[0].mxu0
      %v4169 = vadd.f32 0.0, %v4168
      %v4170 = vpop.f32.mrb[0].mxu0
      %4171 = vmatprep.mubr.bf16.mxu0 0
      %4172 = vmatmul.mubr.bf16.gmra.mrb[0].mxu0 %v3718
      %v4173 = vpop.f32.mrb[0].mxu0
      %v4174 = vadd.f32 0.0, %v4173
      %v4175 = vpop.f32.mrb[0].mxu0
      %v4176 = vpop.f32.mrb[0].mxu0
      %v4177 = vadd.f32 0.0, %v4176
      %v4178 = vpop.f32.mrb[0].mxu0
      %4179 = vmatprep.mubr.bf16.mxu0 0
      %4180 = vmatmul.mubr.bf16.gmra.mrb[0].mxu0 %v3721
      %v4181 = vpop.f32.mrb[0].mxu0
      %v4182 = vadd.f32 0.0, %v4181
      %v4183 = vpop.f32.mrb[0].mxu0
      %v4184 = vpop.f32.mrb[0].mxu0
      %v4185 = vadd.f32 0.0, %v4184
      %v4186 = vpop.f32.mrb[0].mxu0
      %4187 = vmatprep.mubr.bf16.mxu0 0
      %4188 = vmatmul.mubr.bf16.gmra.mrb[0].mxu0 %v3724
      %v4189 = vpop.f32.mrb[0].mxu0
      %v4190 = vadd.f32 0.0, %v4189
      %v4191 = vpop.f32.mrb[0].mxu0
      %v4192 = vpop.f32.mrb[0].mxu0
      %v4193 = vadd.f32 0.0, %v4192
      %v4194 = vpop.f32.mrb[0].mxu0
      %4195 = vmatprep.mubr.bf16.mxu0 0
      %4196 = vmatmul.mubr.bf16.gmra.mrb[0].mxu0 %v3727
      %v4197 = vpop.f32.mrb[0].mxu0
      %v4198 = vadd.f32 0.0, %v4197
      %v4199 = vpop.f32.mrb[0].mxu0
      %v4200 = vpop.f32.mrb[0].mxu0
      %v4201 = vadd.f32 0.0, %v4200
      %v4202 = vpop.f32.mrb[0].mxu0
      %4203 = vmatprep.mubr.bf16.mxu0 0
      %4204 = vmatmul.mubr.bf16.gmra.mrb[0].mxu0 %v3730
      %v4205 = vpop.f32.mrb[0].mxu0
      %v4206 = vadd.f32 0.0, %v4205
      %v4207 = vpop.f32.mrb[0].mxu0
      %v4208 = vpop.f32.mrb[0].mxu0
      %v4209 = vadd.f32 0.0, %v4208
      %v4210 = vpop.f32.mrb[0].mxu0
      %4211 = vmatprep.mubr.bf16.mxu0 0
      %4212 = vmatmul.mubr.bf16.gmra.mrb[0].mxu0 %v3733
      %v4213 = vpop.f32.mrb[0].mxu0
      %v4214 = vadd.f32 0.0, %v4213
      %v4215 = vpop.f32.mrb[0].mxu0
      %v4216 = vpop.f32.mrb[0].mxu0
      %v4217 = vadd.f32 0.0, %v4216
      %v4218 = vpop.f32.mrb[0].mxu0
      %4219 = vmatprep.mubr.bf16.mxu0 0
      %4220 = vmatmul.mubr.bf16.gmra.mrb[0].mxu0 %v3736
      %v4221 = vpop.f32.mrb[0].mxu0
      %v4222 = vadd.f32 0.0, %v4221
      %v4223 = vpop.f32.mrb[0].mxu0
      %v4224 = vpop.f32.mrb[0].mxu0
      %v4225 = vadd.f32 0.0, %v4224
      %v4226 = vpop.f32.mrb[0].mxu0
      %4227 = vmatprep.mubr.bf16.mxu0 0
      %4228 = vmatmul.mubr.bf16.gmra.mrb[0].mxu0 %v3739
      %v4229 = vpop.f32.mrb[0].mxu0
      %v4230 = vadd.f32 0.0, %v4229
      %v4231 = vpop.f32.mrb[0].mxu0
      %v4232 = vpop.f32.mrb[0].mxu0
      %v4233 = vadd.f32 0.0, %v4232
      %v4234 = vpop.f32.mrb[0].mxu0
      %4235 = vmatprep.mubr.bf16.mxu0 0
      %4236 = vmatmul.mubr.bf16.gmra.mrb[0].mxu0 %v3742
      %v4237 = vpop.f32.mrb[0].mxu0
      %v4238 = vadd.f32 0.0, %v4237
      %v4239 = vpop.f32.mrb[0].mxu0
      %v4240 = vpop.f32.mrb[0].mxu0
      %v4241 = vadd.f32 0.0, %v4240
      %v4242 = vpop.f32.mrb[0].mxu0
      %4243 = vmatprep.mubr.bf16.mxu0 0
      %4244 = vmatmul.mubr.bf16.gmra.mrb[0].mxu0 %v3745
      %v4245 = vpop.f32.mrb[0].mxu0
      %v4246 = vadd.f32 0.0, %v4245
      %v4247 = vpop.f32.mrb[0].mxu0
      %v4248 = vpop.f32.mrb[0].mxu0
      %v4249 = vadd.f32 0.0, %v4248
      %v4250 = vpop.f32.mrb[0].mxu0
      %4251 = vmatprep.mubr.bf16.mxu0 0
      %4252 = vmatmul.mubr.bf16.gmra.mrb[0].mxu0 %v3748
      %v4253 = vpop.f32.mrb[0].mxu0
      %v4254 = vadd.f32 0.0, %v4253
      %v4255 = vpop.f32.mrb[0].mxu0
      %v4256 = vpop.f32.mrb[0].mxu0
      %v4257 = vadd.f32 0.0, %v4256
      %v4258 = vpop.f32.mrb[0].mxu0
      %4259 = vmatprep.mubr.bf16.mxu0 0
      %4260 = vmatmul.mubr.bf16.gmra.mrb[0].mxu0 %v3751
      %v4261 = vpop.f32.mrb[0].mxu0
      %v4262 = vadd.f32 0.0, %v4261
      %v4263 = vpop.f32.mrb[0].mxu0
      %v4264 = vpop.f32.mrb[0].mxu0
      %v4265 = vadd.f32 0.0, %v4264
      %v4266 = vpop.f32.mrb[0].mxu0
      %4267 = vmatprep.mubr.bf16.mxu0 0
      %4268 = vmatmul.mubr.bf16.gmra.mrb[0].mxu0 %v3754
      %v4269 = vpop.f32.mrb[0].mxu0
      %v4270 = vadd.f32 0.0, %v4269
      %v4271 = vpop.f32.mrb[0].mxu0
      %v4272 = vpop.f32.mrb[0].mxu0
      %v4273 = vadd.f32 0.0, %v4272
      %v4274 = vpop.f32.mrb[0].mxu0
      %4275 = vmatprep.mubr.bf16.mxu0 0
      %4276 = vmatmul.mubr.bf16.gmra.mrb[0].mxu0 %v3757
      %v4277 = vpop.f32.mrb[0].mxu0
      %v4278 = vadd.f32 0.0, %v4277
      %v4279 = vpop.f32.mrb[0].mxu0
      %v4280 = vpop.f32.mrb[0].mxu0
      %v4281 = vadd.f32 0.0, %v4280
      %v4282 = vpop.f32.mrb[0].mxu0
      %4283 = vmatprep.mubr.bf16.mxu0 0
      %4284 = vmatmul.mubr.bf16.gmra.mrb[0].mxu0 %v3760
      %v4285 = vpop.f32.mrb[0].mxu0
      %v4286 = vadd.f32 0.0, %v4285
      %v4287 = vpop.f32.mrb[0].mxu0
      %v4288 = vpop.f32.mrb[0].mxu0
      %v4289 = vadd.f32 0.0, %v4288
      %v4290 = vpop.f32.mrb[0].mxu0
      %4291 = vmatprep.mubr.bf16.mxu0 0
      %4292 = vmatmul.mubr.bf16.gmra.mrb[0].mxu0 %v3763
      %v4293 = vpop.f32.mrb[0].mxu0
      %v4294 = vadd.f32 0.0, %v4293
      %v4295 = vpop.f32.mrb[0].mxu0
      %v4296 = vpop.f32.mrb[0].mxu0
      %v4297 = vadd.f32 0.0, %v4296
      %v4298 = vpop.f32.mrb[0].mxu0
      %4299 = vmatprep.mubr.bf16.mxu0 0
      %4300 = vmatmul.mubr.bf16.gmra.mrb[0].mxu0 %v3766
      %v4301 = vpop.f32.mrb[0].mxu0
      %v4302 = vadd.f32 0.0, %v4301
      %v4303 = vpop.f32.mrb[0].mxu0
      %v4304 = vpop.f32.mrb[0].mxu0
      %v4305 = vadd.f32 0.0, %v4304
      %v4306 = vpop.f32.mrb[0].mxu0
      %4307 = vmatprep.mubr.bf16.mxu0 0
      %4308 = vmatmul.mubr.bf16.gmra.mrb[0].mxu0 %v3769
      %v4309 = vpop.f32.mrb[0].mxu0
      %v4310 = vadd.f32 0.0, %v4309
      %v4311 = vpop.f32.mrb[0].mxu0
      %v4312 = vpop.f32.mrb[0].mxu0
      %v4313 = vadd.f32 0.0, %v4312
      %v4314 = vpop.f32.mrb[0].mxu0
      %4315 = vmatprep.mubr.bf16.mxu0 0
      %4316 = vmatmul.mubr.bf16.gmra.mrb[0].mxu0 %v3772
      %v4317 = vpop.f32.mrb[0].mxu0
      %v4318 = vadd.f32 0.0, %v4317
      %v4319 = vpop.f32.mrb[0].mxu0
      %v4320 = vpop.f32.mrb[0].mxu0
      %v4321 = vadd.f32 0.0, %v4320
      %v4322 = vpop.f32.mrb[0].mxu0
      %4323 = vmatprep.mubr.bf16.mxu0 0
      %4324 = vmatmul.mubr.bf16.gmra.mrb[0].mxu0 %v3775
      %v4325 = vpop.f32.mrb[0].mxu0
      %v4326 = vadd.f32 0.0, %v4325
      %v4327 = vpop.f32.mrb[0].mxu0
      %v4328 = vpop.f32.mrb[0].mxu0
      %v4329 = vadd.f32 0.0, %v4328
      %v4330 = vpop.f32.mrb[0].mxu0
      %4331 = vmatprep.mubr.bf16.mxu0 0
      %4332 = vmatmul.mubr.bf16.gmra.mrb[0].mxu0 %v3778
      %v4333 = vpop.f32.mrb[0].mxu0
      %v4334 = vadd.f32 0.0, %v4333
      %v4335 = vpop.f32.mrb[0].mxu0
      %v4336 = vpop.f32.mrb[0].mxu0
      %v4337 = vadd.f32 0.0, %v4336
      %v4338 = vpop.f32.mrb[0].mxu0
      %4339 = vmatprep.mubr.bf16.mxu0 0
      %4340 = vmatmul.mubr.bf16.gmra.mrb[0].mxu0 %v3781
      %v4341 = vpop.f32.mrb[0].mxu0
      %v4342 = vadd.f32 0.0, %v4341
      %v4343 = vpop.f32.mrb[0].mxu0
      %v4344 = vpop.f32.mrb[0].mxu0
      %v4345 = vadd.f32 0.0, %v4344
      %v4346 = vpop.f32.mrb[0].mxu0
      %4347 = vmatprep.mubr.bf16.mxu0 0
      %4348 = vmatmul.mubr.bf16.gmra.mrb[0].mxu0 %v3784
      %v4349 = vpop.f32.mrb[0].mxu0
      %v4350 = vadd.f32 0.0, %v4349
      %v4351 = vpop.f32.mrb[0].mxu0
      %v4352 = vpop.f32.mrb[0].mxu0
      %v4353 = vadd.f32 0.0, %v4352
      %v4354 = vpop.f32.mrb[0].mxu0
      %4355 = vmatprep.mubr.bf16.mxu0 0
      %4356 = vmatmul.mubr.bf16.gmra.mrb[0].mxu0 %v3787
      %v4357 = vpop.f32.mrb[0].mxu0
      %v4358 = vadd.f32 0.0, %v4357
      %v4359 = vpop.f32.mrb[0].mxu0
      %v4360 = vpop.f32.mrb[0].mxu0
      %v4361 = vadd.f32 0.0, %v4360
      %v4362 = vpop.f32.mrb[0].mxu0
      %4363 = vmatprep.mubr.bf16.mxu0 0
      %4364 = vmatmul.mubr.bf16.gmra.mrb[0].mxu0 %v3790
      %v4365 = vpop.f32.mrb[0].mxu0
      %v4366 = vadd.f32 0.0, %v4365
      %v4367 = vpop.f32.mrb[0].mxu0
      %v4368 = vpop.f32.mrb[0].mxu0
      %v4369 = vadd.f32 0.0, %v4368
      %v4370 = vpop.f32.mrb[0].mxu0
      %4371 = vdwg.mxu0
      %v4372 = vadd.f32 %v3308, %v3830
      %v4373 = vadd.f32 %v3309, %v3833
      %v4374 = vadd.f32 %v3310, %v3838
      %v4375 = vadd.f32 %v3311, %v3841
      %v4376 = vadd.f32 %v3312, %v3846
      %v4377 = vadd.f32 %v3313, %v3849
      %v4378 = vadd.f32 %v3314, %v3854
      %v4379 = vadd.f32 %v3315, %v3857
      %v4380 = vadd.f32 %v3316, %v3862
      %v4381 = vadd.f32 %v3317, %v3865
      %v4382 = vadd.f32 %v3318, %v3870
      %v4383 = vadd.f32 %v3319, %v3873
      %v4384 = vadd.f32 %v3320, %v3878
      %v4385 = vadd.f32 %v3321, %v3881
      %v4386 = vadd.f32 %v3322, %v3886
      %v4387 = vadd.f32 %v3323, %v3889
      %v4388 = vadd.f32 %v3324, %v3894
      %v4389 = vadd.f32 %v3325, %v3897
      %v4390 = vadd.f32 %v3326, %v3902
      %v4391 = vadd.f32 %v3327, %v3905
      %v4392 = vadd.f32 %v3328, %v3910
      %v4393 = vadd.f32 %v3329, %v3913
      %v4394 = vadd.f32 %v3330, %v3918
      %v4395 = vadd.f32 %v3331, %v3921
      %v4396 = vadd.f32 %v3332, %v3926
      %v4397 = vadd.f32 %v3333, %v3929
      %v4398 = vadd.f32 %v3334, %v3934
      %v4399 = vadd.f32 %v3335, %v3937
      %v4400 = vadd.f32 %v3336, %v3942
      %v4401 = vadd.f32 %v3337, %v3945
      %v4402 = vadd.f32 %v3338, %v3950
      %v4403 = vadd.f32 %v3339, %v3953
      %v4404 = vadd.f32 %v3340, %v3958
      %v4405 = vadd.f32 %v3341, %v3961
      %v4406 = vadd.f32 %v3342, %v3966
      %v4407 = vadd.f32 %v3343, %v3969
      %v4408 = vadd.f32 %v3344, %v3974
      %v4409 = vadd.f32 %v3345, %v3977
      %v4410 = vadd.f32 %v3346, %v3982
      %v4411 = vadd.f32 %v3347, %v3985
      %v4412 = vadd.f32 %v3348, %v3990
      %v4413 = vadd.f32 %v3349, %v3993
      %v4414 = vadd.f32 %v3350, %v3998
      %v4415 = vadd.f32 %v3351, %v4001
      %v4416 = vadd.f32 %v3352, %v4006
      %v4417 = vadd.f32 %v3353, %v4009
      %v4418 = vadd.f32 %v3354, %v4014
      %v4419 = vadd.f32 %v3355, %v4017
      %v4420 = vadd.f32 %v3356, %v4022
      %v4421 = vadd.f32 %v3357, %v4025
      %v4422 = vadd.f32 %v3358, %v4030
      %v4423 = vadd.f32 %v3359, %v4033
      %v4424 = vadd.f32 %v3360, %v4038
      %v4425 = vadd.f32 %v3361, %v4041
      %v4426 = vadd.f32 %v3362, %v4046
      %v4427 = vadd.f32 %v3363, %v4049
      %v4428 = vadd.f32 %v3364, %v4054
      %v4429 = vadd.f32 %v3365, %v4057
      %v4430 = vadd.f32 %v3366, %v4062
      %v4431 = vadd.f32 %v3367, %v4065
      %v4432 = vadd.f32 %v3368, %v4070
      %v4433 = vadd.f32 %v3369, %v4073
      %v4434 = vadd.f32 %v3370, %v4078
      %v4435 = vadd.f32 %v3371, %v4081
      %v4436 = vadd.f32 %v3372, %v4086
      %v4437 = vadd.f32 %v3373, %v4089
      %v4438 = vadd.f32 %v3374, %v4094
      %v4439 = vadd.f32 %v3375, %v4097
      %v4440 = vadd.f32 %v3376, %v4102
      %v4441 = vadd.f32 %v3377, %v4105
      %v4442 = vadd.f32 %v3378, %v4110
      %v4443 = vadd.f32 %v3379, %v4113
      %v4444 = vadd.f32 %v3380, %v4118
      %v4445 = vadd.f32 %v3381, %v4121
      %v4446 = vadd.f32 %v3382, %v4126
      %v4447 = vadd.f32 %v3383, %v4129
      %v4448 = vadd.f32 %v3384, %v4134
      %v4449 = vadd.f32 %v3385, %v4137
      %v4450 = vadd.f32 %v3386, %v4142
      %v4451 = vadd.f32 %v3387, %v4145
      %v4452 = vadd.f32 %v3388, %v4150
      %v4453 = vadd.f32 %v3389, %v4153
      %v4454 = vadd.f32 %v3390, %v4158
      %v4455 = vadd.f32 %v3391, %v4161
      %v4456 = vadd.f32 %v3392, %v4166
      %v4457 = vadd.f32 %v3393, %v4169
      %v4458 = vadd.f32 %v3394, %v4174
      %v4459 = vadd.f32 %v3395, %v4177
      %v4460 = vadd.f32 %v3396, %v4182
      %v4461 = vadd.f32 %v3397, %v4185
      %v4462 = vadd.f32 %v3398, %v4190
      %v4463 = vadd.f32 %v3399, %v4193
      %v4464 = vadd.f32 %v3400, %v4198
      %v4465 = vadd.f32 %v3401, %v4201
      %v4466 = vadd.f32 %v3402, %v4206
      %v4467 = vadd.f32 %v3403, %v4209
      %v4468 = vadd.f32 %v3404, %v4214
      %v4469 = vadd.f32 %v3405, %v4217
      %v4470 = vadd.f32 %v3406, %v4222
      %v4471 = vadd.f32 %v3407, %v4225
      %v4472 = vadd.f32 %v3408, %v4230
      %v4473 = vadd.f32 %v3409, %v4233
      %v4474 = vadd.f32 %v3410, %v4238
      %v4475 = vadd.f32 %v3411, %v4241
      %v4476 = vadd.f32 %v3412, %v4246
      %v4477 = vadd.f32 %v3413, %v4249
      %v4478 = vadd.f32 %v3414, %v4254
      %v4479 = vadd.f32 %v3415, %v4257
      %v4480 = vadd.f32 %v3416, %v4262
      %v4481 = vadd.f32 %v3417, %v4265
      %v4482 = vadd.f32 %v3418, %v4270
      %v4483 = vadd.f32 %v3419, %v4273
      %v4484 = vadd.f32 %v3420, %v4278
      %v4485 = vadd.f32 %v3421, %v4281
      %v4486 = vadd.f32 %v3422, %v4286
      %v4487 = vadd.f32 %v3423, %v4289
      %v4488 = vadd.f32 %v3424, %v4294
      %v4489 = vadd.f32 %v3425, %v4297
      %v4490 = vadd.f32 %v3426, %v4302
      %v4491 = vadd.f32 %v3427, %v4305
      %v4492 = vadd.f32 %v3428, %v4310
      %v4493 = vadd.f32 %v3429, %v4313
      %v4494 = vadd.f32 %v3430, %v4318
      %v4495 = vadd.f32 %v3431, %v4321
      %v4496 = vadd.f32 %v3432, %v4326
      %v4497 = vadd.f32 %v3433, %v4329
      %v4498 = vadd.f32 %v3434, %v4334
      %v4499 = vadd.f32 %v3435, %v4337
      %v4500 = vadd.f32 %v3436, %v4342
      %v4501 = vadd.f32 %v3437, %v4345
      %v4502 = vadd.f32 %v3438, %v4350
      %v4503 = vadd.f32 %v3439, %v4353
      %v4504 = vadd.f32 %v3440, %v4358
      %v4505 = vadd.f32 %v3441, %v4361
      %v4506 = vadd.f32 %v3442, %v4366
      %v4507 = vadd.f32 %v3443, %v4369
      %v4508 = vld [vmem:[%s206 + $0x10] sm:$0xe]
      %v4509 = vld [vmem:[%s206 + $0x14] sm:$0xf]
      %v4510 = vld [vmem:[%s206 + $0x18] sm:$0xf]
      %v4511 = vld [vmem:[%s206 + $0x1c] sm:$0xf]
      %v4512 = vld [vmem:[%s206 + $0x20] sm:$0xf]
      %v4513 = vld [vmem:[%s206 + $0x24] sm:$0xf]
      %v4514 = vld [vmem:[%s206 + $0x28] sm:$0xf]
      %v4515 = vld [vmem:[%s206 + $0x2c] sm:$0xf]
      %v4516 = vld [vmem:[%s206 + $0x30] sm:$0xf]
      %v4517 = vld [vmem:[%s206 + $0x34] sm:$0xf]
      %v4518 = vld [vmem:[%s206 + $0x38] sm:$0xf]
      %v4519 = vld [vmem:[%s206 + $0x3c] sm:$0xf]
      %v4520 = vld [vmem:[%s206 + $0x40] sm:$0xf]
      %v4521 = vld [vmem:[%s206 + $0x44] sm:$0xf]
      %v4522 = vld [vmem:[%s206 + $0x48] sm:$0xf]
      %v4523 = vld [vmem:[%s206 + $0x4c] sm:$0xf]
      %v4524 = vld [vmem:[%s206 + $0x50] sm:$0xf]
      %v4525 = vld [vmem:[%s206 + $0x54] sm:$0xf]
      %v4526 = vld [vmem:[%s206 + $0x58] sm:$0xf]
      %v4527 = vld [vmem:[%s206 + $0x5c] sm:$0xf]
      %v4528 = vld [vmem:[%s206 + $0x60] sm:$0xf]
      %v4529 = vld [vmem:[%s206 + $0x64] sm:$0xf]
      %v4530 = vld [vmem:[%s206 + $0x68] sm:$0xf]
      %v4531 = vld [vmem:[%s206 + $0x6c] sm:$0xf]
      %v4532 = vld [vmem:[%s206 + $0x70] sm:$0xf]
      %v4533 = vld [vmem:[%s206 + $0x74] sm:$0xf]
      %v4534 = vld [vmem:[%s206 + $0x78] sm:$0xf]
      %v4535 = vld [vmem:[%s206 + $0x7c] sm:$0xf]
      %v4536 = vld [vmem:[%s206 + $0x80] sm:$0xf]
      %v4537 = vld [vmem:[%s206 + $0x84] sm:$0xf]
      %v4538 = vld [vmem:[%s206 + $0x88] sm:$0xf]
      %v4539 = vld [vmem:[%s206 + $0x8c] sm:$0xf]
      %v4540 = vld [vmem:[%s206 + $0x90] sm:$0xf]
      %v4541 = vld [vmem:[%s206 + $0x94] sm:$0xf]
      %v4542 = vld [vmem:[%s206 + $0x98] sm:$0xf]
      %v4543 = vld [vmem:[%s206 + $0x9c] sm:$0xf]
      %v4544 = vld [vmem:[%s206 + $0xa0] sm:$0xf]
      %v4545 = vld [vmem:[%s206 + $0xa4] sm:$0xf]
      %v4546 = vld [vmem:[%s206 + $0xa8] sm:$0xf]
      %v4547 = vld [vmem:[%s206 + $0xac] sm:$0xf]
      %v4548 = vld [vmem:[%s206 + $0xb0] sm:$0xf]
      %v4549 = vld [vmem:[%s206 + $0xb4] sm:$0xf]
      %v4550 = vld [vmem:[%s206 + $0xb8] sm:$0xf]
      %v4551 = vld [vmem:[%s206 + $0xbc] sm:$0xf]
      %v4552 = vld [vmem:[%s206 + $0xc0] sm:$0xf]
      %v4553 = vld [vmem:[%s206 + $0xc4] sm:$0xf]
      %v4554 = vld [vmem:[%s206 + $0xc8] sm:$0xf]
      %v4555 = vld [vmem:[%s206 + $0xcc] sm:$0xf]
      %v4556 = vld [vmem:[%s206 + $0xd0] sm:$0xf]
      %v4557 = vld [vmem:[%s206 + $0xd4] sm:$0xf]
      %v4558 = vld [vmem:[%s206 + $0xd8] sm:$0xf]
      %v4559 = vld [vmem:[%s206 + $0xdc] sm:$0xf]
      %v4560 = vld [vmem:[%s206 + $0xe0] sm:$0xf]
      %v4561 = vld [vmem:[%s206 + $0xe4] sm:$0xf]
      %v4562 = vld [vmem:[%s206 + $0xe8] sm:$0xf]
      %v4563 = vld [vmem:[%s206 + $0xec] sm:$0xf]
      %v4564 = vld [vmem:[%s206 + $0xf0] sm:$0xf]
      %v4565 = vld [vmem:[%s206 + $0xf4] sm:$0xf]
      %v4566 = vld [vmem:[%s206 + $0xf8] sm:$0xf]
      %v4567 = vld [vmem:[%s206 + $0xfc] sm:$0xf]
      %v4568 = vld [vmem:[%s206 + $0x100] sm:$0xf]
      %v4569 = vld [vmem:[%s206 + $0x104] sm:$0xf]
      %v4570 = vld [vmem:[%s206 + $0x108] sm:$0xf]
      %v4571 = vld [vmem:[%s206 + $0x10c] sm:$0xf]
      %v4572 = vld [vmem:[%s206 + $0x110] sm:$0xf]
      %v4573 = vld [vmem:[%s206 + $0x114] sm:$0xf]
      %v4574 = vld [vmem:[%s206 + $0x118] sm:$0xf]
      %v4575 = vld [vmem:[%s206 + $0x11c] sm:$0xf]
      %v4576 = vld [vmem:[%s206 + $0x120] sm:$0xf]
      %v4577 = vld [vmem:[%s206 + $0x124] sm:$0xf]
      %v4578 = vld [vmem:[%s206 + $0x128] sm:$0xf]
      %v4579 = vld [vmem:[%s206 + $0x12c] sm:$0xf]
      %v4580 = vld [vmem:[%s206 + $0x130] sm:$0xf]
      %v4581 = vld [vmem:[%s206 + $0x134] sm:$0xf]
      %v4582 = vld [vmem:[%s206 + $0x138] sm:$0xf]
      %v4583 = vld [vmem:[%s206 + $0x13c] sm:$0xf]
      %v4584 = vld [vmem:[%s206 + $0x140] sm:$0xf]
      %v4585 = vld [vmem:[%s206 + $0x144] sm:$0xf]
      %v4586 = vld [vmem:[%s206 + $0x148] sm:$0xf]
      %v4587 = vld [vmem:[%s206 + $0x14c] sm:$0xf]
      %v4588 = vld [vmem:[%s206 + $0x150] sm:$0xf]
      %v4589 = vld [vmem:[%s206 + $0x154] sm:$0xf]
      %v4590 = vld [vmem:[%s206 + $0x158] sm:$0xf]
      %v4591 = vld [vmem:[%s206 + $0x15c] sm:$0xf]
      %v4592 = vld [vmem:[%s206 + $0x160] sm:$0xf]
      %v4593 = vld [vmem:[%s206 + $0x164] sm:$0xf]
      %v4594 = vld [vmem:[%s206 + $0x168] sm:$0xf]
      %v4595 = vld [vmem:[%s206 + $0x16c] sm:$0xf]
      %v4596 = vld [vmem:[%s206 + $0x170] sm:$0xf]
      %v4597 = vld [vmem:[%s206 + $0x174] sm:$0xf]
      %v4598 = vld [vmem:[%s206 + $0x178] sm:$0xf]
      %v4599 = vld [vmem:[%s206 + $0x17c] sm:$0xf]
      %v4600 = vld [vmem:[%s206 + $0x180] sm:$0xf]
      %v4601 = vld [vmem:[%s206 + $0x184] sm:$0xf]
      %v4602 = vld [vmem:[%s206 + $0x188] sm:$0xf]
      %v4603 = vld [vmem:[%s206 + $0x18c] sm:$0xf]
      %v4604 = vld [vmem:[%s206 + $0x190] sm:$0xf]
      %v4605 = vld [vmem:[%s206 + $0x194] sm:$0xf]
      %v4606 = vld [vmem:[%s206 + $0x198] sm:$0xf]
      %v4607 = vld [vmem:[%s206 + $0x19c] sm:$0xf]
      %v4608 = vld [vmem:[%s206 + $0x1a0] sm:$0xf]
      %v4609 = vld [vmem:[%s206 + $0x1a4] sm:$0xf]
      %v4610 = vld [vmem:[%s206 + $0x1a8] sm:$0xf]
      %v4611 = vld [vmem:[%s206 + $0x1ac] sm:$0xf]
      %v4612 = vld [vmem:[%s206 + $0x1b0] sm:$0xf]
      %v4613 = vld [vmem:[%s206 + $0x1b4] sm:$0xf]
      %v4614 = vld [vmem:[%s206 + $0x1b8] sm:$0xf]
      %v4615 = vld [vmem:[%s206 + $0x1bc] sm:$0xf]
      %v4616 = vld [vmem:[%s206 + $0x1c0] sm:$0xf]
      %v4617 = vld [vmem:[%s206 + $0x1c4] sm:$0xf]
      %v4618 = vld [vmem:[%s206 + $0x1c8] sm:$0xf]
      %v4619 = vld [vmem:[%s206 + $0x1cc] sm:$0xf]
      %v4620 = vld [vmem:[%s206 + $0x1d0] sm:$0xf]
      %v4621 = vld [vmem:[%s206 + $0x1d4] sm:$0xf]
      %v4622 = vld [vmem:[%s206 + $0x1d8] sm:$0xf]
      %v4623 = vld [vmem:[%s206 + $0x1dc] sm:$0xf]
      %v4624 = vld [vmem:[%s206 + $0x1e0] sm:$0xf]
      %v4625 = vld [vmem:[%s206 + $0x1e4] sm:$0xf]
      %v4626 = vld [vmem:[%s206 + $0x1e8] sm:$0xf]
      %v4627 = vld [vmem:[%s206 + $0x1ec] sm:$0xf]
      %v4628 = vld [vmem:[%s206 + $0x1f0] sm:$0xf]
      %v4629 = vld [vmem:[%s206 + $0x1f4] sm:$0xf]
      %v4630 = vld [vmem:[%s206 + $0x1f8] sm:$0xf]
      %v4631 = vld [vmem:[%s206 + $0x1fc] sm:$0xf]
      %v4632 = vld [vmem:[%s206 + $0x200] sm:$0xf]
      %v4633 = vld [vmem:[%s206 + $0x204] sm:$0xf]
      %v4634 = vld [vmem:[%s206 + $0x208] sm:$0xf]
      %v4635 = vld [vmem:[%s206 + $0x20c] sm:$0xf]
      %v4636 = vld [vmem:[%s206 + $0x210] sm:$0xf]
      %v4637 = vld [vmem:[%s206 + $0x214] sm:$0xf]
      %v4638 = vld [vmem:[%s206 + $0x218] sm:$0xf]
      %v4639 = vld [vmem:[%s206 + $0x21c] sm:$0xf]
      %v4640 = vld [vmem:[%s206 + $0x220] sm:$0xf]
      %v4641 = vld [vmem:[%s206 + $0x224] sm:$0xf]
      %v4642 = vld [vmem:[%s206 + $0x228] sm:$0xf]
      %v4643 = vld [vmem:[%s206 + $0x22c] sm:$0xf]
      %v4644 = vld [vmem:[%s206 + $0x230] sm:$0x1]
      %s4645 = scalar_lea.vmem %s210, 12
      %v4646 = vld [vmem:[%s4645] sm:$0xf]
      %v4784 = vunpack.c.l.b16 %v4508
      %v4785 = vunpack.c.l.b16 %v4509
      %v4786 = vunpack.c.l.b16 %v4510
      %v4787 = vunpack.c.l.b16 %v4511
      %v4788 = vunpack.c.l.b16 %v4512
      %v4789 = vunpack.c.l.b16 %v4513
      %v4790 = vunpack.c.l.b16 %v4514
      %v4791 = vunpack.c.l.b16 %v4515
      %v4792 = vunpack.c.l.b16 %v4516
      %v4793 = vunpack.c.l.b16 %v4517
      %v4794 = vunpack.c.l.b16 %v4518
      %v4795 = vunpack.c.l.b16 %v4519
      %v4796 = vunpack.c.l.b16 %v4520
      %v4797 = vunpack.c.l.b16 %v4521
      %v4798 = vunpack.c.l.b16 %v4522
      %v4799 = vunpack.c.l.b16 %v4523
      %v4800 = vunpack.c.l.b16 %v4524
      %v4801 = vunpack.c.l.b16 %v4525
      %v4802 = vunpack.c.l.b16 %v4526
      %v4803 = vunpack.c.l.b16 %v4527
      %v4804 = vunpack.c.l.b16 %v4528
      %v4805 = vunpack.c.l.b16 %v4529
      %v4806 = vunpack.c.l.b16 %v4530
      %v4807 = vunpack.c.l.b16 %v4531
      %v4808 = vunpack.c.l.b16 %v4532
      %v4809 = vunpack.c.l.b16 %v4533
      %v4810 = vunpack.c.l.b16 %v4534
      %v4811 = vunpack.c.l.b16 %v4535
      %v4812 = vunpack.c.l.b16 %v4536
      %v4813 = vunpack.c.l.b16 %v4537
      %v4814 = vunpack.c.l.b16 %v4538
      %v4815 = vunpack.c.l.b16 %v4539
      %v4816 = vunpack.c.l.b16 %v4540
      %v4817 = vunpack.c.l.b16 %v4541
      %v4818 = vunpack.c.l.b16 %v4542
      %v4819 = vunpack.c.l.b16 %v4543
      %v4820 = vunpack.c.l.b16 %v4544
      %v4821 = vunpack.c.l.b16 %v4545
      %v4822 = vunpack.c.l.b16 %v4546
      %v4823 = vunpack.c.l.b16 %v4547
      %v4824 = vunpack.c.l.b16 %v4548
      %v4825 = vunpack.c.l.b16 %v4549
      %v4826 = vunpack.c.l.b16 %v4550
      %v4827 = vunpack.c.l.b16 %v4551
      %v4828 = vunpack.c.l.b16 %v4552
      %v4829 = vunpack.c.l.b16 %v4553
      %v4830 = vunpack.c.l.b16 %v4554
      %v4831 = vunpack.c.l.b16 %v4555
      %v4832 = vunpack.c.l.b16 %v4556
      %v4833 = vunpack.c.l.b16 %v4557
      %v4834 = vunpack.c.l.b16 %v4558
      %v4835 = vunpack.c.l.b16 %v4559
      %v4836 = vunpack.c.l.b16 %v4560
      %v4837 = vunpack.c.l.b16 %v4561
      %v4838 = vunpack.c.l.b16 %v4562
      %v4839 = vunpack.c.l.b16 %v4563
      %v4840 = vunpack.c.l.b16 %v4564
      %v4841 = vunpack.c.l.b16 %v4565
      %v4842 = vunpack.c.l.b16 %v4566
      %v4843 = vunpack.c.l.b16 %v4567
      %v4844 = vunpack.c.l.b16 %v4568
      %v4845 = vunpack.c.l.b16 %v4569
      %v4846 = vunpack.c.l.b16 %v4570
      %v4847 = vunpack.c.l.b16 %v4571
      %v4848 = vunpack.c.l.b16 %v4572
      %v4849 = vunpack.c.l.b16 %v4573
      %v4850 = vunpack.c.l.b16 %v4574
      %v4851 = vunpack.c.l.b16 %v4575
      %v4852 = vunpack.c.l.b16 %v4576
      %v4853 = vunpack.c.l.b16 %v4577
      %v4854 = vunpack.c.l.b16 %v4578
      %v4855 = vunpack.c.l.b16 %v4579
      %v4856 = vunpack.c.l.b16 %v4580
      %v4857 = vunpack.c.l.b16 %v4581
      %v4858 = vunpack.c.l.b16 %v4582
      %v4859 = vunpack.c.l.b16 %v4583
      %v4860 = vunpack.c.l.b16 %v4584
      %v4861 = vunpack.c.l.b16 %v4585
      %v4862 = vunpack.c.l.b16 %v4586
      %v4863 = vunpack.c.l.b16 %v4587
      %v4864 = vunpack.c.l.b16 %v4588
      %v4865 = vunpack.c.l.b16 %v4589
      %v4866 = vunpack.c.l.b16 %v4590
      %v4867 = vunpack.c.l.b16 %v4591
      %v4868 = vunpack.c.l.b16 %v4592
      %v4869 = vunpack.c.l.b16 %v4593
      %v4870 = vunpack.c.l.b16 %v4594
      %v4871 = vunpack.c.l.b16 %v4595
      %v4872 = vunpack.c.l.b16 %v4596
      %v4873 = vunpack.c.l.b16 %v4597
      %v4874 = vunpack.c.l.b16 %v4598
      %v4875 = vunpack.c.l.b16 %v4599
      %v4876 = vunpack.c.l.b16 %v4600
      %v4877 = vunpack.c.l.b16 %v4601
      %v4878 = vunpack.c.l.b16 %v4602
      %v4879 = vunpack.c.l.b16 %v4603
      %v4880 = vunpack.c.l.b16 %v4604
      %v4881 = vunpack.c.l.b16 %v4605
      %v4882 = vunpack.c.l.b16 %v4606
      %v4883 = vunpack.c.l.b16 %v4607
      %v4884 = vunpack.c.l.b16 %v4608
      %v4885 = vunpack.c.l.b16 %v4609
      %v4886 = vunpack.c.l.b16 %v4610
      %v4887 = vunpack.c.l.b16 %v4611
      %v4888 = vunpack.c.l.b16 %v4612
      %v4889 = vunpack.c.l.b16 %v4613
      %v4890 = vunpack.c.l.b16 %v4614
      %v4891 = vunpack.c.l.b16 %v4615
      %v4892 = vunpack.c.l.b16 %v4616
      %v4893 = vunpack.c.l.b16 %v4617
      %v4894 = vunpack.c.l.b16 %v4618
      %v4895 = vunpack.c.l.b16 %v4619
      %v4896 = vunpack.c.l.b16 %v4620
      %v4897 = vunpack.c.l.b16 %v4621
      %v4898 = vunpack.c.l.b16 %v4622
      %v4899 = vunpack.c.l.b16 %v4623
      %v4900 = vunpack.c.l.b16 %v4624
      %v4901 = vunpack.c.l.b16 %v4625
      %v4902 = vunpack.c.l.b16 %v4626
      %v4903 = vunpack.c.l.b16 %v4627
      %v4904 = vunpack.c.l.b16 %v4628
      %v4905 = vunpack.c.l.b16 %v4629
      %v4906 = vunpack.c.l.b16 %v4630
      %v4907 = vunpack.c.l.b16 %v4631
      %v4908 = vunpack.c.l.b16 %v4632
      %v4909 = vunpack.c.l.b16 %v4633
      %v4910 = vunpack.c.l.b16 %v4634
      %v4911 = vunpack.c.l.b16 %v4635
      %v4912 = vunpack.c.l.b16 %v4636
      %v4913 = vunpack.c.l.b16 %v4637
      %v4914 = vunpack.c.l.b16 %v4638
      %v4915 = vunpack.c.l.b16 %v4639
      %v4916 = vunpack.c.l.b16 %v4640
      %v4917 = vunpack.c.l.b16 %v4641
      %v4918 = vunpack.c.l.b16 %v4642
      %v4919 = vunpack.c.l.b16 %v4643
      %v4920 = vunpack.c.l.b16 %v4644
      %v4921 = vpack.c.b16 %v4785, %v4784
      %v4922 = vpack.c.b16 %v4787, %v4786
      %v4923 = vpack.c.b16 %v4789, %v4788
      %v4924 = vpack.c.b16 %v4791, %v4790
      %v4925 = vpack.c.b16 %v4793, %v4792
      %v4926 = vpack.c.b16 %v4795, %v4794
      %v4927 = vpack.c.b16 %v4797, %v4796
      %v4928 = vpack.c.b16 %v4799, %v4798
      %v4929 = vpack.c.b16 %v4801, %v4800
      %v4930 = vpack.c.b16 %v4803, %v4802
      %v4931 = vpack.c.b16 %v4805, %v4804
      %v4932 = vpack.c.b16 %v4807, %v4806
      %v4933 = vpack.c.b16 %v4809, %v4808
      %v4934 = vpack.c.b16 %v4811, %v4810
      %v4935 = vpack.c.b16 %v4813, %v4812
      %v4936 = vpack.c.b16 %v4815, %v4814
      %v4937 = vpack.c.b16 %v4817, %v4816
      %v4938 = vpack.c.b16 %v4819, %v4818
      %v4939 = vpack.c.b16 %v4821, %v4820
      %v4940 = vpack.c.b16 %v4823, %v4822
      %v4941 = vpack.c.b16 %v4825, %v4824
      %v4942 = vpack.c.b16 %v4827, %v4826
      %v4943 = vpack.c.b16 %v4829, %v4828
      %v4944 = vpack.c.b16 %v4831, %v4830
      %v4945 = vpack.c.b16 %v4833, %v4832
      %v4946 = vpack.c.b16 %v4835, %v4834
      %v4947 = vpack.c.b16 %v4837, %v4836
      %v4948 = vpack.c.b16 %v4839, %v4838
      %v4949 = vpack.c.b16 %v4841, %v4840
      %v4950 = vpack.c.b16 %v4843, %v4842
      %v4951 = vpack.c.b16 %v4845, %v4844
      %v4952 = vpack.c.b16 %v4847, %v4846
      %v4953 = vpack.c.b16 %v4849, %v4848
      %v4954 = vpack.c.b16 %v4851, %v4850
      %v4955 = vpack.c.b16 %v4853, %v4852
      %v4956 = vpack.c.b16 %v4855, %v4854
      %v4957 = vpack.c.b16 %v4857, %v4856
      %v4958 = vpack.c.b16 %v4859, %v4858
      %v4959 = vpack.c.b16 %v4861, %v4860
      %v4960 = vpack.c.b16 %v4863, %v4862
      %v4961 = vpack.c.b16 %v4865, %v4864
      %v4962 = vpack.c.b16 %v4867, %v4866
      %v4963 = vpack.c.b16 %v4869, %v4868
      %v4964 = vpack.c.b16 %v4871, %v4870
      %v4965 = vpack.c.b16 %v4873, %v4872
      %v4966 = vpack.c.b16 %v4875, %v4874
      %v4967 = vpack.c.b16 %v4877, %v4876
      %v4968 = vpack.c.b16 %v4879, %v4878
      %v4969 = vpack.c.b16 %v4881, %v4880
      %v4970 = vpack.c.b16 %v4883, %v4882
      %v4971 = vpack.c.b16 %v4885, %v4884
      %v4972 = vpack.c.b16 %v4887, %v4886
      %v4973 = vpack.c.b16 %v4889, %v4888
      %v4974 = vpack.c.b16 %v4891, %v4890
      %v4975 = vpack.c.b16 %v4893, %v4892
      %v4976 = vpack.c.b16 %v4895, %v4894
      %v4977 = vpack.c.b16 %v4897, %v4896
      %v4978 = vpack.c.b16 %v4899, %v4898
      %v4979 = vpack.c.b16 %v4901, %v4900
      %v4980 = vpack.c.b16 %v4903, %v4902
      %v4981 = vpack.c.b16 %v4905, %v4904
      %v4982 = vpack.c.b16 %v4907, %v4906
      %v4983 = vpack.c.b16 %v4909, %v4908
      %v4984 = vpack.c.b16 %v4911, %v4910
      %v4985 = vpack.c.b16 %v4913, %v4912
      %v4986 = vpack.c.b16 %v4915, %v4914
      %v4987 = vpack.c.b16 %v4917, %v4916
      %v4988 = vpack.c.b16 %v4919, %v4918
      %v4989 = vpack.c.b16 %v4920, %v4920
      %v4990 = vrot.slane %v4921, 1
      %v4991 = vrot.slane %v4922, 1
      %v4992 = vsel %vm3450, %v4990, %v4991
      %v4993 = vrot.slane %v4923, 1
      %v4994 = vsel %vm3450, %v4991, %v4993
      %v4995 = vrot.slane %v4924, 1
      %v4996 = vsel %vm3450, %v4993, %v4995
      %v4997 = vrot.slane %v4925, 1
      %v4998 = vsel %vm3450, %v4995, %v4997
      %v4999 = vrot.slane %v4926, 1
      %v5000 = vsel %vm3450, %v4997, %v4999
      %v5001 = vrot.slane %v4927, 1
      %v5002 = vsel %vm3450, %v4999, %v5001
      %v5003 = vrot.slane %v4928, 1
      %v5004 = vsel %vm3450, %v5001, %v5003
      %v5005 = vrot.slane %v4929, 1
      %v5006 = vsel %vm3450, %v5003, %v5005
      %v5007 = vrot.slane %v4930, 1
      %v5008 = vsel %vm3450, %v5005, %v5007
      %v5009 = vrot.slane %v4931, 1
      %v5010 = vsel %vm3450, %v5007, %v5009
      %v5011 = vrot.slane %v4932, 1
      %v5012 = vsel %vm3450, %v5009, %v5011
      %v5013 = vrot.slane %v4933, 1
      %v5014 = vsel %vm3450, %v5011, %v5013
      %v5015 = vrot.slane %v4934, 1
      %v5016 = vsel %vm3450, %v5013, %v5015
      %v5017 = vrot.slane %v4935, 1
      %v5018 = vsel %vm3450, %v5015, %v5017
      %v5019 = vrot.slane %v4936, 1
      %v5020 = vsel %vm3450, %v5017, %v5019
      %v5021 = vrot.slane %v4937, 1
      %v5022 = vsel %vm3450, %v5019, %v5021
      %v5023 = vrot.slane %v4938, 1
      %v5024 = vsel %vm3450, %v5021, %v5023
      %v5025 = vrot.slane %v4939, 1
      %v5026 = vsel %vm3450, %v5023, %v5025
      %v5027 = vrot.slane %v4940, 1
      %v5028 = vsel %vm3450, %v5025, %v5027
      %v5029 = vrot.slane %v4941, 1
      %v5030 = vsel %vm3450, %v5027, %v5029
      %v5031 = vrot.slane %v4942, 1
      %v5032 = vsel %vm3450, %v5029, %v5031
      %v5033 = vrot.slane %v4943, 1
      %v5034 = vsel %vm3450, %v5031, %v5033
      %v5035 = vrot.slane %v4944, 1
      %v5036 = vsel %vm3450, %v5033, %v5035
      %v5037 = vrot.slane %v4945, 1
      %v5038 = vsel %vm3450, %v5035, %v5037
      %v5039 = vrot.slane %v4946, 1
      %v5040 = vsel %vm3450, %v5037, %v5039
      %v5041 = vrot.slane %v4947, 1
      %v5042 = vsel %vm3450, %v5039, %v5041
      %v5043 = vrot.slane %v4948, 1
      %v5044 = vsel %vm3450, %v5041, %v5043
      %v5045 = vrot.slane %v4949, 1
      %v5046 = vsel %vm3450, %v5043, %v5045
      %v5047 = vrot.slane %v4950, 1
      %v5048 = vsel %vm3450, %v5045, %v5047
      %v5049 = vrot.slane %v4951, 1
      %v5050 = vsel %vm3450, %v5047, %v5049
      %v5051 = vrot.slane %v4952, 1
      %v5052 = vsel %vm3450, %v5049, %v5051
      %v5053 = vrot.slane %v4953, 1
      %v5054 = vsel %vm3450, %v5051, %v5053
      %v5055 = vrot.slane %v4954, 1
      %v5056 = vsel %vm3450, %v5053, %v5055
      %v5057 = vrot.slane %v4955, 1
      %v5058 = vsel %vm3450, %v5055, %v5057
      %v5059 = vrot.slane %v4956, 1
      %v5060 = vsel %vm3450, %v5057, %v5059
      %v5061 = vrot.slane %v4957, 1
      %v5062 = vsel %vm3450, %v5059, %v5061
      %v5063 = vrot.slane %v4958, 1
      %v5064 = vsel %vm3450, %v5061, %v5063
      %v5065 = vrot.slane %v4959, 1
      %v5066 = vsel %vm3450, %v5063, %v5065
      %v5067 = vrot.slane %v4960, 1
      %v5068 = vsel %vm3450, %v5065, %v5067
      %v5069 = vrot.slane %v4961, 1
      %v5070 = vsel %vm3450, %v5067, %v5069
      %v5071 = vrot.slane %v4962, 1
      %v5072 = vsel %vm3450, %v5069, %v5071
      %v5073 = vrot.slane %v4963, 1
      %v5074 = vsel %vm3450, %v5071, %v5073
      %v5075 = vrot.slane %v4964, 1
      %v5076 = vsel %vm3450, %v5073, %v5075
      %v5077 = vrot.slane %v4965, 1
      %v5078 = vsel %vm3450, %v5075, %v5077
      %v5079 = vrot.slane %v4966, 1
      %v5080 = vsel %vm3450, %v5077, %v5079
      %v5081 = vrot.slane %v4967, 1
      %v5082 = vsel %vm3450, %v5079, %v5081
      %v5083 = vrot.slane %v4968, 1
      %v5084 = vsel %vm3450, %v5081, %v5083
      %v5085 = vrot.slane %v4969, 1
      %v5086 = vsel %vm3450, %v5083, %v5085
      %v5087 = vrot.slane %v4970, 1
      %v5088 = vsel %vm3450, %v5085, %v5087
      %v5089 = vrot.slane %v4971, 1
      %v5090 = vsel %vm3450, %v5087, %v5089
      %v5091 = vrot.slane %v4972, 1
      %v5092 = vsel %vm3450, %v5089, %v5091
      %v5093 = vrot.slane %v4973, 1
      %v5094 = vsel %vm3450, %v5091, %v5093
      %v5095 = vrot.slane %v4974, 1
      %v5096 = vsel %vm3450, %v5093, %v5095
      %v5097 = vrot.slane %v4975, 1
      %v5098 = vsel %vm3450, %v5095, %v5097
      %v5099 = vrot.slane %v4976, 1
      %v5100 = vsel %vm3450, %v5097, %v5099
      %v5101 = vrot.slane %v4977, 1
      %v5102 = vsel %vm3450, %v5099, %v5101
      %v5103 = vrot.slane %v4978, 1
      %v5104 = vsel %vm3450, %v5101, %v5103
      %v5105 = vrot.slane %v4979, 1
      %v5106 = vsel %vm3450, %v5103, %v5105
      %v5107 = vrot.slane %v4980, 1
      %v5108 = vsel %vm3450, %v5105, %v5107
      %v5109 = vrot.slane %v4981, 1
      %v5110 = vsel %vm3450, %v5107, %v5109
      %v5111 = vrot.slane %v4982, 1
      %v5112 = vsel %vm3450, %v5109, %v5111
      %v5113 = vrot.slane %v4983, 1
      %v5114 = vsel %vm3450, %v5111, %v5113
      %v5115 = vrot.slane %v4984, 1
      %v5116 = vsel %vm3450, %v5113, %v5115
      %v5117 = vrot.slane %v4985, 1
      %v5118 = vsel %vm3450, %v5115, %v5117
      %v5119 = vrot.slane %v4986, 1
      %v5120 = vsel %vm3450, %v5117, %v5119
      %v5121 = vrot.slane %v4987, 1
      %v5122 = vsel %vm3450, %v5119, %v5121
      %v5123 = vrot.slane %v4988, 1
      %v5124 = vsel %vm3450, %v5121, %v5123
      %v5125 = vrot.slane %v4989, 1
      %v5126 = vsel %vm3450, %v5123, %v5125
      %v5128 = vsel %vm707, %v4992, 0
      %v5131 = vsel %vm707, %v4994, 0
      %v5134 = vsel %vm707, %v4996, 0
      %v5137 = vsel %vm707, %v4998, 0
      %v5140 = vsel %vm707, %v5000, 0
      %v5143 = vsel %vm707, %v5002, 0
      %v5146 = vsel %vm707, %v5004, 0
      %v5149 = vsel %vm707, %v5006, 0
      %v5152 = vsel %vm707, %v5008, 0
      %v5155 = vsel %vm707, %v5010, 0
      %v5158 = vsel %vm707, %v5012, 0
      %v5161 = vsel %vm707, %v5014, 0
      %v5164 = vsel %vm707, %v5016, 0
      %v5167 = vsel %vm707, %v5018, 0
      %v5170 = vsel %vm707, %v5020, 0
      %v5173 = vsel %vm707, %v5022, 0
      %v5176 = vsel %vm707, %v5024, 0
      %v5179 = vsel %vm707, %v5026, 0
      %v5182 = vsel %vm707, %v5028, 0
      %v5185 = vsel %vm707, %v5030, 0
      %v5188 = vsel %vm707, %v5032, 0
      %v5191 = vsel %vm707, %v5034, 0
      %v5194 = vsel %vm707, %v5036, 0
      %v5197 = vsel %vm707, %v5038, 0
      %v5200 = vsel %vm707, %v5040, 0
      %v5203 = vsel %vm707, %v5042, 0
      %v5206 = vsel %vm707, %v5044, 0
      %v5209 = vsel %vm707, %v5046, 0
      %v5212 = vsel %vm707, %v5048, 0
      %v5215 = vsel %vm707, %v5050, 0
      %v5218 = vsel %vm707, %v5052, 0
      %v5221 = vsel %vm707, %v5054, 0
      %v5224 = vsel %vm707, %v5056, 0
      %v5227 = vsel %vm707, %v5058, 0
      %v5230 = vsel %vm707, %v5060, 0
      %v5233 = vsel %vm707, %v5062, 0
      %v5236 = vsel %vm707, %v5064, 0
      %v5239 = vsel %vm707, %v5066, 0
      %v5242 = vsel %vm707, %v5068, 0
      %v5245 = vsel %vm707, %v5070, 0
      %v5248 = vsel %vm707, %v5072, 0
      %v5251 = vsel %vm707, %v5074, 0
      %v5254 = vsel %vm707, %v5076, 0
      %v5257 = vsel %vm707, %v5078, 0
      %v5260 = vsel %vm707, %v5080, 0
      %v5263 = vsel %vm707, %v5082, 0
      %v5266 = vsel %vm707, %v5084, 0
      %v5269 = vsel %vm707, %v5086, 0
      %v5272 = vsel %vm707, %v5088, 0
      %v5275 = vsel %vm707, %v5090, 0
      %v5278 = vsel %vm707, %v5092, 0
      %v5281 = vsel %vm707, %v5094, 0
      %v5284 = vsel %vm707, %v5096, 0
      %v5287 = vsel %vm707, %v5098, 0
      %v5290 = vsel %vm707, %v5100, 0
      %v5293 = vsel %vm707, %v5102, 0
      %v5296 = vsel %vm707, %v5104, 0
      %v5299 = vsel %vm707, %v5106, 0
      %v5302 = vsel %vm707, %v5108, 0
      %v5305 = vsel %vm707, %v5110, 0
      %v5308 = vsel %vm707, %v5112, 0
      %v5311 = vsel %vm707, %v5114, 0
      %v5314 = vsel %vm707, %v5116, 0
      %v5317 = vsel %vm707, %v5118, 0
      %v5320 = vsel %vm707, %v5120, 0
      %v5323 = vsel %vm707, %v5122, 0
      %v5326 = vsel %vm707, %v5124, 0
      %v5329 = vsel %vm707, %v5126, 0
      %v5332 = vsel %vm912, %v4646, 0
      %5334 = vmatprep.subr.bf16.mxu0 0
      %5335 = vmatpush1.bf16.msra.mxu0 %v5332
      %5336 = vmatprep.subr.bf16.mxu0 0
      %5337 = vmatpush1.bf16.msra.mxu0 0
      %5338 = vmatprep.subr.bf16.mxu0 0
      %5339 = vmatpush1.bf16.msra.mxu0 0
      %5340 = vmatprep.subr.bf16.mxu0 0
      %5341 = vmatpush1.bf16.msra.mxu0 0
      %5342 = vmatprep.subr.bf16.mxu0 0
      %5343 = vmatpush1.bf16.msra.mxu0 0
      %5344 = vmatprep.subr.bf16.mxu0 0
      %5345 = vmatpush1.bf16.msra.mxu0 0
      %5346 = vmatprep.subr.bf16.mxu0 0
      %5347 = vmatpush1.bf16.msra.mxu0 0
      %5348 = vmatprep.subr.bf16.mxu0 0
      %5349 = vmatpush1.bf16.msra.mxu0 0
      %5350 = vmatprep.subr.bf16.mxu0 0
      %5351 = vmatpush1.bf16.msra.mxu0 0
      %5352 = vmatprep.subr.bf16.mxu0 0
      %5353 = vmatpush1.bf16.msra.mxu0 0
      %5354 = vmatprep.subr.bf16.mxu0 0
      %5355 = vmatpush1.bf16.msra.mxu0 0
      %5356 = vmatprep.subr.bf16.mxu0 0
      %5357 = vmatpush1.bf16.msra.mxu0 0
      %5358 = vmatprep.subr.bf16.mxu0 0
      %5359 = vmatpush1.bf16.msra.mxu0 0
      %5360 = vmatprep.subr.bf16.mxu0 0
      %5361 = vmatpush1.bf16.msra.mxu0 0
      %5362 = vmatprep.subr.bf16.mxu0 0
      %5363 = vmatpush1.bf16.msra.mxu0 0
      %5364 = vmatprep.subr.bf16.mxu0 0
      %5365 = vmatpush1.bf16.msra.mxu0 0
      %5366 = vmatprep.mubr.bf16.mxu0 0
      %5367 = vmatmul.mubr.bf16.gmra.mrb[0].mxu0 %v5128
      %v5368 = vpop.f32.mrb[0].mxu0
      %v5369 = vadd.f32 0.0, %v5368
      %v5370 = vpop.f32.mrb[0].mxu0
      %v5371 = vpop.f32.mrb[0].mxu0
      %v5372 = vadd.f32 0.0, %v5371
      %v5373 = vpop.f32.mrb[0].mxu0
      %5374 = vmatprep.mubr.bf16.mxu0 0
      %5375 = vmatmul.mubr.bf16.gmra.mrb[0].mxu0 %v5131
      %v5376 = vpop.f32.mrb[0].mxu0
      %v5377 = vadd.f32 0.0, %v5376
      %v5378 = vpop.f32.mrb[0].mxu0
      %v5379 = vpop.f32.mrb[0].mxu0
      %v5380 = vadd.f32 0.0, %v5379
      %v5381 = vpop.f32.mrb[0].mxu0
      %5382 = vmatprep.mubr.bf16.mxu0 0
      %5383 = vmatmul.mubr.bf16.gmra.mrb[0].mxu0 %v5134
      %v5384 = vpop.f32.mrb[0].mxu0
      %v5385 = vadd.f32 0.0, %v5384
      %v5386 = vpop.f32.mrb[0].mxu0
      %v5387 = vpop.f32.mrb[0].mxu0
      %v5388 = vadd.f32 0.0, %v5387
      %v5389 = vpop.f32.mrb[0].mxu0
      %5390 = vmatprep.mubr.bf16.mxu0 0
      %5391 = vmatmul.mubr.bf16.gmra.mrb[0].mxu0 %v5137
      %v5392 = vpop.f32.mrb[0].mxu0
      %v5393 = vadd.f32 0.0, %v5392
      %v5394 = vpop.f32.mrb[0].mxu0
      %v5395 = vpop.f32.mrb[0].mxu0
      %v5396 = vadd.f32 0.0, %v5395
      %v5397 = vpop.f32.mrb[0].mxu0
      %5398 = vmatprep.mubr.bf16.mxu0 0
      %5399 = vmatmul.mubr.bf16.gmra.mrb[0].mxu0 %v5140
      %v5400 = vpop.f32.mrb[0].mxu0
      %v5401 = vadd.f32 0.0, %v5400
      %v5402 = vpop.f32.mrb[0].mxu0
      %v5403 = vpop.f32.mrb[0].mxu0
      %v5404 = vadd.f32 0.0, %v5403
      %v5405 = vpop.f32.mrb[0].mxu0
      %5406 = vmatprep.mubr.bf16.mxu0 0
      %5407 = vmatmul.mubr.bf16.gmra.mrb[0].mxu0 %v5143
      %v5408 = vpop.f32.mrb[0].mxu0
      %v5409 = vadd.f32 0.0, %v5408
      %v5410 = vpop.f32.mrb[0].mxu0
      %v5411 = vpop.f32.mrb[0].mxu0
      %v5412 = vadd.f32 0.0, %v5411
      %v5413 = vpop.f32.mrb[0].mxu0
      %5414 = vmatprep.mubr.bf16.mxu0 0
      %5415 = vmatmul.mubr.bf16.gmra.mrb[0].mxu0 %v5146
      %v5416 = vpop.f32.mrb[0].mxu0
      %v5417 = vadd.f32 0.0, %v5416
      %v5418 = vpop.f32.mrb[0].mxu0
      %v5419 = vpop.f32.mrb[0].mxu0
      %v5420 = vadd.f32 0.0, %v5419
      %v5421 = vpop.f32.mrb[0].mxu0
      %5422 = vmatprep.mubr.bf16.mxu0 0
      %5423 = vmatmul.mubr.bf16.gmra.mrb[0].mxu0 %v5149
      %v5424 = vpop.f32.mrb[0].mxu0
      %v5425 = vadd.f32 0.0, %v5424
      %v5426 = vpop.f32.mrb[0].mxu0
      %v5427 = vpop.f32.mrb[0].mxu0
      %v5428 = vadd.f32 0.0, %v5427
      %v5429 = vpop.f32.mrb[0].mxu0
      %5430 = vmatprep.mubr.bf16.mxu0 0
      %5431 = vmatmul.mubr.bf16.gmra.mrb[0].mxu0 %v5152
      %v5432 = vpop.f32.mrb[0].mxu0
      %v5433 = vadd.f32 0.0, %v5432
      %v5434 = vpop.f32.mrb[0].mxu0
      %v5435 = vpop.f32.mrb[0].mxu0
      %v5436 = vadd.f32 0.0, %v5435
      %v5437 = vpop.f32.mrb[0].mxu0
      %5438 = vmatprep.mubr.bf16.mxu0 0
      %5439 = vmatmul.mubr.bf16.gmra.mrb[0].mxu0 %v5155
      %v5440 = vpop.f32.mrb[0].mxu0
      %v5441 = vadd.f32 0.0, %v5440
      %v5442 = vpop.f32.mrb[0].mxu0
      %v5443 = vpop.f32.mrb[0].mxu0
      %v5444 = vadd.f32 0.0, %v5443
      %v5445 = vpop.f32.mrb[0].mxu0
      %5446 = vmatprep.mubr.bf16.mxu0 0
      %5447 = vmatmul.mubr.bf16.gmra.mrb[0].mxu0 %v5158
      %v5448 = vpop.f32.mrb[0].mxu0
      %v5449 = vadd.f32 0.0, %v5448
      %v5450 = vpop.f32.mrb[0].mxu0
      %v5451 = vpop.f32.mrb[0].mxu0
      %v5452 = vadd.f32 0.0, %v5451
      %v5453 = vpop.f32.mrb[0].mxu0
      %5454 = vmatprep.mubr.bf16.mxu0 0
      %5455 = vmatmul.mubr.bf16.gmra.mrb[0].mxu0 %v5161
      %v5456 = vpop.f32.mrb[0].mxu0
      %v5457 = vadd.f32 0.0, %v5456
      %v5458 = vpop.f32.mrb[0].mxu0
      %v5459 = vpop.f32.mrb[0].mxu0
      %v5460 = vadd.f32 0.0, %v5459
      %v5461 = vpop.f32.mrb[0].mxu0
      %5462 = vmatprep.mubr.bf16.mxu0 0
      %5463 = vmatmul.mubr.bf16.gmra.mrb[0].mxu0 %v5164
      %v5464 = vpop.f32.mrb[0].mxu0
      %v5465 = vadd.f32 0.0, %v5464
      %v5466 = vpop.f32.mrb[0].mxu0
      %v5467 = vpop.f32.mrb[0].mxu0
      %v5468 = vadd.f32 0.0, %v5467
      %v5469 = vpop.f32.mrb[0].mxu0
      %5470 = vmatprep.mubr.bf16.mxu0 0
      %5471 = vmatmul.mubr.bf16.gmra.mrb[0].mxu0 %v5167
      %v5472 = vpop.f32.mrb[0].mxu0
      %v5473 = vadd.f32 0.0, %v5472
      %v5474 = vpop.f32.mrb[0].mxu0
      %v5475 = vpop.f32.mrb[0].mxu0
      %v5476 = vadd.f32 0.0, %v5475
      %v5477 = vpop.f32.mrb[0].mxu0
      %5478 = vmatprep.mubr.bf16.mxu0 0
      %5479 = vmatmul.mubr.bf16.gmra.mrb[0].mxu0 %v5170
      %v5480 = vpop.f32.mrb[0].mxu0
      %v5481 = vadd.f32 0.0, %v5480
      %v5482 = vpop.f32.mrb[0].mxu0
      %v5483 = vpop.f32.mrb[0].mxu0
      %v5484 = vadd.f32 0.0, %v5483
      %v5485 = vpop.f32.mrb[0].mxu0
      %5486 = vmatprep.mubr.bf16.mxu0 0
      %5487 = vmatmul.mubr.bf16.gmra.mrb[0].mxu0 %v5173
      %v5488 = vpop.f32.mrb[0].mxu0
      %v5489 = vadd.f32 0.0, %v5488
      %v5490 = vpop.f32.mrb[0].mxu0
      %v5491 = vpop.f32.mrb[0].mxu0
      %v5492 = vadd.f32 0.0, %v5491
      %v5493 = vpop.f32.mrb[0].mxu0
      %5494 = vmatprep.mubr.bf16.mxu0 0
      %5495 = vmatmul.mubr.bf16.gmra.mrb[0].mxu0 %v5176
      %v5496 = vpop.f32.mrb[0].mxu0
      %v5497 = vadd.f32 0.0, %v5496
      %v5498 = vpop.f32.mrb[0].mxu0
      %v5499 = vpop.f32.mrb[0].mxu0
      %v5500 = vadd.f32 0.0, %v5499
      %v5501 = vpop.f32.mrb[0].mxu0
      %5502 = vmatprep.mubr.bf16.mxu0 0
      %5503 = vmatmul.mubr.bf16.gmra.mrb[0].mxu0 %v5179
      %v5504 = vpop.f32.mrb[0].mxu0
      %v5505 = vadd.f32 0.0, %v5504
      %v5506 = vpop.f32.mrb[0].mxu0
      %v5507 = vpop.f32.mrb[0].mxu0
      %v5508 = vadd.f32 0.0, %v5507
      %v5509 = vpop.f32.mrb[0].mxu0
      %5510 = vmatprep.mubr.bf16.mxu0 0
      %5511 = vmatmul.mubr.bf16.gmra.mrb[0].mxu0 %v5182
      %v5512 = vpop.f32.mrb[0].mxu0
      %v5513 = vadd.f32 0.0, %v5512
      %v5514 = vpop.f32.mrb[0].mxu0
      %v5515 = vpop.f32.mrb[0].mxu0
      %v5516 = vadd.f32 0.0, %v5515
      %v5517 = vpop.f32.mrb[0].mxu0
      %5518 = vmatprep.mubr.bf16.mxu0 0
      %5519 = vmatmul.mubr.bf16.gmra.mrb[0].mxu0 %v5185
      %v5520 = vpop.f32.mrb[0].mxu0
      %v5521 = vadd.f32 0.0, %v5520
      %v5522 = vpop.f32.mrb[0].mxu0
      %v5523 = vpop.f32.mrb[0].mxu0
      %v5524 = vadd.f32 0.0, %v5523
      %v5525 = vpop.f32.mrb[0].mxu0
      %5526 = vmatprep.mubr.bf16.mxu0 0
      %5527 = vmatmul.mubr.bf16.gmra.mrb[0].mxu0 %v5188
      %v5528 = vpop.f32.mrb[0].mxu0
      %v5529 = vadd.f32 0.0, %v5528
      %v5530 = vpop.f32.mrb[0].mxu0
      %v5531 = vpop.f32.mrb[0].mxu0
      %v5532 = vadd.f32 0.0, %v5531
      %v5533 = vpop.f32.mrb[0].mxu0
      %5534 = vmatprep.mubr.bf16.mxu0 0
      %5535 = vmatmul.mubr.bf16.gmra.mrb[0].mxu0 %v5191
      %v5536 = vpop.f32.mrb[0].mxu0
      %v5537 = vadd.f32 0.0, %v5536
      %v5538 = vpop.f32.mrb[0].mxu0
      %v5539 = vpop.f32.mrb[0].mxu0
      %v5540 = vadd.f32 0.0, %v5539
      %v5541 = vpop.f32.mrb[0].mxu0
      %5542 = vmatprep.mubr.bf16.mxu0 0
      %5543 = vmatmul.mubr.bf16.gmra.mrb[0].mxu0 %v5194
      %v5544 = vpop.f32.mrb[0].mxu0
      %v5545 = vadd.f32 0.0, %v5544
      %v5546 = vpop.f32.mrb[0].mxu0
      %v5547 = vpop.f32.mrb[0].mxu0
      %v5548 = vadd.f32 0.0, %v5547
      %v5549 = vpop.f32.mrb[0].mxu0
      %5550 = vmatprep.mubr.bf16.mxu0 0
      %5551 = vmatmul.mubr.bf16.gmra.mrb[0].mxu0 %v5197
      %v5552 = vpop.f32.mrb[0].mxu0
      %v5553 = vadd.f32 0.0, %v5552
      %v5554 = vpop.f32.mrb[0].mxu0
      %v5555 = vpop.f32.mrb[0].mxu0
      %v5556 = vadd.f32 0.0, %v5555
      %v5557 = vpop.f32.mrb[0].mxu0
      %5558 = vmatprep.mubr.bf16.mxu0 0
      %5559 = vmatmul.mubr.bf16.gmra.mrb[0].mxu0 %v5200
      %v5560 = vpop.f32.mrb[0].mxu0
      %v5561 = vadd.f32 0.0, %v5560
      %v5562 = vpop.f32.mrb[0].mxu0
      %v5563 = vpop.f32.mrb[0].mxu0
      %v5564 = vadd.f32 0.0, %v5563
      %v5565 = vpop.f32.mrb[0].mxu0
      %5566 = vmatprep.mubr.bf16.mxu0 0
      %5567 = vmatmul.mubr.bf16.gmra.mrb[0].mxu0 %v5203
      %v5568 = vpop.f32.mrb[0].mxu0
      %v5569 = vadd.f32 0.0, %v5568
      %v5570 = vpop.f32.mrb[0].mxu0
      %v5571 = vpop.f32.mrb[0].mxu0
      %v5572 = vadd.f32 0.0, %v5571
      %v5573 = vpop.f32.mrb[0].mxu0
      %5574 = vmatprep.mubr.bf16.mxu0 0
      %5575 = vmatmul.mubr.bf16.gmra.mrb[0].mxu0 %v5206
      %v5576 = vpop.f32.mrb[0].mxu0
      %v5577 = vadd.f32 0.0, %v5576
      %v5578 = vpop.f32.mrb[0].mxu0
      %v5579 = vpop.f32.mrb[0].mxu0
      %v5580 = vadd.f32 0.0, %v5579
      %v5581 = vpop.f32.mrb[0].mxu0
      %5582 = vmatprep.mubr.bf16.mxu0 0
      %5583 = vmatmul.mubr.bf16.gmra.mrb[0].mxu0 %v5209
      %v5584 = vpop.f32.mrb[0].mxu0
      %v5585 = vadd.f32 0.0, %v5584
      %v5586 = vpop.f32.mrb[0].mxu0
      %v5587 = vpop.f32.mrb[0].mxu0
      %v5588 = vadd.f32 0.0, %v5587
      %v5589 = vpop.f32.mrb[0].mxu0
      %5590 = vmatprep.mubr.bf16.mxu0 0
      %5591 = vmatmul.mubr.bf16.gmra.mrb[0].mxu0 %v5212
      %v5592 = vpop.f32.mrb[0].mxu0
      %v5593 = vadd.f32 0.0, %v5592
      %v5594 = vpop.f32.mrb[0].mxu0
      %v5595 = vpop.f32.mrb[0].mxu0
      %v5596 = vadd.f32 0.0, %v5595
      %v5597 = vpop.f32.mrb[0].mxu0
      %5598 = vmatprep.mubr.bf16.mxu0 0
      %5599 = vmatmul.mubr.bf16.gmra.mrb[0].mxu0 %v5215
      %v5600 = vpop.f32.mrb[0].mxu0
      %v5601 = vadd.f32 0.0, %v5600
      %v5602 = vpop.f32.mrb[0].mxu0
      %v5603 = vpop.f32.mrb[0].mxu0
      %v5604 = vadd.f32 0.0, %v5603
      %v5605 = vpop.f32.mrb[0].mxu0
      %5606 = vmatprep.mubr.bf16.mxu0 0
      %5607 = vmatmul.mubr.bf16.gmra.mrb[0].mxu0 %v5218
      %v5608 = vpop.f32.mrb[0].mxu0
      %v5609 = vadd.f32 0.0, %v5608
      %v5610 = vpop.f32.mrb[0].mxu0
      %v5611 = vpop.f32.mrb[0].mxu0
      %v5612 = vadd.f32 0.0, %v5611
      %v5613 = vpop.f32.mrb[0].mxu0
      %5614 = vmatprep.mubr.bf16.mxu0 0
      %5615 = vmatmul.mubr.bf16.gmra.mrb[0].mxu0 %v5221
      %v5616 = vpop.f32.mrb[0].mxu0
      %v5617 = vadd.f32 0.0, %v5616
      %v5618 = vpop.f32.mrb[0].mxu0
      %v5619 = vpop.f32.mrb[0].mxu0
      %v5620 = vadd.f32 0.0, %v5619
      %v5621 = vpop.f32.mrb[0].mxu0
      %5622 = vmatprep.mubr.bf16.mxu0 0
      %5623 = vmatmul.mubr.bf16.gmra.mrb[0].mxu0 %v5224
      %v5624 = vpop.f32.mrb[0].mxu0
      %v5625 = vadd.f32 0.0, %v5624
      %v5626 = vpop.f32.mrb[0].mxu0
      %v5627 = vpop.f32.mrb[0].mxu0
      %v5628 = vadd.f32 0.0, %v5627
      %v5629 = vpop.f32.mrb[0].mxu0
      %5630 = vmatprep.mubr.bf16.mxu0 0
      %5631 = vmatmul.mubr.bf16.gmra.mrb[0].mxu0 %v5227
      %v5632 = vpop.f32.mrb[0].mxu0
      %v5633 = vadd.f32 0.0, %v5632
      %v5634 = vpop.f32.mrb[0].mxu0
      %v5635 = vpop.f32.mrb[0].mxu0
      %v5636 = vadd.f32 0.0, %v5635
      %v5637 = vpop.f32.mrb[0].mxu0
      %5638 = vmatprep.mubr.bf16.mxu0 0
      %5639 = vmatmul.mubr.bf16.gmra.mrb[0].mxu0 %v5230
      %v5640 = vpop.f32.mrb[0].mxu0
      %v5641 = vadd.f32 0.0, %v5640
      %v5642 = vpop.f32.mrb[0].mxu0
      %v5643 = vpop.f32.mrb[0].mxu0
      %v5644 = vadd.f32 0.0, %v5643
      %v5645 = vpop.f32.mrb[0].mxu0
      %5646 = vmatprep.mubr.bf16.mxu0 0
      %5647 = vmatmul.mubr.bf16.gmra.mrb[0].mxu0 %v5233
      %v5648 = vpop.f32.mrb[0].mxu0
      %v5649 = vadd.f32 0.0, %v5648
      %v5650 = vpop.f32.mrb[0].mxu0
      %v5651 = vpop.f32.mrb[0].mxu0
      %v5652 = vadd.f32 0.0, %v5651
      %v5653 = vpop.f32.mrb[0].mxu0
      %5654 = vmatprep.mubr.bf16.mxu0 0
      %5655 = vmatmul.mubr.bf16.gmra.mrb[0].mxu0 %v5236
      %v5656 = vpop.f32.mrb[0].mxu0
      %v5657 = vadd.f32 0.0, %v5656
      %v5658 = vpop.f32.mrb[0].mxu0
      %v5659 = vpop.f32.mrb[0].mxu0
      %v5660 = vadd.f32 0.0, %v5659
      %v5661 = vpop.f32.mrb[0].mxu0
      %5662 = vmatprep.mubr.bf16.mxu0 0
      %5663 = vmatmul.mubr.bf16.gmra.mrb[0].mxu0 %v5239
      %v5664 = vpop.f32.mrb[0].mxu0
      %v5665 = vadd.f32 0.0, %v5664
      %v5666 = vpop.f32.mrb[0].mxu0
      %v5667 = vpop.f32.mrb[0].mxu0
      %v5668 = vadd.f32 0.0, %v5667
      %v5669 = vpop.f32.mrb[0].mxu0
      %5670 = vmatprep.mubr.bf16.mxu0 0
      %5671 = vmatmul.mubr.bf16.gmra.mrb[0].mxu0 %v5242
      %v5672 = vpop.f32.mrb[0].mxu0
      %v5673 = vadd.f32 0.0, %v5672
      %v5674 = vpop.f32.mrb[0].mxu0
      %v5675 = vpop.f32.mrb[0].mxu0
      %v5676 = vadd.f32 0.0, %v5675
      %v5677 = vpop.f32.mrb[0].mxu0
      %5678 = vmatprep.mubr.bf16.mxu0 0
      %5679 = vmatmul.mubr.bf16.gmra.mrb[0].mxu0 %v5245
      %v5680 = vpop.f32.mrb[0].mxu0
      %v5681 = vadd.f32 0.0, %v5680
      %v5682 = vpop.f32.mrb[0].mxu0
      %v5683 = vpop.f32.mrb[0].mxu0
      %v5684 = vadd.f32 0.0, %v5683
      %v5685 = vpop.f32.mrb[0].mxu0
      %5686 = vmatprep.mubr.bf16.mxu0 0
      %5687 = vmatmul.mubr.bf16.gmra.mrb[0].mxu0 %v5248
      %v5688 = vpop.f32.mrb[0].mxu0
      %v5689 = vadd.f32 0.0, %v5688
      %v5690 = vpop.f32.mrb[0].mxu0
      %v5691 = vpop.f32.mrb[0].mxu0
      %v5692 = vadd.f32 0.0, %v5691
      %v5693 = vpop.f32.mrb[0].mxu0
      %5694 = vmatprep.mubr.bf16.mxu0 0
      %5695 = vmatmul.mubr.bf16.gmra.mrb[0].mxu0 %v5251
      %v5696 = vpop.f32.mrb[0].mxu0
      %v5697 = vadd.f32 0.0, %v5696
      %v5698 = vpop.f32.mrb[0].mxu0
      %v5699 = vpop.f32.mrb[0].mxu0
      %v5700 = vadd.f32 0.0, %v5699
      %v5701 = vpop.f32.mrb[0].mxu0
      %5702 = vmatprep.mubr.bf16.mxu0 0
      %5703 = vmatmul.mubr.bf16.gmra.mrb[0].mxu0 %v5254
      %v5704 = vpop.f32.mrb[0].mxu0
      %v5705 = vadd.f32 0.0, %v5704
      %v5706 = vpop.f32.mrb[0].mxu0
      %v5707 = vpop.f32.mrb[0].mxu0
      %v5708 = vadd.f32 0.0, %v5707
      %v5709 = vpop.f32.mrb[0].mxu0
      %5710 = vmatprep.mubr.bf16.mxu0 0
      %5711 = vmatmul.mubr.bf16.gmra.mrb[0].mxu0 %v5257
      %v5712 = vpop.f32.mrb[0].mxu0
      %v5713 = vadd.f32 0.0, %v5712
      %v5714 = vpop.f32.mrb[0].mxu0
      %v5715 = vpop.f32.mrb[0].mxu0
      %v5716 = vadd.f32 0.0, %v5715
      %v5717 = vpop.f32.mrb[0].mxu0
      %5718 = vmatprep.mubr.bf16.mxu0 0
      %5719 = vmatmul.mubr.bf16.gmra.mrb[0].mxu0 %v5260
      %v5720 = vpop.f32.mrb[0].mxu0
      %v5721 = vadd.f32 0.0, %v5720
      %v5722 = vpop.f32.mrb[0].mxu0
      %v5723 = vpop.f32.mrb[0].mxu0
      %v5724 = vadd.f32 0.0, %v5723
      %v5725 = vpop.f32.mrb[0].mxu0
      %5726 = vmatprep.mubr.bf16.mxu0 0
      %5727 = vmatmul.mubr.bf16.gmra.mrb[0].mxu0 %v5263
      %v5728 = vpop.f32.mrb[0].mxu0
      %v5729 = vadd.f32 0.0, %v5728
      %v5730 = vpop.f32.mrb[0].mxu0
      %v5731 = vpop.f32.mrb[0].mxu0
      %v5732 = vadd.f32 0.0, %v5731
      %v5733 = vpop.f32.mrb[0].mxu0
      %5734 = vmatprep.mubr.bf16.mxu0 0
      %5735 = vmatmul.mubr.bf16.gmra.mrb[0].mxu0 %v5266
      %v5736 = vpop.f32.mrb[0].mxu0
      %v5737 = vadd.f32 0.0, %v5736
      %v5738 = vpop.f32.mrb[0].mxu0
      %v5739 = vpop.f32.mrb[0].mxu0
      %v5740 = vadd.f32 0.0, %v5739
      %v5741 = vpop.f32.mrb[0].mxu0
      %5742 = vmatprep.mubr.bf16.mxu0 0
      %5743 = vmatmul.mubr.bf16.gmra.mrb[0].mxu0 %v5269
      %v5744 = vpop.f32.mrb[0].mxu0
      %v5745 = vadd.f32 0.0, %v5744
      %v5746 = vpop.f32.mrb[0].mxu0
      %v5747 = vpop.f32.mrb[0].mxu0
      %v5748 = vadd.f32 0.0, %v5747
      %v5749 = vpop.f32.mrb[0].mxu0
      %5750 = vmatprep.mubr.bf16.mxu0 0
      %5751 = vmatmul.mubr.bf16.gmra.mrb[0].mxu0 %v5272
      %v5752 = vpop.f32.mrb[0].mxu0
      %v5753 = vadd.f32 0.0, %v5752
      %v5754 = vpop.f32.mrb[0].mxu0
      %v5755 = vpop.f32.mrb[0].mxu0
      %v5756 = vadd.f32 0.0, %v5755
      %v5757 = vpop.f32.mrb[0].mxu0
      %5758 = vmatprep.mubr.bf16.mxu0 0
      %5759 = vmatmul.mubr.bf16.gmra.mrb[0].mxu0 %v5275
      %v5760 = vpop.f32.mrb[0].mxu0
      %v5761 = vadd.f32 0.0, %v5760
      %v5762 = vpop.f32.mrb[0].mxu0
      %v5763 = vpop.f32.mrb[0].mxu0
      %v5764 = vadd.f32 0.0, %v5763
      %v5765 = vpop.f32.mrb[0].mxu0
      %5766 = vmatprep.mubr.bf16.mxu0 0
      %5767 = vmatmul.mubr.bf16.gmra.mrb[0].mxu0 %v5278
      %v5768 = vpop.f32.mrb[0].mxu0
      %v5769 = vadd.f32 0.0, %v5768
      %v5770 = vpop.f32.mrb[0].mxu0
      %v5771 = vpop.f32.mrb[0].mxu0
      %v5772 = vadd.f32 0.0, %v5771
      %v5773 = vpop.f32.mrb[0].mxu0
      %5774 = vmatprep.mubr.bf16.mxu0 0
      %5775 = vmatmul.mubr.bf16.gmra.mrb[0].mxu0 %v5281
      %v5776 = vpop.f32.mrb[0].mxu0
      %v5777 = vadd.f32 0.0, %v5776
      %v5778 = vpop.f32.mrb[0].mxu0
      %v5779 = vpop.f32.mrb[0].mxu0
      %v5780 = vadd.f32 0.0, %v5779
      %v5781 = vpop.f32.mrb[0].mxu0
      %5782 = vmatprep.mubr.bf16.mxu0 0
      %5783 = vmatmul.mubr.bf16.gmra.mrb[0].mxu0 %v5284
      %v5784 = vpop.f32.mrb[0].mxu0
      %v5785 = vadd.f32 0.0, %v5784
      %v5786 = vpop.f32.mrb[0].mxu0
      %v5787 = vpop.f32.mrb[0].mxu0
      %v5788 = vadd.f32 0.0, %v5787
      %v5789 = vpop.f32.mrb[0].mxu0
      %5790 = vmatprep.mubr.bf16.mxu0 0
      %5791 = vmatmul.mubr.bf16.gmra.mrb[0].mxu0 %v5287
      %v5792 = vpop.f32.mrb[0].mxu0
      %v5793 = vadd.f32 0.0, %v5792
      %v5794 = vpop.f32.mrb[0].mxu0
      %v5795 = vpop.f32.mrb[0].mxu0
      %v5796 = vadd.f32 0.0, %v5795
      %v5797 = vpop.f32.mrb[0].mxu0
      %5798 = vmatprep.mubr.bf16.mxu0 0
      %5799 = vmatmul.mubr.bf16.gmra.mrb[0].mxu0 %v5290
      %v5800 = vpop.f32.mrb[0].mxu0
      %v5801 = vadd.f32 0.0, %v5800
      %v5802 = vpop.f32.mrb[0].mxu0
      %v5803 = vpop.f32.mrb[0].mxu0
      %v5804 = vadd.f32 0.0, %v5803
      %v5805 = vpop.f32.mrb[0].mxu0
      %5806 = vmatprep.mubr.bf16.mxu0 0
      %5807 = vmatmul.mubr.bf16.gmra.mrb[0].mxu0 %v5293
      %v5808 = vpop.f32.mrb[0].mxu0
      %v5809 = vadd.f32 0.0, %v5808
      %v5810 = vpop.f32.mrb[0].mxu0
      %v5811 = vpop.f32.mrb[0].mxu0
      %v5812 = vadd.f32 0.0, %v5811
      %v5813 = vpop.f32.mrb[0].mxu0
      %5814 = vmatprep.mubr.bf16.mxu0 0
      %5815 = vmatmul.mubr.bf16.gmra.mrb[0].mxu0 %v5296
      %v5816 = vpop.f32.mrb[0].mxu0
      %v5817 = vadd.f32 0.0, %v5816
      %v5818 = vpop.f32.mrb[0].mxu0
      %v5819 = vpop.f32.mrb[0].mxu0
      %v5820 = vadd.f32 0.0, %v5819
      %v5821 = vpop.f32.mrb[0].mxu0
      %5822 = vmatprep.mubr.bf16.mxu0 0
      %5823 = vmatmul.mubr.bf16.gmra.mrb[0].mxu0 %v5299
      %v5824 = vpop.f32.mrb[0].mxu0
      %v5825 = vadd.f32 0.0, %v5824
      %v5826 = vpop.f32.mrb[0].mxu0
      %v5827 = vpop.f32.mrb[0].mxu0
      %v5828 = vadd.f32 0.0, %v5827
      %v5829 = vpop.f32.mrb[0].mxu0
      %5830 = vmatprep.mubr.bf16.mxu0 0
      %5831 = vmatmul.mubr.bf16.gmra.mrb[0].mxu0 %v5302
      %v5832 = vpop.f32.mrb[0].mxu0
      %v5833 = vadd.f32 0.0, %v5832
      %v5834 = vpop.f32.mrb[0].mxu0
      %v5835 = vpop.f32.mrb[0].mxu0
      %v5836 = vadd.f32 0.0, %v5835
      %v5837 = vpop.f32.mrb[0].mxu0
      %5838 = vmatprep.mubr.bf16.mxu0 0
      %5839 = vmatmul.mubr.bf16.gmra.mrb[0].mxu0 %v5305
      %v5840 = vpop.f32.mrb[0].mxu0
      %v5841 = vadd.f32 0.0, %v5840
      %v5842 = vpop.f32.mrb[0].mxu0
      %v5843 = vpop.f32.mrb[0].mxu0
      %v5844 = vadd.f32 0.0, %v5843
      %v5845 = vpop.f32.mrb[0].mxu0
      %5846 = vmatprep.mubr.bf16.mxu0 0
      %5847 = vmatmul.mubr.bf16.gmra.mrb[0].mxu0 %v5308
      %v5848 = vpop.f32.mrb[0].mxu0
      %v5849 = vadd.f32 0.0, %v5848
      %v5850 = vpop.f32.mrb[0].mxu0
      %v5851 = vpop.f32.mrb[0].mxu0
      %v5852 = vadd.f32 0.0, %v5851
      %v5853 = vpop.f32.mrb[0].mxu0
      %5854 = vmatprep.mubr.bf16.mxu0 0
      %5855 = vmatmul.mubr.bf16.gmra.mrb[0].mxu0 %v5311
      %v5856 = vpop.f32.mrb[0].mxu0
      %v5857 = vadd.f32 0.0, %v5856
      %v5858 = vpop.f32.mrb[0].mxu0
      %v5859 = vpop.f32.mrb[0].mxu0
      %v5860 = vadd.f32 0.0, %v5859
      %v5861 = vpop.f32.mrb[0].mxu0
      %5862 = vmatprep.mubr.bf16.mxu0 0
      %5863 = vmatmul.mubr.bf16.gmra.mrb[0].mxu0 %v5314
      %v5864 = vpop.f32.mrb[0].mxu0
      %v5865 = vadd.f32 0.0, %v5864
      %v5866 = vpop.f32.mrb[0].mxu0
      %v5867 = vpop.f32.mrb[0].mxu0
      %v5868 = vadd.f32 0.0, %v5867
      %v5869 = vpop.f32.mrb[0].mxu0
      %5870 = vmatprep.mubr.bf16.mxu0 0
      %5871 = vmatmul.mubr.bf16.gmra.mrb[0].mxu0 %v5317
      %v5872 = vpop.f32.mrb[0].mxu0
      %v5873 = vadd.f32 0.0, %v5872
      %v5874 = vpop.f32.mrb[0].mxu0
      %v5875 = vpop.f32.mrb[0].mxu0
      %v5876 = vadd.f32 0.0, %v5875
      %v5877 = vpop.f32.mrb[0].mxu0
      %5878 = vmatprep.mubr.bf16.mxu0 0
      %5879 = vmatmul.mubr.bf16.gmra.mrb[0].mxu0 %v5320
      %v5880 = vpop.f32.mrb[0].mxu0
      %v5881 = vadd.f32 0.0, %v5880
      %v5882 = vpop.f32.mrb[0].mxu0
      %v5883 = vpop.f32.mrb[0].mxu0
      %v5884 = vadd.f32 0.0, %v5883
      %v5885 = vpop.f32.mrb[0].mxu0
      %5886 = vmatprep.mubr.bf16.mxu0 0
      %5887 = vmatmul.mubr.bf16.gmra.mrb[0].mxu0 %v5323
      %v5888 = vpop.f32.mrb[0].mxu0
      %v5889 = vadd.f32 0.0, %v5888
      %v5890 = vpop.f32.mrb[0].mxu0
      %v5891 = vpop.f32.mrb[0].mxu0
      %v5892 = vadd.f32 0.0, %v5891
      %v5893 = vpop.f32.mrb[0].mxu0
      %5894 = vmatprep.mubr.bf16.mxu0 0
      %5895 = vmatmul.mubr.bf16.gmra.mrb[0].mxu0 %v5326
      %v5896 = vpop.f32.mrb[0].mxu0
      %v5897 = vadd.f32 0.0, %v5896
      %v5898 = vpop.f32.mrb[0].mxu0
      %v5899 = vpop.f32.mrb[0].mxu0
      %v5900 = vadd.f32 0.0, %v5899
      %v5901 = vpop.f32.mrb[0].mxu0
      %5902 = vmatprep.mubr.bf16.mxu0 0
      %5903 = vmatmul.mubr.bf16.gmra.mrb[0].mxu0 %v5329
      %v5904 = vpop.f32.mrb[0].mxu0
      %v5905 = vadd.f32 0.0, %v5904
      %v5906 = vpop.f32.mrb[0].mxu0
      %v5907 = vpop.f32.mrb[0].mxu0
      %v5908 = vadd.f32 0.0, %v5907
      %v5909 = vpop.f32.mrb[0].mxu0
      %5910 = vdwg.mxu0
      %v5911 = vadd.f32 %v4372, %v5369
      %v5912 = vadd.f32 %v4373, %v5372
      %v5913 = vadd.f32 %v4374, %v5377
      %v5914 = vadd.f32 %v4375, %v5380
      %v5915 = vadd.f32 %v4376, %v5385
      %v5916 = vadd.f32 %v4377, %v5388
      %v5917 = vadd.f32 %v4378, %v5393
      %v5918 = vadd.f32 %v4379, %v5396
      %v5919 = vadd.f32 %v4380, %v5401
      %v5920 = vadd.f32 %v4381, %v5404
      %v5921 = vadd.f32 %v4382, %v5409
      %v5922 = vadd.f32 %v4383, %v5412
      %v5923 = vadd.f32 %v4384, %v5417
      %v5924 = vadd.f32 %v4385, %v5420
      %v5925 = vadd.f32 %v4386, %v5425
      %v5926 = vadd.f32 %v4387, %v5428
      %v5927 = vadd.f32 %v4388, %v5433
      %v5928 = vadd.f32 %v4389, %v5436
      %v5929 = vadd.f32 %v4390, %v5441
      %v5930 = vadd.f32 %v4391, %v5444
      %v5931 = vadd.f32 %v4392, %v5449
      %v5932 = vadd.f32 %v4393, %v5452
      %v5933 = vadd.f32 %v4394, %v5457
      %v5934 = vadd.f32 %v4395, %v5460
      %v5935 = vadd.f32 %v4396, %v5465
      %v5936 = vadd.f32 %v4397, %v5468
      %v5937 = vadd.f32 %v4398, %v5473
      %v5938 = vadd.f32 %v4399, %v5476
      %v5939 = vadd.f32 %v4400, %v5481
      %v5940 = vadd.f32 %v4401, %v5484
      %v5941 = vadd.f32 %v4402, %v5489
      %v5942 = vadd.f32 %v4403, %v5492
      %v5943 = vadd.f32 %v4404, %v5497
      %v5944 = vadd.f32 %v4405, %v5500
      %v5945 = vadd.f32 %v4406, %v5505
      %v5946 = vadd.f32 %v4407, %v5508
      %v5947 = vadd.f32 %v4408, %v5513
      %v5948 = vadd.f32 %v4409, %v5516
      %v5949 = vadd.f32 %v4410, %v5521
      %v5950 = vadd.f32 %v4411, %v5524
      %v5951 = vadd.f32 %v4412, %v5529
      %v5952 = vadd.f32 %v4413, %v5532
      %v5953 = vadd.f32 %v4414, %v5537
      %v5954 = vadd.f32 %v4415, %v5540
      %v5955 = vadd.f32 %v4416, %v5545
      %v5956 = vadd.f32 %v4417, %v5548
      %v5957 = vadd.f32 %v4418, %v5553
      %v5958 = vadd.f32 %v4419, %v5556
      %v5959 = vadd.f32 %v4420, %v5561
      %v5960 = vadd.f32 %v4421, %v5564
      %v5961 = vadd.f32 %v4422, %v5569
      %v5962 = vadd.f32 %v4423, %v5572
      %v5963 = vadd.f32 %v4424, %v5577
      %v5964 = vadd.f32 %v4425, %v5580
      %v5965 = vadd.f32 %v4426, %v5585
      %v5966 = vadd.f32 %v4427, %v5588
      %v5967 = vadd.f32 %v4428, %v5593
      %v5968 = vadd.f32 %v4429, %v5596
      %v5969 = vadd.f32 %v4430, %v5601
      %v5970 = vadd.f32 %v4431, %v5604
      %v5971 = vadd.f32 %v4432, %v5609
      %v5972 = vadd.f32 %v4433, %v5612
      %v5973 = vadd.f32 %v4434, %v5617
      %v5974 = vadd.f32 %v4435, %v5620
      %v5975 = vadd.f32 %v4436, %v5625
      %v5976 = vadd.f32 %v4437, %v5628
      %v5977 = vadd.f32 %v4438, %v5633
      %v5978 = vadd.f32 %v4439, %v5636
      %v5979 = vadd.f32 %v4440, %v5641
      %v5980 = vadd.f32 %v4441, %v5644
      %v5981 = vadd.f32 %v4442, %v5649
      %v5982 = vadd.f32 %v4443, %v5652
      %v5983 = vadd.f32 %v4444, %v5657
      %v5984 = vadd.f32 %v4445, %v5660
      %v5985 = vadd.f32 %v4446, %v5665
      %v5986 = vadd.f32 %v4447, %v5668
      %v5987 = vadd.f32 %v4448, %v5673
      %v5988 = vadd.f32 %v4449, %v5676
      %v5989 = vadd.f32 %v4450, %v5681
      %v5990 = vadd.f32 %v4451, %v5684
      %v5991 = vadd.f32 %v4452, %v5689
      %v5992 = vadd.f32 %v4453, %v5692
      %v5993 = vadd.f32 %v4454, %v5697
      %v5994 = vadd.f32 %v4455, %v5700
      %v5995 = vadd.f32 %v4456, %v5705
      %v5996 = vadd.f32 %v4457, %v5708
      %v5997 = vadd.f32 %v4458, %v5713
      %v5998 = vadd.f32 %v4459, %v5716
      %v5999 = vadd.f32 %v4460, %v5721
      %v6000 = vadd.f32 %v4461, %v5724
      %v6001 = vadd.f32 %v4462, %v5729
      %v6002 = vadd.f32 %v4463, %v5732
      %v6003 = vadd.f32 %v4464, %v5737
      %v6004 = vadd.f32 %v4465, %v5740
      %v6005 = vadd.f32 %v4466, %v5745
      %v6006 = vadd.f32 %v4467, %v5748
      %v6007 = vadd.f32 %v4468, %v5753
      %v6008 = vadd.f32 %v4469, %v5756
      %v6009 = vadd.f32 %v4470, %v5761
      %v6010 = vadd.f32 %v4471, %v5764
      %v6011 = vadd.f32 %v4472, %v5769
      %v6012 = vadd.f32 %v4473, %v5772
      %v6013 = vadd.f32 %v4474, %v5777
      %v6014 = vadd.f32 %v4475, %v5780
      %v6015 = vadd.f32 %v4476, %v5785
      %v6016 = vadd.f32 %v4477, %v5788
      %v6017 = vadd.f32 %v4478, %v5793
      %v6018 = vadd.f32 %v4479, %v5796
      %v6019 = vadd.f32 %v4480, %v5801
      %v6020 = vadd.f32 %v4481, %v5804
      %v6021 = vadd.f32 %v4482, %v5809
      %v6022 = vadd.f32 %v4483, %v5812
      %v6023 = vadd.f32 %v4484, %v5817
      %v6024 = vadd.f32 %v4485, %v5820
      %v6025 = vadd.f32 %v4486, %v5825
      %v6026 = vadd.f32 %v4487, %v5828
      %v6027 = vadd.f32 %v4488, %v5833
      %v6028 = vadd.f32 %v4489, %v5836
      %v6029 = vadd.f32 %v4490, %v5841
      %v6030 = vadd.f32 %v4491, %v5844
      %v6031 = vadd.f32 %v4492, %v5849
      %v6032 = vadd.f32 %v4493, %v5852
      %v6033 = vadd.f32 %v4494, %v5857
      %v6034 = vadd.f32 %v4495, %v5860
      %v6035 = vadd.f32 %v4496, %v5865
      %v6036 = vadd.f32 %v4497, %v5868
      %v6037 = vadd.f32 %v4498, %v5873
      %v6038 = vadd.f32 %v4499, %v5876
      %v6039 = vadd.f32 %v4500, %v5881
      %v6040 = vadd.f32 %v4501, %v5884
      %v6041 = vadd.f32 %v4502, %v5889
      %v6042 = vadd.f32 %v4503, %v5892
      %v6043 = vadd.f32 %v4504, %v5897
      %v6044 = vadd.f32 %v4505, %v5900
      %v6045 = vadd.f32 %v4506, %v5905
      %v6046 = vadd.f32 %v4507, %v5908
      %v6047 = vld [vmem:[%s206 + $0x230] sm:$0x3]
      %s6048 = scalar_lea.vmem %s210, 16
      %v6049 = vld [vmem:[%s6048] sm:$0xf]
      %v6051 = vunpack.c.l.b16 %v6047
      %v6052 = vpack.c.b16 %v6051, %v6051
      %vm6053 = vsmask.f32 6400
      %v6055 = vshrl.u32 %v4921, 16
      %v6057 = vrot.slane %v6055, 1
      %v6058 = vshll.u32 %v4921, 16
      %v6060 = vrot.slane %v6058, 2
      %v6061 = vor.u32 %v6057, %v6060
      %v6063 = vshrl.u32 %v4922, 16
      %v6065 = vrot.slane %v6063, 1
      %v6066 = vshll.u32 %v4922, 16
      %v6068 = vrot.slane %v6066, 2
      %v6069 = vor.u32 %v6065, %v6068
      %v6070 = vsel %vm6053, %v6061, %v6069
      %v6072 = vshrl.u32 %v4923, 16
      %v6074 = vrot.slane %v6072, 1
      %v6075 = vshll.u32 %v4923, 16
      %v6077 = vrot.slane %v6075, 2
      %v6078 = vor.u32 %v6074, %v6077
      %v6079 = vsel %vm6053, %v6069, %v6078
      %v6081 = vshrl.u32 %v4924, 16
      %v6083 = vrot.slane %v6081, 1
      %v6084 = vshll.u32 %v4924, 16
      %v6086 = vrot.slane %v6084, 2
      %v6087 = vor.u32 %v6083, %v6086
      %v6088 = vsel %vm6053, %v6078, %v6087
      %v6090 = vshrl.u32 %v4925, 16
      %v6092 = vrot.slane %v6090, 1
      %v6093 = vshll.u32 %v4925, 16
      %v6095 = vrot.slane %v6093, 2
      %v6096 = vor.u32 %v6092, %v6095
      %v6097 = vsel %vm6053, %v6087, %v6096
      %v6099 = vshrl.u32 %v4926, 16
      %v6101 = vrot.slane %v6099, 1
      %v6102 = vshll.u32 %v4926, 16
      %v6104 = vrot.slane %v6102, 2
      %v6105 = vor.u32 %v6101, %v6104
      %v6106 = vsel %vm6053, %v6096, %v6105
      %v6108 = vshrl.u32 %v4927, 16
      %v6110 = vrot.slane %v6108, 1
      %v6111 = vshll.u32 %v4927, 16
      %v6113 = vrot.slane %v6111, 2
      %v6114 = vor.u32 %v6110, %v6113
      %v6115 = vsel %vm6053, %v6105, %v6114
      %v6117 = vshrl.u32 %v4928, 16
      %v6119 = vrot.slane %v6117, 1
      %v6120 = vshll.u32 %v4928, 16
      %v6122 = vrot.slane %v6120, 2
      %v6123 = vor.u32 %v6119, %v6122
      %v6124 = vsel %vm6053, %v6114, %v6123
      %v6126 = vshrl.u32 %v4929, 16
      %v6128 = vrot.slane %v6126, 1
      %v6129 = vshll.u32 %v4929, 16
      %v6131 = vrot.slane %v6129, 2
      %v6132 = vor.u32 %v6128, %v6131
      %v6133 = vsel %vm6053, %v6123, %v6132
      %v6135 = vshrl.u32 %v4930, 16
      %v6137 = vrot.slane %v6135, 1
      %v6138 = vshll.u32 %v4930, 16
      %v6140 = vrot.slane %v6138, 2
      %v6141 = vor.u32 %v6137, %v6140
      %v6142 = vsel %vm6053, %v6132, %v6141
      %v6144 = vshrl.u32 %v4931, 16
      %v6146 = vrot.slane %v6144, 1
      %v6147 = vshll.u32 %v4931, 16
      %v6149 = vrot.slane %v6147, 2
      %v6150 = vor.u32 %v6146, %v6149
      %v6151 = vsel %vm6053, %v6141, %v6150
      %v6153 = vshrl.u32 %v4932, 16
      %v6155 = vrot.slane %v6153, 1
      %v6156 = vshll.u32 %v4932, 16
      %v6158 = vrot.slane %v6156, 2
      %v6159 = vor.u32 %v6155, %v6158
      %v6160 = vsel %vm6053, %v6150, %v6159
      %v6162 = vshrl.u32 %v4933, 16
      %v6164 = vrot.slane %v6162, 1
      %v6165 = vshll.u32 %v4933, 16
      %v6167 = vrot.slane %v6165, 2
      %v6168 = vor.u32 %v6164, %v6167
      %v6169 = vsel %vm6053, %v6159, %v6168
      %v6171 = vshrl.u32 %v4934, 16
      %v6173 = vrot.slane %v6171, 1
      %v6174 = vshll.u32 %v4934, 16
      %v6176 = vrot.slane %v6174, 2
      %v6177 = vor.u32 %v6173, %v6176
      %v6178 = vsel %vm6053, %v6168, %v6177
      %v6180 = vshrl.u32 %v4935, 16
      %v6182 = vrot.slane %v6180, 1
      %v6183 = vshll.u32 %v4935, 16
      %v6185 = vrot.slane %v6183, 2
      %v6186 = vor.u32 %v6182, %v6185
      %v6187 = vsel %vm6053, %v6177, %v6186
      %v6189 = vshrl.u32 %v4936, 16
      %v6191 = vrot.slane %v6189, 1
      %v6192 = vshll.u32 %v4936, 16
      %v6194 = vrot.slane %v6192, 2
      %v6195 = vor.u32 %v6191, %v6194
      %v6196 = vsel %vm6053, %v6186, %v6195
      %v6198 = vshrl.u32 %v4937, 16
      %v6200 = vrot.slane %v6198, 1
      %v6201 = vshll.u32 %v4937, 16
      %v6203 = vrot.slane %v6201, 2
      %v6204 = vor.u32 %v6200, %v6203
      %v6205 = vsel %vm6053, %v6195, %v6204
      %v6207 = vshrl.u32 %v4938, 16
      %v6209 = vrot.slane %v6207, 1
      %v6210 = vshll.u32 %v4938, 16
      %v6212 = vrot.slane %v6210, 2
      %v6213 = vor.u32 %v6209, %v6212
      %v6214 = vsel %vm6053, %v6204, %v6213
      %v6216 = vshrl.u32 %v4939, 16
      %v6218 = vrot.slane %v6216, 1
      %v6219 = vshll.u32 %v4939, 16
      %v6221 = vrot.slane %v6219, 2
      %v6222 = vor.u32 %v6218, %v6221
      %v6223 = vsel %vm6053, %v6213, %v6222
      %v6225 = vshrl.u32 %v4940, 16
      %v6227 = vrot.slane %v6225, 1
      %v6228 = vshll.u32 %v4940, 16
      %v6230 = vrot.slane %v6228, 2
      %v6231 = vor.u32 %v6227, %v6230
      %v6232 = vsel %vm6053, %v6222, %v6231
      %v6234 = vshrl.u32 %v4941, 16
      %v6236 = vrot.slane %v6234, 1
      %v6237 = vshll.u32 %v4941, 16
      %v6239 = vrot.slane %v6237, 2
      %v6240 = vor.u32 %v6236, %v6239
      %v6241 = vsel %vm6053, %v6231, %v6240
      %v6243 = vshrl.u32 %v4942, 16
      %v6245 = vrot.slane %v6243, 1
      %v6246 = vshll.u32 %v4942, 16
      %v6248 = vrot.slane %v6246, 2
      %v6249 = vor.u32 %v6245, %v6248
      %v6250 = vsel %vm6053, %v6240, %v6249
      %v6252 = vshrl.u32 %v4943, 16
      %v6254 = vrot.slane %v6252, 1
      %v6255 = vshll.u32 %v4943, 16
      %v6257 = vrot.slane %v6255, 2
      %v6258 = vor.u32 %v6254, %v6257
      %v6259 = vsel %vm6053, %v6249, %v6258
      %v6261 = vshrl.u32 %v4944, 16
      %v6263 = vrot.slane %v6261, 1
      %v6264 = vshll.u32 %v4944, 16
      %v6266 = vrot.slane %v6264, 2
      %v6267 = vor.u32 %v6263, %v6266
      %v6268 = vsel %vm6053, %v6258, %v6267
      %v6270 = vshrl.u32 %v4945, 16
      %v6272 = vrot.slane %v6270, 1
      %v6273 = vshll.u32 %v4945, 16
      %v6275 = vrot.slane %v6273, 2
      %v6276 = vor.u32 %v6272, %v6275
      %v6277 = vsel %vm6053, %v6267, %v6276
      %v6279 = vshrl.u32 %v4946, 16
      %v6281 = vrot.slane %v6279, 1
      %v6282 = vshll.u32 %v4946, 16
      %v6284 = vrot.slane %v6282, 2
      %v6285 = vor.u32 %v6281, %v6284
      %v6286 = vsel %vm6053, %v6276, %v6285
      %v6288 = vshrl.u32 %v4947, 16
      %v6290 = vrot.slane %v6288, 1
      %v6291 = vshll.u32 %v4947, 16
      %v6293 = vrot.slane %v6291, 2
      %v6294 = vor.u32 %v6290, %v6293
      %v6295 = vsel %vm6053, %v6285, %v6294
      %v6297 = vshrl.u32 %v4948, 16
      %v6299 = vrot.slane %v6297, 1
      %v6300 = vshll.u32 %v4948, 16
      %v6302 = vrot.slane %v6300, 2
      %v6303 = vor.u32 %v6299, %v6302
      %v6304 = vsel %vm6053, %v6294, %v6303
      %v6306 = vshrl.u32 %v4949, 16
      %v6308 = vrot.slane %v6306, 1
      %v6309 = vshll.u32 %v4949, 16
      %v6311 = vrot.slane %v6309, 2
      %v6312 = vor.u32 %v6308, %v6311
      %v6313 = vsel %vm6053, %v6303, %v6312
      %v6315 = vshrl.u32 %v4950, 16
      %v6317 = vrot.slane %v6315, 1
      %v6318 = vshll.u32 %v4950, 16
      %v6320 = vrot.slane %v6318, 2
      %v6321 = vor.u32 %v6317, %v6320
      %v6322 = vsel %vm6053, %v6312, %v6321
      %v6324 = vshrl.u32 %v4951, 16
      %v6326 = vrot.slane %v6324, 1
      %v6327 = vshll.u32 %v4951, 16
      %v6329 = vrot.slane %v6327, 2
      %v6330 = vor.u32 %v6326, %v6329
      %v6331 = vsel %vm6053, %v6321, %v6330
      %v6333 = vshrl.u32 %v4952, 16
      %v6335 = vrot.slane %v6333, 1
      %v6336 = vshll.u32 %v4952, 16
      %v6338 = vrot.slane %v6336, 2
      %v6339 = vor.u32 %v6335, %v6338
      %v6340 = vsel %vm6053, %v6330, %v6339
      %v6342 = vshrl.u32 %v4953, 16
      %v6344 = vrot.slane %v6342, 1
      %v6345 = vshll.u32 %v4953, 16
      %v6347 = vrot.slane %v6345, 2
      %v6348 = vor.u32 %v6344, %v6347
      %v6349 = vsel %vm6053, %v6339, %v6348
      %v6351 = vshrl.u32 %v4954, 16
      %v6353 = vrot.slane %v6351, 1
      %v6354 = vshll.u32 %v4954, 16
      %v6356 = vrot.slane %v6354, 2
      %v6357 = vor.u32 %v6353, %v6356
      %v6358 = vsel %vm6053, %v6348, %v6357
      %v6360 = vshrl.u32 %v4955, 16
      %v6362 = vrot.slane %v6360, 1
      %v6363 = vshll.u32 %v4955, 16
      %v6365 = vrot.slane %v6363, 2
      %v6366 = vor.u32 %v6362, %v6365
      %v6367 = vsel %vm6053, %v6357, %v6366
      %v6369 = vshrl.u32 %v4956, 16
      %v6371 = vrot.slane %v6369, 1
      %v6372 = vshll.u32 %v4956, 16
      %v6374 = vrot.slane %v6372, 2
      %v6375 = vor.u32 %v6371, %v6374
      %v6376 = vsel %vm6053, %v6366, %v6375
      %v6378 = vshrl.u32 %v4957, 16
      %v6380 = vrot.slane %v6378, 1
      %v6381 = vshll.u32 %v4957, 16
      %v6383 = vrot.slane %v6381, 2
      %v6384 = vor.u32 %v6380, %v6383
      %v6385 = vsel %vm6053, %v6375, %v6384
      %v6387 = vshrl.u32 %v4958, 16
      %v6389 = vrot.slane %v6387, 1
      %v6390 = vshll.u32 %v4958, 16
      %v6392 = vrot.slane %v6390, 2
      %v6393 = vor.u32 %v6389, %v6392
      %v6394 = vsel %vm6053, %v6384, %v6393
      %v6396 = vshrl.u32 %v4959, 16
      %v6398 = vrot.slane %v6396, 1
      %v6399 = vshll.u32 %v4959, 16
      %v6401 = vrot.slane %v6399, 2
      %v6402 = vor.u32 %v6398, %v6401
      %v6403 = vsel %vm6053, %v6393, %v6402
      %v6405 = vshrl.u32 %v4960, 16
      %v6407 = vrot.slane %v6405, 1
      %v6408 = vshll.u32 %v4960, 16
      %v6410 = vrot.slane %v6408, 2
      %v6411 = vor.u32 %v6407, %v6410
      %v6412 = vsel %vm6053, %v6402, %v6411
      %v6414 = vshrl.u32 %v4961, 16
      %v6416 = vrot.slane %v6414, 1
      %v6417 = vshll.u32 %v4961, 16
      %v6419 = vrot.slane %v6417, 2
      %v6420 = vor.u32 %v6416, %v6419
      %v6421 = vsel %vm6053, %v6411, %v6420
      %v6423 = vshrl.u32 %v4962, 16
      %v6425 = vrot.slane %v6423, 1
      %v6426 = vshll.u32 %v4962, 16
      %v6428 = vrot.slane %v6426, 2
      %v6429 = vor.u32 %v6425, %v6428
      %v6430 = vsel %vm6053, %v6420, %v6429
      %v6432 = vshrl.u32 %v4963, 16
      %v6434 = vrot.slane %v6432, 1
      %v6435 = vshll.u32 %v4963, 16
      %v6437 = vrot.slane %v6435, 2
      %v6438 = vor.u32 %v6434, %v6437
      %v6439 = vsel %vm6053, %v6429, %v6438
      %v6441 = vshrl.u32 %v4964, 16
      %v6443 = vrot.slane %v6441, 1
      %v6444 = vshll.u32 %v4964, 16
      %v6446 = vrot.slane %v6444, 2
      %v6447 = vor.u32 %v6443, %v6446
      %v6448 = vsel %vm6053, %v6438, %v6447
      %v6450 = vshrl.u32 %v4965, 16
      %v6452 = vrot.slane %v6450, 1
      %v6453 = vshll.u32 %v4965, 16
      %v6455 = vrot.slane %v6453, 2
      %v6456 = vor.u32 %v6452, %v6455
      %v6457 = vsel %vm6053, %v6447, %v6456
      %v6459 = vshrl.u32 %v4966, 16
      %v6461 = vrot.slane %v6459, 1
      %v6462 = vshll.u32 %v4966, 16
      %v6464 = vrot.slane %v6462, 2
      %v6465 = vor.u32 %v6461, %v6464
      %v6466 = vsel %vm6053, %v6456, %v6465
      %v6468 = vshrl.u32 %v4967, 16
      %v6470 = vrot.slane %v6468, 1
      %v6471 = vshll.u32 %v4967, 16
      %v6473 = vrot.slane %v6471, 2
      %v6474 = vor.u32 %v6470, %v6473
      %v6475 = vsel %vm6053, %v6465, %v6474
      %v6477 = vshrl.u32 %v4968, 16
      %v6479 = vrot.slane %v6477, 1
      %v6480 = vshll.u32 %v4968, 16
      %v6482 = vrot.slane %v6480, 2
      %v6483 = vor.u32 %v6479, %v6482
      %v6484 = vsel %vm6053, %v6474, %v6483
      %v6486 = vshrl.u32 %v4969, 16
      %v6488 = vrot.slane %v6486, 1
      %v6489 = vshll.u32 %v4969, 16
      %v6491 = vrot.slane %v6489, 2
      %v6492 = vor.u32 %v6488, %v6491
      %v6493 = vsel %vm6053, %v6483, %v6492
      %v6495 = vshrl.u32 %v4970, 16
      %v6497 = vrot.slane %v6495, 1
      %v6498 = vshll.u32 %v4970, 16
      %v6500 = vrot.slane %v6498, 2
      %v6501 = vor.u32 %v6497, %v6500
      %v6502 = vsel %vm6053, %v6492, %v6501
      %v6504 = vshrl.u32 %v4971, 16
      %v6506 = vrot.slane %v6504, 1
      %v6507 = vshll.u32 %v4971, 16
      %v6509 = vrot.slane %v6507, 2
      %v6510 = vor.u32 %v6506, %v6509
      %v6511 = vsel %vm6053, %v6501, %v6510
      %v6513 = vshrl.u32 %v4972, 16
      %v6515 = vrot.slane %v6513, 1
      %v6516 = vshll.u32 %v4972, 16
      %v6518 = vrot.slane %v6516, 2
      %v6519 = vor.u32 %v6515, %v6518
      %v6520 = vsel %vm6053, %v6510, %v6519
      %v6522 = vshrl.u32 %v4973, 16
      %v6524 = vrot.slane %v6522, 1
      %v6525 = vshll.u32 %v4973, 16
      %v6527 = vrot.slane %v6525, 2
      %v6528 = vor.u32 %v6524, %v6527
      %v6529 = vsel %vm6053, %v6519, %v6528
      %v6531 = vshrl.u32 %v4974, 16
      %v6533 = vrot.slane %v6531, 1
      %v6534 = vshll.u32 %v4974, 16
      %v6536 = vrot.slane %v6534, 2
      %v6537 = vor.u32 %v6533, %v6536
      %v6538 = vsel %vm6053, %v6528, %v6537
      %v6540 = vshrl.u32 %v4975, 16
      %v6542 = vrot.slane %v6540, 1
      %v6543 = vshll.u32 %v4975, 16
      %v6545 = vrot.slane %v6543, 2
      %v6546 = vor.u32 %v6542, %v6545
      %v6547 = vsel %vm6053, %v6537, %v6546
      %v6549 = vshrl.u32 %v4976, 16
      %v6551 = vrot.slane %v6549, 1
      %v6552 = vshll.u32 %v4976, 16
      %v6554 = vrot.slane %v6552, 2
      %v6555 = vor.u32 %v6551, %v6554
      %v6556 = vsel %vm6053, %v6546, %v6555
      %v6558 = vshrl.u32 %v4977, 16
      %v6560 = vrot.slane %v6558, 1
      %v6561 = vshll.u32 %v4977, 16
      %v6563 = vrot.slane %v6561, 2
      %v6564 = vor.u32 %v6560, %v6563
      %v6565 = vsel %vm6053, %v6555, %v6564
      %v6567 = vshrl.u32 %v4978, 16
      %v6569 = vrot.slane %v6567, 1
      %v6570 = vshll.u32 %v4978, 16
      %v6572 = vrot.slane %v6570, 2
      %v6573 = vor.u32 %v6569, %v6572
      %v6574 = vsel %vm6053, %v6564, %v6573
      %v6576 = vshrl.u32 %v4979, 16
      %v6578 = vrot.slane %v6576, 1
      %v6579 = vshll.u32 %v4979, 16
      %v6581 = vrot.slane %v6579, 2
      %v6582 = vor.u32 %v6578, %v6581
      %v6583 = vsel %vm6053, %v6573, %v6582
      %v6585 = vshrl.u32 %v4980, 16
      %v6587 = vrot.slane %v6585, 1
      %v6588 = vshll.u32 %v4980, 16
      %v6590 = vrot.slane %v6588, 2
      %v6591 = vor.u32 %v6587, %v6590
      %v6592 = vsel %vm6053, %v6582, %v6591
      %v6594 = vshrl.u32 %v4981, 16
      %v6596 = vrot.slane %v6594, 1
      %v6597 = vshll.u32 %v4981, 16
      %v6599 = vrot.slane %v6597, 2
      %v6600 = vor.u32 %v6596, %v6599
      %v6601 = vsel %vm6053, %v6591, %v6600
      %v6603 = vshrl.u32 %v4982, 16
      %v6605 = vrot.slane %v6603, 1
      %v6606 = vshll.u32 %v4982, 16
      %v6608 = vrot.slane %v6606, 2
      %v6609 = vor.u32 %v6605, %v6608
      %v6610 = vsel %vm6053, %v6600, %v6609
      %v6612 = vshrl.u32 %v4983, 16
      %v6614 = vrot.slane %v6612, 1
      %v6615 = vshll.u32 %v4983, 16
      %v6617 = vrot.slane %v6615, 2
      %v6618 = vor.u32 %v6614, %v6617
      %v6619 = vsel %vm6053, %v6609, %v6618
      %v6621 = vshrl.u32 %v4984, 16
      %v6623 = vrot.slane %v6621, 1
      %v6624 = vshll.u32 %v4984, 16
      %v6626 = vrot.slane %v6624, 2
      %v6627 = vor.u32 %v6623, %v6626
      %v6628 = vsel %vm6053, %v6618, %v6627
      %v6630 = vshrl.u32 %v4985, 16
      %v6632 = vrot.slane %v6630, 1
      %v6633 = vshll.u32 %v4985, 16
      %v6635 = vrot.slane %v6633, 2
      %v6636 = vor.u32 %v6632, %v6635
      %v6637 = vsel %vm6053, %v6627, %v6636
      %v6639 = vshrl.u32 %v4986, 16
      %v6641 = vrot.slane %v6639, 1
      %v6642 = vshll.u32 %v4986, 16
      %v6644 = vrot.slane %v6642, 2
      %v6645 = vor.u32 %v6641, %v6644
      %v6646 = vsel %vm6053, %v6636, %v6645
      %v6648 = vshrl.u32 %v4987, 16
      %v6650 = vrot.slane %v6648, 1
      %v6651 = vshll.u32 %v4987, 16
      %v6653 = vrot.slane %v6651, 2
      %v6654 = vor.u32 %v6650, %v6653
      %v6655 = vsel %vm6053, %v6645, %v6654
      %v6657 = vshrl.u32 %v4988, 16
      %v6659 = vrot.slane %v6657, 1
      %v6660 = vshll.u32 %v4988, 16
      %v6662 = vrot.slane %v6660, 2
      %v6663 = vor.u32 %v6659, %v6662
      %v6664 = vsel %vm6053, %v6654, %v6663
      %v6666 = vshrl.u32 %v6052, 16
      %v6668 = vrot.slane %v6666, 1
      %v6669 = vshll.u32 %v6052, 16
      %v6671 = vrot.slane %v6669, 2
      %v6672 = vor.u32 %v6668, %v6671
      %v6673 = vsel %vm6053, %v6663, %v6672
      %v6675 = vsel %vm707, %v6070, 0
      %v6678 = vsel %vm707, %v6079, 0
      %v6681 = vsel %vm707, %v6088, 0
      %v6684 = vsel %vm707, %v6097, 0
      %v6687 = vsel %vm707, %v6106, 0
      %v6690 = vsel %vm707, %v6115, 0
      %v6693 = vsel %vm707, %v6124, 0
      %v6696 = vsel %vm707, %v6133, 0
      %v6699 = vsel %vm707, %v6142, 0
      %v6702 = vsel %vm707, %v6151, 0
      %v6705 = vsel %vm707, %v6160, 0
      %v6708 = vsel %vm707, %v6169, 0
      %v6711 = vsel %vm707, %v6178, 0
      %v6714 = vsel %vm707, %v6187, 0
      %v6717 = vsel %vm707, %v6196, 0
      %v6720 = vsel %vm707, %v6205, 0
      %v6723 = vsel %vm707, %v6214, 0
      %v6726 = vsel %vm707, %v6223, 0
      %v6729 = vsel %vm707, %v6232, 0
      %v6732 = vsel %vm707, %v6241, 0
      %v6735 = vsel %vm707, %v6250, 0
      %v6738 = vsel %vm707, %v6259, 0
      %v6741 = vsel %vm707, %v6268, 0
      %v6744 = vsel %vm707, %v6277, 0
      %v6747 = vsel %vm707, %v6286, 0
      %v6750 = vsel %vm707, %v6295, 0
      %v6753 = vsel %vm707, %v6304, 0
      %v6756 = vsel %vm707, %v6313, 0
      %v6759 = vsel %vm707, %v6322, 0
      %v6762 = vsel %vm707, %v6331, 0
      %v6765 = vsel %vm707, %v6340, 0
      %v6768 = vsel %vm707, %v6349, 0
      %v6771 = vsel %vm707, %v6358, 0
      %v6774 = vsel %vm707, %v6367, 0
      %v6777 = vsel %vm707, %v6376, 0
      %v6780 = vsel %vm707, %v6385, 0
      %v6783 = vsel %vm707, %v6394, 0
      %v6786 = vsel %vm707, %v6403, 0
      %v6789 = vsel %vm707, %v6412, 0
      %v6792 = vsel %vm707, %v6421, 0
      %v6795 = vsel %vm707, %v6430, 0
      %v6798 = vsel %vm707, %v6439, 0
      %v6801 = vsel %vm707, %v6448, 0
      %v6804 = vsel %vm707, %v6457, 0
      %v6807 = vsel %vm707, %v6466, 0
      %v6810 = vsel %vm707, %v6475, 0
      %v6813 = vsel %vm707, %v6484, 0
      %v6816 = vsel %vm707, %v6493, 0
      %v6819 = vsel %vm707, %v6502, 0
      %v6822 = vsel %vm707, %v6511, 0
      %v6825 = vsel %vm707, %v6520, 0
      %v6828 = vsel %vm707, %v6529, 0
      %v6831 = vsel %vm707, %v6538, 0
      %v6834 = vsel %vm707, %v6547, 0
      %v6837 = vsel %vm707, %v6556, 0
      %v6840 = vsel %vm707, %v6565, 0
      %v6843 = vsel %vm707, %v6574, 0
      %v6846 = vsel %vm707, %v6583, 0
      %v6849 = vsel %vm707, %v6592, 0
      %v6852 = vsel %vm707, %v6601, 0
      %v6855 = vsel %vm707, %v6610, 0
      %v6858 = vsel %vm707, %v6619, 0
      %v6861 = vsel %vm707, %v6628, 0
      %v6864 = vsel %vm707, %v6637, 0
      %v6867 = vsel %vm707, %v6646, 0
      %v6870 = vsel %vm707, %v6655, 0
      %v6873 = vsel %vm707, %v6664, 0
      %v6876 = vsel %vm707, %v6673, 0
      %v6879 = vsel %vm912, %v6049, 0
      %6881 = vmatprep.subr.bf16.mxu0 0
      %6882 = vmatpush1.bf16.msra.mxu0 %v6879
      %6883 = vmatprep.subr.bf16.mxu0 0
      %6884 = vmatpush1.bf16.msra.mxu0 0
      %6885 = vmatprep.subr.bf16.mxu0 0
      %6886 = vmatpush1.bf16.msra.mxu0 0
      %6887 = vmatprep.subr.bf16.mxu0 0
      %6888 = vmatpush1.bf16.msra.mxu0 0
      %6889 = vmatprep.subr.bf16.mxu0 0
      %6890 = vmatpush1.bf16.msra.mxu0 0
      %6891 = vmatprep.subr.bf16.mxu0 0
      %6892 = vmatpush1.bf16.msra.mxu0 0
      %6893 = vmatprep.subr.bf16.mxu0 0
      %6894 = vmatpush1.bf16.msra.mxu0 0
      %6895 = vmatprep.subr.bf16.mxu0 0
      %6896 = vmatpush1.bf16.msra.mxu0 0
      %6897 = vmatprep.subr.bf16.mxu0 0
      %6898 = vmatpush1.bf16.msra.mxu0 0
      %6899 = vmatprep.subr.bf16.mxu0 0
      %6900 = vmatpush1.bf16.msra.mxu0 0
      %6901 = vmatprep.subr.bf16.mxu0 0
      %6902 = vmatpush1.bf16.msra.mxu0 0
      %6903 = vmatprep.subr.bf16.mxu0 0
      %6904 = vmatpush1.bf16.msra.mxu0 0
      %6905 = vmatprep.subr.bf16.mxu0 0
      %6906 = vmatpush1.bf16.msra.mxu0 0
      %6907 = vmatprep.subr.bf16.mxu0 0
      %6908 = vmatpush1.bf16.msra.mxu0 0
      %6909 = vmatprep.subr.bf16.mxu0 0
      %6910 = vmatpush1.bf16.msra.mxu0 0
      %6911 = vmatprep.subr.bf16.mxu0 0
      %6912 = vmatpush1.bf16.msra.mxu0 0
      %6913 = vmatprep.mubr.bf16.mxu0 0
      %6914 = vmatmul.mubr.bf16.gmra.mrb[0].mxu0 %v6675
      %v6915 = vpop.f32.mrb[0].mxu0
      %v6916 = vadd.f32 0.0, %v6915
      %v6917 = vpop.f32.mrb[0].mxu0
      %v6918 = vpop.f32.mrb[0].mxu0
      %v6919 = vadd.f32 0.0, %v6918
      %v6920 = vpop.f32.mrb[0].mxu0
      %6921 = vmatprep.mubr.bf16.mxu0 0
      %6922 = vmatmul.mubr.bf16.gmra.mrb[0].mxu0 %v6678
      %v6923 = vpop.f32.mrb[0].mxu0
      %v6924 = vadd.f32 0.0, %v6923
      %v6925 = vpop.f32.mrb[0].mxu0
      %v6926 = vpop.f32.mrb[0].mxu0
      %v6927 = vadd.f32 0.0, %v6926
      %v6928 = vpop.f32.mrb[0].mxu0
      %6929 = vmatprep.mubr.bf16.mxu0 0
      %6930 = vmatmul.mubr.bf16.gmra.mrb[0].mxu0 %v6681
      %v6931 = vpop.f32.mrb[0].mxu0
      %v6932 = vadd.f32 0.0, %v6931
      %v6933 = vpop.f32.mrb[0].mxu0
      %v6934 = vpop.f32.mrb[0].mxu0
      %v6935 = vadd.f32 0.0, %v6934
      %v6936 = vpop.f32.mrb[0].mxu0
      %6937 = vmatprep.mubr.bf16.mxu0 0
      %6938 = vmatmul.mubr.bf16.gmra.mrb[0].mxu0 %v6684
      %v6939 = vpop.f32.mrb[0].mxu0
      %v6940 = vadd.f32 0.0, %v6939
      %v6941 = vpop.f32.mrb[0].mxu0
      %v6942 = vpop.f32.mrb[0].mxu0
      %v6943 = vadd.f32 0.0, %v6942
      %v6944 = vpop.f32.mrb[0].mxu0
      %6945 = vmatprep.mubr.bf16.mxu0 0
      %6946 = vmatmul.mubr.bf16.gmra.mrb[0].mxu0 %v6687
      %v6947 = vpop.f32.mrb[0].mxu0
      %v6948 = vadd.f32 0.0, %v6947
      %v6949 = vpop.f32.mrb[0].mxu0
      %v6950 = vpop.f32.mrb[0].mxu0
      %v6951 = vadd.f32 0.0, %v6950
      %v6952 = vpop.f32.mrb[0].mxu0
      %6953 = vmatprep.mubr.bf16.mxu0 0
      %6954 = vmatmul.mubr.bf16.gmra.mrb[0].mxu0 %v6690
      %v6955 = vpop.f32.mrb[0].mxu0
      %v6956 = vadd.f32 0.0, %v6955
      %v6957 = vpop.f32.mrb[0].mxu0
      %v6958 = vpop.f32.mrb[0].mxu0
      %v6959 = vadd.f32 0.0, %v6958
      %v6960 = vpop.f32.mrb[0].mxu0
      %6961 = vmatprep.mubr.bf16.mxu0 0
      %6962 = vmatmul.mubr.bf16.gmra.mrb[0].mxu0 %v6693
      %v6963 = vpop.f32.mrb[0].mxu0
      %v6964 = vadd.f32 0.0, %v6963
      %v6965 = vpop.f32.mrb[0].mxu0
      %v6966 = vpop.f32.mrb[0].mxu0
      %v6967 = vadd.f32 0.0, %v6966
      %v6968 = vpop.f32.mrb[0].mxu0
      %6969 = vmatprep.mubr.bf16.mxu0 0
      %6970 = vmatmul.mubr.bf16.gmra.mrb[0].mxu0 %v6696
      %v6971 = vpop.f32.mrb[0].mxu0
      %v6972 = vadd.f32 0.0, %v6971
      %v6973 = vpop.f32.mrb[0].mxu0
      %v6974 = vpop.f32.mrb[0].mxu0
      %v6975 = vadd.f32 0.0, %v6974
      %v6976 = vpop.f32.mrb[0].mxu0
      %6977 = vmatprep.mubr.bf16.mxu0 0
      %6978 = vmatmul.mubr.bf16.gmra.mrb[0].mxu0 %v6699
      %v6979 = vpop.f32.mrb[0].mxu0
      %v6980 = vadd.f32 0.0, %v6979
      %v6981 = vpop.f32.mrb[0].mxu0
      %v6982 = vpop.f32.mrb[0].mxu0
      %v6983 = vadd.f32 0.0, %v6982
      %v6984 = vpop.f32.mrb[0].mxu0
      %6985 = vmatprep.mubr.bf16.mxu0 0
      %6986 = vmatmul.mubr.bf16.gmra.mrb[0].mxu0 %v6702
      %v6987 = vpop.f32.mrb[0].mxu0
      %v6988 = vadd.f32 0.0, %v6987
      %v6989 = vpop.f32.mrb[0].mxu0
      %v6990 = vpop.f32.mrb[0].mxu0
      %v6991 = vadd.f32 0.0, %v6990
      %v6992 = vpop.f32.mrb[0].mxu0
      %6993 = vmatprep.mubr.bf16.mxu0 0
      %6994 = vmatmul.mubr.bf16.gmra.mrb[0].mxu0 %v6705
      %v6995 = vpop.f32.mrb[0].mxu0
      %v6996 = vadd.f32 0.0, %v6995
      %v6997 = vpop.f32.mrb[0].mxu0
      %v6998 = vpop.f32.mrb[0].mxu0
      %v6999 = vadd.f32 0.0, %v6998
      %v7000 = vpop.f32.mrb[0].mxu0
      %7001 = vmatprep.mubr.bf16.mxu0 0
      %7002 = vmatmul.mubr.bf16.gmra.mrb[0].mxu0 %v6708
      %v7003 = vpop.f32.mrb[0].mxu0
      %v7004 = vadd.f32 0.0, %v7003
      %v7005 = vpop.f32.mrb[0].mxu0
      %v7006 = vpop.f32.mrb[0].mxu0
      %v7007 = vadd.f32 0.0, %v7006
      %v7008 = vpop.f32.mrb[0].mxu0
      %7009 = vmatprep.mubr.bf16.mxu0 0
      %7010 = vmatmul.mubr.bf16.gmra.mrb[0].mxu0 %v6711
      %v7011 = vpop.f32.mrb[0].mxu0
      %v7012 = vadd.f32 0.0, %v7011
      %v7013 = vpop.f32.mrb[0].mxu0
      %v7014 = vpop.f32.mrb[0].mxu0
      %v7015 = vadd.f32 0.0, %v7014
      %v7016 = vpop.f32.mrb[0].mxu0
      %7017 = vmatprep.mubr.bf16.mxu0 0
      %7018 = vmatmul.mubr.bf16.gmra.mrb[0].mxu0 %v6714
      %v7019 = vpop.f32.mrb[0].mxu0
      %v7020 = vadd.f32 0.0, %v7019
      %v7021 = vpop.f32.mrb[0].mxu0
      %v7022 = vpop.f32.mrb[0].mxu0
      %v7023 = vadd.f32 0.0, %v7022
      %v7024 = vpop.f32.mrb[0].mxu0
      %7025 = vmatprep.mubr.bf16.mxu0 0
      %7026 = vmatmul.mubr.bf16.gmra.mrb[0].mxu0 %v6717
      %v7027 = vpop.f32.mrb[0].mxu0
      %v7028 = vadd.f32 0.0, %v7027
      %v7029 = vpop.f32.mrb[0].mxu0
      %v7030 = vpop.f32.mrb[0].mxu0
      %v7031 = vadd.f32 0.0, %v7030
      %v7032 = vpop.f32.mrb[0].mxu0
      %7033 = vmatprep.mubr.bf16.mxu0 0
      %7034 = vmatmul.mubr.bf16.gmra.mrb[0].mxu0 %v6720
      %v7035 = vpop.f32.mrb[0].mxu0
      %v7036 = vadd.f32 0.0, %v7035
      %v7037 = vpop.f32.mrb[0].mxu0
      %v7038 = vpop.f32.mrb[0].mxu0
      %v7039 = vadd.f32 0.0, %v7038
      %v7040 = vpop.f32.mrb[0].mxu0
      %7041 = vmatprep.mubr.bf16.mxu0 0
      %7042 = vmatmul.mubr.bf16.gmra.mrb[0].mxu0 %v6723
      %v7043 = vpop.f32.mrb[0].mxu0
      %v7044 = vadd.f32 0.0, %v7043
      %v7045 = vpop.f32.mrb[0].mxu0
      %v7046 = vpop.f32.mrb[0].mxu0
      %v7047 = vadd.f32 0.0, %v7046
      %v7048 = vpop.f32.mrb[0].mxu0
      %7049 = vmatprep.mubr.bf16.mxu0 0
      %7050 = vmatmul.mubr.bf16.gmra.mrb[0].mxu0 %v6726
      %v7051 = vpop.f32.mrb[0].mxu0
      %v7052 = vadd.f32 0.0, %v7051
      %v7053 = vpop.f32.mrb[0].mxu0
      %v7054 = vpop.f32.mrb[0].mxu0
      %v7055 = vadd.f32 0.0, %v7054
      %v7056 = vpop.f32.mrb[0].mxu0
      %7057 = vmatprep.mubr.bf16.mxu0 0
      %7058 = vmatmul.mubr.bf16.gmra.mrb[0].mxu0 %v6729
      %v7059 = vpop.f32.mrb[0].mxu0
      %v7060 = vadd.f32 0.0, %v7059
      %v7061 = vpop.f32.mrb[0].mxu0
      %v7062 = vpop.f32.mrb[0].mxu0
      %v7063 = vadd.f32 0.0, %v7062
      %v7064 = vpop.f32.mrb[0].mxu0
      %7065 = vmatprep.mubr.bf16.mxu0 0
      %7066 = vmatmul.mubr.bf16.gmra.mrb[0].mxu0 %v6732
      %v7067 = vpop.f32.mrb[0].mxu0
      %v7068 = vadd.f32 0.0, %v7067
      %v7069 = vpop.f32.mrb[0].mxu0
      %v7070 = vpop.f32.mrb[0].mxu0
      %v7071 = vadd.f32 0.0, %v7070
      %v7072 = vpop.f32.mrb[0].mxu0
      %7073 = vmatprep.mubr.bf16.mxu0 0
      %7074 = vmatmul.mubr.bf16.gmra.mrb[0].mxu0 %v6735
      %v7075 = vpop.f32.mrb[0].mxu0
      %v7076 = vadd.f32 0.0, %v7075
      %v7077 = vpop.f32.mrb[0].mxu0
      %v7078 = vpop.f32.mrb[0].mxu0
      %v7079 = vadd.f32 0.0, %v7078
      %v7080 = vpop.f32.mrb[0].mxu0
      %7081 = vmatprep.mubr.bf16.mxu0 0
      %7082 = vmatmul.mubr.bf16.gmra.mrb[0].mxu0 %v6738
      %v7083 = vpop.f32.mrb[0].mxu0
      %v7084 = vadd.f32 0.0, %v7083
      %v7085 = vpop.f32.mrb[0].mxu0
      %v7086 = vpop.f32.mrb[0].mxu0
      %v7087 = vadd.f32 0.0, %v7086
      %v7088 = vpop.f32.mrb[0].mxu0
      %7089 = vmatprep.mubr.bf16.mxu0 0
      %7090 = vmatmul.mubr.bf16.gmra.mrb[0].mxu0 %v6741
      %v7091 = vpop.f32.mrb[0].mxu0
      %v7092 = vadd.f32 0.0, %v7091
      %v7093 = vpop.f32.mrb[0].mxu0
      %v7094 = vpop.f32.mrb[0].mxu0
      %v7095 = vadd.f32 0.0, %v7094
      %v7096 = vpop.f32.mrb[0].mxu0
      %7097 = vmatprep.mubr.bf16.mxu0 0
      %7098 = vmatmul.mubr.bf16.gmra.mrb[0].mxu0 %v6744
      %v7099 = vpop.f32.mrb[0].mxu0
      %v7100 = vadd.f32 0.0, %v7099
      %v7101 = vpop.f32.mrb[0].mxu0
      %v7102 = vpop.f32.mrb[0].mxu0
      %v7103 = vadd.f32 0.0, %v7102
      %v7104 = vpop.f32.mrb[0].mxu0
      %7105 = vmatprep.mubr.bf16.mxu0 0
      %7106 = vmatmul.mubr.bf16.gmra.mrb[0].mxu0 %v6747
      %v7107 = vpop.f32.mrb[0].mxu0
      %v7108 = vadd.f32 0.0, %v7107
      %v7109 = vpop.f32.mrb[0].mxu0
      %v7110 = vpop.f32.mrb[0].mxu0
      %v7111 = vadd.f32 0.0, %v7110
      %v7112 = vpop.f32.mrb[0].mxu0
      %7113 = vmatprep.mubr.bf16.mxu0 0
      %7114 = vmatmul.mubr.bf16.gmra.mrb[0].mxu0 %v6750
      %v7115 = vpop.f32.mrb[0].mxu0
      %v7116 = vadd.f32 0.0, %v7115
      %v7117 = vpop.f32.mrb[0].mxu0
      %v7118 = vpop.f32.mrb[0].mxu0
      %v7119 = vadd.f32 0.0, %v7118
      %v7120 = vpop.f32.mrb[0].mxu0
      %7121 = vmatprep.mubr.bf16.mxu0 0
      %7122 = vmatmul.mubr.bf16.gmra.mrb[0].mxu0 %v6753
      %v7123 = vpop.f32.mrb[0].mxu0
      %v7124 = vadd.f32 0.0, %v7123
      %v7125 = vpop.f32.mrb[0].mxu0
      %v7126 = vpop.f32.mrb[0].mxu0
      %v7127 = vadd.f32 0.0, %v7126
      %v7128 = vpop.f32.mrb[0].mxu0
      %7129 = vmatprep.mubr.bf16.mxu0 0
      %7130 = vmatmul.mubr.bf16.gmra.mrb[0].mxu0 %v6756
      %v7131 = vpop.f32.mrb[0].mxu0
      %v7132 = vadd.f32 0.0, %v7131
      %v7133 = vpop.f32.mrb[0].mxu0
      %v7134 = vpop.f32.mrb[0].mxu0
      %v7135 = vadd.f32 0.0, %v7134
      %v7136 = vpop.f32.mrb[0].mxu0
      %7137 = vmatprep.mubr.bf16.mxu0 0
      %7138 = vmatmul.mubr.bf16.gmra.mrb[0].mxu0 %v6759
      %v7139 = vpop.f32.mrb[0].mxu0
      %v7140 = vadd.f32 0.0, %v7139
      %v7141 = vpop.f32.mrb[0].mxu0
      %v7142 = vpop.f32.mrb[0].mxu0
      %v7143 = vadd.f32 0.0, %v7142
      %v7144 = vpop.f32.mrb[0].mxu0
      %7145 = vmatprep.mubr.bf16.mxu0 0
      %7146 = vmatmul.mubr.bf16.gmra.mrb[0].mxu0 %v6762
      %v7147 = vpop.f32.mrb[0].mxu0
      %v7148 = vadd.f32 0.0, %v7147
      %v7149 = vpop.f32.mrb[0].mxu0
      %v7150 = vpop.f32.mrb[0].mxu0
      %v7151 = vadd.f32 0.0, %v7150
      %v7152 = vpop.f32.mrb[0].mxu0
      %7153 = vmatprep.mubr.bf16.mxu0 0
      %7154 = vmatmul.mubr.bf16.gmra.mrb[0].mxu0 %v6765
      %v7155 = vpop.f32.mrb[0].mxu0
      %v7156 = vadd.f32 0.0, %v7155
      %v7157 = vpop.f32.mrb[0].mxu0
      %v7158 = vpop.f32.mrb[0].mxu0
      %v7159 = vadd.f32 0.0, %v7158
      %v7160 = vpop.f32.mrb[0].mxu0
      %7161 = vmatprep.mubr.bf16.mxu0 0
      %7162 = vmatmul.mubr.bf16.gmra.mrb[0].mxu0 %v6768
      %v7163 = vpop.f32.mrb[0].mxu0
      %v7164 = vadd.f32 0.0, %v7163
      %v7165 = vpop.f32.mrb[0].mxu0
      %v7166 = vpop.f32.mrb[0].mxu0
      %v7167 = vadd.f32 0.0, %v7166
      %v7168 = vpop.f32.mrb[0].mxu0
      %7169 = vmatprep.mubr.bf16.mxu0 0
      %7170 = vmatmul.mubr.bf16.gmra.mrb[0].mxu0 %v6771
      %v7171 = vpop.f32.mrb[0].mxu0
      %v7172 = vadd.f32 0.0, %v7171
      %v7173 = vpop.f32.mrb[0].mxu0
      %v7174 = vpop.f32.mrb[0].mxu0
      %v7175 = vadd.f32 0.0, %v7174
      %v7176 = vpop.f32.mrb[0].mxu0
      %7177 = vmatprep.mubr.bf16.mxu0 0
      %7178 = vmatmul.mubr.bf16.gmra.mrb[0].mxu0 %v6774
      %v7179 = vpop.f32.mrb[0].mxu0
      %v7180 = vadd.f32 0.0, %v7179
      %v7181 = vpop.f32.mrb[0].mxu0
      %v7182 = vpop.f32.mrb[0].mxu0
      %v7183 = vadd.f32 0.0, %v7182
      %v7184 = vpop.f32.mrb[0].mxu0
      %7185 = vmatprep.mubr.bf16.mxu0 0
      %7186 = vmatmul.mubr.bf16.gmra.mrb[0].mxu0 %v6777
      %v7187 = vpop.f32.mrb[0].mxu0
      %v7188 = vadd.f32 0.0, %v7187
      %v7189 = vpop.f32.mrb[0].mxu0
      %v7190 = vpop.f32.mrb[0].mxu0
      %v7191 = vadd.f32 0.0, %v7190
      %v7192 = vpop.f32.mrb[0].mxu0
      %7193 = vmatprep.mubr.bf16.mxu0 0
      %7194 = vmatmul.mubr.bf16.gmra.mrb[0].mxu0 %v6780
      %v7195 = vpop.f32.mrb[0].mxu0
      %v7196 = vadd.f32 0.0, %v7195
      %v7197 = vpop.f32.mrb[0].mxu0
      %v7198 = vpop.f32.mrb[0].mxu0
      %v7199 = vadd.f32 0.0, %v7198
      %v7200 = vpop.f32.mrb[0].mxu0
      %7201 = vmatprep.mubr.bf16.mxu0 0
      %7202 = vmatmul.mubr.bf16.gmra.mrb[0].mxu0 %v6783
      %v7203 = vpop.f32.mrb[0].mxu0
      %v7204 = vadd.f32 0.0, %v7203
      %v7205 = vpop.f32.mrb[0].mxu0
      %v7206 = vpop.f32.mrb[0].mxu0
      %v7207 = vadd.f32 0.0, %v7206
      %v7208 = vpop.f32.mrb[0].mxu0
      %7209 = vmatprep.mubr.bf16.mxu0 0
      %7210 = vmatmul.mubr.bf16.gmra.mrb[0].mxu0 %v6786
      %v7211 = vpop.f32.mrb[0].mxu0
      %v7212 = vadd.f32 0.0, %v7211
      %v7213 = vpop.f32.mrb[0].mxu0
      %v7214 = vpop.f32.mrb[0].mxu0
      %v7215 = vadd.f32 0.0, %v7214
      %v7216 = vpop.f32.mrb[0].mxu0
      %7217 = vmatprep.mubr.bf16.mxu0 0
      %7218 = vmatmul.mubr.bf16.gmra.mrb[0].mxu0 %v6789
      %v7219 = vpop.f32.mrb[0].mxu0
      %v7220 = vadd.f32 0.0, %v7219
      %v7221 = vpop.f32.mrb[0].mxu0
      %v7222 = vpop.f32.mrb[0].mxu0
      %v7223 = vadd.f32 0.0, %v7222
      %v7224 = vpop.f32.mrb[0].mxu0
      %7225 = vmatprep.mubr.bf16.mxu0 0
      %7226 = vmatmul.mubr.bf16.gmra.mrb[0].mxu0 %v6792
      %v7227 = vpop.f32.mrb[0].mxu0
      %v7228 = vadd.f32 0.0, %v7227
      %v7229 = vpop.f32.mrb[0].mxu0
      %v7230 = vpop.f32.mrb[0].mxu0
      %v7231 = vadd.f32 0.0, %v7230
      %v7232 = vpop.f32.mrb[0].mxu0
      %7233 = vmatprep.mubr.bf16.mxu0 0
      %7234 = vmatmul.mubr.bf16.gmra.mrb[0].mxu0 %v6795
      %v7235 = vpop.f32.mrb[0].mxu0
      %v7236 = vadd.f32 0.0, %v7235
      %v7237 = vpop.f32.mrb[0].mxu0
      %v7238 = vpop.f32.mrb[0].mxu0
      %v7239 = vadd.f32 0.0, %v7238
      %v7240 = vpop.f32.mrb[0].mxu0
      %7241 = vmatprep.mubr.bf16.mxu0 0
      %7242 = vmatmul.mubr.bf16.gmra.mrb[0].mxu0 %v6798
      %v7243 = vpop.f32.mrb[0].mxu0
      %v7244 = vadd.f32 0.0, %v7243
      %v7245 = vpop.f32.mrb[0].mxu0
      %v7246 = vpop.f32.mrb[0].mxu0
      %v7247 = vadd.f32 0.0, %v7246
      %v7248 = vpop.f32.mrb[0].mxu0
      %7249 = vmatprep.mubr.bf16.mxu0 0
      %7250 = vmatmul.mubr.bf16.gmra.mrb[0].mxu0 %v6801
      %v7251 = vpop.f32.mrb[0].mxu0
      %v7252 = vadd.f32 0.0, %v7251
      %v7253 = vpop.f32.mrb[0].mxu0
      %v7254 = vpop.f32.mrb[0].mxu0
      %v7255 = vadd.f32 0.0, %v7254
      %v7256 = vpop.f32.mrb[0].mxu0
      %7257 = vmatprep.mubr.bf16.mxu0 0
      %7258 = vmatmul.mubr.bf16.gmra.mrb[0].mxu0 %v6804
      %v7259 = vpop.f32.mrb[0].mxu0
      %v7260 = vadd.f32 0.0, %v7259
      %v7261 = vpop.f32.mrb[0].mxu0
      %v7262 = vpop.f32.mrb[0].mxu0
      %v7263 = vadd.f32 0.0, %v7262
      %v7264 = vpop.f32.mrb[0].mxu0
      %7265 = vmatprep.mubr.bf16.mxu0 0
      %7266 = vmatmul.mubr.bf16.gmra.mrb[0].mxu0 %v6807
      %v7267 = vpop.f32.mrb[0].mxu0
      %v7268 = vadd.f32 0.0, %v7267
      %v7269 = vpop.f32.mrb[0].mxu0
      %v7270 = vpop.f32.mrb[0].mxu0
      %v7271 = vadd.f32 0.0, %v7270
      %v7272 = vpop.f32.mrb[0].mxu0
      %7273 = vmatprep.mubr.bf16.mxu0 0
      %7274 = vmatmul.mubr.bf16.gmra.mrb[0].mxu0 %v6810
      %v7275 = vpop.f32.mrb[0].mxu0
      %v7276 = vadd.f32 0.0, %v7275
      %v7277 = vpop.f32.mrb[0].mxu0
      %v7278 = vpop.f32.mrb[0].mxu0
      %v7279 = vadd.f32 0.0, %v7278
      %v7280 = vpop.f32.mrb[0].mxu0
      %7281 = vmatprep.mubr.bf16.mxu0 0
      %7282 = vmatmul.mubr.bf16.gmra.mrb[0].mxu0 %v6813
      %v7283 = vpop.f32.mrb[0].mxu0
      %v7284 = vadd.f32 0.0, %v7283
      %v7285 = vpop.f32.mrb[0].mxu0
      %v7286 = vpop.f32.mrb[0].mxu0
      %v7287 = vadd.f32 0.0, %v7286
      %v7288 = vpop.f32.mrb[0].mxu0
      %7289 = vmatprep.mubr.bf16.mxu0 0
      %7290 = vmatmul.mubr.bf16.gmra.mrb[0].mxu0 %v6816
      %v7291 = vpop.f32.mrb[0].mxu0
      %v7292 = vadd.f32 0.0, %v7291
      %v7293 = vpop.f32.mrb[0].mxu0
      %v7294 = vpop.f32.mrb[0].mxu0
      %v7295 = vadd.f32 0.0, %v7294
      %v7296 = vpop.f32.mrb[0].mxu0
      %7297 = vmatprep.mubr.bf16.mxu0 0
      %7298 = vmatmul.mubr.bf16.gmra.mrb[0].mxu0 %v6819
      %v7299 = vpop.f32.mrb[0].mxu0
      %v7300 = vadd.f32 0.0, %v7299
      %v7301 = vpop.f32.mrb[0].mxu0
      %v7302 = vpop.f32.mrb[0].mxu0
      %v7303 = vadd.f32 0.0, %v7302
      %v7304 = vpop.f32.mrb[0].mxu0
      %7305 = vmatprep.mubr.bf16.mxu0 0
      %7306 = vmatmul.mubr.bf16.gmra.mrb[0].mxu0 %v6822
      %v7307 = vpop.f32.mrb[0].mxu0
      %v7308 = vadd.f32 0.0, %v7307
      %v7309 = vpop.f32.mrb[0].mxu0
      %v7310 = vpop.f32.mrb[0].mxu0
      %v7311 = vadd.f32 0.0, %v7310
      %v7312 = vpop.f32.mrb[0].mxu0
      %7313 = vmatprep.mubr.bf16.mxu0 0
      %7314 = vmatmul.mubr.bf16.gmra.mrb[0].mxu0 %v6825
      %v7315 = vpop.f32.mrb[0].mxu0
      %v7316 = vadd.f32 0.0, %v7315
      %v7317 = vpop.f32.mrb[0].mxu0
      %v7318 = vpop.f32.mrb[0].mxu0
      %v7319 = vadd.f32 0.0, %v7318
      %v7320 = vpop.f32.mrb[0].mxu0
      %7321 = vmatprep.mubr.bf16.mxu0 0
      %7322 = vmatmul.mubr.bf16.gmra.mrb[0].mxu0 %v6828
      %v7323 = vpop.f32.mrb[0].mxu0
      %v7324 = vadd.f32 0.0, %v7323
      %v7325 = vpop.f32.mrb[0].mxu0
      %v7326 = vpop.f32.mrb[0].mxu0
      %v7327 = vadd.f32 0.0, %v7326
      %v7328 = vpop.f32.mrb[0].mxu0
      %7329 = vmatprep.mubr.bf16.mxu0 0
      %7330 = vmatmul.mubr.bf16.gmra.mrb[0].mxu0 %v6831
      %v7331 = vpop.f32.mrb[0].mxu0
      %v7332 = vadd.f32 0.0, %v7331
      %v7333 = vpop.f32.mrb[0].mxu0
      %v7334 = vpop.f32.mrb[0].mxu0
      %v7335 = vadd.f32 0.0, %v7334
      %v7336 = vpop.f32.mrb[0].mxu0
      %7337 = vmatprep.mubr.bf16.mxu0 0
      %7338 = vmatmul.mubr.bf16.gmra.mrb[0].mxu0 %v6834
      %v7339 = vpop.f32.mrb[0].mxu0
      %v7340 = vadd.f32 0.0, %v7339
      %v7341 = vpop.f32.mrb[0].mxu0
      %v7342 = vpop.f32.mrb[0].mxu0
      %v7343 = vadd.f32 0.0, %v7342
      %v7344 = vpop.f32.mrb[0].mxu0
      %7345 = vmatprep.mubr.bf16.mxu0 0
      %7346 = vmatmul.mubr.bf16.gmra.mrb[0].mxu0 %v6837
      %v7347 = vpop.f32.mrb[0].mxu0
      %v7348 = vadd.f32 0.0, %v7347
      %v7349 = vpop.f32.mrb[0].mxu0
      %v7350 = vpop.f32.mrb[0].mxu0
      %v7351 = vadd.f32 0.0, %v7350
      %v7352 = vpop.f32.mrb[0].mxu0
      %7353 = vmatprep.mubr.bf16.mxu0 0
      %7354 = vmatmul.mubr.bf16.gmra.mrb[0].mxu0 %v6840
      %v7355 = vpop.f32.mrb[0].mxu0
      %v7356 = vadd.f32 0.0, %v7355
      %v7357 = vpop.f32.mrb[0].mxu0
      %v7358 = vpop.f32.mrb[0].mxu0
      %v7359 = vadd.f32 0.0, %v7358
      %v7360 = vpop.f32.mrb[0].mxu0
      %7361 = vmatprep.mubr.bf16.mxu0 0
      %7362 = vmatmul.mubr.bf16.gmra.mrb[0].mxu0 %v6843
      %v7363 = vpop.f32.mrb[0].mxu0
      %v7364 = vadd.f32 0.0, %v7363
      %v7365 = vpop.f32.mrb[0].mxu0
      %v7366 = vpop.f32.mrb[0].mxu0
      %v7367 = vadd.f32 0.0, %v7366
      %v7368 = vpop.f32.mrb[0].mxu0
      %7369 = vmatprep.mubr.bf16.mxu0 0
      %7370 = vmatmul.mubr.bf16.gmra.mrb[0].mxu0 %v6846
      %v7371 = vpop.f32.mrb[0].mxu0
      %v7372 = vadd.f32 0.0, %v7371
      %v7373 = vpop.f32.mrb[0].mxu0
      %v7374 = vpop.f32.mrb[0].mxu0
      %v7375 = vadd.f32 0.0, %v7374
      %v7376 = vpop.f32.mrb[0].mxu0
      %7377 = vmatprep.mubr.bf16.mxu0 0
      %7378 = vmatmul.mubr.bf16.gmra.mrb[0].mxu0 %v6849
      %v7379 = vpop.f32.mrb[0].mxu0
      %v7380 = vadd.f32 0.0, %v7379
      %v7381 = vpop.f32.mrb[0].mxu0
      %v7382 = vpop.f32.mrb[0].mxu0
      %v7383 = vadd.f32 0.0, %v7382
      %v7384 = vpop.f32.mrb[0].mxu0
      %7385 = vmatprep.mubr.bf16.mxu0 0
      %7386 = vmatmul.mubr.bf16.gmra.mrb[0].mxu0 %v6852
      %v7387 = vpop.f32.mrb[0].mxu0
      %v7388 = vadd.f32 0.0, %v7387
      %v7389 = vpop.f32.mrb[0].mxu0
      %v7390 = vpop.f32.mrb[0].mxu0
      %v7391 = vadd.f32 0.0, %v7390
      %v7392 = vpop.f32.mrb[0].mxu0
      %7393 = vmatprep.mubr.bf16.mxu0 0
      %7394 = vmatmul.mubr.bf16.gmra.mrb[0].mxu0 %v6855
      %v7395 = vpop.f32.mrb[0].mxu0
      %v7396 = vadd.f32 0.0, %v7395
      %v7397 = vpop.f32.mrb[0].mxu0
      %v7398 = vpop.f32.mrb[0].mxu0
      %v7399 = vadd.f32 0.0, %v7398
      %v7400 = vpop.f32.mrb[0].mxu0
      %7401 = vmatprep.mubr.bf16.mxu0 0
      %7402 = vmatmul.mubr.bf16.gmra.mrb[0].mxu0 %v6858
      %v7403 = vpop.f32.mrb[0].mxu0
      %v7404 = vadd.f32 0.0, %v7403
      %v7405 = vpop.f32.mrb[0].mxu0
      %v7406 = vpop.f32.mrb[0].mxu0
      %v7407 = vadd.f32 0.0, %v7406
      %v7408 = vpop.f32.mrb[0].mxu0
      %7409 = vmatprep.mubr.bf16.mxu0 0
      %7410 = vmatmul.mubr.bf16.gmra.mrb[0].mxu0 %v6861
      %v7411 = vpop.f32.mrb[0].mxu0
      %v7412 = vadd.f32 0.0, %v7411
      %v7413 = vpop.f32.mrb[0].mxu0
      %v7414 = vpop.f32.mrb[0].mxu0
      %v7415 = vadd.f32 0.0, %v7414
      %v7416 = vpop.f32.mrb[0].mxu0
      %7417 = vmatprep.mubr.bf16.mxu0 0
      %7418 = vmatmul.mubr.bf16.gmra.mrb[0].mxu0 %v6864
      %v7419 = vpop.f32.mrb[0].mxu0
      %v7420 = vadd.f32 0.0, %v7419
      %v7421 = vpop.f32.mrb[0].mxu0
      %v7422 = vpop.f32.mrb[0].mxu0
      %v7423 = vadd.f32 0.0, %v7422
      %v7424 = vpop.f32.mrb[0].mxu0
      %7425 = vmatprep.mubr.bf16.mxu0 0
      %7426 = vmatmul.mubr.bf16.gmra.mrb[0].mxu0 %v6867
      %v7427 = vpop.f32.mrb[0].mxu0
      %v7428 = vadd.f32 0.0, %v7427
      %v7429 = vpop.f32.mrb[0].mxu0
      %v7430 = vpop.f32.mrb[0].mxu0
      %v7431 = vadd.f32 0.0, %v7430
      %v7432 = vpop.f32.mrb[0].mxu0
      %7433 = vmatprep.mubr.bf16.mxu0 0
      %7434 = vmatmul.mubr.bf16.gmra.mrb[0].mxu0 %v6870
      %v7435 = vpop.f32.mrb[0].mxu0
      %v7436 = vadd.f32 0.0, %v7435
      %v7437 = vpop.f32.mrb[0].mxu0
      %v7438 = vpop.f32.mrb[0].mxu0
      %v7439 = vadd.f32 0.0, %v7438
      %v7440 = vpop.f32.mrb[0].mxu0
      %7441 = vmatprep.mubr.bf16.mxu0 0
      %7442 = vmatmul.mubr.bf16.gmra.mrb[0].mxu0 %v6873
      %v7443 = vpop.f32.mrb[0].mxu0
      %v7444 = vadd.f32 0.0, %v7443
      %v7445 = vpop.f32.mrb[0].mxu0
      %v7446 = vpop.f32.mrb[0].mxu0
      %v7447 = vadd.f32 0.0, %v7446
      %v7448 = vpop.f32.mrb[0].mxu0
      %7449 = vmatprep.mubr.bf16.mxu0 0
      %7450 = vmatmul.mubr.bf16.gmra.mrb[0].mxu0 %v6876
      %v7451 = vpop.f32.mrb[0].mxu0
      %v7452 = vadd.f32 0.0, %v7451
      %v7453 = vpop.f32.mrb[0].mxu0
      %v7454 = vpop.f32.mrb[0].mxu0
      %v7455 = vadd.f32 0.0, %v7454
      %v7456 = vpop.f32.mrb[0].mxu0
      %7457 = vdwg.mxu0
      %v7458 = vadd.f32 %v5911, %v6916
      %v7459 = vadd.f32 %v5912, %v6919
      %v7460 = vadd.f32 %v5913, %v6924
      %v7461 = vadd.f32 %v5914, %v6927
      %v7462 = vadd.f32 %v5915, %v6932
      %v7463 = vadd.f32 %v5916, %v6935
      %v7464 = vadd.f32 %v5917, %v6940
      %v7465 = vadd.f32 %v5918, %v6943
      %v7466 = vadd.f32 %v5919, %v6948
      %v7467 = vadd.f32 %v5920, %v6951
      %v7468 = vadd.f32 %v5921, %v6956
      %v7469 = vadd.f32 %v5922, %v6959
      %v7470 = vadd.f32 %v5923, %v6964
      %v7471 = vadd.f32 %v5924, %v6967
      %v7472 = vadd.f32 %v5925, %v6972
      %v7473 = vadd.f32 %v5926, %v6975
      %v7474 = vadd.f32 %v5927, %v6980
      %v7475 = vadd.f32 %v5928, %v6983
      %v7476 = vadd.f32 %v5929, %v6988
      %v7477 = vadd.f32 %v5930, %v6991
      %v7478 = vadd.f32 %v5931, %v6996
      %v7479 = vadd.f32 %v5932, %v6999
      %v7480 = vadd.f32 %v5933, %v7004
      %v7481 = vadd.f32 %v5934, %v7007
      %v7482 = vadd.f32 %v5935, %v7012
      %v7483 = vadd.f32 %v5936, %v7015
      %v7484 = vadd.f32 %v5937, %v7020
      %v7485 = vadd.f32 %v5938, %v7023
      %v7486 = vadd.f32 %v5939, %v7028
      %v7487 = vadd.f32 %v5940, %v7031
      %v7488 = vadd.f32 %v5941, %v7036
      %v7489 = vadd.f32 %v5942, %v7039
      %v7490 = vadd.f32 %v5943, %v7044
      %v7491 = vadd.f32 %v5944, %v7047
      %v7492 = vadd.f32 %v5945, %v7052
      %v7493 = vadd.f32 %v5946, %v7055
      %v7494 = vadd.f32 %v5947, %v7060
      %v7495 = vadd.f32 %v5948, %v7063
      %v7496 = vadd.f32 %v5949, %v7068
      %v7497 = vadd.f32 %v5950, %v7071
      %v7498 = vadd.f32 %v5951, %v7076
      %v7499 = vadd.f32 %v5952, %v7079
      %v7500 = vadd.f32 %v5953, %v7084
      %v7501 = vadd.f32 %v5954, %v7087
      %v7502 = vadd.f32 %v5955, %v7092
      %v7503 = vadd.f32 %v5956, %v7095
      %v7504 = vadd.f32 %v5957, %v7100
      %v7505 = vadd.f32 %v5958, %v7103
      %v7506 = vadd.f32 %v5959, %v7108
      %v7507 = vadd.f32 %v5960, %v7111
      %v7508 = vadd.f32 %v5961, %v7116
      %v7509 = vadd.f32 %v5962, %v7119
      %v7510 = vadd.f32 %v5963, %v7124
      %v7511 = vadd.f32 %v5964, %v7127
      %v7512 = vadd.f32 %v5965, %v7132
      %v7513 = vadd.f32 %v5966, %v7135
      %v7514 = vadd.f32 %v5967, %v7140
      %v7515 = vadd.f32 %v5968, %v7143
      %v7516 = vadd.f32 %v5969, %v7148
      %v7517 = vadd.f32 %v5970, %v7151
      %v7518 = vadd.f32 %v5971, %v7156
      %v7519 = vadd.f32 %v5972, %v7159
      %v7520 = vadd.f32 %v5973, %v7164
      %v7521 = vadd.f32 %v5974, %v7167
      %v7522 = vadd.f32 %v5975, %v7172
      %v7523 = vadd.f32 %v5976, %v7175
      %v7524 = vadd.f32 %v5977, %v7180
      %v7525 = vadd.f32 %v5978, %v7183
      %v7526 = vadd.f32 %v5979, %v7188
      %v7527 = vadd.f32 %v5980, %v7191
      %v7528 = vadd.f32 %v5981, %v7196
      %v7529 = vadd.f32 %v5982, %v7199
      %v7530 = vadd.f32 %v5983, %v7204
      %v7531 = vadd.f32 %v5984, %v7207
      %v7532 = vadd.f32 %v5985, %v7212
      %v7533 = vadd.f32 %v5986, %v7215
      %v7534 = vadd.f32 %v5987, %v7220
      %v7535 = vadd.f32 %v5988, %v7223
      %v7536 = vadd.f32 %v5989, %v7228
      %v7537 = vadd.f32 %v5990, %v7231
      %v7538 = vadd.f32 %v5991, %v7236
      %v7539 = vadd.f32 %v5992, %v7239
      %v7540 = vadd.f32 %v5993, %v7244
      %v7541 = vadd.f32 %v5994, %v7247
      %v7542 = vadd.f32 %v5995, %v7252
      %v7543 = vadd.f32 %v5996, %v7255
      %v7544 = vadd.f32 %v5997, %v7260
      %v7545 = vadd.f32 %v5998, %v7263
      %v7546 = vadd.f32 %v5999, %v7268
      %v7547 = vadd.f32 %v6000, %v7271
      %v7548 = vadd.f32 %v6001, %v7276
      %v7549 = vadd.f32 %v6002, %v7279
      %v7550 = vadd.f32 %v6003, %v7284
      %v7551 = vadd.f32 %v6004, %v7287
      %v7552 = vadd.f32 %v6005, %v7292
      %v7553 = vadd.f32 %v6006, %v7295
      %v7554 = vadd.f32 %v6007, %v7300
      %v7555 = vadd.f32 %v6008, %v7303
      %v7556 = vadd.f32 %v6009, %v7308
      %v7557 = vadd.f32 %v6010, %v7311
      %v7558 = vadd.f32 %v6011, %v7316
      %v7559 = vadd.f32 %v6012, %v7319
      %v7560 = vadd.f32 %v6013, %v7324
      %v7561 = vadd.f32 %v6014, %v7327
      %v7562 = vadd.f32 %v6015, %v7332
      %v7563 = vadd.f32 %v6016, %v7335
      %v7564 = vadd.f32 %v6017, %v7340
      %v7565 = vadd.f32 %v6018, %v7343
      %v7566 = vadd.f32 %v6019, %v7348
      %v7567 = vadd.f32 %v6020, %v7351
      %v7568 = vadd.f32 %v6021, %v7356
      %v7569 = vadd.f32 %v6022, %v7359
      %v7570 = vadd.f32 %v6023, %v7364
      %v7571 = vadd.f32 %v6024, %v7367
      %v7572 = vadd.f32 %v6025, %v7372
      %v7573 = vadd.f32 %v6026, %v7375
      %v7574 = vadd.f32 %v6027, %v7380
      %v7575 = vadd.f32 %v6028, %v7383
      %v7576 = vadd.f32 %v6029, %v7388
      %v7577 = vadd.f32 %v6030, %v7391
      %v7578 = vadd.f32 %v6031, %v7396
      %v7579 = vadd.f32 %v6032, %v7399
      %v7580 = vadd.f32 %v6033, %v7404
      %v7581 = vadd.f32 %v6034, %v7407
      %v7582 = vadd.f32 %v6035, %v7412
      %v7583 = vadd.f32 %v6036, %v7415
      %v7584 = vadd.f32 %v6037, %v7420
      %v7585 = vadd.f32 %v6038, %v7423
      %v7586 = vadd.f32 %v6039, %v7428
      %v7587 = vadd.f32 %v6040, %v7431
      %v7588 = vadd.f32 %v6041, %v7436
      %v7589 = vadd.f32 %v6042, %v7439
      %v7590 = vadd.f32 %v6043, %v7444
      %v7591 = vadd.f32 %v6044, %v7447
      %v7592 = vadd.f32 %v6045, %v7452
      %v7593 = vadd.f32 %v6046, %v7455
      %v7594 = vld [vmem:[%s206 + $0x10] sm:$0xc]
      %s7595 = scalar_lea.vmem %s210, 20
      %v7596 = vld [vmem:[%s7595] sm:$0xf]
      %v7598 = vunpack.c.l.b16 %v7594
      %v7599 = vpack.c.b16 %v4785, %v7598
      %vm7600 = vcmask 1045504
      %v7601 = vrot.slane %v7599, 2
      %v7602 = vrot.slane %v4922, 2
      %v7603 = vsel %vm7600, %v7601, %v7602
      %v7604 = vrot.slane %v4923, 2
      %v7605 = vsel %vm7600, %v7602, %v7604
      %v7606 = vrot.slane %v4924, 2
      %v7607 = vsel %vm7600, %v7604, %v7606
      %v7608 = vrot.slane %v4925, 2
      %v7609 = vsel %vm7600, %v7606, %v7608
      %v7610 = vrot.slane %v4926, 2
      %v7611 = vsel %vm7600, %v7608, %v7610
      %v7612 = vrot.slane %v4927, 2
      %v7613 = vsel %vm7600, %v7610, %v7612
      %v7614 = vrot.slane %v4928, 2
      %v7615 = vsel %vm7600, %v7612, %v7614
      %v7616 = vrot.slane %v4929, 2
      %v7617 = vsel %vm7600, %v7614, %v7616
      %v7618 = vrot.slane %v4930, 2
      %v7619 = vsel %vm7600, %v7616, %v7618
      %v7620 = vrot.slane %v4931, 2
      %v7621 = vsel %vm7600, %v7618, %v7620
      %v7622 = vrot.slane %v4932, 2
      %v7623 = vsel %vm7600, %v7620, %v7622
      %v7624 = vrot.slane %v4933, 2
      %v7625 = vsel %vm7600, %v7622, %v7624
      %v7626 = vrot.slane %v4934, 2
      %v7627 = vsel %vm7600, %v7624, %v7626
      %v7628 = vrot.slane %v4935, 2
      %v7629 = vsel %vm7600, %v7626, %v7628
      %v7630 = vrot.slane %v4936, 2
      %v7631 = vsel %vm7600, %v7628, %v7630
      %v7632 = vrot.slane %v4937, 2
      %v7633 = vsel %vm7600, %v7630, %v7632
      %v7634 = vrot.slane %v4938, 2
      %v7635 = vsel %vm7600, %v7632, %v7634
      %v7636 = vrot.slane %v4939, 2
      %v7637 = vsel %vm7600, %v7634, %v7636
      %v7638 = vrot.slane %v4940, 2
      %v7639 = vsel %vm7600, %v7636, %v7638
      %v7640 = vrot.slane %v4941, 2
      %v7641 = vsel %vm7600, %v7638, %v7640
      %v7642 = vrot.slane %v4942, 2
      %v7643 = vsel %vm7600, %v7640, %v7642
      %v7644 = vrot.slane %v4943, 2
      %v7645 = vsel %vm7600, %v7642, %v7644
      %v7646 = vrot.slane %v4944, 2
      %v7647 = vsel %vm7600, %v7644, %v7646
      %v7648 = vrot.slane %v4945, 2
      %v7649 = vsel %vm7600, %v7646, %v7648
      %v7650 = vrot.slane %v4946, 2
      %v7651 = vsel %vm7600, %v7648, %v7650
      %v7652 = vrot.slane %v4947, 2
      %v7653 = vsel %vm7600, %v7650, %v7652
      %v7654 = vrot.slane %v4948, 2
      %v7655 = vsel %vm7600, %v7652, %v7654
      %v7656 = vrot.slane %v4949, 2
      %v7657 = vsel %vm7600, %v7654, %v7656
      %v7658 = vrot.slane %v4950, 2
      %v7659 = vsel %vm7600, %v7656, %v7658
      %v7660 = vrot.slane %v4951, 2
      %v7661 = vsel %vm7600, %v7658, %v7660
      %v7662 = vrot.slane %v4952, 2
      %v7663 = vsel %vm7600, %v7660, %v7662
      %v7664 = vrot.slane %v4953, 2
      %v7665 = vsel %vm7600, %v7662, %v7664
      %v7666 = vrot.slane %v4954, 2
      %v7667 = vsel %vm7600, %v7664, %v7666
      %v7668 = vrot.slane %v4955, 2
      %v7669 = vsel %vm7600, %v7666, %v7668
      %v7670 = vrot.slane %v4956, 2
      %v7671 = vsel %vm7600, %v7668, %v7670
      %v7672 = vrot.slane %v4957, 2
      %v7673 = vsel %vm7600, %v7670, %v7672
      %v7674 = vrot.slane %v4958, 2
      %v7675 = vsel %vm7600, %v7672, %v7674
      %v7676 = vrot.slane %v4959, 2
      %v7677 = vsel %vm7600, %v7674, %v7676
      %v7678 = vrot.slane %v4960, 2
      %v7679 = vsel %vm7600, %v7676, %v7678
      %v7680 = vrot.slane %v4961, 2
      %v7681 = vsel %vm7600, %v7678, %v7680
      %v7682 = vrot.slane %v4962, 2
      %v7683 = vsel %vm7600, %v7680, %v7682
      %v7684 = vrot.slane %v4963, 2
      %v7685 = vsel %vm7600, %v7682, %v7684
      %v7686 = vrot.slane %v4964, 2
      %v7687 = vsel %vm7600, %v7684, %v7686
      %v7688 = vrot.slane %v4965, 2
      %v7689 = vsel %vm7600, %v7686, %v7688
      %v7690 = vrot.slane %v4966, 2
      %v7691 = vsel %vm7600, %v7688, %v7690
      %v7692 = vrot.slane %v4967, 2
      %v7693 = vsel %vm7600, %v7690, %v7692
      %v7694 = vrot.slane %v4968, 2
      %v7695 = vsel %vm7600, %v7692, %v7694
      %v7696 = vrot.slane %v4969, 2
      %v7697 = vsel %vm7600, %v7694, %v7696
      %v7698 = vrot.slane %v4970, 2
      %v7699 = vsel %vm7600, %v7696, %v7698
      %v7700 = vrot.slane %v4971, 2
      %v7701 = vsel %vm7600, %v7698, %v7700
      %v7702 = vrot.slane %v4972, 2
      %v7703 = vsel %vm7600, %v7700, %v7702
      %v7704 = vrot.slane %v4973, 2
      %v7705 = vsel %vm7600, %v7702, %v7704
      %v7706 = vrot.slane %v4974, 2
      %v7707 = vsel %vm7600, %v7704, %v7706
      %v7708 = vrot.slane %v4975, 2
      %v7709 = vsel %vm7600, %v7706, %v7708
      %v7710 = vrot.slane %v4976, 2
      %v7711 = vsel %vm7600, %v7708, %v7710
      %v7712 = vrot.slane %v4977, 2
      %v7713 = vsel %vm7600, %v7710, %v7712
      %v7714 = vrot.slane %v4978, 2
      %v7715 = vsel %vm7600, %v7712, %v7714
      %v7716 = vrot.slane %v4979, 2
      %v7717 = vsel %vm7600, %v7714, %v7716
      %v7718 = vrot.slane %v4980, 2
      %v7719 = vsel %vm7600, %v7716, %v7718
      %v7720 = vrot.slane %v4981, 2
      %v7721 = vsel %vm7600, %v7718, %v7720
      %v7722 = vrot.slane %v4982, 2
      %v7723 = vsel %vm7600, %v7720, %v7722
      %v7724 = vrot.slane %v4983, 2
      %v7725 = vsel %vm7600, %v7722, %v7724
      %v7726 = vrot.slane %v4984, 2
      %v7727 = vsel %vm7600, %v7724, %v7726
      %v7728 = vrot.slane %v4985, 2
      %v7729 = vsel %vm7600, %v7726, %v7728
      %v7730 = vrot.slane %v4986, 2
      %v7731 = vsel %vm7600, %v7728, %v7730
      %v7732 = vrot.slane %v4987, 2
      %v7733 = vsel %vm7600, %v7730, %v7732
      %v7734 = vrot.slane %v4988, 2
      %v7735 = vsel %vm7600, %v7732, %v7734
      %v7736 = vrot.slane %v6052, 2
      %v7737 = vsel %vm7600, %v7734, %v7736
      %v7739 = vsel %vm707, %v7603, 0
      %v7742 = vsel %vm707, %v7605, 0
      %v7745 = vsel %vm707, %v7607, 0
      %v7748 = vsel %vm707, %v7609, 0
      %v7751 = vsel %vm707, %v7611, 0
      %v7754 = vsel %vm707, %v7613, 0
      %v7757 = vsel %vm707, %v7615, 0
      %v7760 = vsel %vm707, %v7617, 0
      %v7763 = vsel %vm707, %v7619, 0
      %v7766 = vsel %vm707, %v7621, 0
      %v7769 = vsel %vm707, %v7623, 0
      %v7772 = vsel %vm707, %v7625, 0
      %v7775 = vsel %vm707, %v7627, 0
      %v7778 = vsel %vm707, %v7629, 0
      %v7781 = vsel %vm707, %v7631, 0
      %v7784 = vsel %vm707, %v7633, 0
      %v7787 = vsel %vm707, %v7635, 0
      %v7790 = vsel %vm707, %v7637, 0
      %v7793 = vsel %vm707, %v7639, 0
      %v7796 = vsel %vm707, %v7641, 0
      %v7799 = vsel %vm707, %v7643, 0
      %v7802 = vsel %vm707, %v7645, 0
      %v7805 = vsel %vm707, %v7647, 0
      %v7808 = vsel %vm707, %v7649, 0
      %v7811 = vsel %vm707, %v7651, 0
      %v7814 = vsel %vm707, %v7653, 0
      %v7817 = vsel %vm707, %v7655, 0
      %v7820 = vsel %vm707, %v7657, 0
      %v7823 = vsel %vm707, %v7659, 0
      %v7826 = vsel %vm707, %v7661, 0
      %v7829 = vsel %vm707, %v7663, 0
      %v7832 = vsel %vm707, %v7665, 0
      %v7835 = vsel %vm707, %v7667, 0
      %v7838 = vsel %vm707, %v7669, 0
      %v7841 = vsel %vm707, %v7671, 0
      %v7844 = vsel %vm707, %v7673, 0
      %v7847 = vsel %vm707, %v7675, 0
      %v7850 = vsel %vm707, %v7677, 0
      %v7853 = vsel %vm707, %v7679, 0
      %v7856 = vsel %vm707, %v7681, 0
      %v7859 = vsel %vm707, %v7683, 0
      %v7862 = vsel %vm707, %v7685, 0
      %v7865 = vsel %vm707, %v7687, 0
      %v7868 = vsel %vm707, %v7689, 0
      %v7871 = vsel %vm707, %v7691, 0
      %v7874 = vsel %vm707, %v7693, 0
      %v7877 = vsel %vm707, %v7695, 0
      %v7880 = vsel %vm707, %v7697, 0
      %v7883 = vsel %vm707, %v7699, 0
      %v7886 = vsel %vm707, %v7701, 0
      %v7889 = vsel %vm707, %v7703, 0
      %v7892 = vsel %vm707, %v7705, 0
      %v7895 = vsel %vm707, %v7707, 0
      %v7898 = vsel %vm707, %v7709, 0
      %v7901 = vsel %vm707, %v7711, 0
      %v7904 = vsel %vm707, %v7713, 0
      %v7907 = vsel %vm707, %v7715, 0
      %v7910 = vsel %vm707, %v7717, 0
      %v7913 = vsel %vm707, %v7719, 0
      %v7916 = vsel %vm707, %v7721, 0
      %v7919 = vsel %vm707, %v7723, 0
      %v7922 = vsel %vm707, %v7725, 0
      %v7925 = vsel %vm707, %v7727, 0
      %v7928 = vsel %vm707, %v7729, 0
      %v7931 = vsel %vm707, %v7731, 0
      %v7934 = vsel %vm707, %v7733, 0
      %v7937 = vsel %vm707, %v7735, 0
      %v7940 = vsel %vm707, %v7737, 0
      %v7943 = vsel %vm912, %v7596, 0
      %7945 = vmatprep.subr.bf16.mxu0 0
      %7946 = vmatpush1.bf16.msra.mxu0 %v7943
      %7947 = vmatprep.subr.bf16.mxu0 0
      %7948 = vmatpush1.bf16.msra.mxu0 0
      %7949 = vmatprep.subr.bf16.mxu0 0
      %7950 = vmatpush1.bf16.msra.mxu0 0
      %7951 = vmatprep.subr.bf16.mxu0 0
      %7952 = vmatpush1.bf16.msra.mxu0 0
      %7953 = vmatprep.subr.bf16.mxu0 0
      %7954 = vmatpush1.bf16.msra.mxu0 0
      %7955 = vmatprep.subr.bf16.mxu0 0
      %7956 = vmatpush1.bf16.msra.mxu0 0
      %7957 = vmatprep.subr.bf16.mxu0 0
      %7958 = vmatpush1.bf16.msra.mxu0 0
      %7959 = vmatprep.subr.bf16.mxu0 0
      %7960 = vmatpush1.bf16.msra.mxu0 0
      %7961 = vmatprep.subr.bf16.mxu0 0
      %7962 = vmatpush1.bf16.msra.mxu0 0
      %7963 = vmatprep.subr.bf16.mxu0 0
      %7964 = vmatpush1.bf16.msra.mxu0 0
      %7965 = vmatprep.subr.bf16.mxu0 0
      %7966 = vmatpush1.bf16.msra.mxu0 0
      %7967 = vmatprep.subr.bf16.mxu0 0
      %7968 = vmatpush1.bf16.msra.mxu0 0
      %7969 = vmatprep.subr.bf16.mxu0 0
      %7970 = vmatpush1.bf16.msra.mxu0 0
      %7971 = vmatprep.subr.bf16.mxu0 0
      %7972 = vmatpush1.bf16.msra.mxu0 0
      %7973 = vmatprep.subr.bf16.mxu0 0
      %7974 = vmatpush1.bf16.msra.mxu0 0
      %7975 = vmatprep.subr.bf16.mxu0 0
      %7976 = vmatpush1.bf16.msra.mxu0 0
      %7977 = vmatprep.mubr.bf16.mxu0 0
      %7978 = vmatmul.mubr.bf16.gmra.mrb[0].mxu0 %v7739
      %v7979 = vpop.f32.mrb[0].mxu0
      %v7980 = vadd.f32 0.0, %v7979
      %v7981 = vpop.f32.mrb[0].mxu0
      %v7982 = vpop.f32.mrb[0].mxu0
      %v7983 = vadd.f32 0.0, %v7982
      %v7984 = vpop.f32.mrb[0].mxu0
      %7985 = vmatprep.mubr.bf16.mxu0 0
      %7986 = vmatmul.mubr.bf16.gmra.mrb[0].mxu0 %v7742
      %v7987 = vpop.f32.mrb[0].mxu0
      %v7988 = vadd.f32 0.0, %v7987
      %v7989 = vpop.f32.mrb[0].mxu0
      %v7990 = vpop.f32.mrb[0].mxu0
      %v7991 = vadd.f32 0.0, %v7990
      %v7992 = vpop.f32.mrb[0].mxu0
      %7993 = vmatprep.mubr.bf16.mxu0 0
      %7994 = vmatmul.mubr.bf16.gmra.mrb[0].mxu0 %v7745
      %v7995 = vpop.f32.mrb[0].mxu0
      %v7996 = vadd.f32 0.0, %v7995
      %v7997 = vpop.f32.mrb[0].mxu0
      %v7998 = vpop.f32.mrb[0].mxu0
      %v7999 = vadd.f32 0.0, %v7998
      %v8000 = vpop.f32.mrb[0].mxu0
      %8001 = vmatprep.mubr.bf16.mxu0 0
      %8002 = vmatmul.mubr.bf16.gmra.mrb[0].mxu0 %v7748
      %v8003 = vpop.f32.mrb[0].mxu0
      %v8004 = vadd.f32 0.0, %v8003
      %v8005 = vpop.f32.mrb[0].mxu0
      %v8006 = vpop.f32.mrb[0].mxu0
      %v8007 = vadd.f32 0.0, %v8006
      %v8008 = vpop.f32.mrb[0].mxu0
      %8009 = vmatprep.mubr.bf16.mxu0 0
      %8010 = vmatmul.mubr.bf16.gmra.mrb[0].mxu0 %v7751
      %v8011 = vpop.f32.mrb[0].mxu0
      %v8012 = vadd.f32 0.0, %v8011
      %v8013 = vpop.f32.mrb[0].mxu0
      %v8014 = vpop.f32.mrb[0].mxu0
      %v8015 = vadd.f32 0.0, %v8014
      %v8016 = vpop.f32.mrb[0].mxu0
      %8017 = vmatprep.mubr.bf16.mxu0 0
      %8018 = vmatmul.mubr.bf16.gmra.mrb[0].mxu0 %v7754
      %v8019 = vpop.f32.mrb[0].mxu0
      %v8020 = vadd.f32 0.0, %v8019
      %v8021 = vpop.f32.mrb[0].mxu0
      %v8022 = vpop.f32.mrb[0].mxu0
      %v8023 = vadd.f32 0.0, %v8022
      %v8024 = vpop.f32.mrb[0].mxu0
      %8025 = vmatprep.mubr.bf16.mxu0 0
      %8026 = vmatmul.mubr.bf16.gmra.mrb[0].mxu0 %v7757
      %v8027 = vpop.f32.mrb[0].mxu0
      %v8028 = vadd.f32 0.0, %v8027
      %v8029 = vpop.f32.mrb[0].mxu0
      %v8030 = vpop.f32.mrb[0].mxu0
      %v8031 = vadd.f32 0.0, %v8030
      %v8032 = vpop.f32.mrb[0].mxu0
      %8033 = vmatprep.mubr.bf16.mxu0 0
      %8034 = vmatmul.mubr.bf16.gmra.mrb[0].mxu0 %v7760
      %v8035 = vpop.f32.mrb[0].mxu0
      %v8036 = vadd.f32 0.0, %v8035
      %v8037 = vpop.f32.mrb[0].mxu0
      %v8038 = vpop.f32.mrb[0].mxu0
      %v8039 = vadd.f32 0.0, %v8038
      %v8040 = vpop.f32.mrb[0].mxu0
      %8041 = vmatprep.mubr.bf16.mxu0 0
      %8042 = vmatmul.mubr.bf16.gmra.mrb[0].mxu0 %v7763
      %v8043 = vpop.f32.mrb[0].mxu0
      %v8044 = vadd.f32 0.0, %v8043
      %v8045 = vpop.f32.mrb[0].mxu0
      %v8046 = vpop.f32.mrb[0].mxu0
      %v8047 = vadd.f32 0.0, %v8046
      %v8048 = vpop.f32.mrb[0].mxu0
      %8049 = vmatprep.mubr.bf16.mxu0 0
      %8050 = vmatmul.mubr.bf16.gmra.mrb[0].mxu0 %v7766
      %v8051 = vpop.f32.mrb[0].mxu0
      %v8052 = vadd.f32 0.0, %v8051
      %v8053 = vpop.f32.mrb[0].mxu0
      %v8054 = vpop.f32.mrb[0].mxu0
      %v8055 = vadd.f32 0.0, %v8054
      %v8056 = vpop.f32.mrb[0].mxu0
      %8057 = vmatprep.mubr.bf16.mxu0 0
      %8058 = vmatmul.mubr.bf16.gmra.mrb[0].mxu0 %v7769
      %v8059 = vpop.f32.mrb[0].mxu0
      %v8060 = vadd.f32 0.0, %v8059
      %v8061 = vpop.f32.mrb[0].mxu0
      %v8062 = vpop.f32.mrb[0].mxu0
      %v8063 = vadd.f32 0.0, %v8062
      %v8064 = vpop.f32.mrb[0].mxu0
      %8065 = vmatprep.mubr.bf16.mxu0 0
      %8066 = vmatmul.mubr.bf16.gmra.mrb[0].mxu0 %v7772
      %v8067 = vpop.f32.mrb[0].mxu0
      %v8068 = vadd.f32 0.0, %v8067
      %v8069 = vpop.f32.mrb[0].mxu0
      %v8070 = vpop.f32.mrb[0].mxu0
      %v8071 = vadd.f32 0.0, %v8070
      %v8072 = vpop.f32.mrb[0].mxu0
      %8073 = vmatprep.mubr.bf16.mxu0 0
      %8074 = vmatmul.mubr.bf16.gmra.mrb[0].mxu0 %v7775
      %v8075 = vpop.f32.mrb[0].mxu0
      %v8076 = vadd.f32 0.0, %v8075
      %v8077 = vpop.f32.mrb[0].mxu0
      %v8078 = vpop.f32.mrb[0].mxu0
      %v8079 = vadd.f32 0.0, %v8078
      %v8080 = vpop.f32.mrb[0].mxu0
      %8081 = vmatprep.mubr.bf16.mxu0 0
      %8082 = vmatmul.mubr.bf16.gmra.mrb[0].mxu0 %v7778
      %v8083 = vpop.f32.mrb[0].mxu0
      %v8084 = vadd.f32 0.0, %v8083
      %v8085 = vpop.f32.mrb[0].mxu0
      %v8086 = vpop.f32.mrb[0].mxu0
      %v8087 = vadd.f32 0.0, %v8086
      %v8088 = vpop.f32.mrb[0].mxu0
      %8089 = vmatprep.mubr.bf16.mxu0 0
      %8090 = vmatmul.mubr.bf16.gmra.mrb[0].mxu0 %v7781
      %v8091 = vpop.f32.mrb[0].mxu0
      %v8092 = vadd.f32 0.0, %v8091
      %v8093 = vpop.f32.mrb[0].mxu0
      %v8094 = vpop.f32.mrb[0].mxu0
      %v8095 = vadd.f32 0.0, %v8094
      %v8096 = vpop.f32.mrb[0].mxu0
      %8097 = vmatprep.mubr.bf16.mxu0 0
      %8098 = vmatmul.mubr.bf16.gmra.mrb[0].mxu0 %v7784
      %v8099 = vpop.f32.mrb[0].mxu0
      %v8100 = vadd.f32 0.0, %v8099
      %v8101 = vpop.f32.mrb[0].mxu0
      %v8102 = vpop.f32.mrb[0].mxu0
      %v8103 = vadd.f32 0.0, %v8102
      %v8104 = vpop.f32.mrb[0].mxu0
      %8105 = vmatprep.mubr.bf16.mxu0 0
      %8106 = vmatmul.mubr.bf16.gmra.mrb[0].mxu0 %v7787
      %v8107 = vpop.f32.mrb[0].mxu0
      %v8108 = vadd.f32 0.0, %v8107
      %v8109 = vpop.f32.mrb[0].mxu0
      %v8110 = vpop.f32.mrb[0].mxu0
      %v8111 = vadd.f32 0.0, %v8110
      %v8112 = vpop.f32.mrb[0].mxu0
      %8113 = vmatprep.mubr.bf16.mxu0 0
      %8114 = vmatmul.mubr.bf16.gmra.mrb[0].mxu0 %v7790
      %v8115 = vpop.f32.mrb[0].mxu0
      %v8116 = vadd.f32 0.0, %v8115
      %v8117 = vpop.f32.mrb[0].mxu0
      %v8118 = vpop.f32.mrb[0].mxu0
      %v8119 = vadd.f32 0.0, %v8118
      %v8120 = vpop.f32.mrb[0].mxu0
      %8121 = vmatprep.mubr.bf16.mxu0 0
      %8122 = vmatmul.mubr.bf16.gmra.mrb[0].mxu0 %v7793
      %v8123 = vpop.f32.mrb[0].mxu0
      %v8124 = vadd.f32 0.0, %v8123
      %v8125 = vpop.f32.mrb[0].mxu0
      %v8126 = vpop.f32.mrb[0].mxu0
      %v8127 = vadd.f32 0.0, %v8126
      %v8128 = vpop.f32.mrb[0].mxu0
      %8129 = vmatprep.mubr.bf16.mxu0 0
      %8130 = vmatmul.mubr.bf16.gmra.mrb[0].mxu0 %v7796
      %v8131 = vpop.f32.mrb[0].mxu0
      %v8132 = vadd.f32 0.0, %v8131
      %v8133 = vpop.f32.mrb[0].mxu0
      %v8134 = vpop.f32.mrb[0].mxu0
      %v8135 = vadd.f32 0.0, %v8134
      %v8136 = vpop.f32.mrb[0].mxu0
      %8137 = vmatprep.mubr.bf16.mxu0 0
      %8138 = vmatmul.mubr.bf16.gmra.mrb[0].mxu0 %v7799
      %v8139 = vpop.f32.mrb[0].mxu0
      %v8140 = vadd.f32 0.0, %v8139
      %v8141 = vpop.f32.mrb[0].mxu0
      %v8142 = vpop.f32.mrb[0].mxu0
      %v8143 = vadd.f32 0.0, %v8142
      %v8144 = vpop.f32.mrb[0].mxu0
      %8145 = vmatprep.mubr.bf16.mxu0 0
      %8146 = vmatmul.mubr.bf16.gmra.mrb[0].mxu0 %v7802
      %v8147 = vpop.f32.mrb[0].mxu0
      %v8148 = vadd.f32 0.0, %v8147
      %v8149 = vpop.f32.mrb[0].mxu0
      %v8150 = vpop.f32.mrb[0].mxu0
      %v8151 = vadd.f32 0.0, %v8150
      %v8152 = vpop.f32.mrb[0].mxu0
      %8153 = vmatprep.mubr.bf16.mxu0 0
      %8154 = vmatmul.mubr.bf16.gmra.mrb[0].mxu0 %v7805
      %v8155 = vpop.f32.mrb[0].mxu0
      %v8156 = vadd.f32 0.0, %v8155
      %v8157 = vpop.f32.mrb[0].mxu0
      %v8158 = vpop.f32.mrb[0].mxu0
      %v8159 = vadd.f32 0.0, %v8158
      %v8160 = vpop.f32.mrb[0].mxu0
      %8161 = vmatprep.mubr.bf16.mxu0 0
      %8162 = vmatmul.mubr.bf16.gmra.mrb[0].mxu0 %v7808
      %v8163 = vpop.f32.mrb[0].mxu0
      %v8164 = vadd.f32 0.0, %v8163
      %v8165 = vpop.f32.mrb[0].mxu0
      %v8166 = vpop.f32.mrb[0].mxu0
      %v8167 = vadd.f32 0.0, %v8166
      %v8168 = vpop.f32.mrb[0].mxu0
      %8169 = vmatprep.mubr.bf16.mxu0 0
      %8170 = vmatmul.mubr.bf16.gmra.mrb[0].mxu0 %v7811
      %v8171 = vpop.f32.mrb[0].mxu0
      %v8172 = vadd.f32 0.0, %v8171
      %v8173 = vpop.f32.mrb[0].mxu0
      %v8174 = vpop.f32.mrb[0].mxu0
      %v8175 = vadd.f32 0.0, %v8174
      %v8176 = vpop.f32.mrb[0].mxu0
      %8177 = vmatprep.mubr.bf16.mxu0 0
      %8178 = vmatmul.mubr.bf16.gmra.mrb[0].mxu0 %v7814
      %v8179 = vpop.f32.mrb[0].mxu0
      %v8180 = vadd.f32 0.0, %v8179
      %v8181 = vpop.f32.mrb[0].mxu0
      %v8182 = vpop.f32.mrb[0].mxu0
      %v8183 = vadd.f32 0.0, %v8182
      %v8184 = vpop.f32.mrb[0].mxu0
      %8185 = vmatprep.mubr.bf16.mxu0 0
      %8186 = vmatmul.mubr.bf16.gmra.mrb[0].mxu0 %v7817
      %v8187 = vpop.f32.mrb[0].mxu0
      %v8188 = vadd.f32 0.0, %v8187
      %v8189 = vpop.f32.mrb[0].mxu0
      %v8190 = vpop.f32.mrb[0].mxu0
      %v8191 = vadd.f32 0.0, %v8190
      %v8192 = vpop.f32.mrb[0].mxu0
      %8193 = vmatprep.mubr.bf16.mxu0 0
      %8194 = vmatmul.mubr.bf16.gmra.mrb[0].mxu0 %v7820
      %v8195 = vpop.f32.mrb[0].mxu0
      %v8196 = vadd.f32 0.0, %v8195
      %v8197 = vpop.f32.mrb[0].mxu0
      %v8198 = vpop.f32.mrb[0].mxu0
      %v8199 = vadd.f32 0.0, %v8198
      %v8200 = vpop.f32.mrb[0].mxu0
      %8201 = vmatprep.mubr.bf16.mxu0 0
      %8202 = vmatmul.mubr.bf16.gmra.mrb[0].mxu0 %v7823
      %v8203 = vpop.f32.mrb[0].mxu0
      %v8204 = vadd.f32 0.0, %v8203
      %v8205 = vpop.f32.mrb[0].mxu0
      %v8206 = vpop.f32.mrb[0].mxu0
      %v8207 = vadd.f32 0.0, %v8206
      %v8208 = vpop.f32.mrb[0].mxu0
      %8209 = vmatprep.mubr.bf16.mxu0 0
      %8210 = vmatmul.mubr.bf16.gmra.mrb[0].mxu0 %v7826
      %v8211 = vpop.f32.mrb[0].mxu0
      %v8212 = vadd.f32 0.0, %v8211
      %v8213 = vpop.f32.mrb[0].mxu0
      %v8214 = vpop.f32.mrb[0].mxu0
      %v8215 = vadd.f32 0.0, %v8214
      %v8216 = vpop.f32.mrb[0].mxu0
      %8217 = vmatprep.mubr.bf16.mxu0 0
      %8218 = vmatmul.mubr.bf16.gmra.mrb[0].mxu0 %v7829
      %v8219 = vpop.f32.mrb[0].mxu0
      %v8220 = vadd.f32 0.0, %v8219
      %v8221 = vpop.f32.mrb[0].mxu0
      %v8222 = vpop.f32.mrb[0].mxu0
      %v8223 = vadd.f32 0.0, %v8222
      %v8224 = vpop.f32.mrb[0].mxu0
      %8225 = vmatprep.mubr.bf16.mxu0 0
      %8226 = vmatmul.mubr.bf16.gmra.mrb[0].mxu0 %v7832
      %v8227 = vpop.f32.mrb[0].mxu0
      %v8228 = vadd.f32 0.0, %v8227
      %v8229 = vpop.f32.mrb[0].mxu0
      %v8230 = vpop.f32.mrb[0].mxu0
      %v8231 = vadd.f32 0.0, %v8230
      %v8232 = vpop.f32.mrb[0].mxu0
      %8233 = vmatprep.mubr.bf16.mxu0 0
      %8234 = vmatmul.mubr.bf16.gmra.mrb[0].mxu0 %v7835
      %v8235 = vpop.f32.mrb[0].mxu0
      %v8236 = vadd.f32 0.0, %v8235
      %v8237 = vpop.f32.mrb[0].mxu0
      %v8238 = vpop.f32.mrb[0].mxu0
      %v8239 = vadd.f32 0.0, %v8238
      %v8240 = vpop.f32.mrb[0].mxu0
      %8241 = vmatprep.mubr.bf16.mxu0 0
      %8242 = vmatmul.mubr.bf16.gmra.mrb[0].mxu0 %v7838
      %v8243 = vpop.f32.mrb[0].mxu0
      %v8244 = vadd.f32 0.0, %v8243
      %v8245 = vpop.f32.mrb[0].mxu0
      %v8246 = vpop.f32.mrb[0].mxu0
      %v8247 = vadd.f32 0.0, %v8246
      %v8248 = vpop.f32.mrb[0].mxu0
      %8249 = vmatprep.mubr.bf16.mxu0 0
      %8250 = vmatmul.mubr.bf16.gmra.mrb[0].mxu0 %v7841
      %v8251 = vpop.f32.mrb[0].mxu0
      %v8252 = vadd.f32 0.0, %v8251
      %v8253 = vpop.f32.mrb[0].mxu0
      %v8254 = vpop.f32.mrb[0].mxu0
      %v8255 = vadd.f32 0.0, %v8254
      %v8256 = vpop.f32.mrb[0].mxu0
      %8257 = vmatprep.mubr.bf16.mxu0 0
      %8258 = vmatmul.mubr.bf16.gmra.mrb[0].mxu0 %v7844
      %v8259 = vpop.f32.mrb[0].mxu0
      %v8260 = vadd.f32 0.0, %v8259
      %v8261 = vpop.f32.mrb[0].mxu0
      %v8262 = vpop.f32.mrb[0].mxu0
      %v8263 = vadd.f32 0.0, %v8262
      %v8264 = vpop.f32.mrb[0].mxu0
      %8265 = vmatprep.mubr.bf16.mxu0 0
      %8266 = vmatmul.mubr.bf16.gmra.mrb[0].mxu0 %v7847
      %v8267 = vpop.f32.mrb[0].mxu0
      %v8268 = vadd.f32 0.0, %v8267
      %v8269 = vpop.f32.mrb[0].mxu0
      %v8270 = vpop.f32.mrb[0].mxu0
      %v8271 = vadd.f32 0.0, %v8270
      %v8272 = vpop.f32.mrb[0].mxu0
      %8273 = vmatprep.mubr.bf16.mxu0 0
      %8274 = vmatmul.mubr.bf16.gmra.mrb[0].mxu0 %v7850
      %v8275 = vpop.f32.mrb[0].mxu0
      %v8276 = vadd.f32 0.0, %v8275
      %v8277 = vpop.f32.mrb[0].mxu0
      %v8278 = vpop.f32.mrb[0].mxu0
      %v8279 = vadd.f32 0.0, %v8278
      %v8280 = vpop.f32.mrb[0].mxu0
      %8281 = vmatprep.mubr.bf16.mxu0 0
      %8282 = vmatmul.mubr.bf16.gmra.mrb[0].mxu0 %v7853
      %v8283 = vpop.f32.mrb[0].mxu0
      %v8284 = vadd.f32 0.0, %v8283
      %v8285 = vpop.f32.mrb[0].mxu0
      %v8286 = vpop.f32.mrb[0].mxu0
      %v8287 = vadd.f32 0.0, %v8286
      %v8288 = vpop.f32.mrb[0].mxu0
      %8289 = vmatprep.mubr.bf16.mxu0 0
      %8290 = vmatmul.mubr.bf16.gmra.mrb[0].mxu0 %v7856
      %v8291 = vpop.f32.mrb[0].mxu0
      %v8292 = vadd.f32 0.0, %v8291
      %v8293 = vpop.f32.mrb[0].mxu0
      %v8294 = vpop.f32.mrb[0].mxu0
      %v8295 = vadd.f32 0.0, %v8294
      %v8296 = vpop.f32.mrb[0].mxu0
      %8297 = vmatprep.mubr.bf16.mxu0 0
      %8298 = vmatmul.mubr.bf16.gmra.mrb[0].mxu0 %v7859
      %v8299 = vpop.f32.mrb[0].mxu0
      %v8300 = vadd.f32 0.0, %v8299
      %v8301 = vpop.f32.mrb[0].mxu0
      %v8302 = vpop.f32.mrb[0].mxu0
      %v8303 = vadd.f32 0.0, %v8302
      %v8304 = vpop.f32.mrb[0].mxu0
      %8305 = vmatprep.mubr.bf16.mxu0 0
      %8306 = vmatmul.mubr.bf16.gmra.mrb[0].mxu0 %v7862
      %v8307 = vpop.f32.mrb[0].mxu0
      %v8308 = vadd.f32 0.0, %v8307
      %v8309 = vpop.f32.mrb[0].mxu0
      %v8310 = vpop.f32.mrb[0].mxu0
      %v8311 = vadd.f32 0.0, %v8310
      %v8312 = vpop.f32.mrb[0].mxu0
      %8313 = vmatprep.mubr.bf16.mxu0 0
      %8314 = vmatmul.mubr.bf16.gmra.mrb[0].mxu0 %v7865
      %v8315 = vpop.f32.mrb[0].mxu0
      %v8316 = vadd.f32 0.0, %v8315
      %v8317 = vpop.f32.mrb[0].mxu0
      %v8318 = vpop.f32.mrb[0].mxu0
      %v8319 = vadd.f32 0.0, %v8318
      %v8320 = vpop.f32.mrb[0].mxu0
      %8321 = vmatprep.mubr.bf16.mxu0 0
      %8322 = vmatmul.mubr.bf16.gmra.mrb[0].mxu0 %v7868
      %v8323 = vpop.f32.mrb[0].mxu0
      %v8324 = vadd.f32 0.0, %v8323
      %v8325 = vpop.f32.mrb[0].mxu0
      %v8326 = vpop.f32.mrb[0].mxu0
      %v8327 = vadd.f32 0.0, %v8326
      %v8328 = vpop.f32.mrb[0].mxu0
      %8329 = vmatprep.mubr.bf16.mxu0 0
      %8330 = vmatmul.mubr.bf16.gmra.mrb[0].mxu0 %v7871
      %v8331 = vpop.f32.mrb[0].mxu0
      %v8332 = vadd.f32 0.0, %v8331
      %v8333 = vpop.f32.mrb[0].mxu0
      %v8334 = vpop.f32.mrb[0].mxu0
      %v8335 = vadd.f32 0.0, %v8334
      %v8336 = vpop.f32.mrb[0].mxu0
      %8337 = vmatprep.mubr.bf16.mxu0 0
      %8338 = vmatmul.mubr.bf16.gmra.mrb[0].mxu0 %v7874
      %v8339 = vpop.f32.mrb[0].mxu0
      %v8340 = vadd.f32 0.0, %v8339
      %v8341 = vpop.f32.mrb[0].mxu0
      %v8342 = vpop.f32.mrb[0].mxu0
      %v8343 = vadd.f32 0.0, %v8342
      %v8344 = vpop.f32.mrb[0].mxu0
      %8345 = vmatprep.mubr.bf16.mxu0 0
      %8346 = vmatmul.mubr.bf16.gmra.mrb[0].mxu0 %v7877
      %v8347 = vpop.f32.mrb[0].mxu0
      %v8348 = vadd.f32 0.0, %v8347
      %v8349 = vpop.f32.mrb[0].mxu0
      %v8350 = vpop.f32.mrb[0].mxu0
      %v8351 = vadd.f32 0.0, %v8350
      %v8352 = vpop.f32.mrb[0].mxu0
      %8353 = vmatprep.mubr.bf16.mxu0 0
      %8354 = vmatmul.mubr.bf16.gmra.mrb[0].mxu0 %v7880
      %v8355 = vpop.f32.mrb[0].mxu0
      %v8356 = vadd.f32 0.0, %v8355
      %v8357 = vpop.f32.mrb[0].mxu0
      %v8358 = vpop.f32.mrb[0].mxu0
      %v8359 = vadd.f32 0.0, %v8358
      %v8360 = vpop.f32.mrb[0].mxu0
      %8361 = vmatprep.mubr.bf16.mxu0 0
      %8362 = vmatmul.mubr.bf16.gmra.mrb[0].mxu0 %v7883
      %v8363 = vpop.f32.mrb[0].mxu0
      %v8364 = vadd.f32 0.0, %v8363
      %v8365 = vpop.f32.mrb[0].mxu0
      %v8366 = vpop.f32.mrb[0].mxu0
      %v8367 = vadd.f32 0.0, %v8366
      %v8368 = vpop.f32.mrb[0].mxu0
      %8369 = vmatprep.mubr.bf16.mxu0 0
      %8370 = vmatmul.mubr.bf16.gmra.mrb[0].mxu0 %v7886
      %v8371 = vpop.f32.mrb[0].mxu0
      %v8372 = vadd.f32 0.0, %v8371
      %v8373 = vpop.f32.mrb[0].mxu0
      %v8374 = vpop.f32.mrb[0].mxu0
      %v8375 = vadd.f32 0.0, %v8374
      %v8376 = vpop.f32.mrb[0].mxu0
      %8377 = vmatprep.mubr.bf16.mxu0 0
      %8378 = vmatmul.mubr.bf16.gmra.mrb[0].mxu0 %v7889
      %v8379 = vpop.f32.mrb[0].mxu0
      %v8380 = vadd.f32 0.0, %v8379
      %v8381 = vpop.f32.mrb[0].mxu0
      %v8382 = vpop.f32.mrb[0].mxu0
      %v8383 = vadd.f32 0.0, %v8382
      %v8384 = vpop.f32.mrb[0].mxu0
      %8385 = vmatprep.mubr.bf16.mxu0 0
      %8386 = vmatmul.mubr.bf16.gmra.mrb[0].mxu0 %v7892
      %v8387 = vpop.f32.mrb[0].mxu0
      %v8388 = vadd.f32 0.0, %v8387
      %v8389 = vpop.f32.mrb[0].mxu0
      %v8390 = vpop.f32.mrb[0].mxu0
      %v8391 = vadd.f32 0.0, %v8390
      %v8392 = vpop.f32.mrb[0].mxu0
      %8393 = vmatprep.mubr.bf16.mxu0 0
      %8394 = vmatmul.mubr.bf16.gmra.mrb[0].mxu0 %v7895
      %v8395 = vpop.f32.mrb[0].mxu0
      %v8396 = vadd.f32 0.0, %v8395
      %v8397 = vpop.f32.mrb[0].mxu0
      %v8398 = vpop.f32.mrb[0].mxu0
      %v8399 = vadd.f32 0.0, %v8398
      %v8400 = vpop.f32.mrb[0].mxu0
      %8401 = vmatprep.mubr.bf16.mxu0 0
      %8402 = vmatmul.mubr.bf16.gmra.mrb[0].mxu0 %v7898
      %v8403 = vpop.f32.mrb[0].mxu0
      %v8404 = vadd.f32 0.0, %v8403
      %v8405 = vpop.f32.mrb[0].mxu0
      %v8406 = vpop.f32.mrb[0].mxu0
      %v8407 = vadd.f32 0.0, %v8406
      %v8408 = vpop.f32.mrb[0].mxu0
      %8409 = vmatprep.mubr.bf16.mxu0 0
      %8410 = vmatmul.mubr.bf16.gmra.mrb[0].mxu0 %v7901
      %v8411 = vpop.f32.mrb[0].mxu0
      %v8412 = vadd.f32 0.0, %v8411
      %v8413 = vpop.f32.mrb[0].mxu0
      %v8414 = vpop.f32.mrb[0].mxu0
      %v8415 = vadd.f32 0.0, %v8414
      %v8416 = vpop.f32.mrb[0].mxu0
      %8417 = vmatprep.mubr.bf16.mxu0 0
      %8418 = vmatmul.mubr.bf16.gmra.mrb[0].mxu0 %v7904
      %v8419 = vpop.f32.mrb[0].mxu0
      %v8420 = vadd.f32 0.0, %v8419
      %v8421 = vpop.f32.mrb[0].mxu0
      %v8422 = vpop.f32.mrb[0].mxu0
      %v8423 = vadd.f32 0.0, %v8422
      %v8424 = vpop.f32.mrb[0].mxu0
      %8425 = vmatprep.mubr.bf16.mxu0 0
      %8426 = vmatmul.mubr.bf16.gmra.mrb[0].mxu0 %v7907
      %v8427 = vpop.f32.mrb[0].mxu0
      %v8428 = vadd.f32 0.0, %v8427
      %v8429 = vpop.f32.mrb[0].mxu0
      %v8430 = vpop.f32.mrb[0].mxu0
      %v8431 = vadd.f32 0.0, %v8430
      %v8432 = vpop.f32.mrb[0].mxu0
      %8433 = vmatprep.mubr.bf16.mxu0 0
      %8434 = vmatmul.mubr.bf16.gmra.mrb[0].mxu0 %v7910
      %v8435 = vpop.f32.mrb[0].mxu0
      %v8436 = vadd.f32 0.0, %v8435
      %v8437 = vpop.f32.mrb[0].mxu0
      %v8438 = vpop.f32.mrb[0].mxu0
      %v8439 = vadd.f32 0.0, %v8438
      %v8440 = vpop.f32.mrb[0].mxu0
      %8441 = vmatprep.mubr.bf16.mxu0 0
      %8442 = vmatmul.mubr.bf16.gmra.mrb[0].mxu0 %v7913
      %v8443 = vpop.f32.mrb[0].mxu0
      %v8444 = vadd.f32 0.0, %v8443
      %v8445 = vpop.f32.mrb[0].mxu0
      %v8446 = vpop.f32.mrb[0].mxu0
      %v8447 = vadd.f32 0.0, %v8446
      %v8448 = vpop.f32.mrb[0].mxu0
      %8449 = vmatprep.mubr.bf16.mxu0 0
      %8450 = vmatmul.mubr.bf16.gmra.mrb[0].mxu0 %v7916
      %v8451 = vpop.f32.mrb[0].mxu0
      %v8452 = vadd.f32 0.0, %v8451
      %v8453 = vpop.f32.mrb[0].mxu0
      %v8454 = vpop.f32.mrb[0].mxu0
      %v8455 = vadd.f32 0.0, %v8454
      %v8456 = vpop.f32.mrb[0].mxu0
      %8457 = vmatprep.mubr.bf16.mxu0 0
      %8458 = vmatmul.mubr.bf16.gmra.mrb[0].mxu0 %v7919
      %v8459 = vpop.f32.mrb[0].mxu0
      %v8460 = vadd.f32 0.0, %v8459
      %v8461 = vpop.f32.mrb[0].mxu0
      %v8462 = vpop.f32.mrb[0].mxu0
      %v8463 = vadd.f32 0.0, %v8462
      %v8464 = vpop.f32.mrb[0].mxu0
      %8465 = vmatprep.mubr.bf16.mxu0 0
      %8466 = vmatmul.mubr.bf16.gmra.mrb[0].mxu0 %v7922
      %v8467 = vpop.f32.mrb[0].mxu0
      %v8468 = vadd.f32 0.0, %v8467
      %v8469 = vpop.f32.mrb[0].mxu0
      %v8470 = vpop.f32.mrb[0].mxu0
      %v8471 = vadd.f32 0.0, %v8470
      %v8472 = vpop.f32.mrb[0].mxu0
      %8473 = vmatprep.mubr.bf16.mxu0 0
      %8474 = vmatmul.mubr.bf16.gmra.mrb[0].mxu0 %v7925
      %v8475 = vpop.f32.mrb[0].mxu0
      %v8476 = vadd.f32 0.0, %v8475
      %v8477 = vpop.f32.mrb[0].mxu0
      %v8478 = vpop.f32.mrb[0].mxu0
      %v8479 = vadd.f32 0.0, %v8478
      %v8480 = vpop.f32.mrb[0].mxu0
      %8481 = vmatprep.mubr.bf16.mxu0 0
      %8482 = vmatmul.mubr.bf16.gmra.mrb[0].mxu0 %v7928
      %v8483 = vpop.f32.mrb[0].mxu0
      %v8484 = vadd.f32 0.0, %v8483
      %v8485 = vpop.f32.mrb[0].mxu0
      %v8486 = vpop.f32.mrb[0].mxu0
      %v8487 = vadd.f32 0.0, %v8486
      %v8488 = vpop.f32.mrb[0].mxu0
      %8489 = vmatprep.mubr.bf16.mxu0 0
      %8490 = vmatmul.mubr.bf16.gmra.mrb[0].mxu0 %v7931
      %v8491 = vpop.f32.mrb[0].mxu0
      %v8492 = vadd.f32 0.0, %v8491
      %v8493 = vpop.f32.mrb[0].mxu0
      %v8494 = vpop.f32.mrb[0].mxu0
      %v8495 = vadd.f32 0.0, %v8494
      %v8496 = vpop.f32.mrb[0].mxu0
      %8497 = vmatprep.mubr.bf16.mxu0 0
      %8498 = vmatmul.mubr.bf16.gmra.mrb[0].mxu0 %v7934
      %v8499 = vpop.f32.mrb[0].mxu0
      %v8500 = vadd.f32 0.0, %v8499
      %v8501 = vpop.f32.mrb[0].mxu0
      %v8502 = vpop.f32.mrb[0].mxu0
      %v8503 = vadd.f32 0.0, %v8502
      %v8504 = vpop.f32.mrb[0].mxu0
      %8505 = vmatprep.mubr.bf16.mxu0 0
      %8506 = vmatmul.mubr.bf16.gmra.mrb[0].mxu0 %v7937
      %v8507 = vpop.f32.mrb[0].mxu0
      %v8508 = vadd.f32 0.0, %v8507
      %v8509 = vpop.f32.mrb[0].mxu0
      %v8510 = vpop.f32.mrb[0].mxu0
      %v8511 = vadd.f32 0.0, %v8510
      %v8512 = vpop.f32.mrb[0].mxu0
      %8513 = vmatprep.mubr.bf16.mxu0 0
      %8514 = vmatmul.mubr.bf16.gmra.mrb[0].mxu0 %v7940
      %v8515 = vpop.f32.mrb[0].mxu0
      %v8516 = vadd.f32 0.0, %v8515
      %v8517 = vpop.f32.mrb[0].mxu0
      %v8518 = vpop.f32.mrb[0].mxu0
      %v8519 = vadd.f32 0.0, %v8518
      %v8520 = vpop.f32.mrb[0].mxu0
      %8521 = vdwg.mxu0
      %v8522 = vadd.f32 %v7458, %v7980
      %v8523 = vadd.f32 %v7459, %v7983
      %v8524 = vadd.f32 %v7460, %v7988
      %v8525 = vadd.f32 %v7461, %v7991
      %v8526 = vadd.f32 %v7462, %v7996
      %v8527 = vadd.f32 %v7463, %v7999
      %v8528 = vadd.f32 %v7464, %v8004
      %v8529 = vadd.f32 %v7465, %v8007
      %v8530 = vadd.f32 %v7466, %v8012
      %v8531 = vadd.f32 %v7467, %v8015
      %v8532 = vadd.f32 %v7468, %v8020
      %v8533 = vadd.f32 %v7469, %v8023
      %v8534 = vadd.f32 %v7470, %v8028
      %v8535 = vadd.f32 %v7471, %v8031
      %v8536 = vadd.f32 %v7472, %v8036
      %v8537 = vadd.f32 %v7473, %v8039
      %v8538 = vadd.f32 %v7474, %v8044
      %v8539 = vadd.f32 %v7475, %v8047
      %v8540 = vadd.f32 %v7476, %v8052
      %v8541 = vadd.f32 %v7477, %v8055
      %v8542 = vadd.f32 %v7478, %v8060
      %v8543 = vadd.f32 %v7479, %v8063
      %v8544 = vadd.f32 %v7480, %v8068
      %v8545 = vadd.f32 %v7481, %v8071
      %v8546 = vadd.f32 %v7482, %v8076
      %v8547 = vadd.f32 %v7483, %v8079
      %v8548 = vadd.f32 %v7484, %v8084
      %v8549 = vadd.f32 %v7485, %v8087
      %v8550 = vadd.f32 %v7486, %v8092
      %v8551 = vadd.f32 %v7487, %v8095
      %v8552 = vadd.f32 %v7488, %v8100
      %v8553 = vadd.f32 %v7489, %v8103
      %v8554 = vadd.f32 %v7490, %v8108
      %v8555 = vadd.f32 %v7491, %v8111
      %v8556 = vadd.f32 %v7492, %v8116
      %v8557 = vadd.f32 %v7493, %v8119
      %v8558 = vadd.f32 %v7494, %v8124
      %v8559 = vadd.f32 %v7495, %v8127
      %v8560 = vadd.f32 %v7496, %v8132
      %v8561 = vadd.f32 %v7497, %v8135
      %v8562 = vadd.f32 %v7498, %v8140
      %v8563 = vadd.f32 %v7499, %v8143
      %v8564 = vadd.f32 %v7500, %v8148
      %v8565 = vadd.f32 %v7501, %v8151
      %v8566 = vadd.f32 %v7502, %v8156
      %v8567 = vadd.f32 %v7503, %v8159
      %v8568 = vadd.f32 %v7504, %v8164
      %v8569 = vadd.f32 %v7505, %v8167
      %v8570 = vadd.f32 %v7506, %v8172
      %v8571 = vadd.f32 %v7507, %v8175
      %v8572 = vadd.f32 %v7508, %v8180
      %v8573 = vadd.f32 %v7509, %v8183
      %v8574 = vadd.f32 %v7510, %v8188
      %v8575 = vadd.f32 %v7511, %v8191
      %v8576 = vadd.f32 %v7512, %v8196
      %v8577 = vadd.f32 %v7513, %v8199
      %v8578 = vadd.f32 %v7514, %v8204
      %v8579 = vadd.f32 %v7515, %v8207
      %v8580 = vadd.f32 %v7516, %v8212
      %v8581 = vadd.f32 %v7517, %v8215
      %v8582 = vadd.f32 %v7518, %v8220
      %v8583 = vadd.f32 %v7519, %v8223
      %v8584 = vadd.f32 %v7520, %v8228
      %v8585 = vadd.f32 %v7521, %v8231
      %v8586 = vadd.f32 %v7522, %v8236
      %v8587 = vadd.f32 %v7523, %v8239
      %v8588 = vadd.f32 %v7524, %v8244
      %v8589 = vadd.f32 %v7525, %v8247
      %v8590 = vadd.f32 %v7526, %v8252
      %v8591 = vadd.f32 %v7527, %v8255
      %v8592 = vadd.f32 %v7528, %v8260
      %v8593 = vadd.f32 %v7529, %v8263
      %v8594 = vadd.f32 %v7530, %v8268
      %v8595 = vadd.f32 %v7531, %v8271
      %v8596 = vadd.f32 %v7532, %v8276
      %v8597 = vadd.f32 %v7533, %v8279
      %v8598 = vadd.f32 %v7534, %v8284
      %v8599 = vadd.f32 %v7535, %v8287
      %v8600 = vadd.f32 %v7536, %v8292
      %v8601 = vadd.f32 %v7537, %v8295
      %v8602 = vadd.f32 %v7538, %v8300
      %v8603 = vadd.f32 %v7539, %v8303
      %v8604 = vadd.f32 %v7540, %v8308
      %v8605 = vadd.f32 %v7541, %v8311
      %v8606 = vadd.f32 %v7542, %v8316
      %v8607 = vadd.f32 %v7543, %v8319
      %v8608 = vadd.f32 %v7544, %v8324
      %v8609 = vadd.f32 %v7545, %v8327
      %v8610 = vadd.f32 %v7546, %v8332
      %v8611 = vadd.f32 %v7547, %v8335
      %v8612 = vadd.f32 %v7548, %v8340
      %v8613 = vadd.f32 %v7549, %v8343
      %v8614 = vadd.f32 %v7550, %v8348
      %v8615 = vadd.f32 %v7551, %v8351
      %v8616 = vadd.f32 %v7552, %v8356
      %v8617 = vadd.f32 %v7553, %v8359
      %v8618 = vadd.f32 %v7554, %v8364
      %v8619 = vadd.f32 %v7555, %v8367
      %v8620 = vadd.f32 %v7556, %v8372
      %v8621 = vadd.f32 %v7557, %v8375
      %v8622 = vadd.f32 %v7558, %v8380
      %v8623 = vadd.f32 %v7559, %v8383
      %v8624 = vadd.f32 %v7560, %v8388
      %v8625 = vadd.f32 %v7561, %v8391
      %v8626 = vadd.f32 %v7562, %v8396
      %v8627 = vadd.f32 %v7563, %v8399
      %v8628 = vadd.f32 %v7564, %v8404
      %v8629 = vadd.f32 %v7565, %v8407
      %v8630 = vadd.f32 %v7566, %v8412
      %v8631 = vadd.f32 %v7567, %v8415
      %v8632 = vadd.f32 %v7568, %v8420
      %v8633 = vadd.f32 %v7569, %v8423
      %v8634 = vadd.f32 %v7570, %v8428
      %v8635 = vadd.f32 %v7571, %v8431
      %v8636 = vadd.f32 %v7572, %v8436
      %v8637 = vadd.f32 %v7573, %v8439
      %v8638 = vadd.f32 %v7574, %v8444
      %v8639 = vadd.f32 %v7575, %v8447
      %v8640 = vadd.f32 %v7576, %v8452
      %v8641 = vadd.f32 %v7577, %v8455
      %v8642 = vadd.f32 %v7578, %v8460
      %v8643 = vadd.f32 %v7579, %v8463
      %v8644 = vadd.f32 %v7580, %v8468
      %v8645 = vadd.f32 %v7581, %v8471
      %v8646 = vadd.f32 %v7582, %v8476
      %v8647 = vadd.f32 %v7583, %v8479
      %v8648 = vadd.f32 %v7584, %v8484
      %v8649 = vadd.f32 %v7585, %v8487
      %v8650 = vadd.f32 %v7586, %v8492
      %v8651 = vadd.f32 %v7587, %v8495
      %v8652 = vadd.f32 %v7588, %v8500
      %v8653 = vadd.f32 %v7589, %v8503
      %v8654 = vadd.f32 %v7590, %v8508
      %v8655 = vadd.f32 %v7591, %v8511
      %v8656 = vadd.f32 %v7592, %v8516
      %v8657 = vadd.f32 %v7593, %v8519
      %v8658 = vld [vmem:[%s206 + $0x20] sm:$0xc]
      %v8659 = vld [vmem:[%s206 + $0x24] sm:$0xf]
      %v8660 = vld [vmem:[%s206 + $0x28] sm:$0xf]
      %v8661 = vld [vmem:[%s206 + $0x2c] sm:$0xf]
      %v8662 = vld [vmem:[%s206 + $0x30] sm:$0xf]
      %v8663 = vld [vmem:[%s206 + $0x34] sm:$0xf]
      %v8664 = vld [vmem:[%s206 + $0x38] sm:$0xf]
      %v8665 = vld [vmem:[%s206 + $0x3c] sm:$0xf]
      %v8666 = vld [vmem:[%s206 + $0x40] sm:$0xf]
      %v8667 = vld [vmem:[%s206 + $0x44] sm:$0xf]
      %v8668 = vld [vmem:[%s206 + $0x48] sm:$0xf]
      %v8669 = vld [vmem:[%s206 + $0x4c] sm:$0xf]
      %v8670 = vld [vmem:[%s206 + $0x50] sm:$0xf]
      %v8671 = vld [vmem:[%s206 + $0x54] sm:$0xf]
      %v8672 = vld [vmem:[%s206 + $0x58] sm:$0xf]
      %v8673 = vld [vmem:[%s206 + $0x5c] sm:$0xf]
      %v8674 = vld [vmem:[%s206 + $0x60] sm:$0xf]
      %v8675 = vld [vmem:[%s206 + $0x64] sm:$0xf]
      %v8676 = vld [vmem:[%s206 + $0x68] sm:$0xf]
      %v8677 = vld [vmem:[%s206 + $0x6c] sm:$0xf]
      %v8678 = vld [vmem:[%s206 + $0x70] sm:$0xf]
      %v8679 = vld [vmem:[%s206 + $0x74] sm:$0xf]
      %v8680 = vld [vmem:[%s206 + $0x78] sm:$0xf]
      %v8681 = vld [vmem:[%s206 + $0x7c] sm:$0xf]
      %v8682 = vld [vmem:[%s206 + $0x80] sm:$0xf]
      %v8683 = vld [vmem:[%s206 + $0x84] sm:$0xf]
      %v8684 = vld [vmem:[%s206 + $0x88] sm:$0xf]
      %v8685 = vld [vmem:[%s206 + $0x8c] sm:$0xf]
      %v8686 = vld [vmem:[%s206 + $0x90] sm:$0xf]
      %v8687 = vld [vmem:[%s206 + $0x94] sm:$0xf]
      %v8688 = vld [vmem:[%s206 + $0x98] sm:$0xf]
      %v8689 = vld [vmem:[%s206 + $0x9c] sm:$0xf]
      %v8690 = vld [vmem:[%s206 + $0xa0] sm:$0xf]
      %v8691 = vld [vmem:[%s206 + $0xa4] sm:$0xf]
      %v8692 = vld [vmem:[%s206 + $0xa8] sm:$0xf]
      %v8693 = vld [vmem:[%s206 + $0xac] sm:$0xf]
      %v8694 = vld [vmem:[%s206 + $0xb0] sm:$0xf]
      %v8695 = vld [vmem:[%s206 + $0xb4] sm:$0xf]
      %v8696 = vld [vmem:[%s206 + $0xb8] sm:$0xf]
      %v8697 = vld [vmem:[%s206 + $0xbc] sm:$0xf]
      %v8698 = vld [vmem:[%s206 + $0xc0] sm:$0xf]
      %v8699 = vld [vmem:[%s206 + $0xc4] sm:$0xf]
      %v8700 = vld [vmem:[%s206 + $0xc8] sm:$0xf]
      %v8701 = vld [vmem:[%s206 + $0xcc] sm:$0xf]
      %v8702 = vld [vmem:[%s206 + $0xd0] sm:$0xf]
      %v8703 = vld [vmem:[%s206 + $0xd4] sm:$0xf]
      %v8704 = vld [vmem:[%s206 + $0xd8] sm:$0xf]
      %v8705 = vld [vmem:[%s206 + $0xdc] sm:$0xf]
      %v8706 = vld [vmem:[%s206 + $0xe0] sm:$0xf]
      %v8707 = vld [vmem:[%s206 + $0xe4] sm:$0xf]
      %v8708 = vld [vmem:[%s206 + $0xe8] sm:$0xf]
      %v8709 = vld [vmem:[%s206 + $0xec] sm:$0xf]
      %v8710 = vld [vmem:[%s206 + $0xf0] sm:$0xf]
      %v8711 = vld [vmem:[%s206 + $0xf4] sm:$0xf]
      %v8712 = vld [vmem:[%s206 + $0xf8] sm:$0xf]
      %v8713 = vld [vmem:[%s206 + $0xfc] sm:$0xf]
      %v8714 = vld [vmem:[%s206 + $0x100] sm:$0xf]
      %v8715 = vld [vmem:[%s206 + $0x104] sm:$0xf]
      %v8716 = vld [vmem:[%s206 + $0x108] sm:$0xf]
      %v8717 = vld [vmem:[%s206 + $0x10c] sm:$0xf]
      %v8718 = vld [vmem:[%s206 + $0x110] sm:$0xf]
      %v8719 = vld [vmem:[%s206 + $0x114] sm:$0xf]
      %v8720 = vld [vmem:[%s206 + $0x118] sm:$0xf]
      %v8721 = vld [vmem:[%s206 + $0x11c] sm:$0xf]
      %v8722 = vld [vmem:[%s206 + $0x120] sm:$0xf]
      %v8723 = vld [vmem:[%s206 + $0x124] sm:$0xf]
      %v8724 = vld [vmem:[%s206 + $0x128] sm:$0xf]
      %v8725 = vld [vmem:[%s206 + $0x12c] sm:$0xf]
      %v8726 = vld [vmem:[%s206 + $0x130] sm:$0xf]
      %v8727 = vld [vmem:[%s206 + $0x134] sm:$0xf]
      %v8728 = vld [vmem:[%s206 + $0x138] sm:$0xf]
      %v8729 = vld [vmem:[%s206 + $0x13c] sm:$0xf]
      %v8730 = vld [vmem:[%s206 + $0x140] sm:$0xf]
      %v8731 = vld [vmem:[%s206 + $0x144] sm:$0xf]
      %v8732 = vld [vmem:[%s206 + $0x148] sm:$0xf]
      %v8733 = vld [vmem:[%s206 + $0x14c] sm:$0xf]
      %v8734 = vld [vmem:[%s206 + $0x150] sm:$0xf]
      %v8735 = vld [vmem:[%s206 + $0x154] sm:$0xf]
      %v8736 = vld [vmem:[%s206 + $0x158] sm:$0xf]
      %v8737 = vld [vmem:[%s206 + $0x15c] sm:$0xf]
      %v8738 = vld [vmem:[%s206 + $0x160] sm:$0xf]
      %v8739 = vld [vmem:[%s206 + $0x164] sm:$0xf]
      %v8740 = vld [vmem:[%s206 + $0x168] sm:$0xf]
      %v8741 = vld [vmem:[%s206 + $0x16c] sm:$0xf]
      %v8742 = vld [vmem:[%s206 + $0x170] sm:$0xf]
      %v8743 = vld [vmem:[%s206 + $0x174] sm:$0xf]
      %v8744 = vld [vmem:[%s206 + $0x178] sm:$0xf]
      %v8745 = vld [vmem:[%s206 + $0x17c] sm:$0xf]
      %v8746 = vld [vmem:[%s206 + $0x180] sm:$0xf]
      %v8747 = vld [vmem:[%s206 + $0x184] sm:$0xf]
      %v8748 = vld [vmem:[%s206 + $0x188] sm:$0xf]
      %v8749 = vld [vmem:[%s206 + $0x18c] sm:$0xf]
      %v8750 = vld [vmem:[%s206 + $0x190] sm:$0xf]
      %v8751 = vld [vmem:[%s206 + $0x194] sm:$0xf]
      %v8752 = vld [vmem:[%s206 + $0x198] sm:$0xf]
      %v8753 = vld [vmem:[%s206 + $0x19c] sm:$0xf]
      %v8754 = vld [vmem:[%s206 + $0x1a0] sm:$0xf]
      %v8755 = vld [vmem:[%s206 + $0x1a4] sm:$0xf]
      %v8756 = vld [vmem:[%s206 + $0x1a8] sm:$0xf]
      %v8757 = vld [vmem:[%s206 + $0x1ac] sm:$0xf]
      %v8758 = vld [vmem:[%s206 + $0x1b0] sm:$0xf]
      %v8759 = vld [vmem:[%s206 + $0x1b4] sm:$0xf]
      %v8760 = vld [vmem:[%s206 + $0x1b8] sm:$0xf]
      %v8761 = vld [vmem:[%s206 + $0x1bc] sm:$0xf]
      %v8762 = vld [vmem:[%s206 + $0x1c0] sm:$0xf]
      %v8763 = vld [vmem:[%s206 + $0x1c4] sm:$0xf]
      %v8764 = vld [vmem:[%s206 + $0x1c8] sm:$0xf]
      %v8765 = vld [vmem:[%s206 + $0x1cc] sm:$0xf]
      %v8766 = vld [vmem:[%s206 + $0x1d0] sm:$0xf]
      %v8767 = vld [vmem:[%s206 + $0x1d4] sm:$0xf]
      %v8768 = vld [vmem:[%s206 + $0x1d8] sm:$0xf]
      %v8769 = vld [vmem:[%s206 + $0x1dc] sm:$0xf]
      %v8770 = vld [vmem:[%s206 + $0x1e0] sm:$0xf]
      %v8771 = vld [vmem:[%s206 + $0x1e4] sm:$0xf]
      %v8772 = vld [vmem:[%s206 + $0x1e8] sm:$0xf]
      %v8773 = vld [vmem:[%s206 + $0x1ec] sm:$0xf]
      %v8774 = vld [vmem:[%s206 + $0x1f0] sm:$0xf]
      %v8775 = vld [vmem:[%s206 + $0x1f4] sm:$0xf]
      %v8776 = vld [vmem:[%s206 + $0x1f8] sm:$0xf]
      %v8777 = vld [vmem:[%s206 + $0x1fc] sm:$0xf]
      %v8778 = vld [vmem:[%s206 + $0x200] sm:$0xf]
      %v8779 = vld [vmem:[%s206 + $0x204] sm:$0xf]
      %v8780 = vld [vmem:[%s206 + $0x208] sm:$0xf]
      %v8781 = vld [vmem:[%s206 + $0x20c] sm:$0xf]
      %v8782 = vld [vmem:[%s206 + $0x210] sm:$0xf]
      %v8783 = vld [vmem:[%s206 + $0x214] sm:$0xf]
      %v8784 = vld [vmem:[%s206 + $0x218] sm:$0xf]
      %v8785 = vld [vmem:[%s206 + $0x21c] sm:$0xf]
      %v8786 = vld [vmem:[%s206 + $0x220] sm:$0xf]
      %v8787 = vld [vmem:[%s206 + $0x224] sm:$0xf]
      %v8788 = vld [vmem:[%s206 + $0x228] sm:$0xf]
      %v8789 = vld [vmem:[%s206 + $0x22c] sm:$0xf]
      %v8790 = vld [vmem:[%s206 + $0x230] sm:$0xf]
      %v8791 = vld [vmem:[%s206 + $0x234] sm:$0xf]
      %v8792 = vld [vmem:[%s206 + $0x238] sm:$0xf]
      %v8793 = vld [vmem:[%s206 + $0x23c] sm:$0xf]
      %v8794 = vld [vmem:[%s206 + $0x240] sm:$0x3]
      %s8795 = scalar_lea.vmem %s210, 24
      %v8796 = vld [vmem:[%s8795] sm:$0xf]
      %v8934 = vunpack.c.l.b16 %v8658
      %v8935 = vunpack.c.l.b16 %v8659
      %v8936 = vunpack.c.l.b16 %v8660
      %v8937 = vunpack.c.l.b16 %v8661
      %v8938 = vunpack.c.l.b16 %v8662
      %v8939 = vunpack.c.l.b16 %v8663
      %v8940 = vunpack.c.l.b16 %v8664
      %v8941 = vunpack.c.l.b16 %v8665
      %v8942 = vunpack.c.l.b16 %v8666
      %v8943 = vunpack.c.l.b16 %v8667
      %v8944 = vunpack.c.l.b16 %v8668
      %v8945 = vunpack.c.l.b16 %v8669
      %v8946 = vunpack.c.l.b16 %v8670
      %v8947 = vunpack.c.l.b16 %v8671
      %v8948 = vunpack.c.l.b16 %v8672
      %v8949 = vunpack.c.l.b16 %v8673
      %v8950 = vunpack.c.l.b16 %v8674
      %v8951 = vunpack.c.l.b16 %v8675
      %v8952 = vunpack.c.l.b16 %v8676
      %v8953 = vunpack.c.l.b16 %v8677
      %v8954 = vunpack.c.l.b16 %v8678
      %v8955 = vunpack.c.l.b16 %v8679
      %v8956 = vunpack.c.l.b16 %v8680
      %v8957 = vunpack.c.l.b16 %v8681
      %v8958 = vunpack.c.l.b16 %v8682
      %v8959 = vunpack.c.l.b16 %v8683
      %v8960 = vunpack.c.l.b16 %v8684
      %v8961 = vunpack.c.l.b16 %v8685
      %v8962 = vunpack.c.l.b16 %v8686
      %v8963 = vunpack.c.l.b16 %v8687
      %v8964 = vunpack.c.l.b16 %v8688
      %v8965 = vunpack.c.l.b16 %v8689
      %v8966 = vunpack.c.l.b16 %v8690
      %v8967 = vunpack.c.l.b16 %v8691
      %v8968 = vunpack.c.l.b16 %v8692
      %v8969 = vunpack.c.l.b16 %v8693
      %v8970 = vunpack.c.l.b16 %v8694
      %v8971 = vunpack.c.l.b16 %v8695
      %v8972 = vunpack.c.l.b16 %v8696
      %v8973 = vunpack.c.l.b16 %v8697
      %v8974 = vunpack.c.l.b16 %v8698
      %v8975 = vunpack.c.l.b16 %v8699
      %v8976 = vunpack.c.l.b16 %v8700
      %v8977 = vunpack.c.l.b16 %v8701
      %v8978 = vunpack.c.l.b16 %v8702
      %v8979 = vunpack.c.l.b16 %v8703
      %v8980 = vunpack.c.l.b16 %v8704
      %v8981 = vunpack.c.l.b16 %v8705
      %v8982 = vunpack.c.l.b16 %v8706
      %v8983 = vunpack.c.l.b16 %v8707
      %v8984 = vunpack.c.l.b16 %v8708
      %v8985 = vunpack.c.l.b16 %v8709
      %v8986 = vunpack.c.l.b16 %v8710
      %v8987 = vunpack.c.l.b16 %v8711
      %v8988 = vunpack.c.l.b16 %v8712
      %v8989 = vunpack.c.l.b16 %v8713
      %v8990 = vunpack.c.l.b16 %v8714
      %v8991 = vunpack.c.l.b16 %v8715
      %v8992 = vunpack.c.l.b16 %v8716
      %v8993 = vunpack.c.l.b16 %v8717
      %v8994 = vunpack.c.l.b16 %v8718
      %v8995 = vunpack.c.l.b16 %v8719
      %v8996 = vunpack.c.l.b16 %v8720
      %v8997 = vunpack.c.l.b16 %v8721
      %v8998 = vunpack.c.l.b16 %v8722
      %v8999 = vunpack.c.l.b16 %v8723
      %v9000 = vunpack.c.l.b16 %v8724
      %v9001 = vunpack.c.l.b16 %v8725
      %v9002 = vunpack.c.l.b16 %v8726
      %v9003 = vunpack.c.l.b16 %v8727
      %v9004 = vunpack.c.l.b16 %v8728
      %v9005 = vunpack.c.l.b16 %v8729
      %v9006 = vunpack.c.l.b16 %v8730
      %v9007 = vunpack.c.l.b16 %v8731
      %v9008 = vunpack.c.l.b16 %v8732
      %v9009 = vunpack.c.l.b16 %v8733
      %v9010 = vunpack.c.l.b16 %v8734
      %v9011 = vunpack.c.l.b16 %v8735
      %v9012 = vunpack.c.l.b16 %v8736
      %v9013 = vunpack.c.l.b16 %v8737
      %v9014 = vunpack.c.l.b16 %v8738
      %v9015 = vunpack.c.l.b16 %v8739
      %v9016 = vunpack.c.l.b16 %v8740
      %v9017 = vunpack.c.l.b16 %v8741
      %v9018 = vunpack.c.l.b16 %v8742
      %v9019 = vunpack.c.l.b16 %v8743
      %v9020 = vunpack.c.l.b16 %v8744
      %v9021 = vunpack.c.l.b16 %v8745
      %v9022 = vunpack.c.l.b16 %v8746
      %v9023 = vunpack.c.l.b16 %v8747
      %v9024 = vunpack.c.l.b16 %v8748
      %v9025 = vunpack.c.l.b16 %v8749
      %v9026 = vunpack.c.l.b16 %v8750
      %v9027 = vunpack.c.l.b16 %v8751
      %v9028 = vunpack.c.l.b16 %v8752
      %v9029 = vunpack.c.l.b16 %v8753
      %v9030 = vunpack.c.l.b16 %v8754
      %v9031 = vunpack.c.l.b16 %v8755
      %v9032 = vunpack.c.l.b16 %v8756
      %v9033 = vunpack.c.l.b16 %v8757
      %v9034 = vunpack.c.l.b16 %v8758
      %v9035 = vunpack.c.l.b16 %v8759
      %v9036 = vunpack.c.l.b16 %v8760
      %v9037 = vunpack.c.l.b16 %v8761
      %v9038 = vunpack.c.l.b16 %v8762
      %v9039 = vunpack.c.l.b16 %v8763
      %v9040 = vunpack.c.l.b16 %v8764
      %v9041 = vunpack.c.l.b16 %v8765
      %v9042 = vunpack.c.l.b16 %v8766
      %v9043 = vunpack.c.l.b16 %v8767
      %v9044 = vunpack.c.l.b16 %v8768
      %v9045 = vunpack.c.l.b16 %v8769
      %v9046 = vunpack.c.l.b16 %v8770
      %v9047 = vunpack.c.l.b16 %v8771
      %v9048 = vunpack.c.l.b16 %v8772
      %v9049 = vunpack.c.l.b16 %v8773
      %v9050 = vunpack.c.l.b16 %v8774
      %v9051 = vunpack.c.l.b16 %v8775
      %v9052 = vunpack.c.l.b16 %v8776
      %v9053 = vunpack.c.l.b16 %v8777
      %v9054 = vunpack.c.l.b16 %v8778
      %v9055 = vunpack.c.l.b16 %v8779
      %v9056 = vunpack.c.l.b16 %v8780
      %v9057 = vunpack.c.l.b16 %v8781
      %v9058 = vunpack.c.l.b16 %v8782
      %v9059 = vunpack.c.l.b16 %v8783
      %v9060 = vunpack.c.l.b16 %v8784
      %v9061 = vunpack.c.l.b16 %v8785
      %v9062 = vunpack.c.l.b16 %v8786
      %v9063 = vunpack.c.l.b16 %v8787
      %v9064 = vunpack.c.l.b16 %v8788
      %v9065 = vunpack.c.l.b16 %v8789
      %v9066 = vunpack.c.l.b16 %v8790
      %v9067 = vunpack.c.l.b16 %v8791
      %v9068 = vunpack.c.l.b16 %v8792
      %v9069 = vunpack.c.l.b16 %v8793
      %v9070 = vunpack.c.l.b16 %v8794
      %v9071 = vpack.c.b16 %v8935, %v8934
      %v9072 = vpack.c.b16 %v8937, %v8936
      %v9073 = vpack.c.b16 %v8939, %v8938
      %v9074 = vpack.c.b16 %v8941, %v8940
      %v9075 = vpack.c.b16 %v8943, %v8942
      %v9076 = vpack.c.b16 %v8945, %v8944
      %v9077 = vpack.c.b16 %v8947, %v8946
      %v9078 = vpack.c.b16 %v8949, %v8948
      %v9079 = vpack.c.b16 %v8951, %v8950
      %v9080 = vpack.c.b16 %v8953, %v8952
      %v9081 = vpack.c.b16 %v8955, %v8954
      %v9082 = vpack.c.b16 %v8957, %v8956
      %v9083 = vpack.c.b16 %v8959, %v8958
      %v9084 = vpack.c.b16 %v8961, %v8960
      %v9085 = vpack.c.b16 %v8963, %v8962
      %v9086 = vpack.c.b16 %v8965, %v8964
      %v9087 = vpack.c.b16 %v8967, %v8966
      %v9088 = vpack.c.b16 %v8969, %v8968
      %v9089 = vpack.c.b16 %v8971, %v8970
      %v9090 = vpack.c.b16 %v8973, %v8972
      %v9091 = vpack.c.b16 %v8975, %v8974
      %v9092 = vpack.c.b16 %v8977, %v8976
      %v9093 = vpack.c.b16 %v8979, %v8978
      %v9094 = vpack.c.b16 %v8981, %v8980
      %v9095 = vpack.c.b16 %v8983, %v8982
      %v9096 = vpack.c.b16 %v8985, %v8984
      %v9097 = vpack.c.b16 %v8987, %v8986
      %v9098 = vpack.c.b16 %v8989, %v8988
      %v9099 = vpack.c.b16 %v8991, %v8990
      %v9100 = vpack.c.b16 %v8993, %v8992
      %v9101 = vpack.c.b16 %v8995, %v8994
      %v9102 = vpack.c.b16 %v8997, %v8996
      %v9103 = vpack.c.b16 %v8999, %v8998
      %v9104 = vpack.c.b16 %v9001, %v9000
      %v9105 = vpack.c.b16 %v9003, %v9002
      %v9106 = vpack.c.b16 %v9005, %v9004
      %v9107 = vpack.c.b16 %v9007, %v9006
      %v9108 = vpack.c.b16 %v9009, %v9008
      %v9109 = vpack.c.b16 %v9011, %v9010
      %v9110 = vpack.c.b16 %v9013, %v9012
      %v9111 = vpack.c.b16 %v9015, %v9014
      %v9112 = vpack.c.b16 %v9017, %v9016
      %v9113 = vpack.c.b16 %v9019, %v9018
      %v9114 = vpack.c.b16 %v9021, %v9020
      %v9115 = vpack.c.b16 %v9023, %v9022
      %v9116 = vpack.c.b16 %v9025, %v9024
      %v9117 = vpack.c.b16 %v9027, %v9026
      %v9118 = vpack.c.b16 %v9029, %v9028
      %v9119 = vpack.c.b16 %v9031, %v9030
      %v9120 = vpack.c.b16 %v9033, %v9032
      %v9121 = vpack.c.b16 %v9035, %v9034
      %v9122 = vpack.c.b16 %v9037, %v9036
      %v9123 = vpack.c.b16 %v9039, %v9038
      %v9124 = vpack.c.b16 %v9041, %v9040
      %v9125 = vpack.c.b16 %v9043, %v9042
      %v9126 = vpack.c.b16 %v9045, %v9044
      %v9127 = vpack.c.b16 %v9047, %v9046
      %v9128 = vpack.c.b16 %v9049, %v9048
      %v9129 = vpack.c.b16 %v9051, %v9050
      %v9130 = vpack.c.b16 %v9053, %v9052
      %v9131 = vpack.c.b16 %v9055, %v9054
      %v9132 = vpack.c.b16 %v9057, %v9056
      %v9133 = vpack.c.b16 %v9059, %v9058
      %v9134 = vpack.c.b16 %v9061, %v9060
      %v9135 = vpack.c.b16 %v9063, %v9062
      %v9136 = vpack.c.b16 %v9065, %v9064
      %v9137 = vpack.c.b16 %v9067, %v9066
      %v9138 = vpack.c.b16 %v9069, %v9068
      %v9139 = vpack.c.b16 %v9070, %v9070
      %v9140 = vrot.slane %v9071, 2
      %v9141 = vrot.slane %v9072, 2
      %v9142 = vsel %vm7600, %v9140, %v9141
      %v9143 = vrot.slane %v9073, 2
      %v9144 = vsel %vm7600, %v9141, %v9143
      %v9145 = vrot.slane %v9074, 2
      %v9146 = vsel %vm7600, %v9143, %v9145
      %v9147 = vrot.slane %v9075, 2
      %v9148 = vsel %vm7600, %v9145, %v9147
      %v9149 = vrot.slane %v9076, 2
      %v9150 = vsel %vm7600, %v9147, %v9149
      %v9151 = vrot.slane %v9077, 2
      %v9152 = vsel %vm7600, %v9149, %v9151
      %v9153 = vrot.slane %v9078, 2
      %v9154 = vsel %vm7600, %v9151, %v9153
      %v9155 = vrot.slane %v9079, 2
      %v9156 = vsel %vm7600, %v9153, %v9155
      %v9157 = vrot.slane %v9080, 2
      %v9158 = vsel %vm7600, %v9155, %v9157
      %v9159 = vrot.slane %v9081, 2
      %v9160 = vsel %vm7600, %v9157, %v9159
      %v9161 = vrot.slane %v9082, 2
      %v9162 = vsel %vm7600, %v9159, %v9161
      %v9163 = vrot.slane %v9083, 2
      %v9164 = vsel %vm7600, %v9161, %v9163
      %v9165 = vrot.slane %v9084, 2
      %v9166 = vsel %vm7600, %v9163, %v9165
      %v9167 = vrot.slane %v9085, 2
      %v9168 = vsel %vm7600, %v9165, %v9167
      %v9169 = vrot.slane %v9086, 2
      %v9170 = vsel %vm7600, %v9167, %v9169
      %v9171 = vrot.slane %v9087, 2
      %v9172 = vsel %vm7600, %v9169, %v9171
      %v9173 = vrot.slane %v9088, 2
      %v9174 = vsel %vm7600, %v9171, %v9173
      %v9175 = vrot.slane %v9089, 2
      %v9176 = vsel %vm7600, %v9173, %v9175
      %v9177 = vrot.slane %v9090, 2
      %v9178 = vsel %vm7600, %v9175, %v9177
      %v9179 = vrot.slane %v9091, 2
      %v9180 = vsel %vm7600, %v9177, %v9179
      %v9181 = vrot.slane %v9092, 2
      %v9182 = vsel %vm7600, %v9179, %v9181
      %v9183 = vrot.slane %v9093, 2
      %v9184 = vsel %vm7600, %v9181, %v9183
      %v9185 = vrot.slane %v9094, 2
      %v9186 = vsel %vm7600, %v9183, %v9185
      %v9187 = vrot.slane %v9095, 2
      %v9188 = vsel %vm7600, %v9185, %v9187
      %v9189 = vrot.slane %v9096, 2
      %v9190 = vsel %vm7600, %v9187, %v9189
      %v9191 = vrot.slane %v9097, 2
      %v9192 = vsel %vm7600, %v9189, %v9191
      %v9193 = vrot.slane %v9098, 2
      %v9194 = vsel %vm7600, %v9191, %v9193
      %v9195 = vrot.slane %v9099, 2
      %v9196 = vsel %vm7600, %v9193, %v9195
      %v9197 = vrot.slane %v9100, 2
      %v9198 = vsel %vm7600, %v9195, %v9197
      %v9199 = vrot.slane %v9101, 2
      %v9200 = vsel %vm7600, %v9197, %v9199
      %v9201 = vrot.slane %v9102, 2
      %v9202 = vsel %vm7600, %v9199, %v9201
      %v9203 = vrot.slane %v9103, 2
      %v9204 = vsel %vm7600, %v9201, %v9203
      %v9205 = vrot.slane %v9104, 2
      %v9206 = vsel %vm7600, %v9203, %v9205
      %v9207 = vrot.slane %v9105, 2
      %v9208 = vsel %vm7600, %v9205, %v9207
      %v9209 = vrot.slane %v9106, 2
      %v9210 = vsel %vm7600, %v9207, %v9209
      %v9211 = vrot.slane %v9107, 2
      %v9212 = vsel %vm7600, %v9209, %v9211
      %v9213 = vrot.slane %v9108, 2
      %v9214 = vsel %vm7600, %v9211, %v9213
      %v9215 = vrot.slane %v9109, 2
      %v9216 = vsel %vm7600, %v9213, %v9215
      %v9217 = vrot.slane %v9110, 2
      %v9218 = vsel %vm7600, %v9215, %v9217
      %v9219 = vrot.slane %v9111, 2
      %v9220 = vsel %vm7600, %v9217, %v9219
      %v9221 = vrot.slane %v9112, 2
      %v9222 = vsel %vm7600, %v9219, %v9221
      %v9223 = vrot.slane %v9113, 2
      %v9224 = vsel %vm7600, %v9221, %v9223
      %v9225 = vrot.slane %v9114, 2
      %v9226 = vsel %vm7600, %v9223, %v9225
      %v9227 = vrot.slane %v9115, 2
      %v9228 = vsel %vm7600, %v9225, %v9227
      %v9229 = vrot.slane %v9116, 2
      %v9230 = vsel %vm7600, %v9227, %v9229
      %v9231 = vrot.slane %v9117, 2
      %v9232 = vsel %vm7600, %v9229, %v9231
      %v9233 = vrot.slane %v9118, 2
      %v9234 = vsel %vm7600, %v9231, %v9233
      %v9235 = vrot.slane %v9119, 2
      %v9236 = vsel %vm7600, %v9233, %v9235
      %v9237 = vrot.slane %v9120, 2
      %v9238 = vsel %vm7600, %v9235, %v9237
      %v9239 = vrot.slane %v9121, 2
      %v9240 = vsel %vm7600, %v9237, %v9239
      %v9241 = vrot.slane %v9122, 2
      %v9242 = vsel %vm7600, %v9239, %v9241
      %v9243 = vrot.slane %v9123, 2
      %v9244 = vsel %vm7600, %v9241, %v9243
      %v9245 = vrot.slane %v9124, 2
      %v9246 = vsel %vm7600, %v9243, %v9245
      %v9247 = vrot.slane %v9125, 2
      %v9248 = vsel %vm7600, %v9245, %v9247
      %v9249 = vrot.slane %v9126, 2
      %v9250 = vsel %vm7600, %v9247, %v9249
      %v9251 = vrot.slane %v9127, 2
      %v9252 = vsel %vm7600, %v9249, %v9251
      %v9253 = vrot.slane %v9128, 2
      %v9254 = vsel %vm7600, %v9251, %v9253
      %v9255 = vrot.slane %v9129, 2
      %v9256 = vsel %vm7600, %v9253, %v9255
      %v9257 = vrot.slane %v9130, 2
      %v9258 = vsel %vm7600, %v9255, %v9257
      %v9259 = vrot.slane %v9131, 2
      %v9260 = vsel %vm7600, %v9257, %v9259
      %v9261 = vrot.slane %v9132, 2
      %v9262 = vsel %vm7600, %v9259, %v9261
      %v9263 = vrot.slane %v9133, 2
      %v9264 = vsel %vm7600, %v9261, %v9263
      %v9265 = vrot.slane %v9134, 2
      %v9266 = vsel %vm7600, %v9263, %v9265
      %v9267 = vrot.slane %v9135, 2
      %v9268 = vsel %vm7600, %v9265, %v9267
      %v9269 = vrot.slane %v9136, 2
      %v9270 = vsel %vm7600, %v9267, %v9269
      %v9271 = vrot.slane %v9137, 2
      %v9272 = vsel %vm7600, %v9269, %v9271
      %v9273 = vrot.slane %v9138, 2
      %v9274 = vsel %vm7600, %v9271, %v9273
      %v9275 = vrot.slane %v9139, 2
      %v9276 = vsel %vm7600, %v9273, %v9275
      %v9278 = vsel %vm707, %v9142, 0
      %v9281 = vsel %vm707, %v9144, 0
      %v9284 = vsel %vm707, %v9146, 0
      %v9287 = vsel %vm707, %v9148, 0
      %v9290 = vsel %vm707, %v9150, 0
      %v9293 = vsel %vm707, %v9152, 0
      %v9296 = vsel %vm707, %v9154, 0
      %v9299 = vsel %vm707, %v9156, 0
      %v9302 = vsel %vm707, %v9158, 0
      %v9305 = vsel %vm707, %v9160, 0
      %v9308 = vsel %vm707, %v9162, 0
      %v9311 = vsel %vm707, %v9164, 0
      %v9314 = vsel %vm707, %v9166, 0
      %v9317 = vsel %vm707, %v9168, 0
      %v9320 = vsel %vm707, %v9170, 0
      %v9323 = vsel %vm707, %v9172, 0
      %v9326 = vsel %vm707, %v9174, 0
      %v9329 = vsel %vm707, %v9176, 0
      %v9332 = vsel %vm707, %v9178, 0
      %v9335 = vsel %vm707, %v9180, 0
      %v9338 = vsel %vm707, %v9182, 0
      %v9341 = vsel %vm707, %v9184, 0
      %v9344 = vsel %vm707, %v9186, 0
      %v9347 = vsel %vm707, %v9188, 0
      %v9350 = vsel %vm707, %v9190, 0
      %v9353 = vsel %vm707, %v9192, 0
      %v9356 = vsel %vm707, %v9194, 0
      %v9359 = vsel %vm707, %v9196, 0
      %v9362 = vsel %vm707, %v9198, 0
      %v9365 = vsel %vm707, %v9200, 0
      %v9368 = vsel %vm707, %v9202, 0
      %v9371 = vsel %vm707, %v9204, 0
      %v9374 = vsel %vm707, %v9206, 0
      %v9377 = vsel %vm707, %v9208, 0
      %v9380 = vsel %vm707, %v9210, 0
      %v9383 = vsel %vm707, %v9212, 0
      %v9386 = vsel %vm707, %v9214, 0
      %v9389 = vsel %vm707, %v9216, 0
      %v9392 = vsel %vm707, %v9218, 0
      %v9395 = vsel %vm707, %v9220, 0
      %v9398 = vsel %vm707, %v9222, 0
      %v9401 = vsel %vm707, %v9224, 0
      %v9404 = vsel %vm707, %v9226, 0
      %v9407 = vsel %vm707, %v9228, 0
      %v9410 = vsel %vm707, %v9230, 0
      %v9413 = vsel %vm707, %v9232, 0
      %v9416 = vsel %vm707, %v9234, 0
      %v9419 = vsel %vm707, %v9236, 0
      %v9422 = vsel %vm707, %v9238, 0
      %v9425 = vsel %vm707, %v9240, 0
      %v9428 = vsel %vm707, %v9242, 0
      %v9431 = vsel %vm707, %v9244, 0
      %v9434 = vsel %vm707, %v9246, 0
      %v9437 = vsel %vm707, %v9248, 0
      %v9440 = vsel %vm707, %v9250, 0
      %v9443 = vsel %vm707, %v9252, 0
      %v9446 = vsel %vm707, %v9254, 0
      %v9449 = vsel %vm707, %v9256, 0
      %v9452 = vsel %vm707, %v9258, 0
      %v9455 = vsel %vm707, %v9260, 0
      %v9458 = vsel %vm707, %v9262, 0
      %v9461 = vsel %vm707, %v9264, 0
      %v9464 = vsel %vm707, %v9266, 0
      %v9467 = vsel %vm707, %v9268, 0
      %v9470 = vsel %vm707, %v9270, 0
      %v9473 = vsel %vm707, %v9272, 0
      %v9476 = vsel %vm707, %v9274, 0
      %v9479 = vsel %vm707, %v9276, 0
      %v9482 = vsel %vm912, %v8796, 0
      %9484 = vmatprep.subr.bf16.mxu0 0
      %9485 = vmatpush1.bf16.msra.mxu0 %v9482
      %9486 = vmatprep.subr.bf16.mxu0 0
      %9487 = vmatpush1.bf16.msra.mxu0 0
      %9488 = vmatprep.subr.bf16.mxu0 0
      %9489 = vmatpush1.bf16.msra.mxu0 0
      %9490 = vmatprep.subr.bf16.mxu0 0
      %9491 = vmatpush1.bf16.msra.mxu0 0
      %9492 = vmatprep.subr.bf16.mxu0 0
      %9493 = vmatpush1.bf16.msra.mxu0 0
      %9494 = vmatprep.subr.bf16.mxu0 0
      %9495 = vmatpush1.bf16.msra.mxu0 0
      %9496 = vmatprep.subr.bf16.mxu0 0
      %9497 = vmatpush1.bf16.msra.mxu0 0
      %9498 = vmatprep.subr.bf16.mxu0 0
      %9499 = vmatpush1.bf16.msra.mxu0 0
      %9500 = vmatprep.subr.bf16.mxu0 0
      %9501 = vmatpush1.bf16.msra.mxu0 0
      %9502 = vmatprep.subr.bf16.mxu0 0
      %9503 = vmatpush1.bf16.msra.mxu0 0
      %9504 = vmatprep.subr.bf16.mxu0 0
      %9505 = vmatpush1.bf16.msra.mxu0 0
      %9506 = vmatprep.subr.bf16.mxu0 0
      %9507 = vmatpush1.bf16.msra.mxu0 0
      %9508 = vmatprep.subr.bf16.mxu0 0
      %9509 = vmatpush1.bf16.msra.mxu0 0
      %9510 = vmatprep.subr.bf16.mxu0 0
      %9511 = vmatpush1.bf16.msra.mxu0 0
      %9512 = vmatprep.subr.bf16.mxu0 0
      %9513 = vmatpush1.bf16.msra.mxu0 0
      %9514 = vmatprep.subr.bf16.mxu0 0
      %9515 = vmatpush1.bf16.msra.mxu0 0
      %9516 = vmatprep.mubr.bf16.mxu0 0
      %9517 = vmatmul.mubr.bf16.gmra.mrb[0].mxu0 %v9278
      %v9518 = vpop.f32.mrb[0].mxu0
      %v9519 = vadd.f32 0.0, %v9518
      %v9520 = vpop.f32.mrb[0].mxu0
      %v9521 = vpop.f32.mrb[0].mxu0
      %v9522 = vadd.f32 0.0, %v9521
      %v9523 = vpop.f32.mrb[0].mxu0
      %9524 = vmatprep.mubr.bf16.mxu0 0
      %9525 = vmatmul.mubr.bf16.gmra.mrb[0].mxu0 %v9281
      %v9526 = vpop.f32.mrb[0].mxu0
      %v9527 = vadd.f32 0.0, %v9526
      %v9528 = vpop.f32.mrb[0].mxu0
      %v9529 = vpop.f32.mrb[0].mxu0
      %v9530 = vadd.f32 0.0, %v9529
      %v9531 = vpop.f32.mrb[0].mxu0
      %9532 = vmatprep.mubr.bf16.mxu0 0
      %9533 = vmatmul.mubr.bf16.gmra.mrb[0].mxu0 %v9284
      %v9534 = vpop.f32.mrb[0].mxu0
      %v9535 = vadd.f32 0.0, %v9534
      %v9536 = vpop.f32.mrb[0].mxu0
      %v9537 = vpop.f32.mrb[0].mxu0
      %v9538 = vadd.f32 0.0, %v9537
      %v9539 = vpop.f32.mrb[0].mxu0
      %9540 = vmatprep.mubr.bf16.mxu0 0
      %9541 = vmatmul.mubr.bf16.gmra.mrb[0].mxu0 %v9287
      %v9542 = vpop.f32.mrb[0].mxu0
      %v9543 = vadd.f32 0.0, %v9542
      %v9544 = vpop.f32.mrb[0].mxu0
      %v9545 = vpop.f32.mrb[0].mxu0
      %v9546 = vadd.f32 0.0, %v9545
      %v9547 = vpop.f32.mrb[0].mxu0
      %9548 = vmatprep.mubr.bf16.mxu0 0
      %9549 = vmatmul.mubr.bf16.gmra.mrb[0].mxu0 %v9290
      %v9550 = vpop.f32.mrb[0].mxu0
      %v9551 = vadd.f32 0.0, %v9550
      %v9552 = vpop.f32.mrb[0].mxu0
      %v9553 = vpop.f32.mrb[0].mxu0
      %v9554 = vadd.f32 0.0, %v9553
      %v9555 = vpop.f32.mrb[0].mxu0
      %9556 = vmatprep.mubr.bf16.mxu0 0
      %9557 = vmatmul.mubr.bf16.gmra.mrb[0].mxu0 %v9293
      %v9558 = vpop.f32.mrb[0].mxu0
      %v9559 = vadd.f32 0.0, %v9558
      %v9560 = vpop.f32.mrb[0].mxu0
      %v9561 = vpop.f32.mrb[0].mxu0
      %v9562 = vadd.f32 0.0, %v9561
      %v9563 = vpop.f32.mrb[0].mxu0
      %9564 = vmatprep.mubr.bf16.mxu0 0
      %9565 = vmatmul.mubr.bf16.gmra.mrb[0].mxu0 %v9296
      %v9566 = vpop.f32.mrb[0].mxu0
      %v9567 = vadd.f32 0.0, %v9566
      %v9568 = vpop.f32.mrb[0].mxu0
      %v9569 = vpop.f32.mrb[0].mxu0
      %v9570 = vadd.f32 0.0, %v9569
      %v9571 = vpop.f32.mrb[0].mxu0
      %9572 = vmatprep.mubr.bf16.mxu0 0
      %9573 = vmatmul.mubr.bf16.gmra.mrb[0].mxu0 %v9299
      %v9574 = vpop.f32.mrb[0].mxu0
      %v9575 = vadd.f32 0.0, %v9574
      %v9576 = vpop.f32.mrb[0].mxu0
      %v9577 = vpop.f32.mrb[0].mxu0
      %v9578 = vadd.f32 0.0, %v9577
      %v9579 = vpop.f32.mrb[0].mxu0
      %9580 = vmatprep.mubr.bf16.mxu0 0
      %9581 = vmatmul.mubr.bf16.gmra.mrb[0].mxu0 %v9302
      %v9582 = vpop.f32.mrb[0].mxu0
      %v9583 = vadd.f32 0.0, %v9582
      %v9584 = vpop.f32.mrb[0].mxu0
      %v9585 = vpop.f32.mrb[0].mxu0
      %v9586 = vadd.f32 0.0, %v9585
      %v9587 = vpop.f32.mrb[0].mxu0
      %9588 = vmatprep.mubr.bf16.mxu0 0
      %9589 = vmatmul.mubr.bf16.gmra.mrb[0].mxu0 %v9305
      %v9590 = vpop.f32.mrb[0].mxu0
      %v9591 = vadd.f32 0.0, %v9590
      %v9592 = vpop.f32.mrb[0].mxu0
      %v9593 = vpop.f32.mrb[0].mxu0
      %v9594 = vadd.f32 0.0, %v9593
      %v9595 = vpop.f32.mrb[0].mxu0
      %9596 = vmatprep.mubr.bf16.mxu0 0
      %9597 = vmatmul.mubr.bf16.gmra.mrb[0].mxu0 %v9308
      %v9598 = vpop.f32.mrb[0].mxu0
      %v9599 = vadd.f32 0.0, %v9598
      %v9600 = vpop.f32.mrb[0].mxu0
      %v9601 = vpop.f32.mrb[0].mxu0
      %v9602 = vadd.f32 0.0, %v9601
      %v9603 = vpop.f32.mrb[0].mxu0
      %9604 = vmatprep.mubr.bf16.mxu0 0
      %9605 = vmatmul.mubr.bf16.gmra.mrb[0].mxu0 %v9311
      %v9606 = vpop.f32.mrb[0].mxu0
      %v9607 = vadd.f32 0.0, %v9606
      %v9608 = vpop.f32.mrb[0].mxu0
      %v9609 = vpop.f32.mrb[0].mxu0
      %v9610 = vadd.f32 0.0, %v9609
      %v9611 = vpop.f32.mrb[0].mxu0
      %9612 = vmatprep.mubr.bf16.mxu0 0
      %9613 = vmatmul.mubr.bf16.gmra.mrb[0].mxu0 %v9314
      %v9614 = vpop.f32.mrb[0].mxu0
      %v9615 = vadd.f32 0.0, %v9614
      %v9616 = vpop.f32.mrb[0].mxu0
      %v9617 = vpop.f32.mrb[0].mxu0
      %v9618 = vadd.f32 0.0, %v9617
      %v9619 = vpop.f32.mrb[0].mxu0
      %9620 = vmatprep.mubr.bf16.mxu0 0
      %9621 = vmatmul.mubr.bf16.gmra.mrb[0].mxu0 %v9317
      %v9622 = vpop.f32.mrb[0].mxu0
      %v9623 = vadd.f32 0.0, %v9622
      %v9624 = vpop.f32.mrb[0].mxu0
      %v9625 = vpop.f32.mrb[0].mxu0
      %v9626 = vadd.f32 0.0, %v9625
      %v9627 = vpop.f32.mrb[0].mxu0
      %9628 = vmatprep.mubr.bf16.mxu0 0
      %9629 = vmatmul.mubr.bf16.gmra.mrb[0].mxu0 %v9320
      %v9630 = vpop.f32.mrb[0].mxu0
      %v9631 = vadd.f32 0.0, %v9630
      %v9632 = vpop.f32.mrb[0].mxu0
      %v9633 = vpop.f32.mrb[0].mxu0
      %v9634 = vadd.f32 0.0, %v9633
      %v9635 = vpop.f32.mrb[0].mxu0
      %9636 = vmatprep.mubr.bf16.mxu0 0
      %9637 = vmatmul.mubr.bf16.gmra.mrb[0].mxu0 %v9323
      %v9638 = vpop.f32.mrb[0].mxu0
      %v9639 = vadd.f32 0.0, %v9638
      %v9640 = vpop.f32.mrb[0].mxu0
      %v9641 = vpop.f32.mrb[0].mxu0
      %v9642 = vadd.f32 0.0, %v9641
      %v9643 = vpop.f32.mrb[0].mxu0
      %9644 = vmatprep.mubr.bf16.mxu0 0
      %9645 = vmatmul.mubr.bf16.gmra.mrb[0].mxu0 %v9326
      %v9646 = vpop.f32.mrb[0].mxu0
      %v9647 = vadd.f32 0.0, %v9646
      %v9648 = vpop.f32.mrb[0].mxu0
      %v9649 = vpop.f32.mrb[0].mxu0
      %v9650 = vadd.f32 0.0, %v9649
      %v9651 = vpop.f32.mrb[0].mxu0
      %9652 = vmatprep.mubr.bf16.mxu0 0
      %9653 = vmatmul.mubr.bf16.gmra.mrb[0].mxu0 %v9329
      %v9654 = vpop.f32.mrb[0].mxu0
      %v9655 = vadd.f32 0.0, %v9654
      %v9656 = vpop.f32.mrb[0].mxu0
      %v9657 = vpop.f32.mrb[0].mxu0
      %v9658 = vadd.f32 0.0, %v9657
      %v9659 = vpop.f32.mrb[0].mxu0
      %9660 = vmatprep.mubr.bf16.mxu0 0
      %9661 = vmatmul.mubr.bf16.gmra.mrb[0].mxu0 %v9332
      %v9662 = vpop.f32.mrb[0].mxu0
      %v9663 = vadd.f32 0.0, %v9662
      %v9664 = vpop.f32.mrb[0].mxu0
      %v9665 = vpop.f32.mrb[0].mxu0
      %v9666 = vadd.f32 0.0, %v9665
      %v9667 = vpop.f32.mrb[0].mxu0
      %9668 = vmatprep.mubr.bf16.mxu0 0
      %9669 = vmatmul.mubr.bf16.gmra.mrb[0].mxu0 %v9335
      %v9670 = vpop.f32.mrb[0].mxu0
      %v9671 = vadd.f32 0.0, %v9670
      %v9672 = vpop.f32.mrb[0].mxu0
      %v9673 = vpop.f32.mrb[0].mxu0
      %v9674 = vadd.f32 0.0, %v9673
      %v9675 = vpop.f32.mrb[0].mxu0
      %9676 = vmatprep.mubr.bf16.mxu0 0
      %9677 = vmatmul.mubr.bf16.gmra.mrb[0].mxu0 %v9338
      %v9678 = vpop.f32.mrb[0].mxu0
      %v9679 = vadd.f32 0.0, %v9678
      %v9680 = vpop.f32.mrb[0].mxu0
      %v9681 = vpop.f32.mrb[0].mxu0
      %v9682 = vadd.f32 0.0, %v9681
      %v9683 = vpop.f32.mrb[0].mxu0
      %9684 = vmatprep.mubr.bf16.mxu0 0
      %9685 = vmatmul.mubr.bf16.gmra.mrb[0].mxu0 %v9341
      %v9686 = vpop.f32.mrb[0].mxu0
      %v9687 = vadd.f32 0.0, %v9686
      %v9688 = vpop.f32.mrb[0].mxu0
      %v9689 = vpop.f32.mrb[0].mxu0
      %v9690 = vadd.f32 0.0, %v9689
      %v9691 = vpop.f32.mrb[0].mxu0
      %9692 = vmatprep.mubr.bf16.mxu0 0
      %9693 = vmatmul.mubr.bf16.gmra.mrb[0].mxu0 %v9344
      %v9694 = vpop.f32.mrb[0].mxu0
      %v9695 = vadd.f32 0.0, %v9694
      %v9696 = vpop.f32.mrb[0].mxu0
      %v9697 = vpop.f32.mrb[0].mxu0
      %v9698 = vadd.f32 0.0, %v9697
      %v9699 = vpop.f32.mrb[0].mxu0
      %9700 = vmatprep.mubr.bf16.mxu0 0
      %9701 = vmatmul.mubr.bf16.gmra.mrb[0].mxu0 %v9347
      %v9702 = vpop.f32.mrb[0].mxu0
      %v9703 = vadd.f32 0.0, %v9702
      %v9704 = vpop.f32.mrb[0].mxu0
      %v9705 = vpop.f32.mrb[0].mxu0
      %v9706 = vadd.f32 0.0, %v9705
      %v9707 = vpop.f32.mrb[0].mxu0
      %9708 = vmatprep.mubr.bf16.mxu0 0
      %9709 = vmatmul.mubr.bf16.gmra.mrb[0].mxu0 %v9350
      %v9710 = vpop.f32.mrb[0].mxu0
      %v9711 = vadd.f32 0.0, %v9710
      %v9712 = vpop.f32.mrb[0].mxu0
      %v9713 = vpop.f32.mrb[0].mxu0
      %v9714 = vadd.f32 0.0, %v9713
      %v9715 = vpop.f32.mrb[0].mxu0
      %9716 = vmatprep.mubr.bf16.mxu0 0
      %9717 = vmatmul.mubr.bf16.gmra.mrb[0].mxu0 %v9353
      %v9718 = vpop.f32.mrb[0].mxu0
      %v9719 = vadd.f32 0.0, %v9718
      %v9720 = vpop.f32.mrb[0].mxu0
      %v9721 = vpop.f32.mrb[0].mxu0
      %v9722 = vadd.f32 0.0, %v9721
      %v9723 = vpop.f32.mrb[0].mxu0
      %9724 = vmatprep.mubr.bf16.mxu0 0
      %9725 = vmatmul.mubr.bf16.gmra.mrb[0].mxu0 %v9356
      %v9726 = vpop.f32.mrb[0].mxu0
      %v9727 = vadd.f32 0.0, %v9726
      %v9728 = vpop.f32.mrb[0].mxu0
      %v9729 = vpop.f32.mrb[0].mxu0
      %v9730 = vadd.f32 0.0, %v9729
      %v9731 = vpop.f32.mrb[0].mxu0
      %9732 = vmatprep.mubr.bf16.mxu0 0
      %9733 = vmatmul.mubr.bf16.gmra.mrb[0].mxu0 %v9359
      %v9734 = vpop.f32.mrb[0].mxu0
      %v9735 = vadd.f32 0.0, %v9734
      %v9736 = vpop.f32.mrb[0].mxu0
      %v9737 = vpop.f32.mrb[0].mxu0
      %v9738 = vadd.f32 0.0, %v9737
      %v9739 = vpop.f32.mrb[0].mxu0
      %9740 = vmatprep.mubr.bf16.mxu0 0
      %9741 = vmatmul.mubr.bf16.gmra.mrb[0].mxu0 %v9362
      %v9742 = vpop.f32.mrb[0].mxu0
      %v9743 = vadd.f32 0.0, %v9742
      %v9744 = vpop.f32.mrb[0].mxu0
      %v9745 = vpop.f32.mrb[0].mxu0
      %v9746 = vadd.f32 0.0, %v9745
      %v9747 = vpop.f32.mrb[0].mxu0
      %9748 = vmatprep.mubr.bf16.mxu0 0
      %9749 = vmatmul.mubr.bf16.gmra.mrb[0].mxu0 %v9365
      %v9750 = vpop.f32.mrb[0].mxu0
      %v9751 = vadd.f32 0.0, %v9750
      %v9752 = vpop.f32.mrb[0].mxu0
      %v9753 = vpop.f32.mrb[0].mxu0
      %v9754 = vadd.f32 0.0, %v9753
      %v9755 = vpop.f32.mrb[0].mxu0
      %9756 = vmatprep.mubr.bf16.mxu0 0
      %9757 = vmatmul.mubr.bf16.gmra.mrb[0].mxu0 %v9368
      %v9758 = vpop.f32.mrb[0].mxu0
      %v9759 = vadd.f32 0.0, %v9758
      %v9760 = vpop.f32.mrb[0].mxu0
      %v9761 = vpop.f32.mrb[0].mxu0
      %v9762 = vadd.f32 0.0, %v9761
      %v9763 = vpop.f32.mrb[0].mxu0
      %9764 = vmatprep.mubr.bf16.mxu0 0
      %9765 = vmatmul.mubr.bf16.gmra.mrb[0].mxu0 %v9371
      %v9766 = vpop.f32.mrb[0].mxu0
      %v9767 = vadd.f32 0.0, %v9766
      %v9768 = vpop.f32.mrb[0].mxu0
      %v9769 = vpop.f32.mrb[0].mxu0
      %v9770 = vadd.f32 0.0, %v9769
      %v9771 = vpop.f32.mrb[0].mxu0
      %9772 = vmatprep.mubr.bf16.mxu0 0
      %9773 = vmatmul.mubr.bf16.gmra.mrb[0].mxu0 %v9374
      %v9774 = vpop.f32.mrb[0].mxu0
      %v9775 = vadd.f32 0.0, %v9774
      %v9776 = vpop.f32.mrb[0].mxu0
      %v9777 = vpop.f32.mrb[0].mxu0
      %v9778 = vadd.f32 0.0, %v9777
      %v9779 = vpop.f32.mrb[0].mxu0
      %9780 = vmatprep.mubr.bf16.mxu0 0
      %9781 = vmatmul.mubr.bf16.gmra.mrb[0].mxu0 %v9377
      %v9782 = vpop.f32.mrb[0].mxu0
      %v9783 = vadd.f32 0.0, %v9782
      %v9784 = vpop.f32.mrb[0].mxu0
      %v9785 = vpop.f32.mrb[0].mxu0
      %v9786 = vadd.f32 0.0, %v9785
      %v9787 = vpop.f32.mrb[0].mxu0
      %9788 = vmatprep.mubr.bf16.mxu0 0
      %9789 = vmatmul.mubr.bf16.gmra.mrb[0].mxu0 %v9380
      %v9790 = vpop.f32.mrb[0].mxu0
      %v9791 = vadd.f32 0.0, %v9790
      %v9792 = vpop.f32.mrb[0].mxu0
      %v9793 = vpop.f32.mrb[0].mxu0
      %v9794 = vadd.f32 0.0, %v9793
      %v9795 = vpop.f32.mrb[0].mxu0
      %9796 = vmatprep.mubr.bf16.mxu0 0
      %9797 = vmatmul.mubr.bf16.gmra.mrb[0].mxu0 %v9383
      %v9798 = vpop.f32.mrb[0].mxu0
      %v9799 = vadd.f32 0.0, %v9798
      %v9800 = vpop.f32.mrb[0].mxu0
      %v9801 = vpop.f32.mrb[0].mxu0
      %v9802 = vadd.f32 0.0, %v9801
      %v9803 = vpop.f32.mrb[0].mxu0
      %9804 = vmatprep.mubr.bf16.mxu0 0
      %9805 = vmatmul.mubr.bf16.gmra.mrb[0].mxu0 %v9386
      %v9806 = vpop.f32.mrb[0].mxu0
      %v9807 = vadd.f32 0.0, %v9806
      %v9808 = vpop.f32.mrb[0].mxu0
      %v9809 = vpop.f32.mrb[0].mxu0
      %v9810 = vadd.f32 0.0, %v9809
      %v9811 = vpop.f32.mrb[0].mxu0
      %9812 = vmatprep.mubr.bf16.mxu0 0
      %9813 = vmatmul.mubr.bf16.gmra.mrb[0].mxu0 %v9389
      %v9814 = vpop.f32.mrb[0].mxu0
      %v9815 = vadd.f32 0.0, %v9814
      %v9816 = vpop.f32.mrb[0].mxu0
      %v9817 = vpop.f32.mrb[0].mxu0
      %v9818 = vadd.f32 0.0, %v9817
      %v9819 = vpop.f32.mrb[0].mxu0
      %9820 = vmatprep.mubr.bf16.mxu0 0
      %9821 = vmatmul.mubr.bf16.gmra.mrb[0].mxu0 %v9392
      %v9822 = vpop.f32.mrb[0].mxu0
      %v9823 = vadd.f32 0.0, %v9822
      %v9824 = vpop.f32.mrb[0].mxu0
      %v9825 = vpop.f32.mrb[0].mxu0
      %v9826 = vadd.f32 0.0, %v9825
      %v9827 = vpop.f32.mrb[0].mxu0
      %9828 = vmatprep.mubr.bf16.mxu0 0
      %9829 = vmatmul.mubr.bf16.gmra.mrb[0].mxu0 %v9395
      %v9830 = vpop.f32.mrb[0].mxu0
      %v9831 = vadd.f32 0.0, %v9830
      %v9832 = vpop.f32.mrb[0].mxu0
      %v9833 = vpop.f32.mrb[0].mxu0
      %v9834 = vadd.f32 0.0, %v9833
      %v9835 = vpop.f32.mrb[0].mxu0
      %9836 = vmatprep.mubr.bf16.mxu0 0
      %9837 = vmatmul.mubr.bf16.gmra.mrb[0].mxu0 %v9398
      %v9838 = vpop.f32.mrb[0].mxu0
      %v9839 = vadd.f32 0.0, %v9838
      %v9840 = vpop.f32.mrb[0].mxu0
      %v9841 = vpop.f32.mrb[0].mxu0
      %v9842 = vadd.f32 0.0, %v9841
      %v9843 = vpop.f32.mrb[0].mxu0
      %9844 = vmatprep.mubr.bf16.mxu0 0
      %9845 = vmatmul.mubr.bf16.gmra.mrb[0].mxu0 %v9401
      %v9846 = vpop.f32.mrb[0].mxu0
      %v9847 = vadd.f32 0.0, %v9846
      %v9848 = vpop.f32.mrb[0].mxu0
      %v9849 = vpop.f32.mrb[0].mxu0
      %v9850 = vadd.f32 0.0, %v9849
      %v9851 = vpop.f32.mrb[0].mxu0
      %9852 = vmatprep.mubr.bf16.mxu0 0
      %9853 = vmatmul.mubr.bf16.gmra.mrb[0].mxu0 %v9404
      %v9854 = vpop.f32.mrb[0].mxu0
      %v9855 = vadd.f32 0.0, %v9854
      %v9856 = vpop.f32.mrb[0].mxu0
      %v9857 = vpop.f32.mrb[0].mxu0
      %v9858 = vadd.f32 0.0, %v9857
      %v9859 = vpop.f32.mrb[0].mxu0
      %9860 = vmatprep.mubr.bf16.mxu0 0
      %9861 = vmatmul.mubr.bf16.gmra.mrb[0].mxu0 %v9407
      %v9862 = vpop.f32.mrb[0].mxu0
      %v9863 = vadd.f32 0.0, %v9862
      %v9864 = vpop.f32.mrb[0].mxu0
      %v9865 = vpop.f32.mrb[0].mxu0
      %v9866 = vadd.f32 0.0, %v9865
      %v9867 = vpop.f32.mrb[0].mxu0
      %9868 = vmatprep.mubr.bf16.mxu0 0
      %9869 = vmatmul.mubr.bf16.gmra.mrb[0].mxu0 %v9410
      %v9870 = vpop.f32.mrb[0].mxu0
      %v9871 = vadd.f32 0.0, %v9870
      %v9872 = vpop.f32.mrb[0].mxu0
      %v9873 = vpop.f32.mrb[0].mxu0
      %v9874 = vadd.f32 0.0, %v9873
      %v9875 = vpop.f32.mrb[0].mxu0
      %9876 = vmatprep.mubr.bf16.mxu0 0
      %9877 = vmatmul.mubr.bf16.gmra.mrb[0].mxu0 %v9413
      %v9878 = vpop.f32.mrb[0].mxu0
      %v9879 = vadd.f32 0.0, %v9878
      %v9880 = vpop.f32.mrb[0].mxu0
      %v9881 = vpop.f32.mrb[0].mxu0
      %v9882 = vadd.f32 0.0, %v9881
      %v9883 = vpop.f32.mrb[0].mxu0
      %9884 = vmatprep.mubr.bf16.mxu0 0
      %9885 = vmatmul.mubr.bf16.gmra.mrb[0].mxu0 %v9416
      %v9886 = vpop.f32.mrb[0].mxu0
      %v9887 = vadd.f32 0.0, %v9886
      %v9888 = vpop.f32.mrb[0].mxu0
      %v9889 = vpop.f32.mrb[0].mxu0
      %v9890 = vadd.f32 0.0, %v9889
      %v9891 = vpop.f32.mrb[0].mxu0
      %9892 = vmatprep.mubr.bf16.mxu0 0
      %9893 = vmatmul.mubr.bf16.gmra.mrb[0].mxu0 %v9419
      %v9894 = vpop.f32.mrb[0].mxu0
      %v9895 = vadd.f32 0.0, %v9894
      %v9896 = vpop.f32.mrb[0].mxu0
      %v9897 = vpop.f32.mrb[0].mxu0
      %v9898 = vadd.f32 0.0, %v9897
      %v9899 = vpop.f32.mrb[0].mxu0
      %9900 = vmatprep.mubr.bf16.mxu0 0
      %9901 = vmatmul.mubr.bf16.gmra.mrb[0].mxu0 %v9422
      %v9902 = vpop.f32.mrb[0].mxu0
      %v9903 = vadd.f32 0.0, %v9902
      %v9904 = vpop.f32.mrb[0].mxu0
      %v9905 = vpop.f32.mrb[0].mxu0
      %v9906 = vadd.f32 0.0, %v9905
      %v9907 = vpop.f32.mrb[0].mxu0
      %9908 = vmatprep.mubr.bf16.mxu0 0
      %9909 = vmatmul.mubr.bf16.gmra.mrb[0].mxu0 %v9425
      %v9910 = vpop.f32.mrb[0].mxu0
      %v9911 = vadd.f32 0.0, %v9910
      %v9912 = vpop.f32.mrb[0].mxu0
      %v9913 = vpop.f32.mrb[0].mxu0
      %v9914 = vadd.f32 0.0, %v9913
      %v9915 = vpop.f32.mrb[0].mxu0
      %9916 = vmatprep.mubr.bf16.mxu0 0
      %9917 = vmatmul.mubr.bf16.gmra.mrb[0].mxu0 %v9428
      %v9918 = vpop.f32.mrb[0].mxu0
      %v9919 = vadd.f32 0.0, %v9918
      %v9920 = vpop.f32.mrb[0].mxu0
      %v9921 = vpop.f32.mrb[0].mxu0
      %v9922 = vadd.f32 0.0, %v9921
      %v9923 = vpop.f32.mrb[0].mxu0
      %9924 = vmatprep.mubr.bf16.mxu0 0
      %9925 = vmatmul.mubr.bf16.gmra.mrb[0].mxu0 %v9431
      %v9926 = vpop.f32.mrb[0].mxu0
      %v9927 = vadd.f32 0.0, %v9926
      %v9928 = vpop.f32.mrb[0].mxu0
      %v9929 = vpop.f32.mrb[0].mxu0
      %v9930 = vadd.f32 0.0, %v9929
      %v9931 = vpop.f32.mrb[0].mxu0
      %9932 = vmatprep.mubr.bf16.mxu0 0
      %9933 = vmatmul.mubr.bf16.gmra.mrb[0].mxu0 %v9434
      %v9934 = vpop.f32.mrb[0].mxu0
      %v9935 = vadd.f32 0.0, %v9934
      %v9936 = vpop.f32.mrb[0].mxu0
      %v9937 = vpop.f32.mrb[0].mxu0
      %v9938 = vadd.f32 0.0, %v9937
      %v9939 = vpop.f32.mrb[0].mxu0
      %9940 = vmatprep.mubr.bf16.mxu0 0
      %9941 = vmatmul.mubr.bf16.gmra.mrb[0].mxu0 %v9437
      %v9942 = vpop.f32.mrb[0].mxu0
      %v9943 = vadd.f32 0.0, %v9942
      %v9944 = vpop.f32.mrb[0].mxu0
      %v9945 = vpop.f32.mrb[0].mxu0
      %v9946 = vadd.f32 0.0, %v9945
      %v9947 = vpop.f32.mrb[0].mxu0
      %9948 = vmatprep.mubr.bf16.mxu0 0
      %9949 = vmatmul.mubr.bf16.gmra.mrb[0].mxu0 %v9440
      %v9950 = vpop.f32.mrb[0].mxu0
      %v9951 = vadd.f32 0.0, %v9950
      %v9952 = vpop.f32.mrb[0].mxu0
      %v9953 = vpop.f32.mrb[0].mxu0
      %v9954 = vadd.f32 0.0, %v9953
      %v9955 = vpop.f32.mrb[0].mxu0
      %9956 = vmatprep.mubr.bf16.mxu0 0
      %9957 = vmatmul.mubr.bf16.gmra.mrb[0].mxu0 %v9443
      %v9958 = vpop.f32.mrb[0].mxu0
      %v9959 = vadd.f32 0.0, %v9958
      %v9960 = vpop.f32.mrb[0].mxu0
      %v9961 = vpop.f32.mrb[0].mxu0
      %v9962 = vadd.f32 0.0, %v9961
      %v9963 = vpop.f32.mrb[0].mxu0
      %9964 = vmatprep.mubr.bf16.mxu0 0
      %9965 = vmatmul.mubr.bf16.gmra.mrb[0].mxu0 %v9446
      %v9966 = vpop.f32.mrb[0].mxu0
      %v9967 = vadd.f32 0.0, %v9966
      %v9968 = vpop.f32.mrb[0].mxu0
      %v9969 = vpop.f32.mrb[0].mxu0
      %v9970 = vadd.f32 0.0, %v9969
      %v9971 = vpop.f32.mrb[0].mxu0
      %9972 = vmatprep.mubr.bf16.mxu0 0
      %9973 = vmatmul.mubr.bf16.gmra.mrb[0].mxu0 %v9449
      %v9974 = vpop.f32.mrb[0].mxu0
      %v9975 = vadd.f32 0.0, %v9974
      %v9976 = vpop.f32.mrb[0].mxu0
      %v9977 = vpop.f32.mrb[0].mxu0
      %v9978 = vadd.f32 0.0, %v9977
      %v9979 = vpop.f32.mrb[0].mxu0
      %9980 = vmatprep.mubr.bf16.mxu0 0
      %9981 = vmatmul.mubr.bf16.gmra.mrb[0].mxu0 %v9452
      %v9982 = vpop.f32.mrb[0].mxu0
      %v9983 = vadd.f32 0.0, %v9982
      %v9984 = vpop.f32.mrb[0].mxu0
      %v9985 = vpop.f32.mrb[0].mxu0
      %v9986 = vadd.f32 0.0, %v9985
      %v9987 = vpop.f32.mrb[0].mxu0
      %9988 = vmatprep.mubr.bf16.mxu0 0
      %9989 = vmatmul.mubr.bf16.gmra.mrb[0].mxu0 %v9455
      %v9990 = vpop.f32.mrb[0].mxu0
      %v9991 = vadd.f32 0.0, %v9990
      %v9992 = vpop.f32.mrb[0].mxu0
      %v9993 = vpop.f32.mrb[0].mxu0
      %v9994 = vadd.f32 0.0, %v9993
      %v9995 = vpop.f32.mrb[0].mxu0
      %9996 = vmatprep.mubr.bf16.mxu0 0
      %9997 = vmatmul.mubr.bf16.gmra.mrb[0].mxu0 %v9458
      %v9998 = vpop.f32.mrb[0].mxu0
      %v9999 = vadd.f32 0.0, %v9998
      %v10000 = vpop.f32.mrb[0].mxu0
      %v10001 = vpop.f32.mrb[0].mxu0
      %v10002 = vadd.f32 0.0, %v10001
      %v10003 = vpop.f32.mrb[0].mxu0
      %10004 = vmatprep.mubr.bf16.mxu0 0
      %10005 = vmatmul.mubr.bf16.gmra.mrb[0].mxu0 %v9461
      %v10006 = vpop.f32.mrb[0].mxu0
      %v10007 = vadd.f32 0.0, %v10006
      %v10008 = vpop.f32.mrb[0].mxu0
      %v10009 = vpop.f32.mrb[0].mxu0
      %v10010 = vadd.f32 0.0, %v10009
      %v10011 = vpop.f32.mrb[0].mxu0
      %10012 = vmatprep.mubr.bf16.mxu0 0
      %10013 = vmatmul.mubr.bf16.gmra.mrb[0].mxu0 %v9464
      %v10014 = vpop.f32.mrb[0].mxu0
      %v10015 = vadd.f32 0.0, %v10014
      %v10016 = vpop.f32.mrb[0].mxu0
      %v10017 = vpop.f32.mrb[0].mxu0
      %v10018 = vadd.f32 0.0, %v10017
      %v10019 = vpop.f32.mrb[0].mxu0
      %10020 = vmatprep.mubr.bf16.mxu0 0
      %10021 = vmatmul.mubr.bf16.gmra.mrb[0].mxu0 %v9467
      %v10022 = vpop.f32.mrb[0].mxu0
      %v10023 = vadd.f32 0.0, %v10022
      %v10024 = vpop.f32.mrb[0].mxu0
      %v10025 = vpop.f32.mrb[0].mxu0
      %v10026 = vadd.f32 0.0, %v10025
      %v10027 = vpop.f32.mrb[0].mxu0
      %10028 = vmatprep.mubr.bf16.mxu0 0
      %10029 = vmatmul.mubr.bf16.gmra.mrb[0].mxu0 %v9470
      %v10030 = vpop.f32.mrb[0].mxu0
      %v10031 = vadd.f32 0.0, %v10030
      %v10032 = vpop.f32.mrb[0].mxu0
      %v10033 = vpop.f32.mrb[0].mxu0
      %v10034 = vadd.f32 0.0, %v10033
      %v10035 = vpop.f32.mrb[0].mxu0
      %10036 = vmatprep.mubr.bf16.mxu0 0
      %10037 = vmatmul.mubr.bf16.gmra.mrb[0].mxu0 %v9473
      %v10038 = vpop.f32.mrb[0].mxu0
      %v10039 = vadd.f32 0.0, %v10038
      %v10040 = vpop.f32.mrb[0].mxu0
      %v10041 = vpop.f32.mrb[0].mxu0
      %v10042 = vadd.f32 0.0, %v10041
      %v10043 = vpop.f32.mrb[0].mxu0
      %10044 = vmatprep.mubr.bf16.mxu0 0
      %10045 = vmatmul.mubr.bf16.gmra.mrb[0].mxu0 %v9476
      %v10046 = vpop.f32.mrb[0].mxu0
      %v10047 = vadd.f32 0.0, %v10046
      %v10048 = vpop.f32.mrb[0].mxu0
      %v10049 = vpop.f32.mrb[0].mxu0
      %v10050 = vadd.f32 0.0, %v10049
      %v10051 = vpop.f32.mrb[0].mxu0
      %10052 = vmatprep.mubr.bf16.mxu0 0
      %10053 = vmatmul.mubr.bf16.gmra.mrb[0].mxu0 %v9479
      %v10054 = vpop.f32.mrb[0].mxu0
      %v10055 = vadd.f32 0.0, %v10054
      %v10056 = vpop.f32.mrb[0].mxu0
      %v10057 = vpop.f32.mrb[0].mxu0
      %v10058 = vadd.f32 0.0, %v10057
      %v10059 = vpop.f32.mrb[0].mxu0
      %10060 = vdwg.mxu0
      %v10061 = vadd.f32 %v8522, %v9519
      %v10062 = vadd.f32 %v8523, %v9522
      %v10063 = vadd.f32 %v8524, %v9527
      %v10064 = vadd.f32 %v8525, %v9530
      %v10065 = vadd.f32 %v8526, %v9535
      %v10066 = vadd.f32 %v8527, %v9538
      %v10067 = vadd.f32 %v8528, %v9543
      %v10068 = vadd.f32 %v8529, %v9546
      %v10069 = vadd.f32 %v8530, %v9551
      %v10070 = vadd.f32 %v8531, %v9554
      %v10071 = vadd.f32 %v8532, %v9559
      %v10072 = vadd.f32 %v8533, %v9562
      %v10073 = vadd.f32 %v8534, %v9567
      %v10074 = vadd.f32 %v8535, %v9570
      %v10075 = vadd.f32 %v8536, %v9575
      %v10076 = vadd.f32 %v8537, %v9578
      %v10077 = vadd.f32 %v8538, %v9583
      %v10078 = vadd.f32 %v8539, %v9586
      %v10079 = vadd.f32 %v8540, %v9591
      %v10080 = vadd.f32 %v8541, %v9594
      %v10081 = vadd.f32 %v8542, %v9599
      %v10082 = vadd.f32 %v8543, %v9602
      %v10083 = vadd.f32 %v8544, %v9607
      %v10084 = vadd.f32 %v8545, %v9610
      %v10085 = vadd.f32 %v8546, %v9615
      %v10086 = vadd.f32 %v8547, %v9618
      %v10087 = vadd.f32 %v8548, %v9623
      %v10088 = vadd.f32 %v8549, %v9626
      %v10089 = vadd.f32 %v8550, %v9631
      %v10090 = vadd.f32 %v8551, %v9634
      %v10091 = vadd.f32 %v8552, %v9639
      %v10092 = vadd.f32 %v8553, %v9642
      %v10093 = vadd.f32 %v8554, %v9647
      %v10094 = vadd.f32 %v8555, %v9650
      %v10095 = vadd.f32 %v8556, %v9655
      %v10096 = vadd.f32 %v8557, %v9658
      %v10097 = vadd.f32 %v8558, %v9663
      %v10098 = vadd.f32 %v8559, %v9666
      %v10099 = vadd.f32 %v8560, %v9671
      %v10100 = vadd.f32 %v8561, %v9674
      %v10101 = vadd.f32 %v8562, %v9679
      %v10102 = vadd.f32 %v8563, %v9682
      %v10103 = vadd.f32 %v8564, %v9687
      %v10104 = vadd.f32 %v8565, %v9690
      %v10105 = vadd.f32 %v8566, %v9695
      %v10106 = vadd.f32 %v8567, %v9698
      %v10107 = vadd.f32 %v8568, %v9703
      %v10108 = vadd.f32 %v8569, %v9706
      %v10109 = vadd.f32 %v8570, %v9711
      %v10110 = vadd.f32 %v8571, %v9714
      %v10111 = vadd.f32 %v8572, %v9719
      %v10112 = vadd.f32 %v8573, %v9722
      %v10113 = vadd.f32 %v8574, %v9727
      %v10114 = vadd.f32 %v8575, %v9730
      %v10115 = vadd.f32 %v8576, %v9735
      %v10116 = vadd.f32 %v8577, %v9738
      %v10117 = vadd.f32 %v8578, %v9743
      %v10118 = vadd.f32 %v8579, %v9746
      %v10119 = vadd.f32 %v8580, %v9751
      %v10120 = vadd.f32 %v8581, %v9754
      %v10121 = vadd.f32 %v8582, %v9759
      %v10122 = vadd.f32 %v8583, %v9762
      %v10123 = vadd.f32 %v8584, %v9767
      %v10124 = vadd.f32 %v8585, %v9770
      %v10125 = vadd.f32 %v8586, %v9775
      %v10126 = vadd.f32 %v8587, %v9778
      %v10127 = vadd.f32 %v8588, %v9783
      %v10128 = vadd.f32 %v8589, %v9786
      %v10129 = vadd.f32 %v8590, %v9791
      %v10130 = vadd.f32 %v8591, %v9794
      %v10131 = vadd.f32 %v8592, %v9799
      %v10132 = vadd.f32 %v8593, %v9802
      %v10133 = vadd.f32 %v8594, %v9807
      %v10134 = vadd.f32 %v8595, %v9810
      %v10135 = vadd.f32 %v8596, %v9815
      %v10136 = vadd.f32 %v8597, %v9818
      %v10137 = vadd.f32 %v8598, %v9823
      %v10138 = vadd.f32 %v8599, %v9826
      %v10139 = vadd.f32 %v8600, %v9831
      %v10140 = vadd.f32 %v8601, %v9834
      %v10141 = vadd.f32 %v8602, %v9839
      %v10142 = vadd.f32 %v8603, %v9842
      %v10143 = vadd.f32 %v8604, %v9847
      %v10144 = vadd.f32 %v8605, %v9850
      %v10145 = vadd.f32 %v8606, %v9855
      %v10146 = vadd.f32 %v8607, %v9858
      %v10147 = vadd.f32 %v8608, %v9863
      %v10148 = vadd.f32 %v8609, %v9866
      %v10149 = vadd.f32 %v8610, %v9871
      %v10150 = vadd.f32 %v8611, %v9874
      %v10151 = vadd.f32 %v8612, %v9879
      %v10152 = vadd.f32 %v8613, %v9882
      %v10153 = vadd.f32 %v8614, %v9887
      %v10154 = vadd.f32 %v8615, %v9890
      %v10155 = vadd.f32 %v8616, %v9895
      %v10156 = vadd.f32 %v8617, %v9898
      %v10157 = vadd.f32 %v8618, %v9903
      %v10158 = vadd.f32 %v8619, %v9906
      %v10159 = vadd.f32 %v8620, %v9911
      %v10160 = vadd.f32 %v8621, %v9914
      %v10161 = vadd.f32 %v8622, %v9919
      %v10162 = vadd.f32 %v8623, %v9922
      %v10163 = vadd.f32 %v8624, %v9927
      %v10164 = vadd.f32 %v8625, %v9930
      %v10165 = vadd.f32 %v8626, %v9935
      %v10166 = vadd.f32 %v8627, %v9938
      %v10167 = vadd.f32 %v8628, %v9943
      %v10168 = vadd.f32 %v8629, %v9946
      %v10169 = vadd.f32 %v8630, %v9951
      %v10170 = vadd.f32 %v8631, %v9954
      %v10171 = vadd.f32 %v8632, %v9959
      %v10172 = vadd.f32 %v8633, %v9962
      %v10173 = vadd.f32 %v8634, %v9967
      %v10174 = vadd.f32 %v8635, %v9970
      %v10175 = vadd.f32 %v8636, %v9975
      %v10176 = vadd.f32 %v8637, %v9978
      %v10177 = vadd.f32 %v8638, %v9983
      %v10178 = vadd.f32 %v8639, %v9986
      %v10179 = vadd.f32 %v8640, %v9991
      %v10180 = vadd.f32 %v8641, %v9994
      %v10181 = vadd.f32 %v8642, %v9999
      %v10182 = vadd.f32 %v8643, %v10002
      %v10183 = vadd.f32 %v8644, %v10007
      %v10184 = vadd.f32 %v8645, %v10010
      %v10185 = vadd.f32 %v8646, %v10015
      %v10186 = vadd.f32 %v8647, %v10018
      %v10187 = vadd.f32 %v8648, %v10023
      %v10188 = vadd.f32 %v8649, %v10026
      %v10189 = vadd.f32 %v8650, %v10031
      %v10190 = vadd.f32 %v8651, %v10034
      %v10191 = vadd.f32 %v8652, %v10039
      %v10192 = vadd.f32 %v8653, %v10042
      %v10193 = vadd.f32 %v8654, %v10047
      %v10194 = vadd.f32 %v8655, %v10050
      %v10195 = vadd.f32 %v8656, %v10055
      %v10196 = vadd.f32 %v8657, %v10058
      %v10197 = vld [vmem:[%s206 + $0x240] sm:$0x7]
      %s10198 = scalar_lea.vmem %s210, 28
      %v10199 = vld [vmem:[%s10198] sm:$0xf]
      %v10201 = vunpack.c.l.b16 %v10197
      %v10202 = vpack.c.b16 %v10201, %v10201
      %vm10203 = vsmask.f32 5376
      %v10205 = vshrl.u32 %v9071, 16
      %v10207 = vrot.slane %v10205, 2
      %v10208 = vshll.u32 %v9071, 16
      %v10210 = vrot.slane %v10208, 3
      %v10211 = vor.u32 %v10207, %v10210
      %v10213 = vshrl.u32 %v9072, 16
      %v10215 = vrot.slane %v10213, 2
      %v10216 = vshll.u32 %v9072, 16
      %v10218 = vrot.slane %v10216, 3
      %v10219 = vor.u32 %v10215, %v10218
      %v10220 = vsel %vm10203, %v10211, %v10219
      %v10222 = vshrl.u32 %v9073, 16
      %v10224 = vrot.slane %v10222, 2
      %v10225 = vshll.u32 %v9073, 16
      %v10227 = vrot.slane %v10225, 3
      %v10228 = vor.u32 %v10224, %v10227
      %v10229 = vsel %vm10203, %v10219, %v10228
      %v10231 = vshrl.u32 %v9074, 16
      %v10233 = vrot.slane %v10231, 2
      %v10234 = vshll.u32 %v9074, 16
      %v10236 = vrot.slane %v10234, 3
      %v10237 = vor.u32 %v10233, %v10236
      %v10238 = vsel %vm10203, %v10228, %v10237
      %v10240 = vshrl.u32 %v9075, 16
      %v10242 = vrot.slane %v10240, 2
      %v10243 = vshll.u32 %v9075, 16
      %v10245 = vrot.slane %v10243, 3
      %v10246 = vor.u32 %v10242, %v10245
      %v10247 = vsel %vm10203, %v10237, %v10246
      %v10249 = vshrl.u32 %v9076, 16
      %v10251 = vrot.slane %v10249, 2
      %v10252 = vshll.u32 %v9076, 16
      %v10254 = vrot.slane %v10252, 3
      %v10255 = vor.u32 %v10251, %v10254
      %v10256 = vsel %vm10203, %v10246, %v10255
      %v10258 = vshrl.u32 %v9077, 16
      %v10260 = vrot.slane %v10258, 2
      %v10261 = vshll.u32 %v9077, 16
      %v10263 = vrot.slane %v10261, 3
      %v10264 = vor.u32 %v10260, %v10263
      %v10265 = vsel %vm10203, %v10255, %v10264
      %v10267 = vshrl.u32 %v9078, 16
      %v10269 = vrot.slane %v10267, 2
      %v10270 = vshll.u32 %v9078, 16
      %v10272 = vrot.slane %v10270, 3
      %v10273 = vor.u32 %v10269, %v10272
      %v10274 = vsel %vm10203, %v10264, %v10273
      %v10276 = vshrl.u32 %v9079, 16
      %v10278 = vrot.slane %v10276, 2
      %v10279 = vshll.u32 %v9079, 16
      %v10281 = vrot.slane %v10279, 3
      %v10282 = vor.u32 %v10278, %v10281
      %v10283 = vsel %vm10203, %v10273, %v10282
      %v10285 = vshrl.u32 %v9080, 16
      %v10287 = vrot.slane %v10285, 2
      %v10288 = vshll.u32 %v9080, 16
      %v10290 = vrot.slane %v10288, 3
      %v10291 = vor.u32 %v10287, %v10290
      %v10292 = vsel %vm10203, %v10282, %v10291
      %v10294 = vshrl.u32 %v9081, 16
      %v10296 = vrot.slane %v10294, 2
      %v10297 = vshll.u32 %v9081, 16
      %v10299 = vrot.slane %v10297, 3
      %v10300 = vor.u32 %v10296, %v10299
      %v10301 = vsel %vm10203, %v10291, %v10300
      %v10303 = vshrl.u32 %v9082, 16
      %v10305 = vrot.slane %v10303, 2
      %v10306 = vshll.u32 %v9082, 16
      %v10308 = vrot.slane %v10306, 3
      %v10309 = vor.u32 %v10305, %v10308
      %v10310 = vsel %vm10203, %v10300, %v10309
      %v10312 = vshrl.u32 %v9083, 16
      %v10314 = vrot.slane %v10312, 2
      %v10315 = vshll.u32 %v9083, 16
      %v10317 = vrot.slane %v10315, 3
      %v10318 = vor.u32 %v10314, %v10317
      %v10319 = vsel %vm10203, %v10309, %v10318
      %v10321 = vshrl.u32 %v9084, 16
      %v10323 = vrot.slane %v10321, 2
      %v10324 = vshll.u32 %v9084, 16
      %v10326 = vrot.slane %v10324, 3
      %v10327 = vor.u32 %v10323, %v10326
      %v10328 = vsel %vm10203, %v10318, %v10327
      %v10330 = vshrl.u32 %v9085, 16
      %v10332 = vrot.slane %v10330, 2
      %v10333 = vshll.u32 %v9085, 16
      %v10335 = vrot.slane %v10333, 3
      %v10336 = vor.u32 %v10332, %v10335
      %v10337 = vsel %vm10203, %v10327, %v10336
      %v10339 = vshrl.u32 %v9086, 16
      %v10341 = vrot.slane %v10339, 2
      %v10342 = vshll.u32 %v9086, 16
      %v10344 = vrot.slane %v10342, 3
      %v10345 = vor.u32 %v10341, %v10344
      %v10346 = vsel %vm10203, %v10336, %v10345
      %v10348 = vshrl.u32 %v9087, 16
      %v10350 = vrot.slane %v10348, 2
      %v10351 = vshll.u32 %v9087, 16
      %v10353 = vrot.slane %v10351, 3
      %v10354 = vor.u32 %v10350, %v10353
      %v10355 = vsel %vm10203, %v10345, %v10354
      %v10357 = vshrl.u32 %v9088, 16
      %v10359 = vrot.slane %v10357, 2
      %v10360 = vshll.u32 %v9088, 16
      %v10362 = vrot.slane %v10360, 3
      %v10363 = vor.u32 %v10359, %v10362
      %v10364 = vsel %vm10203, %v10354, %v10363
      %v10366 = vshrl.u32 %v9089, 16
      %v10368 = vrot.slane %v10366, 2
      %v10369 = vshll.u32 %v9089, 16
      %v10371 = vrot.slane %v10369, 3
      %v10372 = vor.u32 %v10368, %v10371
      %v10373 = vsel %vm10203, %v10363, %v10372
      %v10375 = vshrl.u32 %v9090, 16
      %v10377 = vrot.slane %v10375, 2
      %v10378 = vshll.u32 %v9090, 16
      %v10380 = vrot.slane %v10378, 3
      %v10381 = vor.u32 %v10377, %v10380
      %v10382 = vsel %vm10203, %v10372, %v10381
      %v10384 = vshrl.u32 %v9091, 16
      %v10386 = vrot.slane %v10384, 2
      %v10387 = vshll.u32 %v9091, 16
      %v10389 = vrot.slane %v10387, 3
      %v10390 = vor.u32 %v10386, %v10389
      %v10391 = vsel %vm10203, %v10381, %v10390
      %v10393 = vshrl.u32 %v9092, 16
      %v10395 = vrot.slane %v10393, 2
      %v10396 = vshll.u32 %v9092, 16
      %v10398 = vrot.slane %v10396, 3
      %v10399 = vor.u32 %v10395, %v10398
      %v10400 = vsel %vm10203, %v10390, %v10399
      %v10402 = vshrl.u32 %v9093, 16
      %v10404 = vrot.slane %v10402, 2
      %v10405 = vshll.u32 %v9093, 16
      %v10407 = vrot.slane %v10405, 3
      %v10408 = vor.u32 %v10404, %v10407
      %v10409 = vsel %vm10203, %v10399, %v10408
      %v10411 = vshrl.u32 %v9094, 16
      %v10413 = vrot.slane %v10411, 2
      %v10414 = vshll.u32 %v9094, 16
      %v10416 = vrot.slane %v10414, 3
      %v10417 = vor.u32 %v10413, %v10416
      %v10418 = vsel %vm10203, %v10408, %v10417
      %v10420 = vshrl.u32 %v9095, 16
      %v10422 = vrot.slane %v10420, 2
      %v10423 = vshll.u32 %v9095, 16
      %v10425 = vrot.slane %v10423, 3
      %v10426 = vor.u32 %v10422, %v10425
      %v10427 = vsel %vm10203, %v10417, %v10426
      %v10429 = vshrl.u32 %v9096, 16
      %v10431 = vrot.slane %v10429, 2
      %v10432 = vshll.u32 %v9096, 16
      %v10434 = vrot.slane %v10432, 3
      %v10435 = vor.u32 %v10431, %v10434
      %v10436 = vsel %vm10203, %v10426, %v10435
      %v10438 = vshrl.u32 %v9097, 16
      %v10440 = vrot.slane %v10438, 2
      %v10441 = vshll.u32 %v9097, 16
      %v10443 = vrot.slane %v10441, 3
      %v10444 = vor.u32 %v10440, %v10443
      %v10445 = vsel %vm10203, %v10435, %v10444
      %v10447 = vshrl.u32 %v9098, 16
      %v10449 = vrot.slane %v10447, 2
      %v10450 = vshll.u32 %v9098, 16
      %v10452 = vrot.slane %v10450, 3
      %v10453 = vor.u32 %v10449, %v10452
      %v10454 = vsel %vm10203, %v10444, %v10453
      %v10456 = vshrl.u32 %v9099, 16
      %v10458 = vrot.slane %v10456, 2
      %v10459 = vshll.u32 %v9099, 16
      %v10461 = vrot.slane %v10459, 3
      %v10462 = vor.u32 %v10458, %v10461
      %v10463 = vsel %vm10203, %v10453, %v10462
      %v10465 = vshrl.u32 %v9100, 16
      %v10467 = vrot.slane %v10465, 2
      %v10468 = vshll.u32 %v9100, 16
      %v10470 = vrot.slane %v10468, 3
      %v10471 = vor.u32 %v10467, %v10470
      %v10472 = vsel %vm10203, %v10462, %v10471
      %v10474 = vshrl.u32 %v9101, 16
      %v10476 = vrot.slane %v10474, 2
      %v10477 = vshll.u32 %v9101, 16
      %v10479 = vrot.slane %v10477, 3
      %v10480 = vor.u32 %v10476, %v10479
      %v10481 = vsel %vm10203, %v10471, %v10480
      %v10483 = vshrl.u32 %v9102, 16
      %v10485 = vrot.slane %v10483, 2
      %v10486 = vshll.u32 %v9102, 16
      %v10488 = vrot.slane %v10486, 3
      %v10489 = vor.u32 %v10485, %v10488
      %v10490 = vsel %vm10203, %v10480, %v10489
      %v10492 = vshrl.u32 %v9103, 16
      %v10494 = vrot.slane %v10492, 2
      %v10495 = vshll.u32 %v9103, 16
      %v10497 = vrot.slane %v10495, 3
      %v10498 = vor.u32 %v10494, %v10497
      %v10499 = vsel %vm10203, %v10489, %v10498
      %v10501 = vshrl.u32 %v9104, 16
      %v10503 = vrot.slane %v10501, 2
      %v10504 = vshll.u32 %v9104, 16
      %v10506 = vrot.slane %v10504, 3
      %v10507 = vor.u32 %v10503, %v10506
      %v10508 = vsel %vm10203, %v10498, %v10507
      %v10510 = vshrl.u32 %v9105, 16
      %v10512 = vrot.slane %v10510, 2
      %v10513 = vshll.u32 %v9105, 16
      %v10515 = vrot.slane %v10513, 3
      %v10516 = vor.u32 %v10512, %v10515
      %v10517 = vsel %vm10203, %v10507, %v10516
      %v10519 = vshrl.u32 %v9106, 16
      %v10521 = vrot.slane %v10519, 2
      %v10522 = vshll.u32 %v9106, 16
      %v10524 = vrot.slane %v10522, 3
      %v10525 = vor.u32 %v10521, %v10524
      %v10526 = vsel %vm10203, %v10516, %v10525
      %v10528 = vshrl.u32 %v9107, 16
      %v10530 = vrot.slane %v10528, 2
      %v10531 = vshll.u32 %v9107, 16
      %v10533 = vrot.slane %v10531, 3
      %v10534 = vor.u32 %v10530, %v10533
      %v10535 = vsel %vm10203, %v10525, %v10534
      %v10537 = vshrl.u32 %v9108, 16
      %v10539 = vrot.slane %v10537, 2
      %v10540 = vshll.u32 %v9108, 16
      %v10542 = vrot.slane %v10540, 3
      %v10543 = vor.u32 %v10539, %v10542
      %v10544 = vsel %vm10203, %v10534, %v10543
      %v10546 = vshrl.u32 %v9109, 16
      %v10548 = vrot.slane %v10546, 2
      %v10549 = vshll.u32 %v9109, 16
      %v10551 = vrot.slane %v10549, 3
      %v10552 = vor.u32 %v10548, %v10551
      %v10553 = vsel %vm10203, %v10543, %v10552
      %v10555 = vshrl.u32 %v9110, 16
      %v10557 = vrot.slane %v10555, 2
      %v10558 = vshll.u32 %v9110, 16
      %v10560 = vrot.slane %v10558, 3
      %v10561 = vor.u32 %v10557, %v10560
      %v10562 = vsel %vm10203, %v10552, %v10561
      %v10564 = vshrl.u32 %v9111, 16
      %v10566 = vrot.slane %v10564, 2
      %v10567 = vshll.u32 %v9111, 16
      %v10569 = vrot.slane %v10567, 3
      %v10570 = vor.u32 %v10566, %v10569
      %v10571 = vsel %vm10203, %v10561, %v10570
      %v10573 = vshrl.u32 %v9112, 16
      %v10575 = vrot.slane %v10573, 2
      %v10576 = vshll.u32 %v9112, 16
      %v10578 = vrot.slane %v10576, 3
      %v10579 = vor.u32 %v10575, %v10578
      %v10580 = vsel %vm10203, %v10570, %v10579
      %v10582 = vshrl.u32 %v9113, 16
      %v10584 = vrot.slane %v10582, 2
      %v10585 = vshll.u32 %v9113, 16
      %v10587 = vrot.slane %v10585, 3
      %v10588 = vor.u32 %v10584, %v10587
      %v10589 = vsel %vm10203, %v10579, %v10588
      %v10591 = vshrl.u32 %v9114, 16
      %v10593 = vrot.slane %v10591, 2
      %v10594 = vshll.u32 %v9114, 16
      %v10596 = vrot.slane %v10594, 3
      %v10597 = vor.u32 %v10593, %v10596
      %v10598 = vsel %vm10203, %v10588, %v10597
      %v10600 = vshrl.u32 %v9115, 16
      %v10602 = vrot.slane %v10600, 2
      %v10603 = vshll.u32 %v9115, 16
      %v10605 = vrot.slane %v10603, 3
      %v10606 = vor.u32 %v10602, %v10605
      %v10607 = vsel %vm10203, %v10597, %v10606
      %v10609 = vshrl.u32 %v9116, 16
      %v10611 = vrot.slane %v10609, 2
      %v10612 = vshll.u32 %v9116, 16
      %v10614 = vrot.slane %v10612, 3
      %v10615 = vor.u32 %v10611, %v10614
      %v10616 = vsel %vm10203, %v10606, %v10615
      %v10618 = vshrl.u32 %v9117, 16
      %v10620 = vrot.slane %v10618, 2
      %v10621 = vshll.u32 %v9117, 16
      %v10623 = vrot.slane %v10621, 3
      %v10624 = vor.u32 %v10620, %v10623
      %v10625 = vsel %vm10203, %v10615, %v10624
      %v10627 = vshrl.u32 %v9118, 16
      %v10629 = vrot.slane %v10627, 2
      %v10630 = vshll.u32 %v9118, 16
      %v10632 = vrot.slane %v10630, 3
      %v10633 = vor.u32 %v10629, %v10632
      %v10634 = vsel %vm10203, %v10624, %v10633
      %v10636 = vshrl.u32 %v9119, 16
      %v10638 = vrot.slane %v10636, 2
      %v10639 = vshll.u32 %v9119, 16
      %v10641 = vrot.slane %v10639, 3
      %v10642 = vor.u32 %v10638, %v10641
      %v10643 = vsel %vm10203, %v10633, %v10642
      %v10645 = vshrl.u32 %v9120, 16
      %v10647 = vrot.slane %v10645, 2
      %v10648 = vshll.u32 %v9120, 16
      %v10650 = vrot.slane %v10648, 3
      %v10651 = vor.u32 %v10647, %v10650
      %v10652 = vsel %vm10203, %v10642, %v10651
      %v10654 = vshrl.u32 %v9121, 16
      %v10656 = vrot.slane %v10654, 2
      %v10657 = vshll.u32 %v9121, 16
      %v10659 = vrot.slane %v10657, 3
      %v10660 = vor.u32 %v10656, %v10659
      %v10661 = vsel %vm10203, %v10651, %v10660
      %v10663 = vshrl.u32 %v9122, 16
      %v10665 = vrot.slane %v10663, 2
      %v10666 = vshll.u32 %v9122, 16
      %v10668 = vrot.slane %v10666, 3
      %v10669 = vor.u32 %v10665, %v10668
      %v10670 = vsel %vm10203, %v10660, %v10669
      %v10672 = vshrl.u32 %v9123, 16
      %v10674 = vrot.slane %v10672, 2
      %v10675 = vshll.u32 %v9123, 16
      %v10677 = vrot.slane %v10675, 3
      %v10678 = vor.u32 %v10674, %v10677
      %v10679 = vsel %vm10203, %v10669, %v10678
      %v10681 = vshrl.u32 %v9124, 16
      %v10683 = vrot.slane %v10681, 2
      %v10684 = vshll.u32 %v9124, 16
      %v10686 = vrot.slane %v10684, 3
      %v10687 = vor.u32 %v10683, %v10686
      %v10688 = vsel %vm10203, %v10678, %v10687
      %v10690 = vshrl.u32 %v9125, 16
      %v10692 = vrot.slane %v10690, 2
      %v10693 = vshll.u32 %v9125, 16
      %v10695 = vrot.slane %v10693, 3
      %v10696 = vor.u32 %v10692, %v10695
      %v10697 = vsel %vm10203, %v10687, %v10696
      %v10699 = vshrl.u32 %v9126, 16
      %v10701 = vrot.slane %v10699, 2
      %v10702 = vshll.u32 %v9126, 16
      %v10704 = vrot.slane %v10702, 3
      %v10705 = vor.u32 %v10701, %v10704
      %v10706 = vsel %vm10203, %v10696, %v10705
      %v10708 = vshrl.u32 %v9127, 16
      %v10710 = vrot.slane %v10708, 2
      %v10711 = vshll.u32 %v9127, 16
      %v10713 = vrot.slane %v10711, 3
      %v10714 = vor.u32 %v10710, %v10713
      %v10715 = vsel %vm10203, %v10705, %v10714
      %v10717 = vshrl.u32 %v9128, 16
      %v10719 = vrot.slane %v10717, 2
      %v10720 = vshll.u32 %v9128, 16
      %v10722 = vrot.slane %v10720, 3
      %v10723 = vor.u32 %v10719, %v10722
      %v10724 = vsel %vm10203, %v10714, %v10723
      %v10726 = vshrl.u32 %v9129, 16
      %v10728 = vrot.slane %v10726, 2
      %v10729 = vshll.u32 %v9129, 16
      %v10731 = vrot.slane %v10729, 3
      %v10732 = vor.u32 %v10728, %v10731
      %v10733 = vsel %vm10203, %v10723, %v10732
      %v10735 = vshrl.u32 %v9130, 16
      %v10737 = vrot.slane %v10735, 2
      %v10738 = vshll.u32 %v9130, 16
      %v10740 = vrot.slane %v10738, 3
      %v10741 = vor.u32 %v10737, %v10740
      %v10742 = vsel %vm10203, %v10732, %v10741
      %v10744 = vshrl.u32 %v9131, 16
      %v10746 = vrot.slane %v10744, 2
      %v10747 = vshll.u32 %v9131, 16
      %v10749 = vrot.slane %v10747, 3
      %v10750 = vor.u32 %v10746, %v10749
      %v10751 = vsel %vm10203, %v10741, %v10750
      %v10753 = vshrl.u32 %v9132, 16
      %v10755 = vrot.slane %v10753, 2
      %v10756 = vshll.u32 %v9132, 16
      %v10758 = vrot.slane %v10756, 3
      %v10759 = vor.u32 %v10755, %v10758
      %v10760 = vsel %vm10203, %v10750, %v10759
      %v10762 = vshrl.u32 %v9133, 16
      %v10764 = vrot.slane %v10762, 2
      %v10765 = vshll.u32 %v9133, 16
      %v10767 = vrot.slane %v10765, 3
      %v10768 = vor.u32 %v10764, %v10767
      %v10769 = vsel %vm10203, %v10759, %v10768
      %v10771 = vshrl.u32 %v9134, 16
      %v10773 = vrot.slane %v10771, 2
      %v10774 = vshll.u32 %v9134, 16
      %v10776 = vrot.slane %v10774, 3
      %v10777 = vor.u32 %v10773, %v10776
      %v10778 = vsel %vm10203, %v10768, %v10777
      %v10780 = vshrl.u32 %v9135, 16
      %v10782 = vrot.slane %v10780, 2
      %v10783 = vshll.u32 %v9135, 16
      %v10785 = vrot.slane %v10783, 3
      %v10786 = vor.u32 %v10782, %v10785
      %v10787 = vsel %vm10203, %v10777, %v10786
      %v10789 = vshrl.u32 %v9136, 16
      %v10791 = vrot.slane %v10789, 2
      %v10792 = vshll.u32 %v9136, 16
      %v10794 = vrot.slane %v10792, 3
      %v10795 = vor.u32 %v10791, %v10794
      %v10796 = vsel %vm10203, %v10786, %v10795
      %v10798 = vshrl.u32 %v9137, 16
      %v10800 = vrot.slane %v10798, 2
      %v10801 = vshll.u32 %v9137, 16
      %v10803 = vrot.slane %v10801, 3
      %v10804 = vor.u32 %v10800, %v10803
      %v10805 = vsel %vm10203, %v10795, %v10804
      %v10807 = vshrl.u32 %v9138, 16
      %v10809 = vrot.slane %v10807, 2
      %v10810 = vshll.u32 %v9138, 16
      %v10812 = vrot.slane %v10810, 3
      %v10813 = vor.u32 %v10809, %v10812
      %v10814 = vsel %vm10203, %v10804, %v10813
      %v10816 = vshrl.u32 %v10202, 16
      %v10818 = vrot.slane %v10816, 2
      %v10819 = vshll.u32 %v10202, 16
      %v10821 = vrot.slane %v10819, 3
      %v10822 = vor.u32 %v10818, %v10821
      %v10823 = vsel %vm10203, %v10813, %v10822
      %v10825 = vsel %vm707, %v10220, 0
      %v10828 = vsel %vm707, %v10229, 0
      %v10831 = vsel %vm707, %v10238, 0
      %v10834 = vsel %vm707, %v10247, 0
      %v10837 = vsel %vm707, %v10256, 0
      %v10840 = vsel %vm707, %v10265, 0
      %v10843 = vsel %vm707, %v10274, 0
      %v10846 = vsel %vm707, %v10283, 0
      %v10849 = vsel %vm707, %v10292, 0
      %v10852 = vsel %vm707, %v10301, 0
      %v10855 = vsel %vm707, %v10310, 0
      %v10858 = vsel %vm707, %v10319, 0
      %v10861 = vsel %vm707, %v10328, 0
      %v10864 = vsel %vm707, %v10337, 0
      %v10867 = vsel %vm707, %v10346, 0
      %v10870 = vsel %vm707, %v10355, 0
      %v10873 = vsel %vm707, %v10364, 0
      %v10876 = vsel %vm707, %v10373, 0
      %v10879 = vsel %vm707, %v10382, 0
      %v10882 = vsel %vm707, %v10391, 0
      %v10885 = vsel %vm707, %v10400, 0
      %v10888 = vsel %vm707, %v10409, 0
      %v10891 = vsel %vm707, %v10418, 0
      %v10894 = vsel %vm707, %v10427, 0
      %v10897 = vsel %vm707, %v10436, 0
      %v10900 = vsel %vm707, %v10445, 0
      %v10903 = vsel %vm707, %v10454, 0
      %v10906 = vsel %vm707, %v10463, 0
      %v10909 = vsel %vm707, %v10472, 0
      %v10912 = vsel %vm707, %v10481, 0
      %v10915 = vsel %vm707, %v10490, 0
      %v10918 = vsel %vm707, %v10499, 0
      %v10921 = vsel %vm707, %v10508, 0
      %v10924 = vsel %vm707, %v10517, 0
      %v10927 = vsel %vm707, %v10526, 0
      %v10930 = vsel %vm707, %v10535, 0
      %v10933 = vsel %vm707, %v10544, 0
      %v10936 = vsel %vm707, %v10553, 0
      %v10939 = vsel %vm707, %v10562, 0
      %v10942 = vsel %vm707, %v10571, 0
      %v10945 = vsel %vm707, %v10580, 0
      %v10948 = vsel %vm707, %v10589, 0
      %v10951 = vsel %vm707, %v10598, 0
      %v10954 = vsel %vm707, %v10607, 0
      %v10957 = vsel %vm707, %v10616, 0
      %v10960 = vsel %vm707, %v10625, 0
      %v10963 = vsel %vm707, %v10634, 0
      %v10966 = vsel %vm707, %v10643, 0
      %v10969 = vsel %vm707, %v10652, 0
      %v10972 = vsel %vm707, %v10661, 0
      %v10975 = vsel %vm707, %v10670, 0
      %v10978 = vsel %vm707, %v10679, 0
      %v10981 = vsel %vm707, %v10688, 0
      %v10984 = vsel %vm707, %v10697, 0
      %v10987 = vsel %vm707, %v10706, 0
      %v10990 = vsel %vm707, %v10715, 0
      %v10993 = vsel %vm707, %v10724, 0
      %v10996 = vsel %vm707, %v10733, 0
      %v10999 = vsel %vm707, %v10742, 0
      %v11002 = vsel %vm707, %v10751, 0
      %v11005 = vsel %vm707, %v10760, 0
      %v11008 = vsel %vm707, %v10769, 0
      %v11011 = vsel %vm707, %v10778, 0
      %v11014 = vsel %vm707, %v10787, 0
      %v11017 = vsel %vm707, %v10796, 0
      %v11020 = vsel %vm707, %v10805, 0
      %v11023 = vsel %vm707, %v10814, 0
      %v11026 = vsel %vm707, %v10823, 0
      %v11029 = vsel %vm912, %v10199, 0
      %11031 = vmatprep.subr.bf16.mxu0 0
      %11032 = vmatpush1.bf16.msra.mxu0 %v11029
      %11033 = vmatprep.subr.bf16.mxu0 0
      %11034 = vmatpush1.bf16.msra.mxu0 0
      %11035 = vmatprep.subr.bf16.mxu0 0
      %11036 = vmatpush1.bf16.msra.mxu0 0
      %11037 = vmatprep.subr.bf16.mxu0 0
      %11038 = vmatpush1.bf16.msra.mxu0 0
      %11039 = vmatprep.subr.bf16.mxu0 0
      %11040 = vmatpush1.bf16.msra.mxu0 0
      %11041 = vmatprep.subr.bf16.mxu0 0
      %11042 = vmatpush1.bf16.msra.mxu0 0
      %11043 = vmatprep.subr.bf16.mxu0 0
      %11044 = vmatpush1.bf16.msra.mxu0 0
      %11045 = vmatprep.subr.bf16.mxu0 0
      %11046 = vmatpush1.bf16.msra.mxu0 0
      %11047 = vmatprep.subr.bf16.mxu0 0
      %11048 = vmatpush1.bf16.msra.mxu0 0
      %11049 = vmatprep.subr.bf16.mxu0 0
      %11050 = vmatpush1.bf16.msra.mxu0 0
      %11051 = vmatprep.subr.bf16.mxu0 0
      %11052 = vmatpush1.bf16.msra.mxu0 0
      %11053 = vmatprep.subr.bf16.mxu0 0
      %11054 = vmatpush1.bf16.msra.mxu0 0
      %11055 = vmatprep.subr.bf16.mxu0 0
      %11056 = vmatpush1.bf16.msra.mxu0 0
      %11057 = vmatprep.subr.bf16.mxu0 0
      %11058 = vmatpush1.bf16.msra.mxu0 0
      %11059 = vmatprep.subr.bf16.mxu0 0
      %11060 = vmatpush1.bf16.msra.mxu0 0
      %11061 = vmatprep.subr.bf16.mxu0 0
      %11062 = vmatpush1.bf16.msra.mxu0 0
      %11063 = vmatprep.mubr.bf16.mxu0 0
      %11064 = vmatmul.mubr.bf16.gmra.mrb[0].mxu0 %v10825
      %v11065 = vpop.f32.mrb[0].mxu0
      %v11066 = vadd.f32 0.0, %v11065
      %v11067 = vpop.f32.mrb[0].mxu0
      %v11068 = vpop.f32.mrb[0].mxu0
      %v11069 = vadd.f32 0.0, %v11068
      %v11070 = vpop.f32.mrb[0].mxu0
      %11071 = vmatprep.mubr.bf16.mxu0 0
      %11072 = vmatmul.mubr.bf16.gmra.mrb[0].mxu0 %v10828
      %v11073 = vpop.f32.mrb[0].mxu0
      %v11074 = vadd.f32 0.0, %v11073
      %v11075 = vpop.f32.mrb[0].mxu0
      %v11076 = vpop.f32.mrb[0].mxu0
      %v11077 = vadd.f32 0.0, %v11076
      %v11078 = vpop.f32.mrb[0].mxu0
      %11079 = vmatprep.mubr.bf16.mxu0 0
      %11080 = vmatmul.mubr.bf16.gmra.mrb[0].mxu0 %v10831
      %v11081 = vpop.f32.mrb[0].mxu0
      %v11082 = vadd.f32 0.0, %v11081
      %v11083 = vpop.f32.mrb[0].mxu0
      %v11084 = vpop.f32.mrb[0].mxu0
      %v11085 = vadd.f32 0.0, %v11084
      %v11086 = vpop.f32.mrb[0].mxu0
      %11087 = vmatprep.mubr.bf16.mxu0 0
      %11088 = vmatmul.mubr.bf16.gmra.mrb[0].mxu0 %v10834
      %v11089 = vpop.f32.mrb[0].mxu0
      %v11090 = vadd.f32 0.0, %v11089
      %v11091 = vpop.f32.mrb[0].mxu0
      %v11092 = vpop.f32.mrb[0].mxu0
      %v11093 = vadd.f32 0.0, %v11092
      %v11094 = vpop.f32.mrb[0].mxu0
      %11095 = vmatprep.mubr.bf16.mxu0 0
      %11096 = vmatmul.mubr.bf16.gmra.mrb[0].mxu0 %v10837
      %v11097 = vpop.f32.mrb[0].mxu0
      %v11098 = vadd.f32 0.0, %v11097
      %v11099 = vpop.f32.mrb[0].mxu0
      %v11100 = vpop.f32.mrb[0].mxu0
      %v11101 = vadd.f32 0.0, %v11100
      %v11102 = vpop.f32.mrb[0].mxu0
      %11103 = vmatprep.mubr.bf16.mxu0 0
      %11104 = vmatmul.mubr.bf16.gmra.mrb[0].mxu0 %v10840
      %v11105 = vpop.f32.mrb[0].mxu0
      %v11106 = vadd.f32 0.0, %v11105
      %v11107 = vpop.f32.mrb[0].mxu0
      %v11108 = vpop.f32.mrb[0].mxu0
      %v11109 = vadd.f32 0.0, %v11108
      %v11110 = vpop.f32.mrb[0].mxu0
      %11111 = vmatprep.mubr.bf16.mxu0 0
      %11112 = vmatmul.mubr.bf16.gmra.mrb[0].mxu0 %v10843
      %v11113 = vpop.f32.mrb[0].mxu0
      %v11114 = vadd.f32 0.0, %v11113
      %v11115 = vpop.f32.mrb[0].mxu0
      %v11116 = vpop.f32.mrb[0].mxu0
      %v11117 = vadd.f32 0.0, %v11116
      %v11118 = vpop.f32.mrb[0].mxu0
      %11119 = vmatprep.mubr.bf16.mxu0 0
      %11120 = vmatmul.mubr.bf16.gmra.mrb[0].mxu0 %v10846
      %v11121 = vpop.f32.mrb[0].mxu0
      %v11122 = vadd.f32 0.0, %v11121
      %v11123 = vpop.f32.mrb[0].mxu0
      %v11124 = vpop.f32.mrb[0].mxu0
      %v11125 = vadd.f32 0.0, %v11124
      %v11126 = vpop.f32.mrb[0].mxu0
      %11127 = vmatprep.mubr.bf16.mxu0 0
      %11128 = vmatmul.mubr.bf16.gmra.mrb[0].mxu0 %v10849
      %v11129 = vpop.f32.mrb[0].mxu0
      %v11130 = vadd.f32 0.0, %v11129
      %v11131 = vpop.f32.mrb[0].mxu0
      %v11132 = vpop.f32.mrb[0].mxu0
      %v11133 = vadd.f32 0.0, %v11132
      %v11134 = vpop.f32.mrb[0].mxu0
      %11135 = vmatprep.mubr.bf16.mxu0 0
      %11136 = vmatmul.mubr.bf16.gmra.mrb[0].mxu0 %v10852
      %v11137 = vpop.f32.mrb[0].mxu0
      %v11138 = vadd.f32 0.0, %v11137
      %v11139 = vpop.f32.mrb[0].mxu0
      %v11140 = vpop.f32.mrb[0].mxu0
      %v11141 = vadd.f32 0.0, %v11140
      %v11142 = vpop.f32.mrb[0].mxu0
      %11143 = vmatprep.mubr.bf16.mxu0 0
      %11144 = vmatmul.mubr.bf16.gmra.mrb[0].mxu0 %v10855
      %v11145 = vpop.f32.mrb[0].mxu0
      %v11146 = vadd.f32 0.0, %v11145
      %v11147 = vpop.f32.mrb[0].mxu0
      %v11148 = vpop.f32.mrb[0].mxu0
      %v11149 = vadd.f32 0.0, %v11148
      %v11150 = vpop.f32.mrb[0].mxu0
      %11151 = vmatprep.mubr.bf16.mxu0 0
      %11152 = vmatmul.mubr.bf16.gmra.mrb[0].mxu0 %v10858
      %v11153 = vpop.f32.mrb[0].mxu0
      %v11154 = vadd.f32 0.0, %v11153
      %v11155 = vpop.f32.mrb[0].mxu0
      %v11156 = vpop.f32.mrb[0].mxu0
      %v11157 = vadd.f32 0.0, %v11156
      %v11158 = vpop.f32.mrb[0].mxu0
      %11159 = vmatprep.mubr.bf16.mxu0 0
      %11160 = vmatmul.mubr.bf16.gmra.mrb[0].mxu0 %v10861
      %v11161 = vpop.f32.mrb[0].mxu0
      %v11162 = vadd.f32 0.0, %v11161
      %v11163 = vpop.f32.mrb[0].mxu0
      %v11164 = vpop.f32.mrb[0].mxu0
      %v11165 = vadd.f32 0.0, %v11164
      %v11166 = vpop.f32.mrb[0].mxu0
      %11167 = vmatprep.mubr.bf16.mxu0 0
      %11168 = vmatmul.mubr.bf16.gmra.mrb[0].mxu0 %v10864
      %v11169 = vpop.f32.mrb[0].mxu0
      %v11170 = vadd.f32 0.0, %v11169
      %v11171 = vpop.f32.mrb[0].mxu0
      %v11172 = vpop.f32.mrb[0].mxu0
      %v11173 = vadd.f32 0.0, %v11172
      %v11174 = vpop.f32.mrb[0].mxu0
      %11175 = vmatprep.mubr.bf16.mxu0 0
      %11176 = vmatmul.mubr.bf16.gmra.mrb[0].mxu0 %v10867
      %v11177 = vpop.f32.mrb[0].mxu0
      %v11178 = vadd.f32 0.0, %v11177
      %v11179 = vpop.f32.mrb[0].mxu0
      %v11180 = vpop.f32.mrb[0].mxu0
      %v11181 = vadd.f32 0.0, %v11180
      %v11182 = vpop.f32.mrb[0].mxu0
      %11183 = vmatprep.mubr.bf16.mxu0 0
      %11184 = vmatmul.mubr.bf16.gmra.mrb[0].mxu0 %v10870
      %v11185 = vpop.f32.mrb[0].mxu0
      %v11186 = vadd.f32 0.0, %v11185
      %v11187 = vpop.f32.mrb[0].mxu0
      %v11188 = vpop.f32.mrb[0].mxu0
      %v11189 = vadd.f32 0.0, %v11188
      %v11190 = vpop.f32.mrb[0].mxu0
      %11191 = vmatprep.mubr.bf16.mxu0 0
      %11192 = vmatmul.mubr.bf16.gmra.mrb[0].mxu0 %v10873
      %v11193 = vpop.f32.mrb[0].mxu0
      %v11194 = vadd.f32 0.0, %v11193
      %v11195 = vpop.f32.mrb[0].mxu0
      %v11196 = vpop.f32.mrb[0].mxu0
      %v11197 = vadd.f32 0.0, %v11196
      %v11198 = vpop.f32.mrb[0].mxu0
      %11199 = vmatprep.mubr.bf16.mxu0 0
      %11200 = vmatmul.mubr.bf16.gmra.mrb[0].mxu0 %v10876
      %v11201 = vpop.f32.mrb[0].mxu0
      %v11202 = vadd.f32 0.0, %v11201
      %v11203 = vpop.f32.mrb[0].mxu0
      %v11204 = vpop.f32.mrb[0].mxu0
      %v11205 = vadd.f32 0.0, %v11204
      %v11206 = vpop.f32.mrb[0].mxu0
      %11207 = vmatprep.mubr.bf16.mxu0 0
      %11208 = vmatmul.mubr.bf16.gmra.mrb[0].mxu0 %v10879
      %v11209 = vpop.f32.mrb[0].mxu0
      %v11210 = vadd.f32 0.0, %v11209
      %v11211 = vpop.f32.mrb[0].mxu0
      %v11212 = vpop.f32.mrb[0].mxu0
      %v11213 = vadd.f32 0.0, %v11212
      %v11214 = vpop.f32.mrb[0].mxu0
      %11215 = vmatprep.mubr.bf16.mxu0 0
      %11216 = vmatmul.mubr.bf16.gmra.mrb[0].mxu0 %v10882
      %v11217 = vpop.f32.mrb[0].mxu0
      %v11218 = vadd.f32 0.0, %v11217
      %v11219 = vpop.f32.mrb[0].mxu0
      %v11220 = vpop.f32.mrb[0].mxu0
      %v11221 = vadd.f32 0.0, %v11220
      %v11222 = vpop.f32.mrb[0].mxu0
      %11223 = vmatprep.mubr.bf16.mxu0 0
      %11224 = vmatmul.mubr.bf16.gmra.mrb[0].mxu0 %v10885
      %v11225 = vpop.f32.mrb[0].mxu0
      %v11226 = vadd.f32 0.0, %v11225
      %v11227 = vpop.f32.mrb[0].mxu0
      %v11228 = vpop.f32.mrb[0].mxu0
      %v11229 = vadd.f32 0.0, %v11228
      %v11230 = vpop.f32.mrb[0].mxu0
      %11231 = vmatprep.mubr.bf16.mxu0 0
      %11232 = vmatmul.mubr.bf16.gmra.mrb[0].mxu0 %v10888
      %v11233 = vpop.f32.mrb[0].mxu0
      %v11234 = vadd.f32 0.0, %v11233
      %v11235 = vpop.f32.mrb[0].mxu0
      %v11236 = vpop.f32.mrb[0].mxu0
      %v11237 = vadd.f32 0.0, %v11236
      %v11238 = vpop.f32.mrb[0].mxu0
      %11239 = vmatprep.mubr.bf16.mxu0 0
      %11240 = vmatmul.mubr.bf16.gmra.mrb[0].mxu0 %v10891
      %v11241 = vpop.f32.mrb[0].mxu0
      %v11242 = vadd.f32 0.0, %v11241
      %v11243 = vpop.f32.mrb[0].mxu0
      %v11244 = vpop.f32.mrb[0].mxu0
      %v11245 = vadd.f32 0.0, %v11244
      %v11246 = vpop.f32.mrb[0].mxu0
      %11247 = vmatprep.mubr.bf16.mxu0 0
      %11248 = vmatmul.mubr.bf16.gmra.mrb[0].mxu0 %v10894
      %v11249 = vpop.f32.mrb[0].mxu0
      %v11250 = vadd.f32 0.0, %v11249
      %v11251 = vpop.f32.mrb[0].mxu0
      %v11252 = vpop.f32.mrb[0].mxu0
      %v11253 = vadd.f32 0.0, %v11252
      %v11254 = vpop.f32.mrb[0].mxu0
      %11255 = vmatprep.mubr.bf16.mxu0 0
      %11256 = vmatmul.mubr.bf16.gmra.mrb[0].mxu0 %v10897
      %v11257 = vpop.f32.mrb[0].mxu0
      %v11258 = vadd.f32 0.0, %v11257
      %v11259 = vpop.f32.mrb[0].mxu0
      %v11260 = vpop.f32.mrb[0].mxu0
      %v11261 = vadd.f32 0.0, %v11260
      %v11262 = vpop.f32.mrb[0].mxu0
      %11263 = vmatprep.mubr.bf16.mxu0 0
      %11264 = vmatmul.mubr.bf16.gmra.mrb[0].mxu0 %v10900
      %v11265 = vpop.f32.mrb[0].mxu0
      %v11266 = vadd.f32 0.0, %v11265
      %v11267 = vpop.f32.mrb[0].mxu0
      %v11268 = vpop.f32.mrb[0].mxu0
      %v11269 = vadd.f32 0.0, %v11268
      %v11270 = vpop.f32.mrb[0].mxu0
      %11271 = vmatprep.mubr.bf16.mxu0 0
      %11272 = vmatmul.mubr.bf16.gmra.mrb[0].mxu0 %v10903
      %v11273 = vpop.f32.mrb[0].mxu0
      %v11274 = vadd.f32 0.0, %v11273
      %v11275 = vpop.f32.mrb[0].mxu0
      %v11276 = vpop.f32.mrb[0].mxu0
      %v11277 = vadd.f32 0.0, %v11276
      %v11278 = vpop.f32.mrb[0].mxu0
      %11279 = vmatprep.mubr.bf16.mxu0 0
      %11280 = vmatmul.mubr.bf16.gmra.mrb[0].mxu0 %v10906
      %v11281 = vpop.f32.mrb[0].mxu0
      %v11282 = vadd.f32 0.0, %v11281
      %v11283 = vpop.f32.mrb[0].mxu0
      %v11284 = vpop.f32.mrb[0].mxu0
      %v11285 = vadd.f32 0.0, %v11284
      %v11286 = vpop.f32.mrb[0].mxu0
      %11287 = vmatprep.mubr.bf16.mxu0 0
      %11288 = vmatmul.mubr.bf16.gmra.mrb[0].mxu0 %v10909
      %v11289 = vpop.f32.mrb[0].mxu0
      %v11290 = vadd.f32 0.0, %v11289
      %v11291 = vpop.f32.mrb[0].mxu0
      %v11292 = vpop.f32.mrb[0].mxu0
      %v11293 = vadd.f32 0.0, %v11292
      %v11294 = vpop.f32.mrb[0].mxu0
      %11295 = vmatprep.mubr.bf16.mxu0 0
      %11296 = vmatmul.mubr.bf16.gmra.mrb[0].mxu0 %v10912
      %v11297 = vpop.f32.mrb[0].mxu0
      %v11298 = vadd.f32 0.0, %v11297
      %v11299 = vpop.f32.mrb[0].mxu0
      %v11300 = vpop.f32.mrb[0].mxu0
      %v11301 = vadd.f32 0.0, %v11300
      %v11302 = vpop.f32.mrb[0].mxu0
      %11303 = vmatprep.mubr.bf16.mxu0 0
      %11304 = vmatmul.mubr.bf16.gmra.mrb[0].mxu0 %v10915
      %v11305 = vpop.f32.mrb[0].mxu0
      %v11306 = vadd.f32 0.0, %v11305
      %v11307 = vpop.f32.mrb[0].mxu0
      %v11308 = vpop.f32.mrb[0].mxu0
      %v11309 = vadd.f32 0.0, %v11308
      %v11310 = vpop.f32.mrb[0].mxu0
      %11311 = vmatprep.mubr.bf16.mxu0 0
      %11312 = vmatmul.mubr.bf16.gmra.mrb[0].mxu0 %v10918
      %v11313 = vpop.f32.mrb[0].mxu0
      %v11314 = vadd.f32 0.0, %v11313
      %v11315 = vpop.f32.mrb[0].mxu0
      %v11316 = vpop.f32.mrb[0].mxu0
      %v11317 = vadd.f32 0.0, %v11316
      %v11318 = vpop.f32.mrb[0].mxu0
      %11319 = vmatprep.mubr.bf16.mxu0 0
      %11320 = vmatmul.mubr.bf16.gmra.mrb[0].mxu0 %v10921
      %v11321 = vpop.f32.mrb[0].mxu0
      %v11322 = vadd.f32 0.0, %v11321
      %v11323 = vpop.f32.mrb[0].mxu0
      %v11324 = vpop.f32.mrb[0].mxu0
      %v11325 = vadd.f32 0.0, %v11324
      %v11326 = vpop.f32.mrb[0].mxu0
      %11327 = vmatprep.mubr.bf16.mxu0 0
      %11328 = vmatmul.mubr.bf16.gmra.mrb[0].mxu0 %v10924
      %v11329 = vpop.f32.mrb[0].mxu0
      %v11330 = vadd.f32 0.0, %v11329
      %v11331 = vpop.f32.mrb[0].mxu0
      %v11332 = vpop.f32.mrb[0].mxu0
      %v11333 = vadd.f32 0.0, %v11332
      %v11334 = vpop.f32.mrb[0].mxu0
      %11335 = vmatprep.mubr.bf16.mxu0 0
      %11336 = vmatmul.mubr.bf16.gmra.mrb[0].mxu0 %v10927
      %v11337 = vpop.f32.mrb[0].mxu0
      %v11338 = vadd.f32 0.0, %v11337
      %v11339 = vpop.f32.mrb[0].mxu0
      %v11340 = vpop.f32.mrb[0].mxu0
      %v11341 = vadd.f32 0.0, %v11340
      %v11342 = vpop.f32.mrb[0].mxu0
      %11343 = vmatprep.mubr.bf16.mxu0 0
      %11344 = vmatmul.mubr.bf16.gmra.mrb[0].mxu0 %v10930
      %v11345 = vpop.f32.mrb[0].mxu0
      %v11346 = vadd.f32 0.0, %v11345
      %v11347 = vpop.f32.mrb[0].mxu0
      %v11348 = vpop.f32.mrb[0].mxu0
      %v11349 = vadd.f32 0.0, %v11348
      %v11350 = vpop.f32.mrb[0].mxu0
      %11351 = vmatprep.mubr.bf16.mxu0 0
      %11352 = vmatmul.mubr.bf16.gmra.mrb[0].mxu0 %v10933
      %v11353 = vpop.f32.mrb[0].mxu0
      %v11354 = vadd.f32 0.0, %v11353
      %v11355 = vpop.f32.mrb[0].mxu0
      %v11356 = vpop.f32.mrb[0].mxu0
      %v11357 = vadd.f32 0.0, %v11356
      %v11358 = vpop.f32.mrb[0].mxu0
      %11359 = vmatprep.mubr.bf16.mxu0 0
      %11360 = vmatmul.mubr.bf16.gmra.mrb[0].mxu0 %v10936
      %v11361 = vpop.f32.mrb[0].mxu0
      %v11362 = vadd.f32 0.0, %v11361
      %v11363 = vpop.f32.mrb[0].mxu0
      %v11364 = vpop.f32.mrb[0].mxu0
      %v11365 = vadd.f32 0.0, %v11364
      %v11366 = vpop.f32.mrb[0].mxu0
      %11367 = vmatprep.mubr.bf16.mxu0 0
      %11368 = vmatmul.mubr.bf16.gmra.mrb[0].mxu0 %v10939
      %v11369 = vpop.f32.mrb[0].mxu0
      %v11370 = vadd.f32 0.0, %v11369
      %v11371 = vpop.f32.mrb[0].mxu0
      %v11372 = vpop.f32.mrb[0].mxu0
      %v11373 = vadd.f32 0.0, %v11372
      %v11374 = vpop.f32.mrb[0].mxu0
      %11375 = vmatprep.mubr.bf16.mxu0 0
      %11376 = vmatmul.mubr.bf16.gmra.mrb[0].mxu0 %v10942
      %v11377 = vpop.f32.mrb[0].mxu0
      %v11378 = vadd.f32 0.0, %v11377
      %v11379 = vpop.f32.mrb[0].mxu0
      %v11380 = vpop.f32.mrb[0].mxu0
      %v11381 = vadd.f32 0.0, %v11380
      %v11382 = vpop.f32.mrb[0].mxu0
      %11383 = vmatprep.mubr.bf16.mxu0 0
      %11384 = vmatmul.mubr.bf16.gmra.mrb[0].mxu0 %v10945
      %v11385 = vpop.f32.mrb[0].mxu0
      %v11386 = vadd.f32 0.0, %v11385
      %v11387 = vpop.f32.mrb[0].mxu0
      %v11388 = vpop.f32.mrb[0].mxu0
      %v11389 = vadd.f32 0.0, %v11388
      %v11390 = vpop.f32.mrb[0].mxu0
      %11391 = vmatprep.mubr.bf16.mxu0 0
      %11392 = vmatmul.mubr.bf16.gmra.mrb[0].mxu0 %v10948
      %v11393 = vpop.f32.mrb[0].mxu0
      %v11394 = vadd.f32 0.0, %v11393
      %v11395 = vpop.f32.mrb[0].mxu0
      %v11396 = vpop.f32.mrb[0].mxu0
      %v11397 = vadd.f32 0.0, %v11396
      %v11398 = vpop.f32.mrb[0].mxu0
      %11399 = vmatprep.mubr.bf16.mxu0 0
      %11400 = vmatmul.mubr.bf16.gmra.mrb[0].mxu0 %v10951
      %v11401 = vpop.f32.mrb[0].mxu0
      %v11402 = vadd.f32 0.0, %v11401
      %v11403 = vpop.f32.mrb[0].mxu0
      %v11404 = vpop.f32.mrb[0].mxu0
      %v11405 = vadd.f32 0.0, %v11404
      %v11406 = vpop.f32.mrb[0].mxu0
      %11407 = vmatprep.mubr.bf16.mxu0 0
      %11408 = vmatmul.mubr.bf16.gmra.mrb[0].mxu0 %v10954
      %v11409 = vpop.f32.mrb[0].mxu0
      %v11410 = vadd.f32 0.0, %v11409
      %v11411 = vpop.f32.mrb[0].mxu0
      %v11412 = vpop.f32.mrb[0].mxu0
      %v11413 = vadd.f32 0.0, %v11412
      %v11414 = vpop.f32.mrb[0].mxu0
      %11415 = vmatprep.mubr.bf16.mxu0 0
      %11416 = vmatmul.mubr.bf16.gmra.mrb[0].mxu0 %v10957
      %v11417 = vpop.f32.mrb[0].mxu0
      %v11418 = vadd.f32 0.0, %v11417
      %v11419 = vpop.f32.mrb[0].mxu0
      %v11420 = vpop.f32.mrb[0].mxu0
      %v11421 = vadd.f32 0.0, %v11420
      %v11422 = vpop.f32.mrb[0].mxu0
      %11423 = vmatprep.mubr.bf16.mxu0 0
      %11424 = vmatmul.mubr.bf16.gmra.mrb[0].mxu0 %v10960
      %v11425 = vpop.f32.mrb[0].mxu0
      %v11426 = vadd.f32 0.0, %v11425
      %v11427 = vpop.f32.mrb[0].mxu0
      %v11428 = vpop.f32.mrb[0].mxu0
      %v11429 = vadd.f32 0.0, %v11428
      %v11430 = vpop.f32.mrb[0].mxu0
      %11431 = vmatprep.mubr.bf16.mxu0 0
      %11432 = vmatmul.mubr.bf16.gmra.mrb[0].mxu0 %v10963
      %v11433 = vpop.f32.mrb[0].mxu0
      %v11434 = vadd.f32 0.0, %v11433
      %v11435 = vpop.f32.mrb[0].mxu0
      %v11436 = vpop.f32.mrb[0].mxu0
      %v11437 = vadd.f32 0.0, %v11436
      %v11438 = vpop.f32.mrb[0].mxu0
      %11439 = vmatprep.mubr.bf16.mxu0 0
      %11440 = vmatmul.mubr.bf16.gmra.mrb[0].mxu0 %v10966
      %v11441 = vpop.f32.mrb[0].mxu0
      %v11442 = vadd.f32 0.0, %v11441
      %v11443 = vpop.f32.mrb[0].mxu0
      %v11444 = vpop.f32.mrb[0].mxu0
      %v11445 = vadd.f32 0.0, %v11444
      %v11446 = vpop.f32.mrb[0].mxu0
      %11447 = vmatprep.mubr.bf16.mxu0 0
      %11448 = vmatmul.mubr.bf16.gmra.mrb[0].mxu0 %v10969
      %v11449 = vpop.f32.mrb[0].mxu0
      %v11450 = vadd.f32 0.0, %v11449
      %v11451 = vpop.f32.mrb[0].mxu0
      %v11452 = vpop.f32.mrb[0].mxu0
      %v11453 = vadd.f32 0.0, %v11452
      %v11454 = vpop.f32.mrb[0].mxu0
      %11455 = vmatprep.mubr.bf16.mxu0 0
      %11456 = vmatmul.mubr.bf16.gmra.mrb[0].mxu0 %v10972
      %v11457 = vpop.f32.mrb[0].mxu0
      %v11458 = vadd.f32 0.0, %v11457
      %v11459 = vpop.f32.mrb[0].mxu0
      %v11460 = vpop.f32.mrb[0].mxu0
      %v11461 = vadd.f32 0.0, %v11460
      %v11462 = vpop.f32.mrb[0].mxu0
      %11463 = vmatprep.mubr.bf16.mxu0 0
      %11464 = vmatmul.mubr.bf16.gmra.mrb[0].mxu0 %v10975
      %v11465 = vpop.f32.mrb[0].mxu0
      %v11466 = vadd.f32 0.0, %v11465
      %v11467 = vpop.f32.mrb[0].mxu0
      %v11468 = vpop.f32.mrb[0].mxu0
      %v11469 = vadd.f32 0.0, %v11468
      %v11470 = vpop.f32.mrb[0].mxu0
      %11471 = vmatprep.mubr.bf16.mxu0 0
      %11472 = vmatmul.mubr.bf16.gmra.mrb[0].mxu0 %v10978
      %v11473 = vpop.f32.mrb[0].mxu0
      %v11474 = vadd.f32 0.0, %v11473
      %v11475 = vpop.f32.mrb[0].mxu0
      %v11476 = vpop.f32.mrb[0].mxu0
      %v11477 = vadd.f32 0.0, %v11476
      %v11478 = vpop.f32.mrb[0].mxu0
      %11479 = vmatprep.mubr.bf16.mxu0 0
      %11480 = vmatmul.mubr.bf16.gmra.mrb[0].mxu0 %v10981
      %v11481 = vpop.f32.mrb[0].mxu0
      %v11482 = vadd.f32 0.0, %v11481
      %v11483 = vpop.f32.mrb[0].mxu0
      %v11484 = vpop.f32.mrb[0].mxu0
      %v11485 = vadd.f32 0.0, %v11484
      %v11486 = vpop.f32.mrb[0].mxu0
      %11487 = vmatprep.mubr.bf16.mxu0 0
      %11488 = vmatmul.mubr.bf16.gmra.mrb[0].mxu0 %v10984
      %v11489 = vpop.f32.mrb[0].mxu0
      %v11490 = vadd.f32 0.0, %v11489
      %v11491 = vpop.f32.mrb[0].mxu0
      %v11492 = vpop.f32.mrb[0].mxu0
      %v11493 = vadd.f32 0.0, %v11492
      %v11494 = vpop.f32.mrb[0].mxu0
      %11495 = vmatprep.mubr.bf16.mxu0 0
      %11496 = vmatmul.mubr.bf16.gmra.mrb[0].mxu0 %v10987
      %v11497 = vpop.f32.mrb[0].mxu0
      %v11498 = vadd.f32 0.0, %v11497
      %v11499 = vpop.f32.mrb[0].mxu0
      %v11500 = vpop.f32.mrb[0].mxu0
      %v11501 = vadd.f32 0.0, %v11500
      %v11502 = vpop.f32.mrb[0].mxu0
      %11503 = vmatprep.mubr.bf16.mxu0 0
      %11504 = vmatmul.mubr.bf16.gmra.mrb[0].mxu0 %v10990
      %v11505 = vpop.f32.mrb[0].mxu0
      %v11506 = vadd.f32 0.0, %v11505
      %v11507 = vpop.f32.mrb[0].mxu0
      %v11508 = vpop.f32.mrb[0].mxu0
      %v11509 = vadd.f32 0.0, %v11508
      %v11510 = vpop.f32.mrb[0].mxu0
      %11511 = vmatprep.mubr.bf16.mxu0 0
      %11512 = vmatmul.mubr.bf16.gmra.mrb[0].mxu0 %v10993
      %v11513 = vpop.f32.mrb[0].mxu0
      %v11514 = vadd.f32 0.0, %v11513
      %v11515 = vpop.f32.mrb[0].mxu0
      %v11516 = vpop.f32.mrb[0].mxu0
      %v11517 = vadd.f32 0.0, %v11516
      %v11518 = vpop.f32.mrb[0].mxu0
      %11519 = vmatprep.mubr.bf16.mxu0 0
      %11520 = vmatmul.mubr.bf16.gmra.mrb[0].mxu0 %v10996
      %v11521 = vpop.f32.mrb[0].mxu0
      %v11522 = vadd.f32 0.0, %v11521
      %v11523 = vpop.f32.mrb[0].mxu0
      %v11524 = vpop.f32.mrb[0].mxu0
      %v11525 = vadd.f32 0.0, %v11524
      %v11526 = vpop.f32.mrb[0].mxu0
      %11527 = vmatprep.mubr.bf16.mxu0 0
      %11528 = vmatmul.mubr.bf16.gmra.mrb[0].mxu0 %v10999
      %v11529 = vpop.f32.mrb[0].mxu0
      %v11530 = vadd.f32 0.0, %v11529
      %v11531 = vpop.f32.mrb[0].mxu0
      %v11532 = vpop.f32.mrb[0].mxu0
      %v11533 = vadd.f32 0.0, %v11532
      %v11534 = vpop.f32.mrb[0].mxu0
      %11535 = vmatprep.mubr.bf16.mxu0 0
      %11536 = vmatmul.mubr.bf16.gmra.mrb[0].mxu0 %v11002
      %v11537 = vpop.f32.mrb[0].mxu0
      %v11538 = vadd.f32 0.0, %v11537
      %v11539 = vpop.f32.mrb[0].mxu0
      %v11540 = vpop.f32.mrb[0].mxu0
      %v11541 = vadd.f32 0.0, %v11540
      %v11542 = vpop.f32.mrb[0].mxu0
      %11543 = vmatprep.mubr.bf16.mxu0 0
      %11544 = vmatmul.mubr.bf16.gmra.mrb[0].mxu0 %v11005
      %v11545 = vpop.f32.mrb[0].mxu0
      %v11546 = vadd.f32 0.0, %v11545
      %v11547 = vpop.f32.mrb[0].mxu0
      %v11548 = vpop.f32.mrb[0].mxu0
      %v11549 = vadd.f32 0.0, %v11548
      %v11550 = vpop.f32.mrb[0].mxu0
      %11551 = vmatprep.mubr.bf16.mxu0 0
      %11552 = vmatmul.mubr.bf16.gmra.mrb[0].mxu0 %v11008
      %v11553 = vpop.f32.mrb[0].mxu0
      %v11554 = vadd.f32 0.0, %v11553
      %v11555 = vpop.f32.mrb[0].mxu0
      %v11556 = vpop.f32.mrb[0].mxu0
      %v11557 = vadd.f32 0.0, %v11556
      %v11558 = vpop.f32.mrb[0].mxu0
      %11559 = vmatprep.mubr.bf16.mxu0 0
      %11560 = vmatmul.mubr.bf16.gmra.mrb[0].mxu0 %v11011
      %v11561 = vpop.f32.mrb[0].mxu0
      %v11562 = vadd.f32 0.0, %v11561
      %v11563 = vpop.f32.mrb[0].mxu0
      %v11564 = vpop.f32.mrb[0].mxu0
      %v11565 = vadd.f32 0.0, %v11564
      %v11566 = vpop.f32.mrb[0].mxu0
      %11567 = vmatprep.mubr.bf16.mxu0 0
      %11568 = vmatmul.mubr.bf16.gmra.mrb[0].mxu0 %v11014
      %v11569 = vpop.f32.mrb[0].mxu0
      %v11570 = vadd.f32 0.0, %v11569
      %v11571 = vpop.f32.mrb[0].mxu0
      %v11572 = vpop.f32.mrb[0].mxu0
      %v11573 = vadd.f32 0.0, %v11572
      %v11574 = vpop.f32.mrb[0].mxu0
      %11575 = vmatprep.mubr.bf16.mxu0 0
      %11576 = vmatmul.mubr.bf16.gmra.mrb[0].mxu0 %v11017
      %v11577 = vpop.f32.mrb[0].mxu0
      %v11578 = vadd.f32 0.0, %v11577
      %v11579 = vpop.f32.mrb[0].mxu0
      %v11580 = vpop.f32.mrb[0].mxu0
      %v11581 = vadd.f32 0.0, %v11580
      %v11582 = vpop.f32.mrb[0].mxu0
      %11583 = vmatprep.mubr.bf16.mxu0 0
      %11584 = vmatmul.mubr.bf16.gmra.mrb[0].mxu0 %v11020
      %v11585 = vpop.f32.mrb[0].mxu0
      %v11586 = vadd.f32 0.0, %v11585
      %v11587 = vpop.f32.mrb[0].mxu0
      %v11588 = vpop.f32.mrb[0].mxu0
      %v11589 = vadd.f32 0.0, %v11588
      %v11590 = vpop.f32.mrb[0].mxu0
      %11591 = vmatprep.mubr.bf16.mxu0 0
      %11592 = vmatmul.mubr.bf16.gmra.mrb[0].mxu0 %v11023
      %v11593 = vpop.f32.mrb[0].mxu0
      %v11594 = vadd.f32 0.0, %v11593
      %v11595 = vpop.f32.mrb[0].mxu0
      %v11596 = vpop.f32.mrb[0].mxu0
      %v11597 = vadd.f32 0.0, %v11596
      %v11598 = vpop.f32.mrb[0].mxu0
      %11599 = vmatprep.mubr.bf16.mxu0 0
      %11600 = vmatmul.mubr.bf16.gmra.mrb[0].mxu0 %v11026
      %v11601 = vpop.f32.mrb[0].mxu0
      %v11602 = vadd.f32 0.0, %v11601
      %v11603 = vpop.f32.mrb[0].mxu0
      %v11604 = vpop.f32.mrb[0].mxu0
      %v11605 = vadd.f32 0.0, %v11604
      %v11606 = vpop.f32.mrb[0].mxu0
      %11607 = vdwg.mxu0
      %v11608 = vadd.f32 %v10061, %v11066
      %v11609 = vadd.f32 %v10062, %v11069
      %v11610 = vadd.f32 %v10063, %v11074
      %v11611 = vadd.f32 %v10064, %v11077
      %v11612 = vadd.f32 %v10065, %v11082
      %v11613 = vadd.f32 %v10066, %v11085
      %v11614 = vadd.f32 %v10067, %v11090
      %v11615 = vadd.f32 %v10068, %v11093
      %v11616 = vadd.f32 %v10069, %v11098
      %v11617 = vadd.f32 %v10070, %v11101
      %v11618 = vadd.f32 %v10071, %v11106
      %v11619 = vadd.f32 %v10072, %v11109
      %v11620 = vadd.f32 %v10073, %v11114
      %v11621 = vadd.f32 %v10074, %v11117
      %v11622 = vadd.f32 %v10075, %v11122
      %v11623 = vadd.f32 %v10076, %v11125
      %v11624 = vadd.f32 %v10077, %v11130
      %v11625 = vadd.f32 %v10078, %v11133
      %v11626 = vadd.f32 %v10079, %v11138
      %v11627 = vadd.f32 %v10080, %v11141
      %v11628 = vadd.f32 %v10081, %v11146
      %v11629 = vadd.f32 %v10082, %v11149
      %v11630 = vadd.f32 %v10083, %v11154
      %v11631 = vadd.f32 %v10084, %v11157
      %v11632 = vadd.f32 %v10085, %v11162
      %v11633 = vadd.f32 %v10086, %v11165
      %v11634 = vadd.f32 %v10087, %v11170
      %v11635 = vadd.f32 %v10088, %v11173
      %v11636 = vadd.f32 %v10089, %v11178
      %v11637 = vadd.f32 %v10090, %v11181
      %v11638 = vadd.f32 %v10091, %v11186
      %v11639 = vadd.f32 %v10092, %v11189
      %v11640 = vadd.f32 %v10093, %v11194
      %v11641 = vadd.f32 %v10094, %v11197
      %v11642 = vadd.f32 %v10095, %v11202
      %v11643 = vadd.f32 %v10096, %v11205
      %v11644 = vadd.f32 %v10097, %v11210
      %v11645 = vadd.f32 %v10098, %v11213
      %v11646 = vadd.f32 %v10099, %v11218
      %v11647 = vadd.f32 %v10100, %v11221
      %v11648 = vadd.f32 %v10101, %v11226
      %v11649 = vadd.f32 %v10102, %v11229
      %v11650 = vadd.f32 %v10103, %v11234
      %v11651 = vadd.f32 %v10104, %v11237
      %v11652 = vadd.f32 %v10105, %v11242
      %v11653 = vadd.f32 %v10106, %v11245
      %v11654 = vadd.f32 %v10107, %v11250
      %v11655 = vadd.f32 %v10108, %v11253
      %v11656 = vadd.f32 %v10109, %v11258
      %v11657 = vadd.f32 %v10110, %v11261
      %v11658 = vadd.f32 %v10111, %v11266
      %v11659 = vadd.f32 %v10112, %v11269
      %v11660 = vadd.f32 %v10113, %v11274
      %v11661 = vadd.f32 %v10114, %v11277
      %v11662 = vadd.f32 %v10115, %v11282
      %v11663 = vadd.f32 %v10116, %v11285
      %v11664 = vadd.f32 %v10117, %v11290
      %v11665 = vadd.f32 %v10118, %v11293
      %v11666 = vadd.f32 %v10119, %v11298
      %v11667 = vadd.f32 %v10120, %v11301
      %v11668 = vadd.f32 %v10121, %v11306
      %v11669 = vadd.f32 %v10122, %v11309
      %v11670 = vadd.f32 %v10123, %v11314
      %v11671 = vadd.f32 %v10124, %v11317
      %v11672 = vadd.f32 %v10125, %v11322
      %v11673 = vadd.f32 %v10126, %v11325
      %v11674 = vadd.f32 %v10127, %v11330
      %v11675 = vadd.f32 %v10128, %v11333
      %v11676 = vadd.f32 %v10129, %v11338
      %v11677 = vadd.f32 %v10130, %v11341
      %v11678 = vadd.f32 %v10131, %v11346
      %v11679 = vadd.f32 %v10132, %v11349
      %v11680 = vadd.f32 %v10133, %v11354
      %v11681 = vadd.f32 %v10134, %v11357
      %v11682 = vadd.f32 %v10135, %v11362
      %v11683 = vadd.f32 %v10136, %v11365
      %v11684 = vadd.f32 %v10137, %v11370
      %v11685 = vadd.f32 %v10138, %v11373
      %v11686 = vadd.f32 %v10139, %v11378
      %v11687 = vadd.f32 %v10140, %v11381
      %v11688 = vadd.f32 %v10141, %v11386
      %v11689 = vadd.f32 %v10142, %v11389
      %v11690 = vadd.f32 %v10143, %v11394
      %v11691 = vadd.f32 %v10144, %v11397
      %v11692 = vadd.f32 %v10145, %v11402
      %v11693 = vadd.f32 %v10146, %v11405
      %v11694 = vadd.f32 %v10147, %v11410
      %v11695 = vadd.f32 %v10148, %v11413
      %v11696 = vadd.f32 %v10149, %v11418
      %v11697 = vadd.f32 %v10150, %v11421
      %v11698 = vadd.f32 %v10151, %v11426
      %v11699 = vadd.f32 %v10152, %v11429
      %v11700 = vadd.f32 %v10153, %v11434
      %v11701 = vadd.f32 %v10154, %v11437
      %v11702 = vadd.f32 %v10155, %v11442
      %v11703 = vadd.f32 %v10156, %v11445
      %v11704 = vadd.f32 %v10157, %v11450
      %v11705 = vadd.f32 %v10158, %v11453
      %v11706 = vadd.f32 %v10159, %v11458
      %v11707 = vadd.f32 %v10160, %v11461
      %v11708 = vadd.f32 %v10161, %v11466
      %v11709 = vadd.f32 %v10162, %v11469
      %v11710 = vadd.f32 %v10163, %v11474
      %v11711 = vadd.f32 %v10164, %v11477
      %v11712 = vadd.f32 %v10165, %v11482
      %v11713 = vadd.f32 %v10166, %v11485
      %v11714 = vadd.f32 %v10167, %v11490
      %v11715 = vadd.f32 %v10168, %v11493
      %v11716 = vadd.f32 %v10169, %v11498
      %v11717 = vadd.f32 %v10170, %v11501
      %v11718 = vadd.f32 %v10171, %v11506
      %v11719 = vadd.f32 %v10172, %v11509
      %v11720 = vadd.f32 %v10173, %v11514
      %v11721 = vadd.f32 %v10174, %v11517
      %v11722 = vadd.f32 %v10175, %v11522
      %v11723 = vadd.f32 %v10176, %v11525
      %v11724 = vadd.f32 %v10177, %v11530
      %v11725 = vadd.f32 %v10178, %v11533
      %v11726 = vadd.f32 %v10179, %v11538
      %v11727 = vadd.f32 %v10180, %v11541
      %v11728 = vadd.f32 %v10181, %v11546
      %v11729 = vadd.f32 %v10182, %v11549
      %v11730 = vadd.f32 %v10183, %v11554
      %v11731 = vadd.f32 %v10184, %v11557
      %v11732 = vadd.f32 %v10185, %v11562
      %v11733 = vadd.f32 %v10186, %v11565
      %v11734 = vadd.f32 %v10187, %v11570
      %v11735 = vadd.f32 %v10188, %v11573
      %v11736 = vadd.f32 %v10189, %v11578
      %v11737 = vadd.f32 %v10190, %v11581
      %v11738 = vadd.f32 %v10191, %v11586
      %v11739 = vadd.f32 %v10192, %v11589
      %v11740 = vadd.f32 %v10193, %v11594
      %v11741 = vadd.f32 %v10194, %v11597
      %v11742 = vadd.f32 %v10195, %v11602
      %v11743 = vadd.f32 %v10196, %v11605
      %v11744 = vld [vmem:[%s206 + $0x20] sm:$0x8]
      %s11745 = scalar_lea.vmem %s210, 32
      %v11746 = vld [vmem:[%s11745] sm:$0xf]
      %v11748 = vunpack.c.l.b16 %v11744
      %v11749 = vpack.c.b16 %v8935, %v11748
      %vm11750 = vcmask 1044480
      %v11751 = vrot.slane %v11749, 3
      %v11752 = vrot.slane %v9072, 3
      %v11753 = vsel %vm11750, %v11751, %v11752
      %v11754 = vrot.slane %v9073, 3
      %v11755 = vsel %vm11750, %v11752, %v11754
      %v11756 = vrot.slane %v9074, 3
      %v11757 = vsel %vm11750, %v11754, %v11756
      %v11758 = vrot.slane %v9075, 3
      %v11759 = vsel %vm11750, %v11756, %v11758
      %v11760 = vrot.slane %v9076, 3
      %v11761 = vsel %vm11750, %v11758, %v11760
      %v11762 = vrot.slane %v9077, 3
      %v11763 = vsel %vm11750, %v11760, %v11762
      %v11764 = vrot.slane %v9078, 3
      %v11765 = vsel %vm11750, %v11762, %v11764
      %v11766 = vrot.slane %v9079, 3
      %v11767 = vsel %vm11750, %v11764, %v11766
      %v11768 = vrot.slane %v9080, 3
      %v11769 = vsel %vm11750, %v11766, %v11768
      %v11770 = vrot.slane %v9081, 3
      %v11771 = vsel %vm11750, %v11768, %v11770
      %v11772 = vrot.slane %v9082, 3
      %v11773 = vsel %vm11750, %v11770, %v11772
      %v11774 = vrot.slane %v9083, 3
      %v11775 = vsel %vm11750, %v11772, %v11774
      %v11776 = vrot.slane %v9084, 3
      %v11777 = vsel %vm11750, %v11774, %v11776
      %v11778 = vrot.slane %v9085, 3
      %v11779 = vsel %vm11750, %v11776, %v11778
      %v11780 = vrot.slane %v9086, 3
      %v11781 = vsel %vm11750, %v11778, %v11780
      %v11782 = vrot.slane %v9087, 3
      %v11783 = vsel %vm11750, %v11780, %v11782
      %v11784 = vrot.slane %v9088, 3
      %v11785 = vsel %vm11750, %v11782, %v11784
      %v11786 = vrot.slane %v9089, 3
      %v11787 = vsel %vm11750, %v11784, %v11786
      %v11788 = vrot.slane %v9090, 3
      %v11789 = vsel %vm11750, %v11786, %v11788
      %v11790 = vrot.slane %v9091, 3
      %v11791 = vsel %vm11750, %v11788, %v11790
      %v11792 = vrot.slane %v9092, 3
      %v11793 = vsel %vm11750, %v11790, %v11792
      %v11794 = vrot.slane %v9093, 3
      %v11795 = vsel %vm11750, %v11792, %v11794
      %v11796 = vrot.slane %v9094, 3
      %v11797 = vsel %vm11750, %v11794, %v11796
      %v11798 = vrot.slane %v9095, 3
      %v11799 = vsel %vm11750, %v11796, %v11798
      %v11800 = vrot.slane %v9096, 3
      %v11801 = vsel %vm11750, %v11798, %v11800
      %v11802 = vrot.slane %v9097, 3
      %v11803 = vsel %vm11750, %v11800, %v11802
      %v11804 = vrot.slane %v9098, 3
      %v11805 = vsel %vm11750, %v11802, %v11804
      %v11806 = vrot.slane %v9099, 3
      %v11807 = vsel %vm11750, %v11804, %v11806
      %v11808 = vrot.slane %v9100, 3
      %v11809 = vsel %vm11750, %v11806, %v11808
      %v11810 = vrot.slane %v9101, 3
      %v11811 = vsel %vm11750, %v11808, %v11810
      %v11812 = vrot.slane %v9102, 3
      %v11813 = vsel %vm11750, %v11810, %v11812
      %v11814 = vrot.slane %v9103, 3
      %v11815 = vsel %vm11750, %v11812, %v11814
      %v11816 = vrot.slane %v9104, 3
      %v11817 = vsel %vm11750, %v11814, %v11816
      %v11818 = vrot.slane %v9105, 3
      %v11819 = vsel %vm11750, %v11816, %v11818
      %v11820 = vrot.slane %v9106, 3
      %v11821 = vsel %vm11750, %v11818, %v11820
      %v11822 = vrot.slane %v9107, 3
      %v11823 = vsel %vm11750, %v11820, %v11822
      %v11824 = vrot.slane %v9108, 3
      %v11825 = vsel %vm11750, %v11822, %v11824
      %v11826 = vrot.slane %v9109, 3
      %v11827 = vsel %vm11750, %v11824, %v11826
      %v11828 = vrot.slane %v9110, 3
      %v11829 = vsel %vm11750, %v11826, %v11828
      %v11830 = vrot.slane %v9111, 3
      %v11831 = vsel %vm11750, %v11828, %v11830
      %v11832 = vrot.slane %v9112, 3
      %v11833 = vsel %vm11750, %v11830, %v11832
      %v11834 = vrot.slane %v9113, 3
      %v11835 = vsel %vm11750, %v11832, %v11834
      %v11836 = vrot.slane %v9114, 3
      %v11837 = vsel %vm11750, %v11834, %v11836
      %v11838 = vrot.slane %v9115, 3
      %v11839 = vsel %vm11750, %v11836, %v11838
      %v11840 = vrot.slane %v9116, 3
      %v11841 = vsel %vm11750, %v11838, %v11840
      %v11842 = vrot.slane %v9117, 3
      %v11843 = vsel %vm11750, %v11840, %v11842
      %v11844 = vrot.slane %v9118, 3
      %v11845 = vsel %vm11750, %v11842, %v11844
      %v11846 = vrot.slane %v9119, 3
      %v11847 = vsel %vm11750, %v11844, %v11846
      %v11848 = vrot.slane %v9120, 3
      %v11849 = vsel %vm11750, %v11846, %v11848
      %v11850 = vrot.slane %v9121, 3
      %v11851 = vsel %vm11750, %v11848, %v11850
      %v11852 = vrot.slane %v9122, 3
      %v11853 = vsel %vm11750, %v11850, %v11852
      %v11854 = vrot.slane %v9123, 3
      %v11855 = vsel %vm11750, %v11852, %v11854
      %v11856 = vrot.slane %v9124, 3
      %v11857 = vsel %vm11750, %v11854, %v11856
      %v11858 = vrot.slane %v9125, 3
      %v11859 = vsel %vm11750, %v11856, %v11858
      %v11860 = vrot.slane %v9126, 3
      %v11861 = vsel %vm11750, %v11858, %v11860
      %v11862 = vrot.slane %v9127, 3
      %v11863 = vsel %vm11750, %v11860, %v11862
      %v11864 = vrot.slane %v9128, 3
      %v11865 = vsel %vm11750, %v11862, %v11864
      %v11866 = vrot.slane %v9129, 3
      %v11867 = vsel %vm11750, %v11864, %v11866
      %v11868 = vrot.slane %v9130, 3
      %v11869 = vsel %vm11750, %v11866, %v11868
      %v11870 = vrot.slane %v9131, 3
      %v11871 = vsel %vm11750, %v11868, %v11870
      %v11872 = vrot.slane %v9132, 3
      %v11873 = vsel %vm11750, %v11870, %v11872
      %v11874 = vrot.slane %v9133, 3
      %v11875 = vsel %vm11750, %v11872, %v11874
      %v11876 = vrot.slane %v9134, 3
      %v11877 = vsel %vm11750, %v11874, %v11876
      %v11878 = vrot.slane %v9135, 3
      %v11879 = vsel %vm11750, %v11876, %v11878
      %v11880 = vrot.slane %v9136, 3
      %v11881 = vsel %vm11750, %v11878, %v11880
      %v11882 = vrot.slane %v9137, 3
      %v11883 = vsel %vm11750, %v11880, %v11882
      %v11884 = vrot.slane %v9138, 3
      %v11885 = vsel %vm11750, %v11882, %v11884
      %v11886 = vrot.slane %v10202, 3
      %v11887 = vsel %vm11750, %v11884, %v11886
      %v11889 = vsel %vm707, %v11753, 0
      %v11892 = vsel %vm707, %v11755, 0
      %v11895 = vsel %vm707, %v11757, 0
      %v11898 = vsel %vm707, %v11759, 0
      %v11901 = vsel %vm707, %v11761, 0
      %v11904 = vsel %vm707, %v11763, 0
      %v11907 = vsel %vm707, %v11765, 0
      %v11910 = vsel %vm707, %v11767, 0
      %v11913 = vsel %vm707, %v11769, 0
      %v11916 = vsel %vm707, %v11771, 0
      %v11919 = vsel %vm707, %v11773, 0
      %v11922 = vsel %vm707, %v11775, 0
      %v11925 = vsel %vm707, %v11777, 0
      %v11928 = vsel %vm707, %v11779, 0
      %v11931 = vsel %vm707, %v11781, 0
      %v11934 = vsel %vm707, %v11783, 0
      %v11937 = vsel %vm707, %v11785, 0
      %v11940 = vsel %vm707, %v11787, 0
      %v11943 = vsel %vm707, %v11789, 0
      %v11946 = vsel %vm707, %v11791, 0
      %v11949 = vsel %vm707, %v11793, 0
      %v11952 = vsel %vm707, %v11795, 0
      %v11955 = vsel %vm707, %v11797, 0
      %v11958 = vsel %vm707, %v11799, 0
      %v11961 = vsel %vm707, %v11801, 0
      %v11964 = vsel %vm707, %v11803, 0
      %v11967 = vsel %vm707, %v11805, 0
      %v11970 = vsel %vm707, %v11807, 0
      %v11973 = vsel %vm707, %v11809, 0
      %v11976 = vsel %vm707, %v11811, 0
      %v11979 = vsel %vm707, %v11813, 0
      %v11982 = vsel %vm707, %v11815, 0
      %v11985 = vsel %vm707, %v11817, 0
      %v11988 = vsel %vm707, %v11819, 0
      %v11991 = vsel %vm707, %v11821, 0
      %v11994 = vsel %vm707, %v11823, 0
      %v11997 = vsel %vm707, %v11825, 0
      %v12000 = vsel %vm707, %v11827, 0
      %v12003 = vsel %vm707, %v11829, 0
      %v12006 = vsel %vm707, %v11831, 0
      %v12009 = vsel %vm707, %v11833, 0
      %v12012 = vsel %vm707, %v11835, 0
      %v12015 = vsel %vm707, %v11837, 0
      %v12018 = vsel %vm707, %v11839, 0
      %v12021 = vsel %vm707, %v11841, 0
      %v12024 = vsel %vm707, %v11843, 0
      %v12027 = vsel %vm707, %v11845, 0
      %v12030 = vsel %vm707, %v11847, 0
      %v12033 = vsel %vm707, %v11849, 0
      %v12036 = vsel %vm707, %v11851, 0
      %v12039 = vsel %vm707, %v11853, 0
      %v12042 = vsel %vm707, %v11855, 0
      %v12045 = vsel %vm707, %v11857, 0
      %v12048 = vsel %vm707, %v11859, 0
      %v12051 = vsel %vm707, %v11861, 0
      %v12054 = vsel %vm707, %v11863, 0
      %v12057 = vsel %vm707, %v11865, 0
      %v12060 = vsel %vm707, %v11867, 0
      %v12063 = vsel %vm707, %v11869, 0
      %v12066 = vsel %vm707, %v11871, 0
      %v12069 = vsel %vm707, %v11873, 0
      %v12072 = vsel %vm707, %v11875, 0
      %v12075 = vsel %vm707, %v11877, 0
      %v12078 = vsel %vm707, %v11879, 0
      %v12081 = vsel %vm707, %v11881, 0
      %v12084 = vsel %vm707, %v11883, 0
      %v12087 = vsel %vm707, %v11885, 0
      %v12090 = vsel %vm707, %v11887, 0
      %v12093 = vsel %vm912, %v11746, 0
      %12095 = vmatprep.subr.bf16.mxu0 0
      %12096 = vmatpush1.bf16.msra.mxu0 %v12093
      %12097 = vmatprep.subr.bf16.mxu0 0
      %12098 = vmatpush1.bf16.msra.mxu0 0
      %12099 = vmatprep.subr.bf16.mxu0 0
      %12100 = vmatpush1.bf16.msra.mxu0 0
      %12101 = vmatprep.subr.bf16.mxu0 0
      %12102 = vmatpush1.bf16.msra.mxu0 0
      %12103 = vmatprep.subr.bf16.mxu0 0
      %12104 = vmatpush1.bf16.msra.mxu0 0
      %12105 = vmatprep.subr.bf16.mxu0 0
      %12106 = vmatpush1.bf16.msra.mxu0 0
      %12107 = vmatprep.subr.bf16.mxu0 0
      %12108 = vmatpush1.bf16.msra.mxu0 0
      %12109 = vmatprep.subr.bf16.mxu0 0
      %12110 = vmatpush1.bf16.msra.mxu0 0
      %12111 = vmatprep.subr.bf16.mxu0 0
      %12112 = vmatpush1.bf16.msra.mxu0 0
      %12113 = vmatprep.subr.bf16.mxu0 0
      %12114 = vmatpush1.bf16.msra.mxu0 0
      %12115 = vmatprep.subr.bf16.mxu0 0
      %12116 = vmatpush1.bf16.msra.mxu0 0
      %12117 = vmatprep.subr.bf16.mxu0 0
      %12118 = vmatpush1.bf16.msra.mxu0 0
      %12119 = vmatprep.subr.bf16.mxu0 0
      %12120 = vmatpush1.bf16.msra.mxu0 0
      %12121 = vmatprep.subr.bf16.mxu0 0
      %12122 = vmatpush1.bf16.msra.mxu0 0
      %12123 = vmatprep.subr.bf16.mxu0 0
      %12124 = vmatpush1.bf16.msra.mxu0 0
      %12125 = vmatprep.subr.bf16.mxu0 0
      %12126 = vmatpush1.bf16.msra.mxu0 0
      %12127 = vmatprep.mubr.bf16.mxu0 0
      %12128 = vmatmul.mubr.bf16.gmra.mrb[0].mxu0 %v11889
      %v12129 = vpop.f32.mrb[0].mxu0
      %v12130 = vadd.f32 0.0, %v12129
      %v12131 = vpop.f32.mrb[0].mxu0
      %v12132 = vpop.f32.mrb[0].mxu0
      %v12133 = vadd.f32 0.0, %v12132
      %v12134 = vpop.f32.mrb[0].mxu0
      %12135 = vmatprep.mubr.bf16.mxu0 0
      %12136 = vmatmul.mubr.bf16.gmra.mrb[0].mxu0 %v11892
      %v12137 = vpop.f32.mrb[0].mxu0
      %v12138 = vadd.f32 0.0, %v12137
      %v12139 = vpop.f32.mrb[0].mxu0
      %v12140 = vpop.f32.mrb[0].mxu0
      %v12141 = vadd.f32 0.0, %v12140
      %v12142 = vpop.f32.mrb[0].mxu0
      %12143 = vmatprep.mubr.bf16.mxu0 0
      %12144 = vmatmul.mubr.bf16.gmra.mrb[0].mxu0 %v11895
      %v12145 = vpop.f32.mrb[0].mxu0
      %v12146 = vadd.f32 0.0, %v12145
      %v12147 = vpop.f32.mrb[0].mxu0
      %v12148 = vpop.f32.mrb[0].mxu0
      %v12149 = vadd.f32 0.0, %v12148
      %v12150 = vpop.f32.mrb[0].mxu0
      %12151 = vmatprep.mubr.bf16.mxu0 0
      %12152 = vmatmul.mubr.bf16.gmra.mrb[0].mxu0 %v11898
      %v12153 = vpop.f32.mrb[0].mxu0
      %v12154 = vadd.f32 0.0, %v12153
      %v12155 = vpop.f32.mrb[0].mxu0
      %v12156 = vpop.f32.mrb[0].mxu0
      %v12157 = vadd.f32 0.0, %v12156
      %v12158 = vpop.f32.mrb[0].mxu0
      %12159 = vmatprep.mubr.bf16.mxu0 0
      %12160 = vmatmul.mubr.bf16.gmra.mrb[0].mxu0 %v11901
      %v12161 = vpop.f32.mrb[0].mxu0
      %v12162 = vadd.f32 0.0, %v12161
      %v12163 = vpop.f32.mrb[0].mxu0
      %v12164 = vpop.f32.mrb[0].mxu0
      %v12165 = vadd.f32 0.0, %v12164
      %v12166 = vpop.f32.mrb[0].mxu0
      %12167 = vmatprep.mubr.bf16.mxu0 0
      %12168 = vmatmul.mubr.bf16.gmra.mrb[0].mxu0 %v11904
      %v12169 = vpop.f32.mrb[0].mxu0
      %v12170 = vadd.f32 0.0, %v12169
      %v12171 = vpop.f32.mrb[0].mxu0
      %v12172 = vpop.f32.mrb[0].mxu0
      %v12173 = vadd.f32 0.0, %v12172
      %v12174 = vpop.f32.mrb[0].mxu0
      %12175 = vmatprep.mubr.bf16.mxu0 0
      %12176 = vmatmul.mubr.bf16.gmra.mrb[0].mxu0 %v11907
      %v12177 = vpop.f32.mrb[0].mxu0
      %v12178 = vadd.f32 0.0, %v12177
      %v12179 = vpop.f32.mrb[0].mxu0
      %v12180 = vpop.f32.mrb[0].mxu0
      %v12181 = vadd.f32 0.0, %v12180
      %v12182 = vpop.f32.mrb[0].mxu0
      %12183 = vmatprep.mubr.bf16.mxu0 0
      %12184 = vmatmul.mubr.bf16.gmra.mrb[0].mxu0 %v11910
      %v12185 = vpop.f32.mrb[0].mxu0
      %v12186 = vadd.f32 0.0, %v12185
      %v12187 = vpop.f32.mrb[0].mxu0
      %v12188 = vpop.f32.mrb[0].mxu0
      %v12189 = vadd.f32 0.0, %v12188
      %v12190 = vpop.f32.mrb[0].mxu0
      %12191 = vmatprep.mubr.bf16.mxu0 0
      %12192 = vmatmul.mubr.bf16.gmra.mrb[0].mxu0 %v11913
      %v12193 = vpop.f32.mrb[0].mxu0
      %v12194 = vadd.f32 0.0, %v12193
      %v12195 = vpop.f32.mrb[0].mxu0
      %v12196 = vpop.f32.mrb[0].mxu0
      %v12197 = vadd.f32 0.0, %v12196
      %v12198 = vpop.f32.mrb[0].mxu0
      %12199 = vmatprep.mubr.bf16.mxu0 0
      %12200 = vmatmul.mubr.bf16.gmra.mrb[0].mxu0 %v11916
      %v12201 = vpop.f32.mrb[0].mxu0
      %v12202 = vadd.f32 0.0, %v12201
      %v12203 = vpop.f32.mrb[0].mxu0
      %v12204 = vpop.f32.mrb[0].mxu0
      %v12205 = vadd.f32 0.0, %v12204
      %v12206 = vpop.f32.mrb[0].mxu0
      %12207 = vmatprep.mubr.bf16.mxu0 0
      %12208 = vmatmul.mubr.bf16.gmra.mrb[0].mxu0 %v11919
      %v12209 = vpop.f32.mrb[0].mxu0
      %v12210 = vadd.f32 0.0, %v12209
      %v12211 = vpop.f32.mrb[0].mxu0
      %v12212 = vpop.f32.mrb[0].mxu0
      %v12213 = vadd.f32 0.0, %v12212
      %v12214 = vpop.f32.mrb[0].mxu0
      %12215 = vmatprep.mubr.bf16.mxu0 0
      %12216 = vmatmul.mubr.bf16.gmra.mrb[0].mxu0 %v11922
      %v12217 = vpop.f32.mrb[0].mxu0
      %v12218 = vadd.f32 0.0, %v12217
      %v12219 = vpop.f32.mrb[0].mxu0
      %v12220 = vpop.f32.mrb[0].mxu0
      %v12221 = vadd.f32 0.0, %v12220
      %v12222 = vpop.f32.mrb[0].mxu0
      %12223 = vmatprep.mubr.bf16.mxu0 0
      %12224 = vmatmul.mubr.bf16.gmra.mrb[0].mxu0 %v11925
      %v12225 = vpop.f32.mrb[0].mxu0
      %v12226 = vadd.f32 0.0, %v12225
      %v12227 = vpop.f32.mrb[0].mxu0
      %v12228 = vpop.f32.mrb[0].mxu0
      %v12229 = vadd.f32 0.0, %v12228
      %v12230 = vpop.f32.mrb[0].mxu0
      %12231 = vmatprep.mubr.bf16.mxu0 0
      %12232 = vmatmul.mubr.bf16.gmra.mrb[0].mxu0 %v11928
      %v12233 = vpop.f32.mrb[0].mxu0
      %v12234 = vadd.f32 0.0, %v12233
      %v12235 = vpop.f32.mrb[0].mxu0
      %v12236 = vpop.f32.mrb[0].mxu0
      %v12237 = vadd.f32 0.0, %v12236
      %v12238 = vpop.f32.mrb[0].mxu0
      %12239 = vmatprep.mubr.bf16.mxu0 0
      %12240 = vmatmul.mubr.bf16.gmra.mrb[0].mxu0 %v11931
      %v12241 = vpop.f32.mrb[0].mxu0
      %v12242 = vadd.f32 0.0, %v12241
      %v12243 = vpop.f32.mrb[0].mxu0
      %v12244 = vpop.f32.mrb[0].mxu0
      %v12245 = vadd.f32 0.0, %v12244
      %v12246 = vpop.f32.mrb[0].mxu0
      %12247 = vmatprep.mubr.bf16.mxu0 0
      %12248 = vmatmul.mubr.bf16.gmra.mrb[0].mxu0 %v11934
      %v12249 = vpop.f32.mrb[0].mxu0
      %v12250 = vadd.f32 0.0, %v12249
      %v12251 = vpop.f32.mrb[0].mxu0
      %v12252 = vpop.f32.mrb[0].mxu0
      %v12253 = vadd.f32 0.0, %v12252
      %v12254 = vpop.f32.mrb[0].mxu0
      %12255 = vmatprep.mubr.bf16.mxu0 0
      %12256 = vmatmul.mubr.bf16.gmra.mrb[0].mxu0 %v11937
      %v12257 = vpop.f32.mrb[0].mxu0
      %v12258 = vadd.f32 0.0, %v12257
      %v12259 = vpop.f32.mrb[0].mxu0
      %v12260 = vpop.f32.mrb[0].mxu0
      %v12261 = vadd.f32 0.0, %v12260
      %v12262 = vpop.f32.mrb[0].mxu0
      %12263 = vmatprep.mubr.bf16.mxu0 0
      %12264 = vmatmul.mubr.bf16.gmra.mrb[0].mxu0 %v11940
      %v12265 = vpop.f32.mrb[0].mxu0
      %v12266 = vadd.f32 0.0, %v12265
      %v12267 = vpop.f32.mrb[0].mxu0
      %v12268 = vpop.f32.mrb[0].mxu0
      %v12269 = vadd.f32 0.0, %v12268
      %v12270 = vpop.f32.mrb[0].mxu0
      %12271 = vmatprep.mubr.bf16.mxu0 0
      %12272 = vmatmul.mubr.bf16.gmra.mrb[0].mxu0 %v11943
      %v12273 = vpop.f32.mrb[0].mxu0
      %v12274 = vadd.f32 0.0, %v12273
      %v12275 = vpop.f32.mrb[0].mxu0
      %v12276 = vpop.f32.mrb[0].mxu0
      %v12277 = vadd.f32 0.0, %v12276
      %v12278 = vpop.f32.mrb[0].mxu0
      %12279 = vmatprep.mubr.bf16.mxu0 0
      %12280 = vmatmul.mubr.bf16.gmra.mrb[0].mxu0 %v11946
      %v12281 = vpop.f32.mrb[0].mxu0
      %v12282 = vadd.f32 0.0, %v12281
      %v12283 = vpop.f32.mrb[0].mxu0
      %v12284 = vpop.f32.mrb[0].mxu0
      %v12285 = vadd.f32 0.0, %v12284
      %v12286 = vpop.f32.mrb[0].mxu0
      %12287 = vmatprep.mubr.bf16.mxu0 0
      %12288 = vmatmul.mubr.bf16.gmra.mrb[0].mxu0 %v11949
      %v12289 = vpop.f32.mrb[0].mxu0
      %v12290 = vadd.f32 0.0, %v12289
      %v12291 = vpop.f32.mrb[0].mxu0
      %v12292 = vpop.f32.mrb[0].mxu0
      %v12293 = vadd.f32 0.0, %v12292
      %v12294 = vpop.f32.mrb[0].mxu0
      %12295 = vmatprep.mubr.bf16.mxu0 0
      %12296 = vmatmul.mubr.bf16.gmra.mrb[0].mxu0 %v11952
      %v12297 = vpop.f32.mrb[0].mxu0
      %v12298 = vadd.f32 0.0, %v12297
      %v12299 = vpop.f32.mrb[0].mxu0
      %v12300 = vpop.f32.mrb[0].mxu0
      %v12301 = vadd.f32 0.0, %v12300
      %v12302 = vpop.f32.mrb[0].mxu0
      %12303 = vmatprep.mubr.bf16.mxu0 0
      %12304 = vmatmul.mubr.bf16.gmra.mrb[0].mxu0 %v11955
      %v12305 = vpop.f32.mrb[0].mxu0
      %v12306 = vadd.f32 0.0, %v12305
      %v12307 = vpop.f32.mrb[0].mxu0
      %v12308 = vpop.f32.mrb[0].mxu0
      %v12309 = vadd.f32 0.0, %v12308
      %v12310 = vpop.f32.mrb[0].mxu0
      %12311 = vmatprep.mubr.bf16.mxu0 0
      %12312 = vmatmul.mubr.bf16.gmra.mrb[0].mxu0 %v11958
      %v12313 = vpop.f32.mrb[0].mxu0
      %v12314 = vadd.f32 0.0, %v12313
      %v12315 = vpop.f32.mrb[0].mxu0
      %v12316 = vpop.f32.mrb[0].mxu0
      %v12317 = vadd.f32 0.0, %v12316
      %v12318 = vpop.f32.mrb[0].mxu0
      %12319 = vmatprep.mubr.bf16.mxu0 0
      %12320 = vmatmul.mubr.bf16.gmra.mrb[0].mxu0 %v11961
      %v12321 = vpop.f32.mrb[0].mxu0
      %v12322 = vadd.f32 0.0, %v12321
      %v12323 = vpop.f32.mrb[0].mxu0
      %v12324 = vpop.f32.mrb[0].mxu0
      %v12325 = vadd.f32 0.0, %v12324
      %v12326 = vpop.f32.mrb[0].mxu0
      %12327 = vmatprep.mubr.bf16.mxu0 0
      %12328 = vmatmul.mubr.bf16.gmra.mrb[0].mxu0 %v11964
      %v12329 = vpop.f32.mrb[0].mxu0
      %v12330 = vadd.f32 0.0, %v12329
      %v12331 = vpop.f32.mrb[0].mxu0
      %v12332 = vpop.f32.mrb[0].mxu0
      %v12333 = vadd.f32 0.0, %v12332
      %v12334 = vpop.f32.mrb[0].mxu0
      %12335 = vmatprep.mubr.bf16.mxu0 0
      %12336 = vmatmul.mubr.bf16.gmra.mrb[0].mxu0 %v11967
      %v12337 = vpop.f32.mrb[0].mxu0
      %v12338 = vadd.f32 0.0, %v12337
      %v12339 = vpop.f32.mrb[0].mxu0
      %v12340 = vpop.f32.mrb[0].mxu0
      %v12341 = vadd.f32 0.0, %v12340
      %v12342 = vpop.f32.mrb[0].mxu0
      %12343 = vmatprep.mubr.bf16.mxu0 0
      %12344 = vmatmul.mubr.bf16.gmra.mrb[0].mxu0 %v11970
      %v12345 = vpop.f32.mrb[0].mxu0
      %v12346 = vadd.f32 0.0, %v12345
      %v12347 = vpop.f32.mrb[0].mxu0
      %v12348 = vpop.f32.mrb[0].mxu0
      %v12349 = vadd.f32 0.0, %v12348
      %v12350 = vpop.f32.mrb[0].mxu0
      %12351 = vmatprep.mubr.bf16.mxu0 0
      %12352 = vmatmul.mubr.bf16.gmra.mrb[0].mxu0 %v11973
      %v12353 = vpop.f32.mrb[0].mxu0
      %v12354 = vadd.f32 0.0, %v12353
      %v12355 = vpop.f32.mrb[0].mxu0
      %v12356 = vpop.f32.mrb[0].mxu0
      %v12357 = vadd.f32 0.0, %v12356
      %v12358 = vpop.f32.mrb[0].mxu0
      %12359 = vmatprep.mubr.bf16.mxu0 0
      %12360 = vmatmul.mubr.bf16.gmra.mrb[0].mxu0 %v11976
      %v12361 = vpop.f32.mrb[0].mxu0
      %v12362 = vadd.f32 0.0, %v12361
      %v12363 = vpop.f32.mrb[0].mxu0
      %v12364 = vpop.f32.mrb[0].mxu0
      %v12365 = vadd.f32 0.0, %v12364
      %v12366 = vpop.f32.mrb[0].mxu0
      %12367 = vmatprep.mubr.bf16.mxu0 0
      %12368 = vmatmul.mubr.bf16.gmra.mrb[0].mxu0 %v11979
      %v12369 = vpop.f32.mrb[0].mxu0
      %v12370 = vadd.f32 0.0, %v12369
      %v12371 = vpop.f32.mrb[0].mxu0
      %v12372 = vpop.f32.mrb[0].mxu0
      %v12373 = vadd.f32 0.0, %v12372
      %v12374 = vpop.f32.mrb[0].mxu0
      %12375 = vmatprep.mubr.bf16.mxu0 0
      %12376 = vmatmul.mubr.bf16.gmra.mrb[0].mxu0 %v11982
      %v12377 = vpop.f32.mrb[0].mxu0
      %v12378 = vadd.f32 0.0, %v12377
      %v12379 = vpop.f32.mrb[0].mxu0
      %v12380 = vpop.f32.mrb[0].mxu0
      %v12381 = vadd.f32 0.0, %v12380
      %v12382 = vpop.f32.mrb[0].mxu0
      %12383 = vmatprep.mubr.bf16.mxu0 0
      %12384 = vmatmul.mubr.bf16.gmra.mrb[0].mxu0 %v11985
      %v12385 = vpop.f32.mrb[0].mxu0
      %v12386 = vadd.f32 0.0, %v12385
      %v12387 = vpop.f32.mrb[0].mxu0
      %v12388 = vpop.f32.mrb[0].mxu0
      %v12389 = vadd.f32 0.0, %v12388
      %v12390 = vpop.f32.mrb[0].mxu0
      %12391 = vmatprep.mubr.bf16.mxu0 0
      %12392 = vmatmul.mubr.bf16.gmra.mrb[0].mxu0 %v11988
      %v12393 = vpop.f32.mrb[0].mxu0
      %v12394 = vadd.f32 0.0, %v12393
      %v12395 = vpop.f32.mrb[0].mxu0
      %v12396 = vpop.f32.mrb[0].mxu0
      %v12397 = vadd.f32 0.0, %v12396
      %v12398 = vpop.f32.mrb[0].mxu0
      %12399 = vmatprep.mubr.bf16.mxu0 0
      %12400 = vmatmul.mubr.bf16.gmra.mrb[0].mxu0 %v11991
      %v12401 = vpop.f32.mrb[0].mxu0
      %v12402 = vadd.f32 0.0, %v12401
      %v12403 = vpop.f32.mrb[0].mxu0
      %v12404 = vpop.f32.mrb[0].mxu0
      %v12405 = vadd.f32 0.0, %v12404
      %v12406 = vpop.f32.mrb[0].mxu0
      %12407 = vmatprep.mubr.bf16.mxu0 0
      %12408 = vmatmul.mubr.bf16.gmra.mrb[0].mxu0 %v11994
      %v12409 = vpop.f32.mrb[0].mxu0
      %v12410 = vadd.f32 0.0, %v12409
      %v12411 = vpop.f32.mrb[0].mxu0
      %v12412 = vpop.f32.mrb[0].mxu0
      %v12413 = vadd.f32 0.0, %v12412
      %v12414 = vpop.f32.mrb[0].mxu0
      %12415 = vmatprep.mubr.bf16.mxu0 0
      %12416 = vmatmul.mubr.bf16.gmra.mrb[0].mxu0 %v11997
      %v12417 = vpop.f32.mrb[0].mxu0
      %v12418 = vadd.f32 0.0, %v12417
      %v12419 = vpop.f32.mrb[0].mxu0
      %v12420 = vpop.f32.mrb[0].mxu0
      %v12421 = vadd.f32 0.0, %v12420
      %v12422 = vpop.f32.mrb[0].mxu0
      %12423 = vmatprep.mubr.bf16.mxu0 0
      %12424 = vmatmul.mubr.bf16.gmra.mrb[0].mxu0 %v12000
      %v12425 = vpop.f32.mrb[0].mxu0
      %v12426 = vadd.f32 0.0, %v12425
      %v12427 = vpop.f32.mrb[0].mxu0
      %v12428 = vpop.f32.mrb[0].mxu0
      %v12429 = vadd.f32 0.0, %v12428
      %v12430 = vpop.f32.mrb[0].mxu0
      %12431 = vmatprep.mubr.bf16.mxu0 0
      %12432 = vmatmul.mubr.bf16.gmra.mrb[0].mxu0 %v12003
      %v12433 = vpop.f32.mrb[0].mxu0
      %v12434 = vadd.f32 0.0, %v12433
      %v12435 = vpop.f32.mrb[0].mxu0
      %v12436 = vpop.f32.mrb[0].mxu0
      %v12437 = vadd.f32 0.0, %v12436
      %v12438 = vpop.f32.mrb[0].mxu0
      %12439 = vmatprep.mubr.bf16.mxu0 0
      %12440 = vmatmul.mubr.bf16.gmra.mrb[0].mxu0 %v12006
      %v12441 = vpop.f32.mrb[0].mxu0
      %v12442 = vadd.f32 0.0, %v12441
      %v12443 = vpop.f32.mrb[0].mxu0
      %v12444 = vpop.f32.mrb[0].mxu0
      %v12445 = vadd.f32 0.0, %v12444
      %v12446 = vpop.f32.mrb[0].mxu0
      %12447 = vmatprep.mubr.bf16.mxu0 0
      %12448 = vmatmul.mubr.bf16.gmra.mrb[0].mxu0 %v12009
      %v12449 = vpop.f32.mrb[0].mxu0
      %v12450 = vadd.f32 0.0, %v12449
      %v12451 = vpop.f32.mrb[0].mxu0
      %v12452 = vpop.f32.mrb[0].mxu0
      %v12453 = vadd.f32 0.0, %v12452
      %v12454 = vpop.f32.mrb[0].mxu0
      %12455 = vmatprep.mubr.bf16.mxu0 0
      %12456 = vmatmul.mubr.bf16.gmra.mrb[0].mxu0 %v12012
      %v12457 = vpop.f32.mrb[0].mxu0
      %v12458 = vadd.f32 0.0, %v12457
      %v12459 = vpop.f32.mrb[0].mxu0
      %v12460 = vpop.f32.mrb[0].mxu0
      %v12461 = vadd.f32 0.0, %v12460
      %v12462 = vpop.f32.mrb[0].mxu0
      %12463 = vmatprep.mubr.bf16.mxu0 0
      %12464 = vmatmul.mubr.bf16.gmra.mrb[0].mxu0 %v12015
      %v12465 = vpop.f32.mrb[0].mxu0
      %v12466 = vadd.f32 0.0, %v12465
      %v12467 = vpop.f32.mrb[0].mxu0
      %v12468 = vpop.f32.mrb[0].mxu0
      %v12469 = vadd.f32 0.0, %v12468
      %v12470 = vpop.f32.mrb[0].mxu0
      %12471 = vmatprep.mubr.bf16.mxu0 0
      %12472 = vmatmul.mubr.bf16.gmra.mrb[0].mxu0 %v12018
      %v12473 = vpop.f32.mrb[0].mxu0
      %v12474 = vadd.f32 0.0, %v12473
      %v12475 = vpop.f32.mrb[0].mxu0
      %v12476 = vpop.f32.mrb[0].mxu0
      %v12477 = vadd.f32 0.0, %v12476
      %v12478 = vpop.f32.mrb[0].mxu0
      %12479 = vmatprep.mubr.bf16.mxu0 0
      %12480 = vmatmul.mubr.bf16.gmra.mrb[0].mxu0 %v12021
      %v12481 = vpop.f32.mrb[0].mxu0
      %v12482 = vadd.f32 0.0, %v12481
      %v12483 = vpop.f32.mrb[0].mxu0
      %v12484 = vpop.f32.mrb[0].mxu0
      %v12485 = vadd.f32 0.0, %v12484
      %v12486 = vpop.f32.mrb[0].mxu0
      %12487 = vmatprep.mubr.bf16.mxu0 0
      %12488 = vmatmul.mubr.bf16.gmra.mrb[0].mxu0 %v12024
      %v12489 = vpop.f32.mrb[0].mxu0
      %v12490 = vadd.f32 0.0, %v12489
      %v12491 = vpop.f32.mrb[0].mxu0
      %v12492 = vpop.f32.mrb[0].mxu0
      %v12493 = vadd.f32 0.0, %v12492
      %v12494 = vpop.f32.mrb[0].mxu0
      %12495 = vmatprep.mubr.bf16.mxu0 0
      %12496 = vmatmul.mubr.bf16.gmra.mrb[0].mxu0 %v12027
      %v12497 = vpop.f32.mrb[0].mxu0
      %v12498 = vadd.f32 0.0, %v12497
      %v12499 = vpop.f32.mrb[0].mxu0
      %v12500 = vpop.f32.mrb[0].mxu0
      %v12501 = vadd.f32 0.0, %v12500
      %v12502 = vpop.f32.mrb[0].mxu0
      %12503 = vmatprep.mubr.bf16.mxu0 0
      %12504 = vmatmul.mubr.bf16.gmra.mrb[0].mxu0 %v12030
      %v12505 = vpop.f32.mrb[0].mxu0
      %v12506 = vadd.f32 0.0, %v12505
      %v12507 = vpop.f32.mrb[0].mxu0
      %v12508 = vpop.f32.mrb[0].mxu0
      %v12509 = vadd.f32 0.0, %v12508
      %v12510 = vpop.f32.mrb[0].mxu0
      %12511 = vmatprep.mubr.bf16.mxu0 0
      %12512 = vmatmul.mubr.bf16.gmra.mrb[0].mxu0 %v12033
      %v12513 = vpop.f32.mrb[0].mxu0
      %v12514 = vadd.f32 0.0, %v12513
      %v12515 = vpop.f32.mrb[0].mxu0
      %v12516 = vpop.f32.mrb[0].mxu0
      %v12517 = vadd.f32 0.0, %v12516
      %v12518 = vpop.f32.mrb[0].mxu0
      %12519 = vmatprep.mubr.bf16.mxu0 0
      %12520 = vmatmul.mubr.bf16.gmra.mrb[0].mxu0 %v12036
      %v12521 = vpop.f32.mrb[0].mxu0
      %v12522 = vadd.f32 0.0, %v12521
      %v12523 = vpop.f32.mrb[0].mxu0
      %v12524 = vpop.f32.mrb[0].mxu0
      %v12525 = vadd.f32 0.0, %v12524
      %v12526 = vpop.f32.mrb[0].mxu0
      %12527 = vmatprep.mubr.bf16.mxu0 0
      %12528 = vmatmul.mubr.bf16.gmra.mrb[0].mxu0 %v12039
      %v12529 = vpop.f32.mrb[0].mxu0
      %v12530 = vadd.f32 0.0, %v12529
      %v12531 = vpop.f32.mrb[0].mxu0
      %v12532 = vpop.f32.mrb[0].mxu0
      %v12533 = vadd.f32 0.0, %v12532
      %v12534 = vpop.f32.mrb[0].mxu0
      %12535 = vmatprep.mubr.bf16.mxu0 0
      %12536 = vmatmul.mubr.bf16.gmra.mrb[0].mxu0 %v12042
      %v12537 = vpop.f32.mrb[0].mxu0
      %v12538 = vadd.f32 0.0, %v12537
      %v12539 = vpop.f32.mrb[0].mxu0
      %v12540 = vpop.f32.mrb[0].mxu0
      %v12541 = vadd.f32 0.0, %v12540
      %v12542 = vpop.f32.mrb[0].mxu0
      %12543 = vmatprep.mubr.bf16.mxu0 0
      %12544 = vmatmul.mubr.bf16.gmra.mrb[0].mxu0 %v12045
      %v12545 = vpop.f32.mrb[0].mxu0
      %v12546 = vadd.f32 0.0, %v12545
      %v12547 = vpop.f32.mrb[0].mxu0
      %v12548 = vpop.f32.mrb[0].mxu0
      %v12549 = vadd.f32 0.0, %v12548
      %v12550 = vpop.f32.mrb[0].mxu0
      %12551 = vmatprep.mubr.bf16.mxu0 0
      %12552 = vmatmul.mubr.bf16.gmra.mrb[0].mxu0 %v12048
      %v12553 = vpop.f32.mrb[0].mxu0
      %v12554 = vadd.f32 0.0, %v12553
      %v12555 = vpop.f32.mrb[0].mxu0
      %v12556 = vpop.f32.mrb[0].mxu0
      %v12557 = vadd.f32 0.0, %v12556
      %v12558 = vpop.f32.mrb[0].mxu0
      %12559 = vmatprep.mubr.bf16.mxu0 0
      %12560 = vmatmul.mubr.bf16.gmra.mrb[0].mxu0 %v12051
      %v12561 = vpop.f32.mrb[0].mxu0
      %v12562 = vadd.f32 0.0, %v12561
      %v12563 = vpop.f32.mrb[0].mxu0
      %v12564 = vpop.f32.mrb[0].mxu0
      %v12565 = vadd.f32 0.0, %v12564
      %v12566 = vpop.f32.mrb[0].mxu0
      %12567 = vmatprep.mubr.bf16.mxu0 0
      %12568 = vmatmul.mubr.bf16.gmra.mrb[0].mxu0 %v12054
      %v12569 = vpop.f32.mrb[0].mxu0
      %v12570 = vadd.f32 0.0, %v12569
      %v12571 = vpop.f32.mrb[0].mxu0
      %v12572 = vpop.f32.mrb[0].mxu0
      %v12573 = vadd.f32 0.0, %v12572
      %v12574 = vpop.f32.mrb[0].mxu0
      %12575 = vmatprep.mubr.bf16.mxu0 0
      %12576 = vmatmul.mubr.bf16.gmra.mrb[0].mxu0 %v12057
      %v12577 = vpop.f32.mrb[0].mxu0
      %v12578 = vadd.f32 0.0, %v12577
      %v12579 = vpop.f32.mrb[0].mxu0
      %v12580 = vpop.f32.mrb[0].mxu0
      %v12581 = vadd.f32 0.0, %v12580
      %v12582 = vpop.f32.mrb[0].mxu0
      %12583 = vmatprep.mubr.bf16.mxu0 0
      %12584 = vmatmul.mubr.bf16.gmra.mrb[0].mxu0 %v12060
      %v12585 = vpop.f32.mrb[0].mxu0
      %v12586 = vadd.f32 0.0, %v12585
      %v12587 = vpop.f32.mrb[0].mxu0
      %v12588 = vpop.f32.mrb[0].mxu0
      %v12589 = vadd.f32 0.0, %v12588
      %v12590 = vpop.f32.mrb[0].mxu0
      %12591 = vmatprep.mubr.bf16.mxu0 0
      %12592 = vmatmul.mubr.bf16.gmra.mrb[0].mxu0 %v12063
      %v12593 = vpop.f32.mrb[0].mxu0
      %v12594 = vadd.f32 0.0, %v12593
      %v12595 = vpop.f32.mrb[0].mxu0
      %v12596 = vpop.f32.mrb[0].mxu0
      %v12597 = vadd.f32 0.0, %v12596
      %v12598 = vpop.f32.mrb[0].mxu0
      %12599 = vmatprep.mubr.bf16.mxu0 0
      %12600 = vmatmul.mubr.bf16.gmra.mrb[0].mxu0 %v12066
      %v12601 = vpop.f32.mrb[0].mxu0
      %v12602 = vadd.f32 0.0, %v12601
      %v12603 = vpop.f32.mrb[0].mxu0
      %v12604 = vpop.f32.mrb[0].mxu0
      %v12605 = vadd.f32 0.0, %v12604
      %v12606 = vpop.f32.mrb[0].mxu0
      %12607 = vmatprep.mubr.bf16.mxu0 0
      %12608 = vmatmul.mubr.bf16.gmra.mrb[0].mxu0 %v12069
      %v12609 = vpop.f32.mrb[0].mxu0
      %v12610 = vadd.f32 0.0, %v12609
      %v12611 = vpop.f32.mrb[0].mxu0
      %v12612 = vpop.f32.mrb[0].mxu0
      %v12613 = vadd.f32 0.0, %v12612
      %v12614 = vpop.f32.mrb[0].mxu0
      %12615 = vmatprep.mubr.bf16.mxu0 0
      %12616 = vmatmul.mubr.bf16.gmra.mrb[0].mxu0 %v12072
      %v12617 = vpop.f32.mrb[0].mxu0
      %v12618 = vadd.f32 0.0, %v12617
      %v12619 = vpop.f32.mrb[0].mxu0
      %v12620 = vpop.f32.mrb[0].mxu0
      %v12621 = vadd.f32 0.0, %v12620
      %v12622 = vpop.f32.mrb[0].mxu0
      %12623 = vmatprep.mubr.bf16.mxu0 0
      %12624 = vmatmul.mubr.bf16.gmra.mrb[0].mxu0 %v12075
      %v12625 = vpop.f32.mrb[0].mxu0
      %v12626 = vadd.f32 0.0, %v12625
      %v12627 = vpop.f32.mrb[0].mxu0
      %v12628 = vpop.f32.mrb[0].mxu0
      %v12629 = vadd.f32 0.0, %v12628
      %v12630 = vpop.f32.mrb[0].mxu0
      %12631 = vmatprep.mubr.bf16.mxu0 0
      %12632 = vmatmul.mubr.bf16.gmra.mrb[0].mxu0 %v12078
      %v12633 = vpop.f32.mrb[0].mxu0
      %v12634 = vadd.f32 0.0, %v12633
      %v12635 = vpop.f32.mrb[0].mxu0
      %v12636 = vpop.f32.mrb[0].mxu0
      %v12637 = vadd.f32 0.0, %v12636
      %v12638 = vpop.f32.mrb[0].mxu0
      %12639 = vmatprep.mubr.bf16.mxu0 0
      %12640 = vmatmul.mubr.bf16.gmra.mrb[0].mxu0 %v12081
      %v12641 = vpop.f32.mrb[0].mxu0
      %v12642 = vadd.f32 0.0, %v12641
      %v12643 = vpop.f32.mrb[0].mxu0
      %v12644 = vpop.f32.mrb[0].mxu0
      %v12645 = vadd.f32 0.0, %v12644
      %v12646 = vpop.f32.mrb[0].mxu0
      %12647 = vmatprep.mubr.bf16.mxu0 0
      %12648 = vmatmul.mubr.bf16.gmra.mrb[0].mxu0 %v12084
      %v12649 = vpop.f32.mrb[0].mxu0
      %v12650 = vadd.f32 0.0, %v12649
      %v12651 = vpop.f32.mrb[0].mxu0
      %v12652 = vpop.f32.mrb[0].mxu0
      %v12653 = vadd.f32 0.0, %v12652
      %v12654 = vpop.f32.mrb[0].mxu0
      %12655 = vmatprep.mubr.bf16.mxu0 0
      %12656 = vmatmul.mubr.bf16.gmra.mrb[0].mxu0 %v12087
      %v12657 = vpop.f32.mrb[0].mxu0
      %v12658 = vadd.f32 0.0, %v12657
      %v12659 = vpop.f32.mrb[0].mxu0
      %v12660 = vpop.f32.mrb[0].mxu0
      %v12661 = vadd.f32 0.0, %v12660
      %v12662 = vpop.f32.mrb[0].mxu0
      %12663 = vmatprep.mubr.bf16.mxu0 0
      %12664 = vmatmul.mubr.bf16.gmra.mrb[0].mxu0 %v12090
      %v12665 = vpop.f32.mrb[0].mxu0
      %v12666 = vadd.f32 0.0, %v12665
      %v12667 = vpop.f32.mrb[0].mxu0
      %v12668 = vpop.f32.mrb[0].mxu0
      %v12669 = vadd.f32 0.0, %v12668
      %v12670 = vpop.f32.mrb[0].mxu0
      %12671 = vdwg.mxu0
      %v12672 = vadd.f32 %v11608, %v12130
      %v12673 = vadd.f32 %v11609, %v12133
      %v12674 = vadd.f32 %v11610, %v12138
      %v12675 = vadd.f32 %v11611, %v12141
      %v12676 = vadd.f32 %v11612, %v12146
      %v12677 = vadd.f32 %v11613, %v12149
      %v12678 = vadd.f32 %v11614, %v12154
      %v12679 = vadd.f32 %v11615, %v12157
      %v12680 = vadd.f32 %v11616, %v12162
      %v12681 = vadd.f32 %v11617, %v12165
      %v12682 = vadd.f32 %v11618, %v12170
      %v12683 = vadd.f32 %v11619, %v12173
      %v12684 = vadd.f32 %v11620, %v12178
      %v12685 = vadd.f32 %v11621, %v12181
      %v12686 = vadd.f32 %v11622, %v12186
      %v12687 = vadd.f32 %v11623, %v12189
      %v12688 = vadd.f32 %v11624, %v12194
      %v12689 = vadd.f32 %v11625, %v12197
      %v12690 = vadd.f32 %v11626, %v12202
      %v12691 = vadd.f32 %v11627, %v12205
      %v12692 = vadd.f32 %v11628, %v12210
      %v12693 = vadd.f32 %v11629, %v12213
      %v12694 = vadd.f32 %v11630, %v12218
      %v12695 = vadd.f32 %v11631, %v12221
      %v12696 = vadd.f32 %v11632, %v12226
      %v12697 = vadd.f32 %v11633, %v12229
      %v12698 = vadd.f32 %v11634, %v12234
      %v12699 = vadd.f32 %v11635, %v12237
      %v12700 = vadd.f32 %v11636, %v12242
      %v12701 = vadd.f32 %v11637, %v12245
      %v12702 = vadd.f32 %v11638, %v12250
      %v12703 = vadd.f32 %v11639, %v12253
      %v12704 = vadd.f32 %v11640, %v12258
      %v12705 = vadd.f32 %v11641, %v12261
      %v12706 = vadd.f32 %v11642, %v12266
      %v12707 = vadd.f32 %v11643, %v12269
      %v12708 = vadd.f32 %v11644, %v12274
      %v12709 = vadd.f32 %v11645, %v12277
      %v12710 = vadd.f32 %v11646, %v12282
      %v12711 = vadd.f32 %v11647, %v12285
      %v12712 = vadd.f32 %v11648, %v12290
      %v12713 = vadd.f32 %v11649, %v12293
      %v12714 = vadd.f32 %v11650, %v12298
      %v12715 = vadd.f32 %v11651, %v12301
      %v12716 = vadd.f32 %v11652, %v12306
      %v12717 = vadd.f32 %v11653, %v12309
      %v12718 = vadd.f32 %v11654, %v12314
      %v12719 = vadd.f32 %v11655, %v12317
      %v12720 = vadd.f32 %v11656, %v12322
      %v12721 = vadd.f32 %v11657, %v12325
      %v12722 = vadd.f32 %v11658, %v12330
      %v12723 = vadd.f32 %v11659, %v12333
      %v12724 = vadd.f32 %v11660, %v12338
      %v12725 = vadd.f32 %v11661, %v12341
      %v12726 = vadd.f32 %v11662, %v12346
      %v12727 = vadd.f32 %v11663, %v12349
      %v12728 = vadd.f32 %v11664, %v12354
      %v12729 = vadd.f32 %v11665, %v12357
      %v12730 = vadd.f32 %v11666, %v12362
      %v12731 = vadd.f32 %v11667, %v12365
      %v12732 = vadd.f32 %v11668, %v12370
      %v12733 = vadd.f32 %v11669, %v12373
      %v12734 = vadd.f32 %v11670, %v12378
      %v12735 = vadd.f32 %v11671, %v12381
      %v12736 = vadd.f32 %v11672, %v12386
      %v12737 = vadd.f32 %v11673, %v12389
      %v12738 = vadd.f32 %v11674, %v12394
      %v12739 = vadd.f32 %v11675, %v12397
      %v12740 = vadd.f32 %v11676, %v12402
      %v12741 = vadd.f32 %v11677, %v12405
      %v12742 = vadd.f32 %v11678, %v12410
      %v12743 = vadd.f32 %v11679, %v12413
      %v12744 = vadd.f32 %v11680, %v12418
      %v12745 = vadd.f32 %v11681, %v12421
      %v12746 = vadd.f32 %v11682, %v12426
      %v12747 = vadd.f32 %v11683, %v12429
      %v12748 = vadd.f32 %v11684, %v12434
      %v12749 = vadd.f32 %v11685, %v12437
      %v12750 = vadd.f32 %v11686, %v12442
      %v12751 = vadd.f32 %v11687, %v12445
      %v12752 = vadd.f32 %v11688, %v12450
      %v12753 = vadd.f32 %v11689, %v12453
      %v12754 = vadd.f32 %v11690, %v12458
      %v12755 = vadd.f32 %v11691, %v12461
      %v12756 = vadd.f32 %v11692, %v12466
      %v12757 = vadd.f32 %v11693, %v12469
      %v12758 = vadd.f32 %v11694, %v12474
      %v12759 = vadd.f32 %v11695, %v12477
      %v12760 = vadd.f32 %v11696, %v12482
      %v12761 = vadd.f32 %v11697, %v12485
      %v12762 = vadd.f32 %v11698, %v12490
      %v12763 = vadd.f32 %v11699, %v12493
      %v12764 = vadd.f32 %v11700, %v12498
      %v12765 = vadd.f32 %v11701, %v12501
      %v12766 = vadd.f32 %v11702, %v12506
      %v12767 = vadd.f32 %v11703, %v12509
      %v12768 = vadd.f32 %v11704, %v12514
      %v12769 = vadd.f32 %v11705, %v12517
      %v12770 = vadd.f32 %v11706, %v12522
      %v12771 = vadd.f32 %v11707, %v12525
      %v12772 = vadd.f32 %v11708, %v12530
      %v12773 = vadd.f32 %v11709, %v12533
      %v12774 = vadd.f32 %v11710, %v12538
      %v12775 = vadd.f32 %v11711, %v12541
      %v12776 = vadd.f32 %v11712, %v12546
      %v12777 = vadd.f32 %v11713, %v12549
      %v12778 = vadd.f32 %v11714, %v12554
      %v12779 = vadd.f32 %v11715, %v12557
      %v12780 = vadd.f32 %v11716, %v12562
      %v12781 = vadd.f32 %v11717, %v12565
      %v12782 = vadd.f32 %v11718, %v12570
      %v12783 = vadd.f32 %v11719, %v12573
      %v12784 = vadd.f32 %v11720, %v12578
      %v12785 = vadd.f32 %v11721, %v12581
      %v12786 = vadd.f32 %v11722, %v12586
      %v12787 = vadd.f32 %v11723, %v12589
      %v12788 = vadd.f32 %v11724, %v12594
      %v12789 = vadd.f32 %v11725, %v12597
      %v12790 = vadd.f32 %v11726, %v12602
      %v12791 = vadd.f32 %v11727, %v12605
      %v12792 = vadd.f32 %v11728, %v12610
      %v12793 = vadd.f32 %v11729, %v12613
      %v12794 = vadd.f32 %v11730, %v12618
      %v12795 = vadd.f32 %v11731, %v12621
      %v12796 = vadd.f32 %v11732, %v12626
      %v12797 = vadd.f32 %v11733, %v12629
      %v12798 = vadd.f32 %v11734, %v12634
      %v12799 = vadd.f32 %v11735, %v12637
      %v12800 = vadd.f32 %v11736, %v12642
      %v12801 = vadd.f32 %v11737, %v12645
      %v12802 = vadd.f32 %v11738, %v12650
      %v12803 = vadd.f32 %v11739, %v12653
      %v12804 = vadd.f32 %v11740, %v12658
      %v12805 = vadd.f32 %v11741, %v12661
      %v12806 = vadd.f32 %v11742, %v12666
      %v12807 = vadd.f32 %v11743, %v12669
      %12808 = vst [vmem:[%s221] sm:$0xff] %v12672
      %12809 = vst [vmem:[%s221 + $0x8] sm:$0xff] %v12673
      %12810 = vst [vmem:[%s221 + $0x10] sm:$0xff] %v12674
      %12811 = vst [vmem:[%s221 + $0x18] sm:$0xff] %v12675
      %12812 = vst [vmem:[%s221 + $0x20] sm:$0xff] %v12676
      %12813 = vst [vmem:[%s221 + $0x28] sm:$0xff] %v12677
      %12814 = vst [vmem:[%s221 + $0x30] sm:$0xff] %v12678
      %12815 = vst [vmem:[%s221 + $0x38] sm:$0xff] %v12679
      %12816 = vst [vmem:[%s221 + $0x40] sm:$0xff] %v12680
      %12817 = vst [vmem:[%s221 + $0x48] sm:$0xff] %v12681
      %12818 = vst [vmem:[%s221 + $0x50] sm:$0xff] %v12682
      %12819 = vst [vmem:[%s221 + $0x58] sm:$0xff] %v12683
      %12820 = vst [vmem:[%s221 + $0x60] sm:$0xff] %v12684
      %12821 = vst [vmem:[%s221 + $0x68] sm:$0xff] %v12685
      %12822 = vst [vmem:[%s221 + $0x70] sm:$0xff] %v12686
      %12823 = vst [vmem:[%s221 + $0x78] sm:$0xff] %v12687
      %12824 = vst [vmem:[%s221 + $0x80] sm:$0xff] %v12688
      %12825 = vst [vmem:[%s221 + $0x88] sm:$0xff] %v12689
      %12826 = vst [vmem:[%s221 + $0x90] sm:$0xff] %v12690
      %12827 = vst [vmem:[%s221 + $0x98] sm:$0xff] %v12691
      %12828 = vst [vmem:[%s221 + $0xa0] sm:$0xff] %v12692
      %12829 = vst [vmem:[%s221 + $0xa8] sm:$0xff] %v12693
      %12830 = vst [vmem:[%s221 + $0xb0] sm:$0xff] %v12694
      %12831 = vst [vmem:[%s221 + $0xb8] sm:$0xff] %v12695
      %12832 = vst [vmem:[%s221 + $0xc0] sm:$0xff] %v12696
      %12833 = vst [vmem:[%s221 + $0xc8] sm:$0xff] %v12697
      %12834 = vst [vmem:[%s221 + $0xd0] sm:$0xff] %v12698
      %12835 = vst [vmem:[%s221 + $0xd8] sm:$0xff] %v12699
      %12836 = vst [vmem:[%s221 + $0xe0] sm:$0xff] %v12700
      %12837 = vst [vmem:[%s221 + $0xe8] sm:$0xff] %v12701
      %12838 = vst [vmem:[%s221 + $0xf0] sm:$0xff] %v12702
      %12839 = vst [vmem:[%s221 + $0xf8] sm:$0xff] %v12703
      %12840 = vst [vmem:[%s221 + $0x100] sm:$0xff] %v12704
      %12841 = vst [vmem:[%s221 + $0x108] sm:$0xff] %v12705
      %12842 = vst [vmem:[%s221 + $0x110] sm:$0xff] %v12706
      %12843 = vst [vmem:[%s221 + $0x118] sm:$0xff] %v12707
      %12844 = vst [vmem:[%s221 + $0x120] sm:$0xff] %v12708
      %12845 = vst [vmem:[%s221 + $0x128] sm:$0xff] %v12709
      %12846 = vst [vmem:[%s221 + $0x130] sm:$0xff] %v12710
      %12847 = vst [vmem:[%s221 + $0x138] sm:$0xff] %v12711
      %12848 = vst [vmem:[%s221 + $0x140] sm:$0xff] %v12712
      %12849 = vst [vmem:[%s221 + $0x148] sm:$0xff] %v12713
      %12850 = vst [vmem:[%s221 + $0x150] sm:$0xff] %v12714
      %12851 = vst [vmem:[%s221 + $0x158] sm:$0xff] %v12715
      %12852 = vst [vmem:[%s221 + $0x160] sm:$0xff] %v12716
      %12853 = vst [vmem:[%s221 + $0x168] sm:$0xff] %v12717
      %12854 = vst [vmem:[%s221 + $0x170] sm:$0xff] %v12718
      %12855 = vst [vmem:[%s221 + $0x178] sm:$0xff] %v12719
      %12856 = vst [vmem:[%s221 + $0x180] sm:$0xff] %v12720
      %12857 = vst [vmem:[%s221 + $0x188] sm:$0xff] %v12721
      %12858 = vst [vmem:[%s221 + $0x190] sm:$0xff] %v12722
      %12859 = vst [vmem:[%s221 + $0x198] sm:$0xff] %v12723
      %12860 = vst [vmem:[%s221 + $0x1a0] sm:$0xff] %v12724
      %12861 = vst [vmem:[%s221 + $0x1a8] sm:$0xff] %v12725
      %12862 = vst [vmem:[%s221 + $0x1b0] sm:$0xff] %v12726
      %12863 = vst [vmem:[%s221 + $0x1b8] sm:$0xff] %v12727
      %12864 = vst [vmem:[%s221 + $0x1c0] sm:$0xff] %v12728
      %12865 = vst [vmem:[%s221 + $0x1c8] sm:$0xff] %v12729
      %12866 = vst [vmem:[%s221 + $0x1d0] sm:$0xff] %v12730
      %12867 = vst [vmem:[%s221 + $0x1d8] sm:$0xff] %v12731
      %12868 = vst [vmem:[%s221 + $0x1e0] sm:$0xff] %v12732
      %12869 = vst [vmem:[%s221 + $0x1e8] sm:$0xff] %v12733
      %12870 = vst [vmem:[%s221 + $0x1f0] sm:$0xff] %v12734
      %12871 = vst [vmem:[%s221 + $0x1f8] sm:$0xff] %v12735
      %12872 = vst [vmem:[%s221 + $0x200] sm:$0xff] %v12736
      %12873 = vst [vmem:[%s221 + $0x208] sm:$0xff] %v12737
      %12874 = vst [vmem:[%s221 + $0x210] sm:$0xff] %v12738
      %12875 = vst [vmem:[%s221 + $0x218] sm:$0xff] %v12739
      %12876 = vst [vmem:[%s221 + $0x220] sm:$0xff] %v12740
      %12877 = vst [vmem:[%s221 + $0x228] sm:$0xff] %v12741
      %12878 = vst [vmem:[%s221 + $0x230] sm:$0xff] %v12742
      %12879 = vst [vmem:[%s221 + $0x238] sm:$0xff] %v12743
      %12880 = vst [vmem:[%s221 + $0x240] sm:$0xff] %v12744
      %12881 = vst [vmem:[%s221 + $0x248] sm:$0xff] %v12745
      %12882 = vst [vmem:[%s221 + $0x250] sm:$0xff] %v12746
      %12883 = vst [vmem:[%s221 + $0x258] sm:$0xff] %v12747
      %12884 = vst [vmem:[%s221 + $0x260] sm:$0xff] %v12748
      %12885 = vst [vmem:[%s221 + $0x268] sm:$0xff] %v12749
      %12886 = vst [vmem:[%s221 + $0x270] sm:$0xff] %v12750
      %12887 = vst [vmem:[%s221 + $0x278] sm:$0xff] %v12751
      %12888 = vst [vmem:[%s221 + $0x280] sm:$0xff] %v12752
      %12889 = vst [vmem:[%s221 + $0x288] sm:$0xff] %v12753
      %12890 = vst [vmem:[%s221 + $0x290] sm:$0xff] %v12754
      %12891 = vst [vmem:[%s221 + $0x298] sm:$0xff] %v12755
      %12892 = vst [vmem:[%s221 + $0x2a0] sm:$0xff] %v12756
      %12893 = vst [vmem:[%s221 + $0x2a8] sm:$0xff] %v12757
      %12894 = vst [vmem:[%s221 + $0x2b0] sm:$0xff] %v12758
      %12895 = vst [vmem:[%s221 + $0x2b8] sm:$0xff] %v12759
      %12896 = vst [vmem:[%s221 + $0x2c0] sm:$0xff] %v12760
      %12897 = vst [vmem:[%s221 + $0x2c8] sm:$0xff] %v12761
      %12898 = vst [vmem:[%s221 + $0x2d0] sm:$0xff] %v12762
      %12899 = vst [vmem:[%s221 + $0x2d8] sm:$0xff] %v12763
      %12900 = vst [vmem:[%s221 + $0x2e0] sm:$0xff] %v12764
      %12901 = vst [vmem:[%s221 + $0x2e8] sm:$0xff] %v12765
      %12902 = vst [vmem:[%s221 + $0x2f0] sm:$0xff] %v12766
      %12903 = vst [vmem:[%s221 + $0x2f8] sm:$0xff] %v12767
      %12904 = vst [vmem:[%s221 + $0x300] sm:$0xff] %v12768
      %12905 = vst [vmem:[%s221 + $0x308] sm:$0xff] %v12769
      %12906 = vst [vmem:[%s221 + $0x310] sm:$0xff] %v12770
      %12907 = vst [vmem:[%s221 + $0x318] sm:$0xff] %v12771
      %12908 = vst [vmem:[%s221 + $0x320] sm:$0xff] %v12772
      %12909 = vst [vmem:[%s221 + $0x328] sm:$0xff] %v12773
      %12910 = vst [vmem:[%s221 + $0x330] sm:$0xff] %v12774
      %12911 = vst [vmem:[%s221 + $0x338] sm:$0xff] %v12775
      %12912 = vst [vmem:[%s221 + $0x340] sm:$0xff] %v12776
      %12913 = vst [vmem:[%s221 + $0x348] sm:$0xff] %v12777
      %12914 = vst [vmem:[%s221 + $0x350] sm:$0xff] %v12778
      %12915 = vst [vmem:[%s221 + $0x358] sm:$0xff] %v12779
      %12916 = vst [vmem:[%s221 + $0x360] sm:$0xff] %v12780
      %12917 = vst [vmem:[%s221 + $0x368] sm:$0xff] %v12781
      %12918 = vst [vmem:[%s221 + $0x370] sm:$0xff] %v12782
      %12919 = vst [vmem:[%s221 + $0x378] sm:$0xff] %v12783
      %12920 = vst [vmem:[%s221 + $0x380] sm:$0xff] %v12784
      %12921 = vst [vmem:[%s221 + $0x388] sm:$0xff] %v12785
      %12922 = vst [vmem:[%s221 + $0x390] sm:$0xff] %v12786
      %12923 = vst [vmem:[%s221 + $0x398] sm:$0xff] %v12787
      %12924 = vst [vmem:[%s221 + $0x3a0] sm:$0xff] %v12788
      %12925 = vst [vmem:[%s221 + $0x3a8] sm:$0xff] %v12789
      %12926 = vst [vmem:[%s221 + $0x3b0] sm:$0xff] %v12790
      %12927 = vst [vmem:[%s221 + $0x3b8] sm:$0xff] %v12791
      %12928 = vst [vmem:[%s221 + $0x3c0] sm:$0xff] %v12792
      %12929 = vst [vmem:[%s221 + $0x3c8] sm:$0xff] %v12793
      %12930 = vst [vmem:[%s221 + $0x3d0] sm:$0xff] %v12794
      %12931 = vst [vmem:[%s221 + $0x3d8] sm:$0xff] %v12795
      %12932 = vst [vmem:[%s221 + $0x3e0] sm:$0xff] %v12796
      %12933 = vst [vmem:[%s221 + $0x3e8] sm:$0xff] %v12797
      %12934 = vst [vmem:[%s221 + $0x3f0] sm:$0xff] %v12798
      %12935 = vst [vmem:[%s221 + $0x3f8] sm:$0xff] %v12799
      %12936 = vst [vmem:[%s221 + $0x400] sm:$0xff] %v12800
      %12937 = vst [vmem:[%s221 + $0x408] sm:$0xff] %v12801
      %12938 = vst [vmem:[%s221 + $0x410] sm:$0xff] %v12802
      %12939 = vst [vmem:[%s221 + $0x418] sm:$0xff] %v12803
      %12940 = vst [vmem:[%s221 + $0x420] sm:$0xff] %v12804
      %12941 = vst [vmem:[%s221 + $0x428] sm:$0xff] %v12805
      %12942 = vst [vmem:[%s221 + $0x430] sm:$0xff] %v12806
      %12943 = vst [vmem:[%s221 + $0x438] sm:$0xff] %v12807
      %p12944 = scmp.lt.s32.totalorder %s18, 1
      %s12945 = scalar_select %p12944, %s18, 1
      %p12946 = scmp.lt.s32.totalorder %s19, 0
      %s12947 = scalar_select %p12946, %s19, 0
      %s12948 = smul.addr %s12945, 136
      %s12949 = sadd.s32 %s12947, %s12948
      %s12950 = smul.addr %s12949, 8
      %s12951 = scalar_lea.vmem %s3, %s12950
      // Predicated region
      $region33: #{upsample_conv_layer.1} parent=31 // pred_check
        %p12952 = pneg %p124
      $region34: #{upsample_conv_layer.1} parent=31 // pred_check_branch
        %12954 = sbr.rel (%p12952) target = $region36
      $region35: #{upsample_conv_layer.1} parent=31 // pred_region
        _
      $region36: #{upsample_conv_layer.1} parent=31 // pred_fallthru
        _
    $region32: #{upsample_conv_layer.1} parent=5 // pred_fallthru
      _
    %p12955 = scmp.le.s32.totalorder 2, %s9
    // Predicated region
    $region37: #{upsample_conv_layer.1} parent=5 // pred_check
      %p12956 = pneg %p12955
    $region38: #{upsample_conv_layer.1} parent=5 // pred_check_branch
      %12958 = sbr.rel (%p12956) target = $region40
    $region39: #{upsample_conv_layer.1} parent=5 // pred_region
      %s12959 = ssub.s32 %s9, 2
      // Predicated region
      $region41: #{upsample_conv_layer.1} parent=39 // pred_check
        %p12960 = pneg %p130
      $region42: #{upsample_conv_layer.1} parent=39 // pred_check_branch
        %12962 = sbr.rel (%p12960) target = $region44
      $region43: #{upsample_conv_layer.1} parent=39 // pred_region
        %p12963 = scmp.lt.s32.totalorder %s20, 1
        %s12964 = scalar_select %p12963, %s20, 1
        %p12965 = scmp.lt.s32.totalorder %s21, 0
        %s12966 = scalar_select %p12965, %s21, 0
        %s12967 = smul.addr %s12964, 136
        %s12968 = sadd.s32 %s12966, %s12967
        %s12969 = smul.addr %s12968, 8
        %s12970 = scalar_lea.vmem %s3, %s12969
      $region44: #{upsample_conv_layer.1} parent=39 // pred_fallthru
        _
    $region40: #{upsample_conv_layer.1} parent=5 // pred_fallthru
      _
  $region6: #{upsample_conv_layer.1} parent=0 // loop_footer
    %s13 = sadd.s32 1, %s9
  $region7: #{upsample_conv_layer.1} parent=0 // loop_footer_branch
    %8 = sbr.rel target = $region3
  $region8: #{upsample_conv_layer.1} parent=0 // loop_exit
    _

</llo_original>
